<compile_context>
chip_gen: v5e
topology: v5e:2x2
jax: 0.10.0
libtpu: 0.0.40
codegen_flags: <defaults>
</compile_context>

<pallas_src>
import functools

import jax
import jax.numpy as jnp
from jax.experimental import pallas as pl
from jax.experimental.pallas import tpu as pltpu


def _vae_kernel(
    x_ref, eps_ref,
    we1, be1, we2, be2, we3, be3, we4, be4,
    wd1, bd1, wd2, bd2, wd3, bd3, wd4, bd4,
    xhat_ref, enc_ref,
):
    """8 MXU matmuls (bf16 operands, f32 acc) + VPU/EUP elementwise, fused."""
    f32 = jnp.float32
    bf16 = jnp.bfloat16

    def linear(h_bf16, w_ref, b_ref):
        # bf16 MXU matmul, f32 accumulation, f32 bias add on the VPU.
        return jnp.dot(h_bf16, w_ref[...], preferred_element_type=f32) + b_ref[...]

    def relu_bf16(a_f32):
        # Cast straight back to bf16: halves the inter-layer VMEM temporary;
        # it is exactly the cast the next MXU op would perform anyway.
        return jnp.maximum(a_f32, 0.0).astype(bf16)

    # ---- encoder: D -> H -> H -> H -> 2Z ----
    h = relu_bf16(linear(x_ref[...].astype(bf16), we1, be1))
    h = relu_bf16(linear(h, we2, be2))
    h = relu_bf16(linear(h, we3, be3))
    enc = linear(h, we4, be4)            # (TN, 2Z) = [mu | logvar], f32
    enc_ref[...] = enc                   # single unmasked, lane-dense store

    # ---- reparametrize: z = mu + eps * exp(0.5 * logvar) ----
    # TODO(synk): eps could be generated in-kernel via pltpu.prng_seed +
    # pltpu.prng_random_bits (saves its input DMA); kept as an explicit input
    # here so the result is deterministic and testable against a reference.
    z_dim = eps_ref.shape[1]
    mu = enc[:, :z_dim]                  # static lane slices of a (TN, 128) tile
    logvar = enc[:, z_dim:]
    z = mu + eps_ref[...] * jnp.exp(0.5 * logvar)     # (TN, Z) f32

    # ---- decoder: Z -> H -> H -> H -> D, sigmoid output (stored bf16) ----
    h = relu_bf16(linear(z.astype(bf16), wd1, bd1))
    h = relu_bf16(linear(h, wd2, bd2))
    h = relu_bf16(linear(h, wd3, bd3))
    xhat_ref[...] = jax.nn.sigmoid(linear(h, wd4, bd4)).astype(xhat_ref.dtype)


def prepare_vae_params(params):
    """One-time parameter prep (hoisted out of the per-call hot path).

    Weights stay (in, out) and are cast to bf16 (MXU-native, halves weight
    DMA); biases become (1, out) f32 row tiles.  Call once, reuse the result.
    """
    flat = []
    for w, b in params:
        flat.append(jnp.asarray(w, jnp.bfloat16))
        flat.append(jnp.asarray(b, jnp.float32).reshape(1, -1))
    return tuple(flat)


def vae_forward(x, eps, flat_params, *, tile_n=256):
    """x: (N, D) f32, eps: (N, Z) f32, flat_params: prepare_vae_params output.

    Returns (x_hat bf16 (N, D), mu f32 (N, Z), logvar f32 (N, Z)).
    """
    n, d = x.shape
    z_dim = eps.shape[1]
    two_z = 2 * z_dim
    assert n % tile_n == 0, "batch must be a multiple of tile_n"

    def row_spec(cols):
        return pl.BlockSpec((tile_n, cols), lambda i: (i, 0))

    def resident_spec(arr):
        # Constant index_map -> the weight/bias tile never revolves; it stays
        # VMEM-resident across all grid steps.
        return pl.BlockSpec(arr.shape, lambda i: (0, 0))

    in_specs = [row_spec(d), row_spec(z_dim)]
    in_specs += [resident_spec(a) for a in flat_params]

    x_hat, enc = pl.pallas_call(
        _vae_kernel,
        out_shape=(
            jax.ShapeDtypeStruct((n, d), jnp.bfloat16),      # x_hat (bf16 writeback)
            jax.ShapeDtypeStruct((n, two_z), jnp.float32),   # [mu | logvar]
        ),
        grid=(n // tile_n,),
        in_specs=in_specs,
        out_specs=(row_spec(d), row_spec(two_z)),
        compiler_params=pltpu.CompilerParams(
            dimension_semantics=("parallel",)),   # shards grid steps across v7x TCs
    )(x, eps, *flat_params)

    # Lane-dense split outside the kernel (fuse into the KL loss if possible).
    return x_hat, enc[:, :z_dim], enc[:, z_dim:]


def init_vae_params(key, input_size, hidden_dim, latent_size):
    """Deterministic synthetic init; weights stored as (in, out)."""
    dims = [
        # encoder
        (input_size, hidden_dim),
        (hidden_dim, hidden_dim),
        (hidden_dim, hidden_dim),
        (hidden_dim, 2 * latent_size),
        # decoder
        (latent_size, hidden_dim),
        (hidden_dim, hidden_dim),
        (hidden_dim, hidden_dim),
        (hidden_dim, input_size),
    ]
    params = []
    for fan_in, fan_out in dims:
        key, kw, kb = jax.random.split(key, 3)
        bound = 1.0 / jnp.sqrt(fan_in)
        w = jax.random.uniform(kw, (fan_in, fan_out), jnp.float32, -bound, bound)
        b = jax.random.uniform(kb, (fan_out,), jnp.float32, -bound, bound)
        params.append((w, b))
    return params


def vae_reference_mixed(x, eps, params):
    """Pure-JAX reference with the same mixed precision as the kernel."""
    bf16, f32 = jnp.bfloat16, jnp.float32

    def linear(h, wb):
        w, b = wb
        return jnp.dot(h.astype(bf16), w.astype(bf16),
                       preferred_element_type=f32) + b

    h = jax.nn.relu(linear(x, params[0]))
    h = jax.nn.relu(linear(h, params[1]))
    h = jax.nn.relu(linear(h, params[2]))
    enc = linear(h, params[3])
    z_dim = enc.shape[1] // 2
    mu, logvar = enc[:, :z_dim], enc[:, z_dim:]
    z = mu + eps * jnp.exp(0.5 * logvar)
    h = jax.nn.relu(linear(z, params[4]))
    h = jax.nn.relu(linear(h, params[5]))
    h = jax.nn.relu(linear(h, params[6]))
    x_hat = jax.nn.sigmoid(linear(h, params[7]))
    return x_hat, mu, logvar


def vae_reference_f32(x, eps, params):
    """Full-f32 forward matching the original PyTorch module exactly."""
    def linear(h, wb):
        return h @ wb[0] + wb[1]

    h = jax.nn.relu(linear(x, params[0]))
    h = jax.nn.relu(linear(h, params[1]))
    h = jax.nn.relu(linear(h, params[2]))
    enc = linear(h, params[3])
    z_dim = enc.shape[1] // 2
    mu, logvar = enc[:, :z_dim], enc[:, z_dim:]
    z = mu + eps * jnp.exp(0.5 * logvar)
    h = jax.nn.relu(linear(z, params[4]))
    h = jax.nn.relu(linear(h, params[5]))
    h = jax.nn.relu(linear(h, params[6]))
    x_hat = jax.nn.sigmoid(linear(h, params[7]))
    return x_hat, mu, logvar


if __name__ == "__main__":
    # TPU-tile-friendly shapes; batch gridded into 2 steps of 256 rows (even
    # step count so both v7x TensorCores get work).
    N, INPUT_SIZE, HIDDEN_DIM, LATENT_SIZE = 512, 256, 256, 64
    TILE_N = 256

    key = jax.random.PRNGKey(0)
    key, kx, keps, kparams = jax.random.split(key, 4)

    x = jax.random.uniform(kx, (N, INPUT_SIZE), jnp.float32)      # "images" in [0,1)
    eps = jax.random.normal(keps, (N, LATENT_SIZE), jnp.float32)  # reparam noise
    params = init_vae_params(kparams, INPUT_SIZE, HIDDEN_DIM, LATENT_SIZE)

    # One-time parameter prep + one-time jit; reuse for every call.
    flat = prepare_vae_params(params)
    fwd = jax.jit(functools.partial(vae_forward, tile_n=TILE_N))

    x_hat, mu, logvar = jax.block_until_ready(fwd(x, eps, flat))

    assert x_hat.shape == (N, INPUT_SIZE) and x_hat.dtype == jnp.bfloat16
    assert mu.shape == (N, LATENT_SIZE) and logvar.shape == (N, LATENT_SIZE)

    # Tight check vs a reference using the same bf16-operand / f32-acc matmuls
    # (x_hat tolerance covers its final bf16 store rounding).
    x_hat_f32 = x_hat.astype(jnp.float32)
    x_hat_r, mu_r, logvar_r = vae_reference_mixed(x, eps, params)
    assert jnp.allclose(x_hat_f32, x_hat_r, atol=1e-2)
    assert jnp.allclose(mu, mu_r, atol=2e-3, rtol=2e-3)
    assert jnp.allclose(logvar, logvar_r, atol=2e-3, rtol=2e-3)

    # Loose sanity check vs the original all-f32 module semantics.
    x_hat_f, mu_f, logvar_f = vae_reference_f32(x, eps, params)
    assert jnp.allclose(x_hat_f32, x_hat_f, atol=6e-2)
    assert jnp.allclose(mu, mu_f, atol=6e-2)
    assert jnp.allclose(logvar, logvar_f, atol=6e-2)

    print("KERNEL_OK")
</pallas_src>

<mosaic_0001>
module attributes {stable_mosaic.version = 11 : i64} {
  func.func @_vae_kernel(%arg0: i32, %arg1: memref<256x256xf32, #tpu.memory_space<vmem>>, %arg2: memref<256x64xf32, #tpu.memory_space<vmem>>, %arg3: memref<256x256xbf16, #tpu.memory_space<vmem>>, %arg4: memref<1x256xf32, #tpu.memory_space<vmem>>, %arg5: memref<256x256xbf16, #tpu.memory_space<vmem>>, %arg6: memref<1x256xf32, #tpu.memory_space<vmem>>, %arg7: memref<256x256xbf16, #tpu.memory_space<vmem>>, %arg8: memref<1x256xf32, #tpu.memory_space<vmem>>, %arg9: memref<256x128xbf16, #tpu.memory_space<vmem>>, %arg10: memref<1x128xf32, #tpu.memory_space<vmem>>, %arg11: memref<64x256xbf16, #tpu.memory_space<vmem>>, %arg12: memref<1x256xf32, #tpu.memory_space<vmem>>, %arg13: memref<256x256xbf16, #tpu.memory_space<vmem>>, %arg14: memref<1x256xf32, #tpu.memory_space<vmem>>, %arg15: memref<256x256xbf16, #tpu.memory_space<vmem>>, %arg16: memref<1x256xf32, #tpu.memory_space<vmem>>, %arg17: memref<256x256xbf16, #tpu.memory_space<vmem>>, %arg18: memref<1x256xf32, #tpu.memory_space<vmem>>, %arg19: memref<256x256xbf16, #tpu.memory_space<vmem>>, %arg20: memref<256x128xf32, #tpu.memory_space<vmem>>) attributes {dimension_semantics = [#tpu.dimension_semantics<parallel>], iteration_bounds = array<i64: 2>, scalar_prefetch = 0 : i64, scratch_operands = 0 : i64, tpu.core_type = #tpu.core_type<tc>, window_params = [{transform_indices = @transform_0, window_bounds = array<i64: 256, 256>}, {transform_indices = @transform_1, window_bounds = array<i64: 256, 64>}, {pipeline_mode = #tpu.pipeline_mode<synchronous>, transform_indices = @transform_2, window_bounds = array<i64: 256, 256>}, {pipeline_mode = #tpu.pipeline_mode<synchronous>, transform_indices = @transform_3, window_bounds = array<i64: 1, 256>}, {pipeline_mode = #tpu.pipeline_mode<synchronous>, transform_indices = @transform_4, window_bounds = array<i64: 256, 256>}, {pipeline_mode = #tpu.pipeline_mode<synchronous>, transform_indices = @transform_5, window_bounds = array<i64: 1, 256>}, {pipeline_mode = #tpu.pipeline_mode<synchronous>, transform_indices = @transform_6, window_bounds = array<i64: 256, 256>}, {pipeline_mode = #tpu.pipeline_mode<synchronous>, transform_indices = @transform_7, window_bounds = array<i64: 1, 256>}, {pipeline_mode = #tpu.pipeline_mode<synchronous>, transform_indices = @transform_8, window_bounds = array<i64: 256, 128>}, {pipeline_mode = #tpu.pipeline_mode<synchronous>, transform_indices = @transform_9, window_bounds = array<i64: 1, 128>}, {pipeline_mode = #tpu.pipeline_mode<synchronous>, transform_indices = @transform_10, window_bounds = array<i64: 64, 256>}, {pipeline_mode = #tpu.pipeline_mode<synchronous>, transform_indices = @transform_11, window_bounds = array<i64: 1, 256>}, {pipeline_mode = #tpu.pipeline_mode<synchronous>, transform_indices = @transform_12, window_bounds = array<i64: 256, 256>}, {pipeline_mode = #tpu.pipeline_mode<synchronous>, transform_indices = @transform_13, window_bounds = array<i64: 1, 256>}, {pipeline_mode = #tpu.pipeline_mode<synchronous>, transform_indices = @transform_14, window_bounds = array<i64: 256, 256>}, {pipeline_mode = #tpu.pipeline_mode<synchronous>, transform_indices = @transform_15, window_bounds = array<i64: 1, 256>}, {pipeline_mode = #tpu.pipeline_mode<synchronous>, transform_indices = @transform_16, window_bounds = array<i64: 256, 256>}, {pipeline_mode = #tpu.pipeline_mode<synchronous>, transform_indices = @transform_17, window_bounds = array<i64: 1, 256>}, {transform_indices = @transform_18, window_bounds = array<i64: 256, 256>}, {transform_indices = @transform_19, window_bounds = array<i64: 256, 128>}]} {
    %c0 = arith.constant 0 : index
    %c0_0 = arith.constant 0 : index
    %0 = vector.load %arg1[%c0, %c0_0] : memref<256x256xf32, #tpu.memory_space<vmem>>, vector<256x256xf32>
    %1 = arith.truncf %0 : vector<256x256xf32> to vector<256x256xbf16>
    %c0_1 = arith.constant 0 : index
    %c0_2 = arith.constant 0 : index
    %2 = vector.load %arg3[%c0_1, %c0_2] : memref<256x256xbf16, #tpu.memory_space<vmem>>, vector<256x256xbf16>
    %cst = arith.constant dense<0.000000e+00> : vector<256x256xf32>
    %3 = tpu.matmul %1, %2, %cst {dimension_numbers = #tpu.dot_dimension_numbers<[1], [0], [0], [1], [0, 0, 1, 1], [], []>} : vector<256x256xbf16>, vector<256x256xbf16>, vector<256x256xf32> -> vector<256x256xf32>
    %c0_3 = arith.constant 0 : index
    %c0_4 = arith.constant 0 : index
    %4 = vector.load %arg4[%c0_3, %c0_4] : memref<1x256xf32, #tpu.memory_space<vmem>>, vector<1x256xf32>
    %5 = vector.broadcast %4 : vector<1x256xf32> to vector<256x256xf32>
    %6 = arith.addf %3, %5 : vector<256x256xf32>
    %cst_5 = arith.constant 0.000000e+00 : f32
    %7 = vector.broadcast %cst_5 : f32 to vector<256x256xf32>
    %8 = arith.maximumf %6, %7 : vector<256x256xf32>
    %9 = arith.truncf %8 : vector<256x256xf32> to vector<256x256xbf16>
    %c0_6 = arith.constant 0 : index
    %c0_7 = arith.constant 0 : index
    %10 = vector.load %arg5[%c0_6, %c0_7] : memref<256x256xbf16, #tpu.memory_space<vmem>>, vector<256x256xbf16>
    %cst_8 = arith.constant dense<0.000000e+00> : vector<256x256xf32>
    %11 = tpu.matmul %9, %10, %cst_8 {dimension_numbers = #tpu.dot_dimension_numbers<[1], [0], [0], [1], [0, 0, 1, 1], [], []>} : vector<256x256xbf16>, vector<256x256xbf16>, vector<256x256xf32> -> vector<256x256xf32>
    %c0_9 = arith.constant 0 : index
    %c0_10 = arith.constant 0 : index
    %12 = vector.load %arg6[%c0_9, %c0_10] : memref<1x256xf32, #tpu.memory_space<vmem>>, vector<1x256xf32>
    %13 = vector.broadcast %12 : vector<1x256xf32> to vector<256x256xf32>
    %14 = arith.addf %11, %13 : vector<256x256xf32>
    %cst_11 = arith.constant 0.000000e+00 : f32
    %15 = vector.broadcast %cst_11 : f32 to vector<256x256xf32>
    %16 = arith.maximumf %14, %15 : vector<256x256xf32>
    %17 = arith.truncf %16 : vector<256x256xf32> to vector<256x256xbf16>
    %c0_12 = arith.constant 0 : index
    %c0_13 = arith.constant 0 : index
    %18 = vector.load %arg7[%c0_12, %c0_13] : memref<256x256xbf16, #tpu.memory_space<vmem>>, vector<256x256xbf16>
    %cst_14 = arith.constant dense<0.000000e+00> : vector<256x256xf32>
    %19 = tpu.matmul %17, %18, %cst_14 {dimension_numbers = #tpu.dot_dimension_numbers<[1], [0], [0], [1], [0, 0, 1, 1], [], []>} : vector<256x256xbf16>, vector<256x256xbf16>, vector<256x256xf32> -> vector<256x256xf32>
    %c0_15 = arith.constant 0 : index
    %c0_16 = arith.constant 0 : index
    %20 = vector.load %arg8[%c0_15, %c0_16] : memref<1x256xf32, #tpu.memory_space<vmem>>, vector<1x256xf32>
    %21 = vector.broadcast %20 : vector<1x256xf32> to vector<256x256xf32>
    %22 = arith.addf %19, %21 : vector<256x256xf32>
    %cst_17 = arith.constant 0.000000e+00 : f32
    %23 = vector.broadcast %cst_17 : f32 to vector<256x256xf32>
    %24 = arith.maximumf %22, %23 : vector<256x256xf32>
    %25 = arith.truncf %24 : vector<256x256xf32> to vector<256x256xbf16>
    %c0_18 = arith.constant 0 : index
    %c0_19 = arith.constant 0 : index
    %26 = vector.load %arg9[%c0_18, %c0_19] : memref<256x128xbf16, #tpu.memory_space<vmem>>, vector<256x128xbf16>
    %cst_20 = arith.constant dense<0.000000e+00> : vector<256x128xf32>
    %27 = tpu.matmul %25, %26, %cst_20 {dimension_numbers = #tpu.dot_dimension_numbers<[1], [0], [0], [1], [0, 0, 1, 1], [], []>} : vector<256x256xbf16>, vector<256x128xbf16>, vector<256x128xf32> -> vector<256x128xf32>
    %c0_21 = arith.constant 0 : index
    %c0_22 = arith.constant 0 : index
    %28 = vector.load %arg10[%c0_21, %c0_22] : memref<1x128xf32, #tpu.memory_space<vmem>>, vector<1x128xf32>
    %29 = vector.broadcast %28 : vector<1x128xf32> to vector<256x128xf32>
    %30 = arith.addf %27, %29 : vector<256x128xf32>
    %c0_23 = arith.constant 0 : index
    %c0_24 = arith.constant 0 : index
    %31 = vector.load %arg20[%c0_23, %c0_24] : memref<256x128xf32, #tpu.memory_space<vmem>>, vector<256x128xf32>
    tpu.vector_store %arg20[%c0_23, %c0_24], %30 {strides = array<i32>} : memref<256x128xf32, #tpu.memory_space<vmem>>, vector<256x128xf32>,
    %32 = vector.extract_strided_slice %30 {offsets = [0, 0], sizes = [256, 64], strides = [1, 1]} : vector<256x128xf32> to vector<256x64xf32>
    %33 = vector.extract_strided_slice %30 {offsets = [0, 64], sizes = [256, 64], strides = [1, 1]} : vector<256x128xf32> to vector<256x64xf32>
    %c0_25 = arith.constant 0 : index
    %c0_26 = arith.constant 0 : index
    %34 = vector.load %arg2[%c0_25, %c0_26] : memref<256x64xf32, #tpu.memory_space<vmem>>, vector<256x64xf32>
    %cst_27 = arith.constant 5.000000e-01 : f32
    %35 = vector.broadcast %cst_27 : f32 to vector<256x64xf32>
    %36 = arith.mulf %35, %33 : vector<256x64xf32>
    %37 = math.exp %36 : vector<256x64xf32>
    %38 = arith.mulf %34, %37 : vector<256x64xf32>
    %39 = arith.addf %32, %38 : vector<256x64xf32>
    %40 = arith.truncf %39 : vector<256x64xf32> to vector<256x64xbf16>
    %c0_28 = arith.constant 0 : index
    %c0_29 = arith.constant 0 : index
    %41 = vector.load %arg11[%c0_28, %c0_29] : memref<64x256xbf16, #tpu.memory_space<vmem>>, vector<64x256xbf16>
    %cst_30 = arith.constant dense<0.000000e+00> : vector<256x256xf32>
    %42 = tpu.matmul %40, %41, %cst_30 {dimension_numbers = #tpu.dot_dimension_numbers<[1], [0], [0], [1], [0, 0, 1, 1], [], []>} : vector<256x64xbf16>, vector<64x256xbf16>, vector<256x256xf32> -> vector<256x256xf32>
    %c0_31 = arith.constant 0 : index
    %c0_32 = arith.constant 0 : index
    %43 = vector.load %arg12[%c0_31, %c0_32] : memref<1x256xf32, #tpu.memory_space<vmem>>, vector<1x256xf32>
    %44 = vector.broadcast %43 : vector<1x256xf32> to vector<256x256xf32>
    %45 = arith.addf %42, %44 : vector<256x256xf32>
    %cst_33 = arith.constant 0.000000e+00 : f32
    %46 = vector.broadcast %cst_33 : f32 to vector<256x256xf32>
    %47 = arith.maximumf %45, %46 : vector<256x256xf32>
    %48 = arith.truncf %47 : vector<256x256xf32> to vector<256x256xbf16>
    %c0_34 = arith.constant 0 : index
    %c0_35 = arith.constant 0 : index
    %49 = vector.load %arg13[%c0_34, %c0_35] : memref<256x256xbf16, #tpu.memory_space<vmem>>, vector<256x256xbf16>
    %cst_36 = arith.constant dense<0.000000e+00> : vector<256x256xf32>
    %50 = tpu.matmul %48, %49, %cst_36 {dimension_numbers = #tpu.dot_dimension_numbers<[1], [0], [0], [1], [0, 0, 1, 1], [], []>} : vector<256x256xbf16>, vector<256x256xbf16>, vector<256x256xf32> -> vector<256x256xf32>
    %c0_37 = arith.constant 0 : index
    %c0_38 = arith.constant 0 : index
    %51 = vector.load %arg14[%c0_37, %c0_38] : memref<1x256xf32, #tpu.memory_space<vmem>>, vector<1x256xf32>
    %52 = vector.broadcast %51 : vector<1x256xf32> to vector<256x256xf32>
    %53 = arith.addf %50, %52 : vector<256x256xf32>
    %cst_39 = arith.constant 0.000000e+00 : f32
    %54 = vector.broadcast %cst_39 : f32 to vector<256x256xf32>
    %55 = arith.maximumf %53, %54 : vector<256x256xf32>
    %56 = arith.truncf %55 : vector<256x256xf32> to vector<256x256xbf16>
    %c0_40 = arith.constant 0 : index
    %c0_41 = arith.constant 0 : index
    %57 = vector.load %arg15[%c0_40, %c0_41] : memref<256x256xbf16, #tpu.memory_space<vmem>>, vector<256x256xbf16>
    %cst_42 = arith.constant dense<0.000000e+00> : vector<256x256xf32>
    %58 = tpu.matmul %56, %57, %cst_42 {dimension_numbers = #tpu.dot_dimension_numbers<[1], [0], [0], [1], [0, 0, 1, 1], [], []>} : vector<256x256xbf16>, vector<256x256xbf16>, vector<256x256xf32> -> vector<256x256xf32>
    %c0_43 = arith.constant 0 : index
    %c0_44 = arith.constant 0 : index
    %59 = vector.load %arg16[%c0_43, %c0_44] : memref<1x256xf32, #tpu.memory_space<vmem>>, vector<1x256xf32>
    %60 = vector.broadcast %59 : vector<1x256xf32> to vector<256x256xf32>
    %61 = arith.addf %58, %60 : vector<256x256xf32>
    %cst_45 = arith.constant 0.000000e+00 : f32
    %62 = vector.broadcast %cst_45 : f32 to vector<256x256xf32>
    %63 = arith.maximumf %61, %62 : vector<256x256xf32>
    %64 = arith.truncf %63 : vector<256x256xf32> to vector<256x256xbf16>
    %c0_46 = arith.constant 0 : index
    %c0_47 = arith.constant 0 : index
    %65 = vector.load %arg17[%c0_46, %c0_47] : memref<256x256xbf16, #tpu.memory_space<vmem>>, vector<256x256xbf16>
    %cst_48 = arith.constant dense<0.000000e+00> : vector<256x256xf32>
    %66 = tpu.matmul %64, %65, %cst_48 {dimension_numbers = #tpu.dot_dimension_numbers<[1], [0], [0], [1], [0, 0, 1, 1], [], []>} : vector<256x256xbf16>, vector<256x256xbf16>, vector<256x256xf32> -> vector<256x256xf32>
    %c0_49 = arith.constant 0 : index
    %c0_50 = arith.constant 0 : index
    %67 = vector.load %arg18[%c0_49, %c0_50] : memref<1x256xf32, #tpu.memory_space<vmem>>, vector<1x256xf32>
    %68 = vector.broadcast %67 : vector<1x256xf32> to vector<256x256xf32>
    %69 = arith.addf %66, %68 : vector<256x256xf32>
    %70 = arith.negf %69 : vector<256x256xf32>
    %71 = math.exp %70 : vector<256x256xf32>
    %cst_51 = arith.constant 1.000000e+00 : f32
    %72 = vector.broadcast %cst_51 : f32 to vector<256x256xf32>
    %73 = arith.addf %72, %71 : vector<256x256xf32>
    %74 = arith.divf %72, %73 : vector<256x256xf32>
    %75 = arith.truncf %74 : vector<256x256xf32> to vector<256x256xbf16>
    %c0_52 = arith.constant 0 : index
    %c0_53 = arith.constant 0 : index
    %76 = vector.load %arg19[%c0_52, %c0_53] : memref<256x256xbf16, #tpu.memory_space<vmem>>, vector<256x256xbf16>
    tpu.vector_store %arg19[%c0_52, %c0_53], %75 {strides = array<i32>} : memref<256x256xbf16, #tpu.memory_space<vmem>>, vector<256x256xbf16>,
    return
  }
  func.func @transform_0(%arg0: i32) -> (i32, i32) {
    %c0_i32 = arith.constant 0 : i32
    %c0_i32_0 = arith.constant 0 : i32
    return %arg0, %c0_i32 : i32, i32
  }
  func.func @transform_1(%arg0: i32) -> (i32, i32) {
    %c0_i32 = arith.constant 0 : i32
    %c0_i32_0 = arith.constant 0 : i32
    return %arg0, %c0_i32 : i32, i32
  }
  func.func @transform_2(%arg0: i32) -> (i32, i32) {
    %c0_i32 = arith.constant 0 : i32
    %c0_i32_0 = arith.constant 0 : i32
    %c0_i32_1 = arith.constant 0 : i32
    return %c0_i32, %c0_i32_0 : i32, i32
  }
  func.func @transform_3(%arg0: i32) -> (i32, i32) {
    %c0_i32 = arith.constant 0 : i32
    %c0_i32_0 = arith.constant 0 : i32
    %c0_i32_1 = arith.constant 0 : i32
    return %c0_i32, %c0_i32_0 : i32, i32
  }
  func.func @transform_4(%arg0: i32) -> (i32, i32) {
    %c0_i32 = arith.constant 0 : i32
    %c0_i32_0 = arith.constant 0 : i32
    %c0_i32_1 = arith.constant 0 : i32
    return %c0_i32, %c0_i32_0 : i32, i32
  }
  func.func @transform_5(%arg0: i32) -> (i32, i32) {
    %c0_i32 = arith.constant 0 : i32
    %c0_i32_0 = arith.constant 0 : i32
    %c0_i32_1 = arith.constant 0 : i32
    return %c0_i32, %c0_i32_0 : i32, i32
  }
  func.func @transform_6(%arg0: i32) -> (i32, i32) {
    %c0_i32 = arith.constant 0 : i32
    %c0_i32_0 = arith.constant 0 : i32
    %c0_i32_1 = arith.constant 0 : i32
    return %c0_i32, %c0_i32_0 : i32, i32
  }
  func.func @transform_7(%arg0: i32) -> (i32, i32) {
    %c0_i32 = arith.constant 0 : i32
    %c0_i32_0 = arith.constant 0 : i32
    %c0_i32_1 = arith.constant 0 : i32
    return %c0_i32, %c0_i32_0 : i32, i32
  }
  func.func @transform_8(%arg0: i32) -> (i32, i32) {
    %c0_i32 = arith.constant 0 : i32
    %c0_i32_0 = arith.constant 0 : i32
    %c0_i32_1 = arith.constant 0 : i32
    return %c0_i32, %c0_i32_0 : i32, i32
  }
  func.func @transform_9(%arg0: i32) -> (i32, i32) {
    %c0_i32 = arith.constant 0 : i32
    %c0_i32_0 = arith.constant 0 : i32
    %c0_i32_1 = arith.constant 0 : i32
    return %c0_i32, %c0_i32_0 : i32, i32
  }
  func.func @transform_10(%arg0: i32) -> (i32, i32) {
    %c0_i32 = arith.constant 0 : i32
    %c0_i32_0 = arith.constant 0 : i32
    %c0_i32_1 = arith.constant 0 : i32
    return %c0_i32, %c0_i32_0 : i32, i32
  }
  func.func @transform_11(%arg0: i32) -> (i32, i32) {
    %c0_i32 = arith.constant 0 : i32
    %c0_i32_0 = arith.constant 0 : i32
    %c0_i32_1 = arith.constant 0 : i32
    return %c0_i32, %c0_i32_0 : i32, i32
  }
  func.func @transform_12(%arg0: i32) -> (i32, i32) {
    %c0_i32 = arith.constant 0 : i32
    %c0_i32_0 = arith.constant 0 : i32
    %c0_i32_1 = arith.constant 0 : i32
    return %c0_i32, %c0_i32_0 : i32, i32
  }
  func.func @transform_13(%arg0: i32) -> (i32, i32) {
    %c0_i32 = arith.constant 0 : i32
    %c0_i32_0 = arith.constant 0 : i32
    %c0_i32_1 = arith.constant 0 : i32
    return %c0_i32, %c0_i32_0 : i32, i32
  }
  func.func @transform_14(%arg0: i32) -> (i32, i32) {
    %c0_i32 = arith.constant 0 : i32
    %c0_i32_0 = arith.constant 0 : i32
    %c0_i32_1 = arith.constant 0 : i32
    return %c0_i32, %c0_i32_0 : i32, i32
  }
  func.func @transform_15(%arg0: i32) -> (i32, i32) {
    %c0_i32 = arith.constant 0 : i32
    %c0_i32_0 = arith.constant 0 : i32
    %c0_i32_1 = arith.constant 0 : i32
    return %c0_i32, %c0_i32_0 : i32, i32
  }
  func.func @transform_16(%arg0: i32) -> (i32, i32) {
    %c0_i32 = arith.constant 0 : i32
    %c0_i32_0 = arith.constant 0 : i32
    %c0_i32_1 = arith.constant 0 : i32
    return %c0_i32, %c0_i32_0 : i32, i32
  }
  func.func @transform_17(%arg0: i32) -> (i32, i32) {
    %c0_i32 = arith.constant 0 : i32
    %c0_i32_0 = arith.constant 0 : i32
    %c0_i32_1 = arith.constant 0 : i32
    return %c0_i32, %c0_i32_0 : i32, i32
  }
  func.func @transform_18(%arg0: i32) -> (i32, i32) {
    %c0_i32 = arith.constant 0 : i32
    %c0_i32_0 = arith.constant 0 : i32
    return %arg0, %c0_i32 : i32, i32
  }
  func.func @transform_19(%arg0: i32) -> (i32, i32) {
    %c0_i32 = arith.constant 0 : i32
    %c0_i32_0 = arith.constant 0 : i32
    return %arg0, %c0_i32 : i32, i32
  }
}

</mosaic_0001>

<llo_original>
// kernel: vae_forward.1
$region0: #{vae_forward.1}
  #allocation0 [shape = 'u32[]', space=smem, size = 0x4, offset = 0x4, fixed_abs, tag = 'smem constant byte address 0x4 - core index']
  #allocation1 [shape = 'u32[72,128]{1,0:T(1,128)}', space=vmem, size = 0x9000, scoped, tag = 'internal scratch']
  %s0 = inlined_call_operand.hbm [shape: f32[512,256], index: 0, kind: input, shape index: {}]
  %s1 = inlined_call_operand.vmem [shape: f32[512,64], index: 1, kind: input, shape index: {}]
  %s2 = inlined_call_operand.vmem [shape: bf16[256,256], index: 2, kind: input, shape index: {}]
  %s3 = inlined_call_operand.hbm [shape: f32[1,256], index: 3, kind: input, shape index: {}]
  %s4 = inlined_call_operand.vmem [shape: bf16[256,256], index: 4, kind: input, shape index: {}]
  %s5 = inlined_call_operand.hbm [shape: f32[1,256], index: 5, kind: input, shape index: {}]
  %s6 = inlined_call_operand.vmem [shape: bf16[256,256], index: 6, kind: input, shape index: {}]
  %s7 = inlined_call_operand.hbm [shape: f32[1,256], index: 7, kind: input, shape index: {}]
  %s8 = inlined_call_operand.hbm [shape: bf16[256,128], index: 8, kind: input, shape index: {}]
  %s9 = inlined_call_operand.hbm [shape: f32[1,128], index: 9, kind: input, shape index: {}]
  %s10 = inlined_call_operand.hbm [shape: bf16[64,256], index: 10, kind: input, shape index: {}]
  %s11 = inlined_call_operand.vmem [shape: f32[1,256], index: 11, kind: input, shape index: {}]
  %s12 = inlined_call_operand.hbm [shape: bf16[256,256], index: 12, kind: input, shape index: {}]
  %s13 = inlined_call_operand.vmem [shape: f32[1,256], index: 13, kind: input, shape index: {}]
  %s14 = inlined_call_operand.hbm [shape: bf16[256,256], index: 14, kind: input, shape index: {}]
  %s15 = inlined_call_operand.vmem [shape: f32[1,256], index: 15, kind: input, shape index: {}]
  %s16 = inlined_call_operand.hbm [shape: bf16[256,256], index: 16, kind: input, shape index: {}]
  %s17 = inlined_call_operand.vmem [shape: f32[1,256], index: 17, kind: input, shape index: {}]
  %s18 = inlined_call_operand.hbm [shape: bf16[512,256], index: 18, kind: output, shape index: {0}]
  %s19 = inlined_call_operand.vmem [shape: f32[512,128], index: 19, kind: output, shape index: {1}]
  %20 = xla_tuple %s18, %s19
  %s21 = sld [smem:[#allocation0]]
  $region153: #{vae_forward.1} parent=0
    _
  %s23 = ssub.s32 1, %s21
  %s24 = scalar_select 0, %s23, %s21
  $region1: #{vae_forward.1} parent=0
    #allocation2 [shape = 'u8[524288]{0}', space=vmem, size = 0x80000, scoped, tag = 'input window, operand 0']
    #allocation3 [shape = 's32[2]{0}', space=sflag, size = 0x8, scoped, tag = 'scoped memory for vae_forward.1']
    #allocation4 [shape = 's32[2]{0}', space=sflag, size = 0x8, scoped, tag = 'scoped memory for vae_forward.1']
    #allocation5 [shape = 'u8[1024]{0}', space=vmem, size = 0x400, scoped, tag = 'input window, operand 3, single buffered']
    #allocation6 [shape = 's32[1]{0}', space=sflag, size = 0x4, scoped, tag = 'scoped memory for vae_forward.1']
    #allocation7 [shape = 'u8[1024]{0}', space=vmem, size = 0x400, scoped, tag = 'input window, operand 5, single buffered']
    #allocation8 [shape = 'u8[1024]{0}', space=vmem, size = 0x400, scoped, tag = 'input window, operand 7, single buffered']
    #allocation9 [shape = 's32[1]{0}', space=sflag, size = 0x4, scoped, tag = 'scoped memory for vae_forward.1']
    #allocation10 [shape = 'u8[65536]{0}', space=vmem, size = 0x10000, scoped, tag = 'input window, operand 8, single buffered']
    #allocation11 [shape = 'u8[512]{0}', space=vmem, size = 0x400, scoped, tag = 'input window, operand 9, single buffered']
    #allocation12 [shape = 's32[1]{0}', space=sflag, size = 0x4, scoped, tag = 'scoped memory for vae_forward.1']
    #allocation13 [shape = 'u8[32768]{0}', space=vmem, size = 0x8000, scoped, tag = 'input window, operand 10, single buffered']
    #allocation14 [shape = 'u8[131072]{0}', space=vmem, size = 0x20000, scoped, tag = 'input window, operand 12, single buffered']
    #allocation15 [shape = 's32[1]{0}', space=sflag, size = 0x4, scoped, tag = 'scoped memory for vae_forward.1']
    #allocation16 [shape = 'u8[131072]{0}', space=vmem, size = 0x20000, scoped, tag = 'input window, operand 14, single buffered']
    #allocation17 [shape = 'u8[131072]{0}', space=vmem, size = 0x20000, scoped, tag = 'input window, operand 16, single buffered']
    #allocation18 [shape = 's32[1]{0}', space=sflag, size = 0x4, scoped, tag = 'scoped memory for vae_forward.1']
    #allocation19 [shape = 'u8[262144]{0}', space=vmem, size = 0x40000, scoped, tag = 'output window, operand 0']
    %25 = vsyncpa [#allocation3], 0
    %s26 = scalar_lea.sflag [#allocation3], 1
    %27 = vsyncpa %s26, 0
    %28 = vsyncpa [#allocation6], 0
    %29 = vsyncpa [#allocation9], 0
    %30 = vsyncpa [#allocation12], 0
    %31 = vsyncpa [#allocation15], 0
    %32 = vsyncpa [#allocation18], 0
    %33 = vsyncpa [#allocation4], 0
    %s34 = scalar_lea.sflag [#allocation4], 1
    %35 = vsyncpa %s34, 0
    loop: start=0, step=1, limit=4
    $region2: #{vae_forward.1} parent=1 // loop_pre_header
      _
    $region3: #{vae_forward.1} parent=1 // loop_header
      %s37 = sphi 0, %s41
      %p38 = scmp.ge.s32.totalorder %s37, 4
      %s47 = sphi 0, %s49
      %s50 = sphi 0, %s47
      %s51 = sphi 0, %s50
      %s67 = sphi 0, %s51
      %s73 = sphi 0, %s75
      %s76 = sphi 0, %s73
      %s77 = sphi 0, %s76
      %s93 = sphi 0, %s77
      %s97 = sphi 0, %s97
      %s99 = sphi 0, %s97
      %s100 = sphi 0, %s99
      %s114 = sphi 0, %s100
      %s118 = sphi 0, %s118
      %s120 = sphi 0, %s118
      %s121 = sphi 0, %s120
      %s135 = sphi 0, %s121
      %s139 = sphi 0, %s139
      %s141 = sphi 0, %s139
      %s142 = sphi 0, %s141
      %s156 = sphi 0, %s142
      %s160 = sphi 0, %s160
      %s162 = sphi 0, %s160
      %s163 = sphi 0, %s162
      %s177 = sphi 0, %s163
      %s181 = sphi 0, %s181
      %s183 = sphi 0, %s181
      %s184 = sphi 0, %s183
      %s198 = sphi 0, %s184
      %s202 = sphi 0, %s202
      %s204 = sphi 0, %s202
      %s205 = sphi 0, %s204
      %s219 = sphi 0, %s205
      %s223 = sphi 0, %s223
      %s225 = sphi 0, %s223
      %s226 = sphi 0, %s225
      %s240 = sphi 0, %s226
      %s244 = sphi 0, %s244
      %s246 = sphi 0, %s244
      %s247 = sphi 0, %s246
      %s261 = sphi 0, %s247
      %s265 = sphi 0, %s265
      %s267 = sphi 0, %s265
      %s268 = sphi 0, %s267
      %s282 = sphi 0, %s268
      %s286 = sphi 0, %s286
      %s288 = sphi 0, %s286
      %s289 = sphi 0, %s288
      %s303 = sphi 0, %s289
      %s307 = sphi 0, %s307
      %s309 = sphi 0, %s307
      %s310 = sphi 0, %s309
      %s324 = sphi 0, %s310
      %s328 = sphi 0, %s328
      %s330 = sphi 0, %s328
      %s331 = sphi 0, %s330
      %s345 = sphi 0, %s331
      %s349 = sphi 0, %s349
      %s351 = sphi 0, %s349
      %s352 = sphi 0, %s351
      %s366 = sphi 0, %s352
      %s370 = sphi 0, %s370
      %s372 = sphi 0, %s370
      %s373 = sphi 0, %s372
      %s387 = sphi 0, %s373
      %s391 = sphi 0, %s391
      %s393 = sphi 0, %s391
      %s394 = sphi 0, %s393
      %s408 = sphi 0, %s394
      %s412 = sphi 0, %s412
      %s414 = sphi 0, %s412
      %s415 = sphi 0, %s414
      %s429 = sphi 0, %s415
      %s435 = sphi 0, %s437
      %s438 = sphi 0, %s435
      %s439 = sphi 0, %s438
      %s455 = sphi 0, %s439
      %s461 = sphi 0, %s463
      %s464 = sphi 0, %s461
      %s465 = sphi 0, %s464
      %s481 = sphi 0, %s465
    $region4: #{vae_forward.1} parent=1 // loop_header_branch
      %40 = sbr.rel (%p38) target = $region8
    $region5: #{vae_forward.1} parent=1 // loop_body
      %s42 = ssub.s32 %s37, 1
      %s43 = ssub.s32 %s37, 2
      %s44 = sadd.s32 %s37, 1
      %s45 = ssub.s32 %s37, %s44
      %p46 = scmp.eq.s32.totalorder %s45, 0
      %s48 = sadd.s32 %s47, 1
      %s49 = scalar_select %p46, %s47, %s48
      %p52 = pneg %p46
      %p53 = scmp.eq.s32.totalorder %s37, 1
      %p54 = por %p52, %p53
      %p55 = scmp.ne.s32.totalorder %s47, %s50
      %p56 = scmp.eq.s32.totalorder %s37, 0
      %p57 = por %p55, %p56
      %p58 = scmp.ne.s32.totalorder %s47, %s50
      %p59 = scmp.eq.s32.totalorder %s42, 1
      %p60 = por %p58, %p59
      %p61 = scmp.ne.s32.totalorder %s50, %s51
      %p62 = scmp.eq.s32.totalorder %s42, 0
      %p63 = por %p61, %p62
      %p64 = scmp.ne.s32.totalorder %s50, %s51
      %p65 = scmp.eq.s32.totalorder %s43, 1
      %p66 = por %p64, %p65
      %p68 = scmp.ne.s32.totalorder %s51, %s67
      %p69 = scmp.eq.s32.totalorder %s43, 0
      %p70 = por %p68, %p69
      %s71 = ssub.s32 %s37, %s44
      %p72 = scmp.eq.s32.totalorder %s71, 0
      %s74 = sadd.s32 %s73, 1
      %s75 = scalar_select %p72, %s73, %s74
      %p78 = pneg %p72
      %p79 = scmp.eq.s32.totalorder %s37, 1
      %p80 = por %p78, %p79
      %p81 = scmp.ne.s32.totalorder %s73, %s76
      %p82 = scmp.eq.s32.totalorder %s37, 0
      %p83 = por %p81, %p82
      %p84 = scmp.ne.s32.totalorder %s73, %s76
      %p85 = scmp.eq.s32.totalorder %s42, 1
      %p86 = por %p84, %p85
      %p87 = scmp.ne.s32.totalorder %s76, %s77
      %p88 = scmp.eq.s32.totalorder %s42, 0
      %p89 = por %p87, %p88
      %p90 = scmp.ne.s32.totalorder %s76, %s77
      %p91 = scmp.eq.s32.totalorder %s43, 1
      %p92 = por %p90, %p91
      %p94 = scmp.ne.s32.totalorder %s77, %s93
      %p95 = scmp.eq.s32.totalorder %s43, 0
      %p96 = por %p94, %p95
      %s98 = sadd.s32 %s97, 1
      %p101 = scmp.eq.s32.totalorder %s37, 1
      %p102 = scmp.ne.s32.totalorder %s97, %s99
      %p103 = scmp.eq.s32.totalorder %s37, 0
      %p104 = por %p102, %p103
      %p105 = scmp.ne.s32.totalorder %s97, %s99
      %p106 = scmp.eq.s32.totalorder %s42, 1
      %p107 = por %p105, %p106
      %p108 = scmp.ne.s32.totalorder %s99, %s100
      %p109 = scmp.eq.s32.totalorder %s42, 0
      %p110 = por %p108, %p109
      %p111 = scmp.ne.s32.totalorder %s99, %s100
      %p112 = scmp.eq.s32.totalorder %s43, 1
      %p113 = por %p111, %p112
      %p115 = scmp.ne.s32.totalorder %s100, %s114
      %p116 = scmp.eq.s32.totalorder %s43, 0
      %p117 = por %p115, %p116
      %s119 = sadd.s32 %s118, 1
      %p122 = scmp.eq.s32.totalorder %s37, 1
      %p123 = scmp.ne.s32.totalorder %s118, %s120
      %p124 = scmp.eq.s32.totalorder %s37, 0
      %p125 = por %p123, %p124
      %p126 = scmp.ne.s32.totalorder %s118, %s120
      %p127 = scmp.eq.s32.totalorder %s42, 1
      %p128 = por %p126, %p127
      %p129 = scmp.ne.s32.totalorder %s120, %s121
      %p130 = scmp.eq.s32.totalorder %s42, 0
      %p131 = por %p129, %p130
      %p132 = scmp.ne.s32.totalorder %s120, %s121
      %p133 = scmp.eq.s32.totalorder %s43, 1
      %p134 = por %p132, %p133
      %p136 = scmp.ne.s32.totalorder %s121, %s135
      %p137 = scmp.eq.s32.totalorder %s43, 0
      %p138 = por %p136, %p137
      %s140 = sadd.s32 %s139, 1
      %p143 = scmp.eq.s32.totalorder %s37, 1
      %p144 = scmp.ne.s32.totalorder %s139, %s141
      %p145 = scmp.eq.s32.totalorder %s37, 0
      %p146 = por %p144, %p145
      %p147 = scmp.ne.s32.totalorder %s139, %s141
      %p148 = scmp.eq.s32.totalorder %s42, 1
      %p149 = por %p147, %p148
      %p150 = scmp.ne.s32.totalorder %s141, %s142
      %p151 = scmp.eq.s32.totalorder %s42, 0
      %p152 = por %p150, %p151
      %p153 = scmp.ne.s32.totalorder %s141, %s142
      %p154 = scmp.eq.s32.totalorder %s43, 1
      %p155 = por %p153, %p154
      %p157 = scmp.ne.s32.totalorder %s142, %s156
      %p158 = scmp.eq.s32.totalorder %s43, 0
      %p159 = por %p157, %p158
      %s161 = sadd.s32 %s160, 1
      %p164 = scmp.eq.s32.totalorder %s37, 1
      %p165 = scmp.ne.s32.totalorder %s160, %s162
      %p166 = scmp.eq.s32.totalorder %s37, 0
      %p167 = por %p165, %p166
      %p168 = scmp.ne.s32.totalorder %s160, %s162
      %p169 = scmp.eq.s32.totalorder %s42, 1
      %p170 = por %p168, %p169
      %p171 = scmp.ne.s32.totalorder %s162, %s163
      %p172 = scmp.eq.s32.totalorder %s42, 0
      %p173 = por %p171, %p172
      %p174 = scmp.ne.s32.totalorder %s162, %s163
      %p175 = scmp.eq.s32.totalorder %s43, 1
      %p176 = por %p174, %p175
      %p178 = scmp.ne.s32.totalorder %s163, %s177
      %p179 = scmp.eq.s32.totalorder %s43, 0
      %p180 = por %p178, %p179
      %s182 = sadd.s32 %s181, 1
      %p185 = scmp.eq.s32.totalorder %s37, 1
      %p186 = scmp.ne.s32.totalorder %s181, %s183
      %p187 = scmp.eq.s32.totalorder %s37, 0
      %p188 = por %p186, %p187
      %p189 = scmp.ne.s32.totalorder %s181, %s183
      %p190 = scmp.eq.s32.totalorder %s42, 1
      %p191 = por %p189, %p190
      %p192 = scmp.ne.s32.totalorder %s183, %s184
      %p193 = scmp.eq.s32.totalorder %s42, 0
      %p194 = por %p192, %p193
      %p195 = scmp.ne.s32.totalorder %s183, %s184
      %p196 = scmp.eq.s32.totalorder %s43, 1
      %p197 = por %p195, %p196
      %p199 = scmp.ne.s32.totalorder %s184, %s198
      %p200 = scmp.eq.s32.totalorder %s43, 0
      %p201 = por %p199, %p200
      %s203 = sadd.s32 %s202, 1
      %p206 = scmp.eq.s32.totalorder %s37, 1
      %p207 = scmp.ne.s32.totalorder %s202, %s204
      %p208 = scmp.eq.s32.totalorder %s37, 0
      %p209 = por %p207, %p208
      %p210 = scmp.ne.s32.totalorder %s202, %s204
      %p211 = scmp.eq.s32.totalorder %s42, 1
      %p212 = por %p210, %p211
      %p213 = scmp.ne.s32.totalorder %s204, %s205
      %p214 = scmp.eq.s32.totalorder %s42, 0
      %p215 = por %p213, %p214
      %p216 = scmp.ne.s32.totalorder %s204, %s205
      %p217 = scmp.eq.s32.totalorder %s43, 1
      %p218 = por %p216, %p217
      %p220 = scmp.ne.s32.totalorder %s205, %s219
      %p221 = scmp.eq.s32.totalorder %s43, 0
      %p222 = por %p220, %p221
      %s224 = sadd.s32 %s223, 1
      %p227 = scmp.eq.s32.totalorder %s37, 1
      %p228 = scmp.ne.s32.totalorder %s223, %s225
      %p229 = scmp.eq.s32.totalorder %s37, 0
      %p230 = por %p228, %p229
      %p231 = scmp.ne.s32.totalorder %s223, %s225
      %p232 = scmp.eq.s32.totalorder %s42, 1
      %p233 = por %p231, %p232
      %p234 = scmp.ne.s32.totalorder %s225, %s226
      %p235 = scmp.eq.s32.totalorder %s42, 0
      %p236 = por %p234, %p235
      %p237 = scmp.ne.s32.totalorder %s225, %s226
      %p238 = scmp.eq.s32.totalorder %s43, 1
      %p239 = por %p237, %p238
      %p241 = scmp.ne.s32.totalorder %s226, %s240
      %p242 = scmp.eq.s32.totalorder %s43, 0
      %p243 = por %p241, %p242
      %s245 = sadd.s32 %s244, 1
      %p248 = scmp.eq.s32.totalorder %s37, 1
      %p249 = scmp.ne.s32.totalorder %s244, %s246
      %p250 = scmp.eq.s32.totalorder %s37, 0
      %p251 = por %p249, %p250
      %p252 = scmp.ne.s32.totalorder %s244, %s246
      %p253 = scmp.eq.s32.totalorder %s42, 1
      %p254 = por %p252, %p253
      %p255 = scmp.ne.s32.totalorder %s246, %s247
      %p256 = scmp.eq.s32.totalorder %s42, 0
      %p257 = por %p255, %p256
      %p258 = scmp.ne.s32.totalorder %s246, %s247
      %p259 = scmp.eq.s32.totalorder %s43, 1
      %p260 = por %p258, %p259
      %p262 = scmp.ne.s32.totalorder %s247, %s261
      %p263 = scmp.eq.s32.totalorder %s43, 0
      %p264 = por %p262, %p263
      %s266 = sadd.s32 %s265, 1
      %p269 = scmp.eq.s32.totalorder %s37, 1
      %p270 = scmp.ne.s32.totalorder %s265, %s267
      %p271 = scmp.eq.s32.totalorder %s37, 0
      %p272 = por %p270, %p271
      %p273 = scmp.ne.s32.totalorder %s265, %s267
      %p274 = scmp.eq.s32.totalorder %s42, 1
      %p275 = por %p273, %p274
      %p276 = scmp.ne.s32.totalorder %s267, %s268
      %p277 = scmp.eq.s32.totalorder %s42, 0
      %p278 = por %p276, %p277
      %p279 = scmp.ne.s32.totalorder %s267, %s268
      %p280 = scmp.eq.s32.totalorder %s43, 1
      %p281 = por %p279, %p280
      %p283 = scmp.ne.s32.totalorder %s268, %s282
      %p284 = scmp.eq.s32.totalorder %s43, 0
      %p285 = por %p283, %p284
      %s287 = sadd.s32 %s286, 1
      %p290 = scmp.eq.s32.totalorder %s37, 1
      %p291 = scmp.ne.s32.totalorder %s286, %s288
      %p292 = scmp.eq.s32.totalorder %s37, 0
      %p293 = por %p291, %p292
      %p294 = scmp.ne.s32.totalorder %s286, %s288
      %p295 = scmp.eq.s32.totalorder %s42, 1
      %p296 = por %p294, %p295
      %p297 = scmp.ne.s32.totalorder %s288, %s289
      %p298 = scmp.eq.s32.totalorder %s42, 0
      %p299 = por %p297, %p298
      %p300 = scmp.ne.s32.totalorder %s288, %s289
      %p301 = scmp.eq.s32.totalorder %s43, 1
      %p302 = por %p300, %p301
      %p304 = scmp.ne.s32.totalorder %s289, %s303
      %p305 = scmp.eq.s32.totalorder %s43, 0
      %p306 = por %p304, %p305
      %s308 = sadd.s32 %s307, 1
      %p311 = scmp.eq.s32.totalorder %s37, 1
      %p312 = scmp.ne.s32.totalorder %s307, %s309
      %p313 = scmp.eq.s32.totalorder %s37, 0
      %p314 = por %p312, %p313
      %p315 = scmp.ne.s32.totalorder %s307, %s309
      %p316 = scmp.eq.s32.totalorder %s42, 1
      %p317 = por %p315, %p316
      %p318 = scmp.ne.s32.totalorder %s309, %s310
      %p319 = scmp.eq.s32.totalorder %s42, 0
      %p320 = por %p318, %p319
      %p321 = scmp.ne.s32.totalorder %s309, %s310
      %p322 = scmp.eq.s32.totalorder %s43, 1
      %p323 = por %p321, %p322
      %p325 = scmp.ne.s32.totalorder %s310, %s324
      %p326 = scmp.eq.s32.totalorder %s43, 0
      %p327 = por %p325, %p326
      %s329 = sadd.s32 %s328, 1
      %p332 = scmp.eq.s32.totalorder %s37, 1
      %p333 = scmp.ne.s32.totalorder %s328, %s330
      %p334 = scmp.eq.s32.totalorder %s37, 0
      %p335 = por %p333, %p334
      %p336 = scmp.ne.s32.totalorder %s328, %s330
      %p337 = scmp.eq.s32.totalorder %s42, 1
      %p338 = por %p336, %p337
      %p339 = scmp.ne.s32.totalorder %s330, %s331
      %p340 = scmp.eq.s32.totalorder %s42, 0
      %p341 = por %p339, %p340
      %p342 = scmp.ne.s32.totalorder %s330, %s331
      %p343 = scmp.eq.s32.totalorder %s43, 1
      %p344 = por %p342, %p343
      %p346 = scmp.ne.s32.totalorder %s331, %s345
      %p347 = scmp.eq.s32.totalorder %s43, 0
      %p348 = por %p346, %p347
      %s350 = sadd.s32 %s349, 1
      %p353 = scmp.eq.s32.totalorder %s37, 1
      %p354 = scmp.ne.s32.totalorder %s349, %s351
      %p355 = scmp.eq.s32.totalorder %s37, 0
      %p356 = por %p354, %p355
      %p357 = scmp.ne.s32.totalorder %s349, %s351
      %p358 = scmp.eq.s32.totalorder %s42, 1
      %p359 = por %p357, %p358
      %p360 = scmp.ne.s32.totalorder %s351, %s352
      %p361 = scmp.eq.s32.totalorder %s42, 0
      %p362 = por %p360, %p361
      %p363 = scmp.ne.s32.totalorder %s351, %s352
      %p364 = scmp.eq.s32.totalorder %s43, 1
      %p365 = por %p363, %p364
      %p367 = scmp.ne.s32.totalorder %s352, %s366
      %p368 = scmp.eq.s32.totalorder %s43, 0
      %p369 = por %p367, %p368
      %s371 = sadd.s32 %s370, 1
      %p374 = scmp.eq.s32.totalorder %s37, 1
      %p375 = scmp.ne.s32.totalorder %s370, %s372
      %p376 = scmp.eq.s32.totalorder %s37, 0
      %p377 = por %p375, %p376
      %p378 = scmp.ne.s32.totalorder %s370, %s372
      %p379 = scmp.eq.s32.totalorder %s42, 1
      %p380 = por %p378, %p379
      %p381 = scmp.ne.s32.totalorder %s372, %s373
      %p382 = scmp.eq.s32.totalorder %s42, 0
      %p383 = por %p381, %p382
      %p384 = scmp.ne.s32.totalorder %s372, %s373
      %p385 = scmp.eq.s32.totalorder %s43, 1
      %p386 = por %p384, %p385
      %p388 = scmp.ne.s32.totalorder %s373, %s387
      %p389 = scmp.eq.s32.totalorder %s43, 0
      %p390 = por %p388, %p389
      %s392 = sadd.s32 %s391, 1
      %p395 = scmp.eq.s32.totalorder %s37, 1
      %p396 = scmp.ne.s32.totalorder %s391, %s393
      %p397 = scmp.eq.s32.totalorder %s37, 0
      %p398 = por %p396, %p397
      %p399 = scmp.ne.s32.totalorder %s391, %s393
      %p400 = scmp.eq.s32.totalorder %s42, 1
      %p401 = por %p399, %p400
      %p402 = scmp.ne.s32.totalorder %s393, %s394
      %p403 = scmp.eq.s32.totalorder %s42, 0
      %p404 = por %p402, %p403
      %p405 = scmp.ne.s32.totalorder %s393, %s394
      %p406 = scmp.eq.s32.totalorder %s43, 1
      %p407 = por %p405, %p406
      %p409 = scmp.ne.s32.totalorder %s394, %s408
      %p410 = scmp.eq.s32.totalorder %s43, 0
      %p411 = por %p409, %p410
      %s413 = sadd.s32 %s412, 1
      %p416 = scmp.eq.s32.totalorder %s37, 1
      %p417 = scmp.ne.s32.totalorder %s412, %s414
      %p418 = scmp.eq.s32.totalorder %s37, 0
      %p419 = por %p417, %p418
      %p420 = scmp.ne.s32.totalorder %s412, %s414
      %p421 = scmp.eq.s32.totalorder %s42, 1
      %p422 = por %p420, %p421
      %p423 = scmp.ne.s32.totalorder %s414, %s415
      %p424 = scmp.eq.s32.totalorder %s42, 0
      %p425 = por %p423, %p424
      %p426 = scmp.ne.s32.totalorder %s414, %s415
      %p427 = scmp.eq.s32.totalorder %s43, 1
      %p428 = por %p426, %p427
      %p430 = scmp.ne.s32.totalorder %s415, %s429
      %p431 = scmp.eq.s32.totalorder %s43, 0
      %p432 = por %p430, %p431
      %s433 = ssub.s32 %s37, %s44
      %p434 = scmp.eq.s32.totalorder %s433, 0
      %s436 = sadd.s32 %s435, 1
      %s437 = scalar_select %p434, %s435, %s436
      %p440 = pneg %p434
      %p441 = scmp.eq.s32.totalorder %s37, 1
      %p442 = por %p440, %p441
      %p443 = scmp.ne.s32.totalorder %s435, %s438
      %p444 = scmp.eq.s32.totalorder %s37, 0
      %p445 = por %p443, %p444
      %p446 = scmp.ne.s32.totalorder %s435, %s438
      %p447 = scmp.eq.s32.totalorder %s42, 1
      %p448 = por %p446, %p447
      %p449 = scmp.ne.s32.totalorder %s438, %s439
      %p450 = scmp.eq.s32.totalorder %s42, 0
      %p451 = por %p449, %p450
      %p452 = scmp.ne.s32.totalorder %s438, %s439
      %p453 = scmp.eq.s32.totalorder %s43, 1
      %p454 = por %p452, %p453
      %p456 = scmp.ne.s32.totalorder %s439, %s455
      %p457 = scmp.eq.s32.totalorder %s43, 0
      %p458 = por %p456, %p457
      %s459 = ssub.s32 %s37, %s44
      %p460 = scmp.eq.s32.totalorder %s459, 0
      %s462 = sadd.s32 %s461, 1
      %s463 = scalar_select %p460, %s461, %s462
      %p466 = pneg %p460
      %p467 = scmp.eq.s32.totalorder %s37, 1
      %p468 = por %p466, %p467
      %p469 = scmp.ne.s32.totalorder %s461, %s464
      %p470 = scmp.eq.s32.totalorder %s37, 0
      %p471 = por %p469, %p470
      %p472 = scmp.ne.s32.totalorder %s461, %s464
      %p473 = scmp.eq.s32.totalorder %s42, 1
      %p474 = por %p472, %p473
      %p475 = scmp.ne.s32.totalorder %s464, %s465
      %p476 = scmp.eq.s32.totalorder %s42, 0
      %p477 = por %p475, %p476
      %p478 = scmp.ne.s32.totalorder %s464, %s465
      %p479 = scmp.eq.s32.totalorder %s43, 1
      %p480 = por %p478, %p479
      %p482 = scmp.ne.s32.totalorder %s465, %s481
      %p483 = scmp.eq.s32.totalorder %s43, 0
      %p484 = por %p482, %p483
      %p485 = scmp.le.s32.totalorder 1, %s37
      %p486 = scmp.lt.s32.totalorder %s37, 3
      %p487 = pnand %p485, %p486
      %p488 = pneg %p487
      // Predicated region
      $region9: #{vae_forward.1} parent=5 // pred_check
        _
      $region10: #{vae_forward.1} parent=5 // pred_check_branch
        %490 = sbr.rel (%p487) target = $region12
      $region11: #{vae_forward.1} parent=5 // pred_region
        %s491 = ssub.s32 %s37, 1
        // Predicated region
        $region13: #{vae_forward.1} parent=11 // pred_check
          %p492 = pneg %p110
        $region14: #{vae_forward.1} parent=11 // pred_check_branch
          %494 = sbr.rel (%p492) target = $region16
        $region15: #{vae_forward.1} parent=11 // pred_region
          _
        $region16: #{vae_forward.1} parent=11 // pred_fallthru
          _
        // Predicated region
        $region17: #{vae_forward.1} parent=11 // pred_check
          %p495 = pneg %p131
        $region18: #{vae_forward.1} parent=11 // pred_check_branch
          %497 = sbr.rel (%p495) target = $region20
        $region19: #{vae_forward.1} parent=11 // pred_region
          %499 = vsyncadd [#allocation6], 0
          %s501 = sshll.u32 %s3, 4
          %s502 = int_to_ptr.hbm [resolvable:$true] %s501
          %s503 = sshll.u32 [#allocation5], 4
          %s504 = int_to_ptr.vmem [resolvable:$true] %s503
          %506 = dma.hbm_to_vmem [thread:$0]  %s502, 32, %s504, [#allocation6]
        $region20: #{vae_forward.1} parent=11 // pred_fallthru
          _
        // Predicated region
        $region21: #{vae_forward.1} parent=11 // pred_check
          %p507 = pneg %p152
        $region22: #{vae_forward.1} parent=11 // pred_check_branch
          %509 = sbr.rel (%p507) target = $region24
        $region23: #{vae_forward.1} parent=11 // pred_region
          _
        $region24: #{vae_forward.1} parent=11 // pred_fallthru
          _
        // Predicated region
        $region25: #{vae_forward.1} parent=11 // pred_check
          %p510 = pneg %p173
        $region26: #{vae_forward.1} parent=11 // pred_check_branch
          %512 = sbr.rel (%p510) target = $region28
        $region27: #{vae_forward.1} parent=11 // pred_region
          %514 = vsyncadd [#allocation6], 0
          %s516 = sshll.u32 %s5, 4
          %s517 = int_to_ptr.hbm [resolvable:$true] %s516
          %s518 = sshll.u32 [#allocation7], 4
          %s519 = int_to_ptr.vmem [resolvable:$true] %s518
          %521 = dma.hbm_to_vmem [thread:$0]  %s517, 32, %s519, [#allocation6]
        $region28: #{vae_forward.1} parent=11 // pred_fallthru
          _
        // Predicated region
        $region29: #{vae_forward.1} parent=11 // pred_check
          %p522 = pneg %p194
        $region30: #{vae_forward.1} parent=11 // pred_check_branch
          %524 = sbr.rel (%p522) target = $region32
        $region31: #{vae_forward.1} parent=11 // pred_region
          _
        $region32: #{vae_forward.1} parent=11 // pred_fallthru
          _
        // Predicated region
        $region33: #{vae_forward.1} parent=11 // pred_check
          %p525 = pneg %p215
        $region34: #{vae_forward.1} parent=11 // pred_check_branch
          %527 = sbr.rel (%p525) target = $region36
        $region35: #{vae_forward.1} parent=11 // pred_region
          %529 = vsyncadd [#allocation9], 0
          %s531 = sshll.u32 %s7, 4
          %s532 = int_to_ptr.hbm [resolvable:$true] %s531
          %s533 = sshll.u32 [#allocation8], 4
          %s534 = int_to_ptr.vmem [resolvable:$true] %s533
          %536 = dma.hbm_to_vmem [thread:$0]  %s532, 32, %s534, [#allocation9]
        $region36: #{vae_forward.1} parent=11 // pred_fallthru
          _
        // Predicated region
        $region37: #{vae_forward.1} parent=11 // pred_check
          %p537 = pneg %p236
        $region38: #{vae_forward.1} parent=11 // pred_check_branch
          %539 = sbr.rel (%p537) target = $region40
        $region39: #{vae_forward.1} parent=11 // pred_region
          %541 = vsyncadd [#allocation9], 0
          %s542 = sshll.u32 %s8, 4
          %s543 = int_to_ptr.hbm [resolvable:$true] %s542
          %s544 = sshll.u32 [#allocation10], 4
          %s545 = int_to_ptr.vmem [resolvable:$true] %s544
          %550 = dma.hbm_to_vmem [thread:$0]  %s543, 2048, %s545, [#allocation9], 64, 64, 4
        $region40: #{vae_forward.1} parent=11 // pred_fallthru
          _
        // Predicated region
        $region41: #{vae_forward.1} parent=11 // pred_check
          %p551 = pneg %p257
        $region42: #{vae_forward.1} parent=11 // pred_check_branch
          %553 = sbr.rel (%p551) target = $region44
        $region43: #{vae_forward.1} parent=11 // pred_region
          %555 = vsyncadd [#allocation12], 0
          %s557 = sshll.u32 %s9, 4
          %s558 = int_to_ptr.hbm [resolvable:$true] %s557
          %s559 = sshll.u32 [#allocation11], 4
          %s560 = int_to_ptr.vmem [resolvable:$true] %s559
          %562 = dma.hbm_to_vmem [thread:$0]  %s558, 16, %s560, [#allocation12]
        $region44: #{vae_forward.1} parent=11 // pred_fallthru
          _
        // Predicated region
        $region45: #{vae_forward.1} parent=11 // pred_check
          %p563 = pneg %p278
        $region46: #{vae_forward.1} parent=11 // pred_check_branch
          %565 = sbr.rel (%p563) target = $region48
        $region47: #{vae_forward.1} parent=11 // pred_region
          %567 = vsyncadd [#allocation12], 0
          %s568 = sshll.u32 %s10, 4
          %s569 = int_to_ptr.hbm [resolvable:$true] %s568
          %s570 = sshll.u32 [#allocation13], 4
          %s571 = int_to_ptr.vmem [resolvable:$true] %s570
          %576 = dma.hbm_to_vmem [thread:$0]  %s569, 1024, %s571, [#allocation12], 128, 128, 8
        $region48: #{vae_forward.1} parent=11 // pred_fallthru
          _
        // Predicated region
        $region49: #{vae_forward.1} parent=11 // pred_check
          %p577 = pneg %p299
        $region50: #{vae_forward.1} parent=11 // pred_check_branch
          %579 = sbr.rel (%p577) target = $region52
        $region51: #{vae_forward.1} parent=11 // pred_region
          _
        $region52: #{vae_forward.1} parent=11 // pred_fallthru
          _
        // Predicated region
        $region53: #{vae_forward.1} parent=11 // pred_check
          %p580 = pneg %p320
        $region54: #{vae_forward.1} parent=11 // pred_check_branch
          %582 = sbr.rel (%p580) target = $region56
        $region55: #{vae_forward.1} parent=11 // pred_region
          %584 = vsyncadd [#allocation15], 0
          %s585 = sshll.u32 %s12, 4
          %s586 = int_to_ptr.hbm [resolvable:$true] %s585
          %s587 = sshll.u32 [#allocation14], 4
          %s588 = int_to_ptr.vmem [resolvable:$true] %s587
          %593 = dma.hbm_to_vmem [thread:$0]  %s586, 4096, %s588, [#allocation15], 128, 128, 8
        $region56: #{vae_forward.1} parent=11 // pred_fallthru
          _
        // Predicated region
        $region57: #{vae_forward.1} parent=11 // pred_check
          %p594 = pneg %p341
        $region58: #{vae_forward.1} parent=11 // pred_check_branch
          %596 = sbr.rel (%p594) target = $region60
        $region59: #{vae_forward.1} parent=11 // pred_region
          _
        $region60: #{vae_forward.1} parent=11 // pred_fallthru
          _
        // Predicated region
        $region61: #{vae_forward.1} parent=11 // pred_check
          %p597 = pneg %p362
        $region62: #{vae_forward.1} parent=11 // pred_check_branch
          %599 = sbr.rel (%p597) target = $region64
        $region63: #{vae_forward.1} parent=11 // pred_region
          %601 = vsyncadd [#allocation15], 0
          %s602 = sshll.u32 %s14, 4
          %s603 = int_to_ptr.hbm [resolvable:$true] %s602
          %s604 = sshll.u32 [#allocation16], 4
          %s605 = int_to_ptr.vmem [resolvable:$true] %s604
          %610 = dma.hbm_to_vmem [thread:$0]  %s603, 4096, %s605, [#allocation15], 128, 128, 8
        $region64: #{vae_forward.1} parent=11 // pred_fallthru
          _
        // Predicated region
        $region65: #{vae_forward.1} parent=11 // pred_check
          %p611 = pneg %p383
        $region66: #{vae_forward.1} parent=11 // pred_check_branch
          %613 = sbr.rel (%p611) target = $region68
        $region67: #{vae_forward.1} parent=11 // pred_region
          _
        $region68: #{vae_forward.1} parent=11 // pred_fallthru
          _
        // Predicated region
        $region69: #{vae_forward.1} parent=11 // pred_check
          %p614 = pneg %p404
        $region70: #{vae_forward.1} parent=11 // pred_check_branch
          %616 = sbr.rel (%p614) target = $region72
        $region71: #{vae_forward.1} parent=11 // pred_region
          %618 = vsyncadd [#allocation18], 0
          %s619 = sshll.u32 %s16, 4
          %s620 = int_to_ptr.hbm [resolvable:$true] %s619
          %s621 = sshll.u32 [#allocation17], 4
          %s622 = int_to_ptr.vmem [resolvable:$true] %s621
          %627 = dma.hbm_to_vmem [thread:$0]  %s620, 4096, %s622, [#allocation18], 128, 128, 8
        $region72: #{vae_forward.1} parent=11 // pred_fallthru
          _
        // Predicated region
        $region73: #{vae_forward.1} parent=11 // pred_check
          %p628 = pneg %p425
        $region74: #{vae_forward.1} parent=11 // pred_check_branch
          %630 = sbr.rel (%p628) target = $region76
        $region75: #{vae_forward.1} parent=11 // pred_region
          _
        $region76: #{vae_forward.1} parent=11 // pred_fallthru
          _
      $region12: #{vae_forward.1} parent=5 // pred_fallthru
        _
      %p631 = scmp.lt.s32.totalorder %s37, 2
      // Predicated region
      $region77: #{vae_forward.1} parent=5 // pred_check
        %p632 = pneg %p631
      $region78: #{vae_forward.1} parent=5 // pred_check_branch
        %634 = sbr.rel (%p632) target = $region80
      $region79: #{vae_forward.1} parent=5 // pred_region
        // Predicated region
        $region81: #{vae_forward.1} parent=79 // pred_check
          %p635 = pneg %p57
        $region82: #{vae_forward.1} parent=79 // pred_check_branch
          %637 = sbr.rel (%p635) target = $region84
        $region83: #{vae_forward.1} parent=79 // pred_region
          %s638 = sand.u32 %s47, 1
          %s639 = scalar_lea.sflag [#allocation3], %s638
          %s640 = sand.u32 %s47, 1
          %s641 = smul.addr %s640, 512
          %s642 = scalar_lea.vmem [#allocation2], %s641
          %s643 = smul.u32 32, %s37
          %645 = vsyncadd %s639, 0
          %s646 = smul.addr %s643, 2
          %s647 = smul.addr %s646, 8
          %s648 = scalar_lea.hbm %s0, %s647
          %s649 = sshll.u32 %s648, 4
          %s650 = int_to_ptr.hbm [resolvable:$true] %s649
          %s651 = sshll.u32 %s642, 4
          %s652 = int_to_ptr.vmem [resolvable:$true] %s651
          %657 = dma.hbm_to_vmem [thread:$0]  %s650, 8192, %s652, %s639, 256, 256, 16
        $region84: #{vae_forward.1} parent=79 // pred_fallthru
          _
        // Predicated region
        $region85: #{vae_forward.1} parent=79 // pred_check
          %p658 = pneg %p83
        $region86: #{vae_forward.1} parent=79 // pred_check_branch
          %660 = sbr.rel (%p658) target = $region88
        $region87: #{vae_forward.1} parent=79 // pred_region
          %s661 = smul.u32 32, %s37
          %p662 = scmp.lt.s32.totalorder %s661, 63
          %s663 = scalar_select %p662, %s661, 63
          %s664 = smul.addr %s663, 8
          %s665 = scalar_lea.vmem %s1, %s664
          %s666 = smul.u32 32, %s37
        $region88: #{vae_forward.1} parent=79 // pred_fallthru
          _
      $region80: #{vae_forward.1} parent=5 // pred_fallthru
        _
      %p667 = scmp.le.s32.totalorder 1, %s37
      %p668 = scmp.lt.s32.totalorder %s37, 3
      %p669 = pnand %p667, %p668
      %p670 = pneg %p669
      // Predicated region
      $region89: #{vae_forward.1} parent=5 // pred_check
        _
      $region90: #{vae_forward.1} parent=5 // pred_check_branch
        %672 = sbr.rel (%p669) target = $region92
      $region91: #{vae_forward.1} parent=5 // pred_region
        %s673 = ssub.s32 %s37, 1
        %s674 = sand.u32 %s50, 1
        %s675 = scalar_lea.sflag [#allocation3], %s674
        %s676 = sand.u32 %s50, 1
        %s677 = smul.addr %s676, 512
        %s678 = scalar_lea.vmem [#allocation2], %s677
        // Predicated region
        $region93: #{vae_forward.1} parent=91 // pred_check
          %p679 = pneg %p63
        $region94: #{vae_forward.1} parent=91 // pred_check_branch
          %681 = sbr.rel (%p679) target = $region96
        $region95: #{vae_forward.1} parent=91 // pred_region
          %683 = dma.done %s675, 8192
        $region96: #{vae_forward.1} parent=91 // pred_fallthru
          _
        // Predicated region
        $region97: #{vae_forward.1} parent=91 // pred_check
          %p684 = pneg %p131
        $region98: #{vae_forward.1} parent=91 // pred_check_branch
          %686 = sbr.rel (%p684) target = $region100
        $region99: #{vae_forward.1} parent=91 // pred_region
          %688 = dma.done [#allocation6], 32
        $region100: #{vae_forward.1} parent=91 // pred_fallthru
          _
        // Predicated region
        $region101: #{vae_forward.1} parent=91 // pred_check
          %p689 = pneg %p173
        $region102: #{vae_forward.1} parent=91 // pred_check_branch
          %691 = sbr.rel (%p689) target = $region104
        $region103: #{vae_forward.1} parent=91 // pred_region
          %693 = dma.done [#allocation6], 32
        $region104: #{vae_forward.1} parent=91 // pred_fallthru
          _
        // Predicated region
        $region105: #{vae_forward.1} parent=91 // pred_check
          %p694 = pneg %p215
        $region106: #{vae_forward.1} parent=91 // pred_check_branch
          %696 = sbr.rel (%p694) target = $region108
        $region107: #{vae_forward.1} parent=91 // pred_region
          %698 = dma.done [#allocation9], 32
        $region108: #{vae_forward.1} parent=91 // pred_fallthru
          _
        // Predicated region
        $region109: #{vae_forward.1} parent=91 // pred_check
          %p699 = pneg %p236
        $region110: #{vae_forward.1} parent=91 // pred_check_branch
          %701 = sbr.rel (%p699) target = $region112
        $region111: #{vae_forward.1} parent=91 // pred_region
          %703 = dma.done [#allocation9], 2048
        $region112: #{vae_forward.1} parent=91 // pred_fallthru
          _
        // Predicated region
        $region113: #{vae_forward.1} parent=91 // pred_check
          %p704 = pneg %p257
        $region114: #{vae_forward.1} parent=91 // pred_check_branch
          %706 = sbr.rel (%p704) target = $region116
        $region115: #{vae_forward.1} parent=91 // pred_region
          %708 = dma.done [#allocation12], 16
        $region116: #{vae_forward.1} parent=91 // pred_fallthru
          _
        // Predicated region
        $region117: #{vae_forward.1} parent=91 // pred_check
          %p709 = pneg %p278
        $region118: #{vae_forward.1} parent=91 // pred_check_branch
          %711 = sbr.rel (%p709) target = $region120
        $region119: #{vae_forward.1} parent=91 // pred_region
          %713 = dma.done [#allocation12], 1024
        $region120: #{vae_forward.1} parent=91 // pred_fallthru
          _
        // Predicated region
        $region121: #{vae_forward.1} parent=91 // pred_check
          %p714 = pneg %p320
        $region122: #{vae_forward.1} parent=91 // pred_check_branch
          %716 = sbr.rel (%p714) target = $region124
        $region123: #{vae_forward.1} parent=91 // pred_region
          %718 = dma.done [#allocation15], 4096
        $region124: #{vae_forward.1} parent=91 // pred_fallthru
          _
        // Predicated region
        $region125: #{vae_forward.1} parent=91 // pred_check
          %p719 = pneg %p362
        $region126: #{vae_forward.1} parent=91 // pred_check_branch
          %721 = sbr.rel (%p719) target = $region128
        $region127: #{vae_forward.1} parent=91 // pred_region
          %723 = dma.done [#allocation15], 4096
        $region128: #{vae_forward.1} parent=91 // pred_fallthru
          _
        // Predicated region
        $region129: #{vae_forward.1} parent=91 // pred_check
          %p724 = pneg %p404
        $region130: #{vae_forward.1} parent=91 // pred_check_branch
          %726 = sbr.rel (%p724) target = $region132
        $region131: #{vae_forward.1} parent=91 // pred_region
          %728 = dma.done [#allocation18], 4096
        $region132: #{vae_forward.1} parent=91 // pred_fallthru
          _
        %s729 = sand.u32 %s50, 1
        %s730 = scalar_lea.sflag [#allocation3], %s729
        %s731 = sand.u32 %s50, 1
        %s732 = smul.addr %s731, 512
        %s733 = scalar_lea.vmem [#allocation2], %s732
        %p734 = pneg %p63
        %p735 = pneg %p60
        %s736 = smul.u32 32, %s42
        %p737 = scmp.lt.s32.totalorder %s736, 63
        %s738 = scalar_select %p737, %s736, 63
        %s739 = smul.addr %s738, 8
        %s740 = scalar_lea.vmem %s1, %s739
        %p741 = pneg %p89
        %p742 = pneg %p86
        %p743 = pneg %p110
        %p744 = pneg %p107
        %p745 = pneg %p131
        %p746 = pneg %p128
        %p747 = pneg %p152
        %p748 = pneg %p149
        %p749 = pneg %p173
        %p750 = pneg %p170
        %p751 = pneg %p194
        %p752 = pneg %p191
        %p753 = pneg %p215
        %p754 = pneg %p212
        %p755 = pneg %p236
        %p756 = pneg %p233
        %p757 = pneg %p257
        %p758 = pneg %p254
        %p759 = pneg %p278
        %p760 = pneg %p275
        %p761 = pneg %p299
        %p762 = pneg %p296
        %p763 = pneg %p320
        %p764 = pneg %p317
        %p765 = pneg %p341
        %p766 = pneg %p338
        %p767 = pneg %p362
        %p768 = pneg %p359
        %p769 = pneg %p383
        %p770 = pneg %p380
        %p771 = pneg %p404
        %p772 = pneg %p401
        %p773 = pneg %p425
        %p774 = pneg %p422
        %p775 = pneg %p451
        %p776 = pneg %p448
        %s777 = sand.u32 %s438, 1
        %s778 = scalar_lea.sflag [#allocation4], %s777
        %s779 = sand.u32 %s438, 1
        %s780 = smul.addr %s779, 256
        %s781 = scalar_lea.vmem [#allocation19], %s780
        %p782 = pneg %p477
        %p783 = pneg %p474
        %s784 = smul.u32 32, %s42
        %p785 = scmp.lt.s32.totalorder %s784, 63
        %s786 = scalar_select %p785, %s784, 63
        %s787 = smul.addr %s786, 8
        %s788 = scalar_lea.vmem %s19, %s787
        %s789 = smul.u32 32, %s42
        %s790 = smul.u32 32, %s42
        %p791 = scmp.lt.s32.totalorder %s790, 63
        %s792 = scalar_select %p791, %s790, 63
        %s793 = smul.addr %s792, 8
        %s794 = scalar_lea.vmem %s1, %s793
        %s795 = smul.u32 32, %s42
        %s796 = smul.u32 32, %s42
        %s797 = smul.u32 32, %s42
        %p798 = scmp.lt.s32.totalorder %s797, 63
        %s799 = scalar_select %p798, %s797, 63
        %s800 = smul.addr %s799, 8
        %s801 = scalar_lea.vmem %s19, %s800
        %s802 = smul.u32 32, %s42
        %v804 = vld [vmem:[%s678] sm:$0xff]
        %v805 = vld [vmem:[%s678 + $0x8] sm:$0xff]
        %v806 = vld [vmem:[%s678 + $0x10] sm:$0xff]
        %v807 = vld [vmem:[%s678 + $0x18] sm:$0xff]
        %v808 = vld [vmem:[%s678 + $0x20] sm:$0xff]
        %v809 = vld [vmem:[%s678 + $0x28] sm:$0xff]
        %v810 = vld [vmem:[%s678 + $0x30] sm:$0xff]
        %v811 = vld [vmem:[%s678 + $0x38] sm:$0xff]
        %v812 = vld [vmem:[%s678 + $0x40] sm:$0xff]
        %v813 = vld [vmem:[%s678 + $0x48] sm:$0xff]
        %v814 = vld [vmem:[%s678 + $0x50] sm:$0xff]
        %v815 = vld [vmem:[%s678 + $0x58] sm:$0xff]
        %v816 = vld [vmem:[%s678 + $0x60] sm:$0xff]
        %v817 = vld [vmem:[%s678 + $0x68] sm:$0xff]
        %v818 = vld [vmem:[%s678 + $0x70] sm:$0xff]
        %v819 = vld [vmem:[%s678 + $0x78] sm:$0xff]
        %v820 = vld [vmem:[%s678 + $0x80] sm:$0xff]
        %v821 = vld [vmem:[%s678 + $0x88] sm:$0xff]
        %v822 = vld [vmem:[%s678 + $0x90] sm:$0xff]
        %v823 = vld [vmem:[%s678 + $0x98] sm:$0xff]
        %v824 = vld [vmem:[%s678 + $0xa0] sm:$0xff]
        %v825 = vld [vmem:[%s678 + $0xa8] sm:$0xff]
        %v826 = vld [vmem:[%s678 + $0xb0] sm:$0xff]
        %v827 = vld [vmem:[%s678 + $0xb8] sm:$0xff]
        %v828 = vld [vmem:[%s678 + $0xc0] sm:$0xff]
        %v829 = vld [vmem:[%s678 + $0xc8] sm:$0xff]
        %v830 = vld [vmem:[%s678 + $0xd0] sm:$0xff]
        %v831 = vld [vmem:[%s678 + $0xd8] sm:$0xff]
        %v832 = vld [vmem:[%s678 + $0xe0] sm:$0xff]
        %v833 = vld [vmem:[%s678 + $0xe8] sm:$0xff]
        %v834 = vld [vmem:[%s678 + $0xf0] sm:$0xff]
        %v835 = vld [vmem:[%s678 + $0xf8] sm:$0xff]
        %v836 = vld [vmem:[%s678 + $0x100] sm:$0xff]
        %v837 = vld [vmem:[%s678 + $0x108] sm:$0xff]
        %v838 = vld [vmem:[%s678 + $0x110] sm:$0xff]
        %v839 = vld [vmem:[%s678 + $0x118] sm:$0xff]
        %v840 = vld [vmem:[%s678 + $0x120] sm:$0xff]
        %v841 = vld [vmem:[%s678 + $0x128] sm:$0xff]
        %v842 = vld [vmem:[%s678 + $0x130] sm:$0xff]
        %v843 = vld [vmem:[%s678 + $0x138] sm:$0xff]
        %v844 = vld [vmem:[%s678 + $0x140] sm:$0xff]
        %v845 = vld [vmem:[%s678 + $0x148] sm:$0xff]
        %v846 = vld [vmem:[%s678 + $0x150] sm:$0xff]
        %v847 = vld [vmem:[%s678 + $0x158] sm:$0xff]
        %v848 = vld [vmem:[%s678 + $0x160] sm:$0xff]
        %v849 = vld [vmem:[%s678 + $0x168] sm:$0xff]
        %v850 = vld [vmem:[%s678 + $0x170] sm:$0xff]
        %v851 = vld [vmem:[%s678 + $0x178] sm:$0xff]
        %v852 = vld [vmem:[%s678 + $0x180] sm:$0xff]
        %v853 = vld [vmem:[%s678 + $0x188] sm:$0xff]
        %v854 = vld [vmem:[%s678 + $0x190] sm:$0xff]
        %v855 = vld [vmem:[%s678 + $0x198] sm:$0xff]
        %v856 = vld [vmem:[%s678 + $0x1a0] sm:$0xff]
        %v857 = vld [vmem:[%s678 + $0x1a8] sm:$0xff]
        %v858 = vld [vmem:[%s678 + $0x1b0] sm:$0xff]
        %v859 = vld [vmem:[%s678 + $0x1b8] sm:$0xff]
        %v860 = vld [vmem:[%s678 + $0x1c0] sm:$0xff]
        %v861 = vld [vmem:[%s678 + $0x1c8] sm:$0xff]
        %v862 = vld [vmem:[%s678 + $0x1d0] sm:$0xff]
        %v863 = vld [vmem:[%s678 + $0x1d8] sm:$0xff]
        %v864 = vld [vmem:[%s678 + $0x1e0] sm:$0xff]
        %v865 = vld [vmem:[%s678 + $0x1e8] sm:$0xff]
        %v866 = vld [vmem:[%s678 + $0x1f0] sm:$0xff]
        %v867 = vld [vmem:[%s678 + $0x1f8] sm:$0xff]
        %v868 = vpack.c.bf16 %v806, %v804
        %v869 = vpack.c.bf16 %v807, %v805
        %v870 = vpack.c.bf16 %v810, %v808
        %v871 = vpack.c.bf16 %v811, %v809
        %v872 = vpack.c.bf16 %v814, %v812
        %v873 = vpack.c.bf16 %v815, %v813
        %v874 = vpack.c.bf16 %v818, %v816
        %v875 = vpack.c.bf16 %v819, %v817
        %v876 = vpack.c.bf16 %v822, %v820
        %v877 = vpack.c.bf16 %v823, %v821
        %v878 = vpack.c.bf16 %v826, %v824
        %v879 = vpack.c.bf16 %v827, %v825
        %v880 = vpack.c.bf16 %v830, %v828
        %v881 = vpack.c.bf16 %v831, %v829
        %v882 = vpack.c.bf16 %v834, %v832
        %v883 = vpack.c.bf16 %v835, %v833
        %v884 = vpack.c.bf16 %v838, %v836
        %v885 = vpack.c.bf16 %v839, %v837
        %v886 = vpack.c.bf16 %v842, %v840
        %v887 = vpack.c.bf16 %v843, %v841
        %v888 = vpack.c.bf16 %v846, %v844
        %v889 = vpack.c.bf16 %v847, %v845
        %v890 = vpack.c.bf16 %v850, %v848
        %v891 = vpack.c.bf16 %v851, %v849
        %v892 = vpack.c.bf16 %v854, %v852
        %v893 = vpack.c.bf16 %v855, %v853
        %v894 = vpack.c.bf16 %v858, %v856
        %v895 = vpack.c.bf16 %v859, %v857
        %v896 = vpack.c.bf16 %v862, %v860
        %v897 = vpack.c.bf16 %v863, %v861
        %v898 = vpack.c.bf16 %v866, %v864
        %v899 = vpack.c.bf16 %v867, %v865
        %v900 = vld [vmem:[%s2] sm:$0xff]
        %v901 = vld [vmem:[%s2 + $0x8] sm:$0xff]
        %v902 = vld [vmem:[%s2 + $0x10] sm:$0xff]
        %v903 = vld [vmem:[%s2 + $0x18] sm:$0xff]
        %v904 = vld [vmem:[%s2 + $0x20] sm:$0xff]
        %v905 = vld [vmem:[%s2 + $0x28] sm:$0xff]
        %v906 = vld [vmem:[%s2 + $0x30] sm:$0xff]
        %v907 = vld [vmem:[%s2 + $0x38] sm:$0xff]
        %v908 = vld [vmem:[%s2 + $0x40] sm:$0xff]
        %v909 = vld [vmem:[%s2 + $0x48] sm:$0xff]
        %v910 = vld [vmem:[%s2 + $0x50] sm:$0xff]
        %v911 = vld [vmem:[%s2 + $0x58] sm:$0xff]
        %v912 = vld [vmem:[%s2 + $0x60] sm:$0xff]
        %v913 = vld [vmem:[%s2 + $0x68] sm:$0xff]
        %v914 = vld [vmem:[%s2 + $0x70] sm:$0xff]
        %v915 = vld [vmem:[%s2 + $0x78] sm:$0xff]
        %v916 = vld [vmem:[%s2 + $0x80] sm:$0xff]
        %v917 = vld [vmem:[%s2 + $0x88] sm:$0xff]
        %v918 = vld [vmem:[%s2 + $0x90] sm:$0xff]
        %v919 = vld [vmem:[%s2 + $0x98] sm:$0xff]
        %v920 = vld [vmem:[%s2 + $0xa0] sm:$0xff]
        %v921 = vld [vmem:[%s2 + $0xa8] sm:$0xff]
        %v922 = vld [vmem:[%s2 + $0xb0] sm:$0xff]
        %v923 = vld [vmem:[%s2 + $0xb8] sm:$0xff]
        %v924 = vld [vmem:[%s2 + $0xc0] sm:$0xff]
        %v925 = vld [vmem:[%s2 + $0xc8] sm:$0xff]
        %v926 = vld [vmem:[%s2 + $0xd0] sm:$0xff]
        %v927 = vld [vmem:[%s2 + $0xd8] sm:$0xff]
        %v928 = vld [vmem:[%s2 + $0xe0] sm:$0xff]
        %v929 = vld [vmem:[%s2 + $0xe8] sm:$0xff]
        %v930 = vld [vmem:[%s2 + $0xf0] sm:$0xff]
        %v931 = vld [vmem:[%s2 + $0xf8] sm:$0xff]
        %v932 = vld [vmem:[#allocation5] sm:$0x3]
        %v934 = vperm.slane %v932, 0
        %v935 = vperm.slane %v932, 1
        %v970 = vunpack.c.l.b16 %v900
        %v971 = vunpack.c.h.b16 %v900
        %v972 = vunpack.c.l.b16 %v901
        %v973 = vunpack.c.h.b16 %v901
        %v974 = vunpack.c.l.b16 %v902
        %v975 = vunpack.c.h.b16 %v902
        %v976 = vunpack.c.l.b16 %v903
        %v977 = vunpack.c.h.b16 %v903
        %v978 = vunpack.c.l.b16 %v904
        %v979 = vunpack.c.h.b16 %v904
        %v980 = vunpack.c.l.b16 %v905
        %v981 = vunpack.c.h.b16 %v905
        %v982 = vunpack.c.l.b16 %v906
        %v983 = vunpack.c.h.b16 %v906
        %v984 = vunpack.c.l.b16 %v907
        %v985 = vunpack.c.h.b16 %v907
        %v986 = vunpack.c.l.b16 %v908
        %v987 = vunpack.c.h.b16 %v908
        %v988 = vunpack.c.l.b16 %v909
        %v989 = vunpack.c.h.b16 %v909
        %v990 = vunpack.c.l.b16 %v910
        %v991 = vunpack.c.h.b16 %v910
        %v992 = vunpack.c.l.b16 %v911
        %v993 = vunpack.c.h.b16 %v911
        %v994 = vunpack.c.l.b16 %v912
        %v995 = vunpack.c.h.b16 %v912
        %v996 = vunpack.c.l.b16 %v913
        %v997 = vunpack.c.h.b16 %v913
        %v998 = vunpack.c.l.b16 %v914
        %v999 = vunpack.c.h.b16 %v914
        %v1000 = vunpack.c.l.b16 %v915
        %v1001 = vunpack.c.h.b16 %v915
        %v1002 = vunpack.c.l.b16 %v916
        %v1003 = vunpack.c.h.b16 %v916
        %v1004 = vunpack.c.l.b16 %v917
        %v1005 = vunpack.c.h.b16 %v917
        %v1006 = vunpack.c.l.b16 %v918
        %v1007 = vunpack.c.h.b16 %v918
        %v1008 = vunpack.c.l.b16 %v919
        %v1009 = vunpack.c.h.b16 %v919
        %v1010 = vunpack.c.l.b16 %v920
        %v1011 = vunpack.c.h.b16 %v920
        %v1012 = vunpack.c.l.b16 %v921
        %v1013 = vunpack.c.h.b16 %v921
        %v1014 = vunpack.c.l.b16 %v922
        %v1015 = vunpack.c.h.b16 %v922
        %v1016 = vunpack.c.l.b16 %v923
        %v1017 = vunpack.c.h.b16 %v923
        %v1018 = vunpack.c.l.b16 %v924
        %v1019 = vunpack.c.h.b16 %v924
        %v1020 = vunpack.c.l.b16 %v925
        %v1021 = vunpack.c.h.b16 %v925
        %v1022 = vunpack.c.l.b16 %v926
        %v1023 = vunpack.c.h.b16 %v926
        %v1024 = vunpack.c.l.b16 %v927
        %v1025 = vunpack.c.h.b16 %v927
        %v1026 = vunpack.c.l.b16 %v928
        %v1027 = vunpack.c.h.b16 %v928
        %v1028 = vunpack.c.l.b16 %v929
        %v1029 = vunpack.c.h.b16 %v929
        %v1030 = vunpack.c.l.b16 %v930
        %v1031 = vunpack.c.h.b16 %v930
        %v1032 = vunpack.c.l.b16 %v931
        %v1033 = vunpack.c.h.b16 %v931
        %v1034 = vpack.c.b16 %v972, %v970
        %v1035 = vpack.c.b16 %v973, %v971
        %v1036 = vpack.c.b16 %v976, %v974
        %v1037 = vpack.c.b16 %v977, %v975
        %v1038 = vpack.c.b16 %v980, %v978
        %v1039 = vpack.c.b16 %v981, %v979
        %v1040 = vpack.c.b16 %v984, %v982
        %v1041 = vpack.c.b16 %v985, %v983
        %v1042 = vpack.c.b16 %v988, %v986
        %v1043 = vpack.c.b16 %v989, %v987
        %v1044 = vpack.c.b16 %v992, %v990
        %v1045 = vpack.c.b16 %v993, %v991
        %v1046 = vpack.c.b16 %v996, %v994
        %v1047 = vpack.c.b16 %v997, %v995
        %v1048 = vpack.c.b16 %v1000, %v998
        %v1049 = vpack.c.b16 %v1001, %v999
        %v1050 = vpack.c.b16 %v1004, %v1002
        %v1051 = vpack.c.b16 %v1005, %v1003
        %v1052 = vpack.c.b16 %v1008, %v1006
        %v1053 = vpack.c.b16 %v1009, %v1007
        %v1054 = vpack.c.b16 %v1012, %v1010
        %v1055 = vpack.c.b16 %v1013, %v1011
        %v1056 = vpack.c.b16 %v1016, %v1014
        %v1057 = vpack.c.b16 %v1017, %v1015
        %v1058 = vpack.c.b16 %v1020, %v1018
        %v1059 = vpack.c.b16 %v1021, %v1019
        %v1060 = vpack.c.b16 %v1024, %v1022
        %v1061 = vpack.c.b16 %v1025, %v1023
        %v1062 = vpack.c.b16 %v1028, %v1026
        %v1063 = vpack.c.b16 %v1029, %v1027
        %v1064 = vpack.c.b16 %v1032, %v1030
        %v1065 = vpack.c.b16 %v1033, %v1031
        %1098 = vmatpush.bf16.msra.mxu0 %v1048
        %1099 = vmatpush.bf16.msra.mxu0 %v1046
        %1100 = vmatpush.bf16.msra.mxu0 %v1044
        %1101 = vmatpush.bf16.msra.mxu0 %v1042
        %1102 = vmatpush.bf16.msra.mxu0 %v1040
        %1103 = vmatpush.bf16.msra.mxu0 %v1038
        %1104 = vmatpush.bf16.msra.mxu0 %v1036
        %1105 = vmatpush.bf16.msra.mxu0 %v1034
        %1106 = vmatmul.bf16.gmra.mxu0 %v868
        %v1107 = vpop.f32.mrf.mxu0
        %v1108 = vadd.f32 %v934, %v1107
        %v1109 = vpop.f32.mrf.mxu0
        %v1110 = vadd.f32 %v934, %v1109
        %1111 = vmatmul.bf16.gmra.mxu0 %v870
        %v1112 = vpop.f32.mrf.mxu0
        %v1113 = vadd.f32 %v934, %v1112
        %v1114 = vpop.f32.mrf.mxu0
        %v1115 = vadd.f32 %v934, %v1114
        %1116 = vmatmul.bf16.gmra.mxu0 %v872
        %v1117 = vpop.f32.mrf.mxu0
        %v1118 = vadd.f32 %v934, %v1117
        %v1119 = vpop.f32.mrf.mxu0
        %v1120 = vadd.f32 %v934, %v1119
        %1121 = vmatmul.bf16.gmra.mxu0 %v874
        %v1122 = vpop.f32.mrf.mxu0
        %v1123 = vadd.f32 %v934, %v1122
        %v1124 = vpop.f32.mrf.mxu0
        %v1125 = vadd.f32 %v934, %v1124
        %1126 = vmatmul.bf16.gmra.mxu0 %v876
        %v1127 = vpop.f32.mrf.mxu0
        %v1128 = vadd.f32 %v934, %v1127
        %v1129 = vpop.f32.mrf.mxu0
        %v1130 = vadd.f32 %v934, %v1129
        %1131 = vmatmul.bf16.gmra.mxu0 %v878
        %v1132 = vpop.f32.mrf.mxu0
        %v1133 = vadd.f32 %v934, %v1132
        %v1134 = vpop.f32.mrf.mxu0
        %v1135 = vadd.f32 %v934, %v1134
        %1136 = vmatmul.bf16.gmra.mxu0 %v880
        %v1137 = vpop.f32.mrf.mxu0
        %v1138 = vadd.f32 %v934, %v1137
        %v1139 = vpop.f32.mrf.mxu0
        %v1140 = vadd.f32 %v934, %v1139
        %1141 = vmatmul.bf16.gmra.mxu0 %v882
        %v1142 = vpop.f32.mrf.mxu0
        %v1143 = vadd.f32 %v934, %v1142
        %v1144 = vpop.f32.mrf.mxu0
        %v1145 = vadd.f32 %v934, %v1144
        %1146 = vmatmul.bf16.gmra.mxu0 %v884
        %v1147 = vpop.f32.mrf.mxu0
        %v1148 = vadd.f32 %v934, %v1147
        %v1149 = vpop.f32.mrf.mxu0
        %v1150 = vadd.f32 %v934, %v1149
        %1151 = vmatmul.bf16.gmra.mxu0 %v886
        %v1152 = vpop.f32.mrf.mxu0
        %v1153 = vadd.f32 %v934, %v1152
        %v1154 = vpop.f32.mrf.mxu0
        %v1155 = vadd.f32 %v934, %v1154
        %1156 = vmatmul.bf16.gmra.mxu0 %v888
        %v1157 = vpop.f32.mrf.mxu0
        %v1158 = vadd.f32 %v934, %v1157
        %v1159 = vpop.f32.mrf.mxu0
        %v1160 = vadd.f32 %v934, %v1159
        %1161 = vmatmul.bf16.gmra.mxu0 %v890
        %v1162 = vpop.f32.mrf.mxu0
        %v1163 = vadd.f32 %v934, %v1162
        %v1164 = vpop.f32.mrf.mxu0
        %v1165 = vadd.f32 %v934, %v1164
        %1166 = vmatmul.bf16.gmra.mxu0 %v892
        %v1167 = vpop.f32.mrf.mxu0
        %v1168 = vadd.f32 %v934, %v1167
        %v1169 = vpop.f32.mrf.mxu0
        %v1170 = vadd.f32 %v934, %v1169
        %1171 = vmatmul.bf16.gmra.mxu0 %v894
        %v1172 = vpop.f32.mrf.mxu0
        %v1173 = vadd.f32 %v934, %v1172
        %v1174 = vpop.f32.mrf.mxu0
        %v1175 = vadd.f32 %v934, %v1174
        %1176 = vmatmul.bf16.gmra.mxu0 %v896
        %v1177 = vpop.f32.mrf.mxu0
        %v1178 = vadd.f32 %v934, %v1177
        %v1179 = vpop.f32.mrf.mxu0
        %v1180 = vadd.f32 %v934, %v1179
        %1181 = vmatmul.bf16.gmra.mxu0 %v898
        %v1182 = vpop.f32.mrf.mxu0
        %v1183 = vadd.f32 %v934, %v1182
        %v1184 = vpop.f32.mrf.mxu0
        %v1185 = vadd.f32 %v934, %v1184
        %1186 = vdwg.mxu0
        %1187 = vmatpush.bf16.msra.mxu0 %v1064
        %1188 = vmatpush.bf16.msra.mxu0 %v1062
        %1189 = vmatpush.bf16.msra.mxu0 %v1060
        %1190 = vmatpush.bf16.msra.mxu0 %v1058
        %1191 = vmatpush.bf16.msra.mxu0 %v1056
        %1192 = vmatpush.bf16.msra.mxu0 %v1054
        %1193 = vmatpush.bf16.msra.mxu0 %v1052
        %1194 = vmatpush.bf16.msra.mxu0 %v1050
        %1195 = vmatmul.bf16.gmra.mxu0 %v869
        %v1196 = vpop.f32.mrf.mxu0
        %v1197 = vadd.f32 %v1108, %v1196
        %v1198 = vpop.f32.mrf.mxu0
        %v1199 = vadd.f32 %v1110, %v1198
        %1200 = vmatmul.bf16.gmra.mxu0 %v871
        %v1201 = vpop.f32.mrf.mxu0
        %v1202 = vadd.f32 %v1113, %v1201
        %v1203 = vpop.f32.mrf.mxu0
        %v1204 = vadd.f32 %v1115, %v1203
        %1205 = vmatmul.bf16.gmra.mxu0 %v873
        %v1206 = vpop.f32.mrf.mxu0
        %v1207 = vadd.f32 %v1118, %v1206
        %v1208 = vpop.f32.mrf.mxu0
        %v1209 = vadd.f32 %v1120, %v1208
        %1210 = vmatmul.bf16.gmra.mxu0 %v875
        %v1211 = vpop.f32.mrf.mxu0
        %v1212 = vadd.f32 %v1123, %v1211
        %v1213 = vpop.f32.mrf.mxu0
        %v1214 = vadd.f32 %v1125, %v1213
        %1215 = vmatmul.bf16.gmra.mxu0 %v877
        %v1216 = vpop.f32.mrf.mxu0
        %v1217 = vadd.f32 %v1128, %v1216
        %v1218 = vpop.f32.mrf.mxu0
        %v1219 = vadd.f32 %v1130, %v1218
        %1220 = vmatmul.bf16.gmra.mxu0 %v879
        %v1221 = vpop.f32.mrf.mxu0
        %v1222 = vadd.f32 %v1133, %v1221
        %v1223 = vpop.f32.mrf.mxu0
        %v1224 = vadd.f32 %v1135, %v1223
        %1225 = vmatmul.bf16.gmra.mxu0 %v881
        %v1226 = vpop.f32.mrf.mxu0
        %v1227 = vadd.f32 %v1138, %v1226
        %v1228 = vpop.f32.mrf.mxu0
        %v1229 = vadd.f32 %v1140, %v1228
        %1230 = vmatmul.bf16.gmra.mxu0 %v883
        %v1231 = vpop.f32.mrf.mxu0
        %v1232 = vadd.f32 %v1143, %v1231
        %v1233 = vpop.f32.mrf.mxu0
        %v1234 = vadd.f32 %v1145, %v1233
        %1235 = vmatmul.bf16.gmra.mxu0 %v885
        %v1236 = vpop.f32.mrf.mxu0
        %v1237 = vadd.f32 %v1148, %v1236
        %v1238 = vpop.f32.mrf.mxu0
        %v1239 = vadd.f32 %v1150, %v1238
        %1240 = vmatmul.bf16.gmra.mxu0 %v887
        %v1241 = vpop.f32.mrf.mxu0
        %v1242 = vadd.f32 %v1153, %v1241
        %v1243 = vpop.f32.mrf.mxu0
        %v1244 = vadd.f32 %v1155, %v1243
        %1245 = vmatmul.bf16.gmra.mxu0 %v889
        %v1246 = vpop.f32.mrf.mxu0
        %v1247 = vadd.f32 %v1158, %v1246
        %v1248 = vpop.f32.mrf.mxu0
        %v1249 = vadd.f32 %v1160, %v1248
        %1250 = vmatmul.bf16.gmra.mxu0 %v891
        %v1251 = vpop.f32.mrf.mxu0
        %v1252 = vadd.f32 %v1163, %v1251
        %v1253 = vpop.f32.mrf.mxu0
        %v1254 = vadd.f32 %v1165, %v1253
        %1255 = vmatmul.bf16.gmra.mxu0 %v893
        %v1256 = vpop.f32.mrf.mxu0
        %v1257 = vadd.f32 %v1168, %v1256
        %v1258 = vpop.f32.mrf.mxu0
        %v1259 = vadd.f32 %v1170, %v1258
        %1260 = vmatmul.bf16.gmra.mxu0 %v895
        %v1261 = vpop.f32.mrf.mxu0
        %v1262 = vadd.f32 %v1173, %v1261
        %v1263 = vpop.f32.mrf.mxu0
        %v1264 = vadd.f32 %v1175, %v1263
        %1265 = vmatmul.bf16.gmra.mxu0 %v897
        %v1266 = vpop.f32.mrf.mxu0
        %v1267 = vadd.f32 %v1178, %v1266
        %v1268 = vpop.f32.mrf.mxu0
        %v1269 = vadd.f32 %v1180, %v1268
        %1270 = vmatmul.bf16.gmra.mxu0 %v899
        %v1271 = vpop.f32.mrf.mxu0
        %v1272 = vadd.f32 %v1183, %v1271
        %v1273 = vpop.f32.mrf.mxu0
        %v1274 = vadd.f32 %v1185, %v1273
        %1275 = vdwg.mxu0
        %1276 = vmatpush.bf16.msra.mxu0 %v1049
        %1277 = vmatpush.bf16.msra.mxu0 %v1047
        %1278 = vmatpush.bf16.msra.mxu0 %v1045
        %1279 = vmatpush.bf16.msra.mxu0 %v1043
        %1280 = vmatpush.bf16.msra.mxu0 %v1041
        %1281 = vmatpush.bf16.msra.mxu0 %v1039
        %1282 = vmatpush.bf16.msra.mxu0 %v1037
        %1283 = vmatpush.bf16.msra.mxu0 %v1035
        %1284 = vmatmul.bf16.gmra.mxu0 %v868
        %v1285 = vpop.f32.mrf.mxu0
        %v1286 = vadd.f32 %v935, %v1285
        %v1287 = vpop.f32.mrf.mxu0
        %v1288 = vadd.f32 %v935, %v1287
        %1289 = vmatmul.bf16.gmra.mxu0 %v870
        %v1290 = vpop.f32.mrf.mxu0
        %v1291 = vadd.f32 %v935, %v1290
        %v1292 = vpop.f32.mrf.mxu0
        %v1293 = vadd.f32 %v935, %v1292
        %1294 = vmatmul.bf16.gmra.mxu0 %v872
        %v1295 = vpop.f32.mrf.mxu0
        %v1296 = vadd.f32 %v935, %v1295
        %v1297 = vpop.f32.mrf.mxu0
        %v1298 = vadd.f32 %v935, %v1297
        %1299 = vmatmul.bf16.gmra.mxu0 %v874
        %v1300 = vpop.f32.mrf.mxu0
        %v1301 = vadd.f32 %v935, %v1300
        %v1302 = vpop.f32.mrf.mxu0
        %v1303 = vadd.f32 %v935, %v1302
        %1304 = vmatmul.bf16.gmra.mxu0 %v876
        %v1305 = vpop.f32.mrf.mxu0
        %v1306 = vadd.f32 %v935, %v1305
        %v1307 = vpop.f32.mrf.mxu0
        %v1308 = vadd.f32 %v935, %v1307
        %1309 = vmatmul.bf16.gmra.mxu0 %v878
        %v1310 = vpop.f32.mrf.mxu0
        %v1311 = vadd.f32 %v935, %v1310
        %v1312 = vpop.f32.mrf.mxu0
        %v1313 = vadd.f32 %v935, %v1312
        %1314 = vmatmul.bf16.gmra.mxu0 %v880
        %v1315 = vpop.f32.mrf.mxu0
        %v1316 = vadd.f32 %v935, %v1315
        %v1317 = vpop.f32.mrf.mxu0
        %v1318 = vadd.f32 %v935, %v1317
        %1319 = vmatmul.bf16.gmra.mxu0 %v882
        %v1320 = vpop.f32.mrf.mxu0
        %v1321 = vadd.f32 %v935, %v1320
        %v1322 = vpop.f32.mrf.mxu0
        %v1323 = vadd.f32 %v935, %v1322
        %1324 = vmatmul.bf16.gmra.mxu0 %v884
        %v1325 = vpop.f32.mrf.mxu0
        %v1326 = vadd.f32 %v935, %v1325
        %v1327 = vpop.f32.mrf.mxu0
        %v1328 = vadd.f32 %v935, %v1327
        %1329 = vmatmul.bf16.gmra.mxu0 %v886
        %v1330 = vpop.f32.mrf.mxu0
        %v1331 = vadd.f32 %v935, %v1330
        %v1332 = vpop.f32.mrf.mxu0
        %v1333 = vadd.f32 %v935, %v1332
        %1334 = vmatmul.bf16.gmra.mxu0 %v888
        %v1335 = vpop.f32.mrf.mxu0
        %v1336 = vadd.f32 %v935, %v1335
        %v1337 = vpop.f32.mrf.mxu0
        %v1338 = vadd.f32 %v935, %v1337
        %1339 = vmatmul.bf16.gmra.mxu0 %v890
        %v1340 = vpop.f32.mrf.mxu0
        %v1341 = vadd.f32 %v935, %v1340
        %v1342 = vpop.f32.mrf.mxu0
        %v1343 = vadd.f32 %v935, %v1342
        %1344 = vmatmul.bf16.gmra.mxu0 %v892
        %v1345 = vpop.f32.mrf.mxu0
        %v1346 = vadd.f32 %v935, %v1345
        %v1347 = vpop.f32.mrf.mxu0
        %v1348 = vadd.f32 %v935, %v1347
        %1349 = vmatmul.bf16.gmra.mxu0 %v894
        %v1350 = vpop.f32.mrf.mxu0
        %v1351 = vadd.f32 %v935, %v1350
        %v1352 = vpop.f32.mrf.mxu0
        %v1353 = vadd.f32 %v935, %v1352
        %1354 = vmatmul.bf16.gmra.mxu0 %v896
        %v1355 = vpop.f32.mrf.mxu0
        %v1356 = vadd.f32 %v935, %v1355
        %v1357 = vpop.f32.mrf.mxu0
        %v1358 = vadd.f32 %v935, %v1357
        %1359 = vmatmul.bf16.gmra.mxu0 %v898
        %v1360 = vpop.f32.mrf.mxu0
        %v1361 = vadd.f32 %v935, %v1360
        %v1362 = vpop.f32.mrf.mxu0
        %v1363 = vadd.f32 %v935, %v1362
        %1364 = vdwg.mxu0
        %1365 = vmatpush.bf16.msra.mxu0 %v1065
        %1366 = vmatpush.bf16.msra.mxu0 %v1063
        %1367 = vmatpush.bf16.msra.mxu0 %v1061
        %1368 = vmatpush.bf16.msra.mxu0 %v1059
        %1369 = vmatpush.bf16.msra.mxu0 %v1057
        %1370 = vmatpush.bf16.msra.mxu0 %v1055
        %1371 = vmatpush.bf16.msra.mxu0 %v1053
        %1372 = vmatpush.bf16.msra.mxu0 %v1051
        %1373 = vmatmul.bf16.gmra.mxu0 %v869
        %v1374 = vpop.f32.mrf.mxu0
        %v1375 = vadd.f32 %v1286, %v1374
        %v1376 = vpop.f32.mrf.mxu0
        %v1377 = vadd.f32 %v1288, %v1376
        %1378 = vmatmul.bf16.gmra.mxu0 %v871
        %v1379 = vpop.f32.mrf.mxu0
        %v1380 = vadd.f32 %v1291, %v1379
        %v1381 = vpop.f32.mrf.mxu0
        %v1382 = vadd.f32 %v1293, %v1381
        %1383 = vmatmul.bf16.gmra.mxu0 %v873
        %v1384 = vpop.f32.mrf.mxu0
        %v1385 = vadd.f32 %v1296, %v1384
        %v1386 = vpop.f32.mrf.mxu0
        %v1387 = vadd.f32 %v1298, %v1386
        %1388 = vmatmul.bf16.gmra.mxu0 %v875
        %v1389 = vpop.f32.mrf.mxu0
        %v1390 = vadd.f32 %v1301, %v1389
        %v1391 = vpop.f32.mrf.mxu0
        %v1392 = vadd.f32 %v1303, %v1391
        %1393 = vmatmul.bf16.gmra.mxu0 %v877
        %v1394 = vpop.f32.mrf.mxu0
        %v1395 = vadd.f32 %v1306, %v1394
        %v1396 = vpop.f32.mrf.mxu0
        %v1397 = vadd.f32 %v1308, %v1396
        %1398 = vmatmul.bf16.gmra.mxu0 %v879
        %v1399 = vpop.f32.mrf.mxu0
        %v1400 = vadd.f32 %v1311, %v1399
        %v1401 = vpop.f32.mrf.mxu0
        %v1402 = vadd.f32 %v1313, %v1401
        %1403 = vmatmul.bf16.gmra.mxu0 %v881
        %v1404 = vpop.f32.mrf.mxu0
        %v1405 = vadd.f32 %v1316, %v1404
        %v1406 = vpop.f32.mrf.mxu0
        %v1407 = vadd.f32 %v1318, %v1406
        %1408 = vmatmul.bf16.gmra.mxu0 %v883
        %v1409 = vpop.f32.mrf.mxu0
        %v1410 = vadd.f32 %v1321, %v1409
        %v1411 = vpop.f32.mrf.mxu0
        %v1412 = vadd.f32 %v1323, %v1411
        %1413 = vmatmul.bf16.gmra.mxu0 %v885
        %v1414 = vpop.f32.mrf.mxu0
        %v1415 = vadd.f32 %v1326, %v1414
        %v1416 = vpop.f32.mrf.mxu0
        %v1417 = vadd.f32 %v1328, %v1416
        %1418 = vmatmul.bf16.gmra.mxu0 %v887
        %v1419 = vpop.f32.mrf.mxu0
        %v1420 = vadd.f32 %v1331, %v1419
        %v1421 = vpop.f32.mrf.mxu0
        %v1422 = vadd.f32 %v1333, %v1421
        %1423 = vmatmul.bf16.gmra.mxu0 %v889
        %v1424 = vpop.f32.mrf.mxu0
        %v1425 = vadd.f32 %v1336, %v1424
        %v1426 = vpop.f32.mrf.mxu0
        %v1427 = vadd.f32 %v1338, %v1426
        %1428 = vmatmul.bf16.gmra.mxu0 %v891
        %v1429 = vpop.f32.mrf.mxu0
        %v1430 = vadd.f32 %v1341, %v1429
        %v1431 = vpop.f32.mrf.mxu0
        %v1432 = vadd.f32 %v1343, %v1431
        %1433 = vmatmul.bf16.gmra.mxu0 %v893
        %v1434 = vpop.f32.mrf.mxu0
        %v1435 = vadd.f32 %v1346, %v1434
        %v1436 = vpop.f32.mrf.mxu0
        %v1437 = vadd.f32 %v1348, %v1436
        %1438 = vmatmul.bf16.gmra.mxu0 %v895
        %v1439 = vpop.f32.mrf.mxu0
        %v1440 = vadd.f32 %v1351, %v1439
        %v1441 = vpop.f32.mrf.mxu0
        %v1442 = vadd.f32 %v1353, %v1441
        %1443 = vmatmul.bf16.gmra.mxu0 %v897
        %v1444 = vpop.f32.mrf.mxu0
        %v1445 = vadd.f32 %v1356, %v1444
        %v1446 = vpop.f32.mrf.mxu0
        %v1447 = vadd.f32 %v1358, %v1446
        %1448 = vmatmul.bf16.gmra.mxu0 %v899
        %v1449 = vpop.f32.mrf.mxu0
        %v1450 = vadd.f32 %v1361, %v1449
        %v1451 = vpop.f32.mrf.mxu0
        %v1452 = vadd.f32 %v1363, %v1451
        %1453 = vdwg.mxu0
        %v1454 = vmax.f32 %v1197, 0.0
        %v1455 = vmax.f32 %v1375, 0.0
        %v1456 = vmax.f32 %v1199, 0.0
        %v1457 = vmax.f32 %v1377, 0.0
        %v1458 = vmax.f32 %v1202, 0.0
        %v1459 = vmax.f32 %v1380, 0.0
        %v1460 = vmax.f32 %v1204, 0.0
        %v1461 = vmax.f32 %v1382, 0.0
        %v1462 = vmax.f32 %v1207, 0.0
        %v1463 = vmax.f32 %v1385, 0.0
        %v1464 = vmax.f32 %v1209, 0.0
        %v1465 = vmax.f32 %v1387, 0.0
        %v1466 = vmax.f32 %v1212, 0.0
        %v1467 = vmax.f32 %v1390, 0.0
        %v1468 = vmax.f32 %v1214, 0.0
        %v1469 = vmax.f32 %v1392, 0.0
        %v1470 = vmax.f32 %v1217, 0.0
        %v1471 = vmax.f32 %v1395, 0.0
        %v1472 = vmax.f32 %v1219, 0.0
        %v1473 = vmax.f32 %v1397, 0.0
        %v1474 = vmax.f32 %v1222, 0.0
        %v1475 = vmax.f32 %v1400, 0.0
        %v1476 = vmax.f32 %v1224, 0.0
        %v1477 = vmax.f32 %v1402, 0.0
        %v1478 = vmax.f32 %v1227, 0.0
        %v1479 = vmax.f32 %v1405, 0.0
        %v1480 = vmax.f32 %v1229, 0.0
        %v1481 = vmax.f32 %v1407, 0.0
        %v1482 = vmax.f32 %v1232, 0.0
        %v1483 = vmax.f32 %v1410, 0.0
        %v1484 = vmax.f32 %v1234, 0.0
        %v1485 = vmax.f32 %v1412, 0.0
        %v1486 = vmax.f32 %v1237, 0.0
        %v1487 = vmax.f32 %v1415, 0.0
        %v1488 = vmax.f32 %v1239, 0.0
        %v1489 = vmax.f32 %v1417, 0.0
        %v1490 = vmax.f32 %v1242, 0.0
        %v1491 = vmax.f32 %v1420, 0.0
        %v1492 = vmax.f32 %v1244, 0.0
        %v1493 = vmax.f32 %v1422, 0.0
        %v1494 = vmax.f32 %v1247, 0.0
        %v1495 = vmax.f32 %v1425, 0.0
        %v1496 = vmax.f32 %v1249, 0.0
        %v1497 = vmax.f32 %v1427, 0.0
        %v1498 = vmax.f32 %v1252, 0.0
        %v1499 = vmax.f32 %v1430, 0.0
        %v1500 = vmax.f32 %v1254, 0.0
        %v1501 = vmax.f32 %v1432, 0.0
        %v1502 = vmax.f32 %v1257, 0.0
        %v1503 = vmax.f32 %v1435, 0.0
        %v1504 = vmax.f32 %v1259, 0.0
        %v1505 = vmax.f32 %v1437, 0.0
        %v1506 = vmax.f32 %v1262, 0.0
        %v1507 = vmax.f32 %v1440, 0.0
        %v1508 = vmax.f32 %v1264, 0.0
        %v1509 = vmax.f32 %v1442, 0.0
        %v1510 = vmax.f32 %v1267, 0.0
        %v1511 = vmax.f32 %v1445, 0.0
        %v1512 = vmax.f32 %v1269, 0.0
        %v1513 = vmax.f32 %v1447, 0.0
        %v1514 = vmax.f32 %v1272, 0.0
        %v1515 = vmax.f32 %v1450, 0.0
        %v1516 = vmax.f32 %v1274, 0.0
        %v1517 = vmax.f32 %v1452, 0.0
        %v1518 = vpack.c.bf16 %v1456, %v1454
        %v1519 = vpack.c.bf16 %v1457, %v1455
        %v1520 = vpack.c.bf16 %v1460, %v1458
        %v1521 = vpack.c.bf16 %v1461, %v1459
        %v1522 = vpack.c.bf16 %v1464, %v1462
        %v1523 = vpack.c.bf16 %v1465, %v1463
        %v1524 = vpack.c.bf16 %v1468, %v1466
        %v1525 = vpack.c.bf16 %v1469, %v1467
        %v1526 = vpack.c.bf16 %v1472, %v1470
        %v1527 = vpack.c.bf16 %v1473, %v1471
        %v1528 = vpack.c.bf16 %v1476, %v1474
        %v1529 = vpack.c.bf16 %v1477, %v1475
        %v1530 = vpack.c.bf16 %v1480, %v1478
        %v1531 = vpack.c.bf16 %v1481, %v1479
        %v1532 = vpack.c.bf16 %v1484, %v1482
        %v1533 = vpack.c.bf16 %v1485, %v1483
        %v1534 = vpack.c.bf16 %v1488, %v1486
        %v1535 = vpack.c.bf16 %v1489, %v1487
        %v1536 = vpack.c.bf16 %v1492, %v1490
        %v1537 = vpack.c.bf16 %v1493, %v1491
        %v1538 = vpack.c.bf16 %v1496, %v1494
        %v1539 = vpack.c.bf16 %v1497, %v1495
        %v1540 = vpack.c.bf16 %v1500, %v1498
        %v1541 = vpack.c.bf16 %v1501, %v1499
        %v1542 = vpack.c.bf16 %v1504, %v1502
        %v1543 = vpack.c.bf16 %v1505, %v1503
        %v1544 = vpack.c.bf16 %v1508, %v1506
        %v1545 = vpack.c.bf16 %v1509, %v1507
        %v1546 = vpack.c.bf16 %v1512, %v1510
        %v1547 = vpack.c.bf16 %v1513, %v1511
        %v1548 = vpack.c.bf16 %v1516, %v1514
        %v1549 = vpack.c.bf16 %v1517, %v1515
        %v1550 = vld [vmem:[%s4] sm:$0xff]
        %v1551 = vld [vmem:[%s4 + $0x8] sm:$0xff]
        %v1552 = vld [vmem:[%s4 + $0x10] sm:$0xff]
        %v1553 = vld [vmem:[%s4 + $0x18] sm:$0xff]
        %v1554 = vld [vmem:[%s4 + $0x20] sm:$0xff]
        %v1555 = vld [vmem:[%s4 + $0x28] sm:$0xff]
        %v1556 = vld [vmem:[%s4 + $0x30] sm:$0xff]
        %v1557 = vld [vmem:[%s4 + $0x38] sm:$0xff]
        %v1558 = vld [vmem:[%s4 + $0x40] sm:$0xff]
        %v1559 = vld [vmem:[%s4 + $0x48] sm:$0xff]
        %v1560 = vld [vmem:[%s4 + $0x50] sm:$0xff]
        %v1561 = vld [vmem:[%s4 + $0x58] sm:$0xff]
        %v1562 = vld [vmem:[%s4 + $0x60] sm:$0xff]
        %v1563 = vld [vmem:[%s4 + $0x68] sm:$0xff]
        %v1564 = vld [vmem:[%s4 + $0x70] sm:$0xff]
        %v1565 = vld [vmem:[%s4 + $0x78] sm:$0xff]
        %v1566 = vld [vmem:[%s4 + $0x80] sm:$0xff]
        %v1567 = vld [vmem:[%s4 + $0x88] sm:$0xff]
        %v1568 = vld [vmem:[%s4 + $0x90] sm:$0xff]
        %v1569 = vld [vmem:[%s4 + $0x98] sm:$0xff]
        %v1570 = vld [vmem:[%s4 + $0xa0] sm:$0xff]
        %v1571 = vld [vmem:[%s4 + $0xa8] sm:$0xff]
        %v1572 = vld [vmem:[%s4 + $0xb0] sm:$0xff]
        %v1573 = vld [vmem:[%s4 + $0xb8] sm:$0xff]
        %v1574 = vld [vmem:[%s4 + $0xc0] sm:$0xff]
        %v1575 = vld [vmem:[%s4 + $0xc8] sm:$0xff]
        %v1576 = vld [vmem:[%s4 + $0xd0] sm:$0xff]
        %v1577 = vld [vmem:[%s4 + $0xd8] sm:$0xff]
        %v1578 = vld [vmem:[%s4 + $0xe0] sm:$0xff]
        %v1579 = vld [vmem:[%s4 + $0xe8] sm:$0xff]
        %v1580 = vld [vmem:[%s4 + $0xf0] sm:$0xff]
        %v1581 = vld [vmem:[%s4 + $0xf8] sm:$0xff]
        %v1582 = vld [vmem:[#allocation7] sm:$0x3]
        %v1584 = vperm.slane %v1582, 0
        %v1585 = vperm.slane %v1582, 1
        %v1620 = vunpack.c.l.b16 %v1550
        %v1621 = vunpack.c.h.b16 %v1550
        %v1622 = vunpack.c.l.b16 %v1551
        %v1623 = vunpack.c.h.b16 %v1551
        %v1624 = vunpack.c.l.b16 %v1552
        %v1625 = vunpack.c.h.b16 %v1552
        %v1626 = vunpack.c.l.b16 %v1553
        %v1627 = vunpack.c.h.b16 %v1553
        %v1628 = vunpack.c.l.b16 %v1554
        %v1629 = vunpack.c.h.b16 %v1554
        %v1630 = vunpack.c.l.b16 %v1555
        %v1631 = vunpack.c.h.b16 %v1555
        %v1632 = vunpack.c.l.b16 %v1556
        %v1633 = vunpack.c.h.b16 %v1556
        %v1634 = vunpack.c.l.b16 %v1557
        %v1635 = vunpack.c.h.b16 %v1557
        %v1636 = vunpack.c.l.b16 %v1558
        %v1637 = vunpack.c.h.b16 %v1558
        %v1638 = vunpack.c.l.b16 %v1559
        %v1639 = vunpack.c.h.b16 %v1559
        %v1640 = vunpack.c.l.b16 %v1560
        %v1641 = vunpack.c.h.b16 %v1560
        %v1642 = vunpack.c.l.b16 %v1561
        %v1643 = vunpack.c.h.b16 %v1561
        %v1644 = vunpack.c.l.b16 %v1562
        %v1645 = vunpack.c.h.b16 %v1562
        %v1646 = vunpack.c.l.b16 %v1563
        %v1647 = vunpack.c.h.b16 %v1563
        %v1648 = vunpack.c.l.b16 %v1564
        %v1649 = vunpack.c.h.b16 %v1564
        %v1650 = vunpack.c.l.b16 %v1565
        %v1651 = vunpack.c.h.b16 %v1565
        %v1652 = vunpack.c.l.b16 %v1566
        %v1653 = vunpack.c.h.b16 %v1566
        %v1654 = vunpack.c.l.b16 %v1567
        %v1655 = vunpack.c.h.b16 %v1567
        %v1656 = vunpack.c.l.b16 %v1568
        %v1657 = vunpack.c.h.b16 %v1568
        %v1658 = vunpack.c.l.b16 %v1569
        %v1659 = vunpack.c.h.b16 %v1569
        %v1660 = vunpack.c.l.b16 %v1570
        %v1661 = vunpack.c.h.b16 %v1570
        %v1662 = vunpack.c.l.b16 %v1571
        %v1663 = vunpack.c.h.b16 %v1571
        %v1664 = vunpack.c.l.b16 %v1572
        %v1665 = vunpack.c.h.b16 %v1572
        %v1666 = vunpack.c.l.b16 %v1573
        %v1667 = vunpack.c.h.b16 %v1573
        %v1668 = vunpack.c.l.b16 %v1574
        %v1669 = vunpack.c.h.b16 %v1574
        %v1670 = vunpack.c.l.b16 %v1575
        %v1671 = vunpack.c.h.b16 %v1575
        %v1672 = vunpack.c.l.b16 %v1576
        %v1673 = vunpack.c.h.b16 %v1576
        %v1674 = vunpack.c.l.b16 %v1577
        %v1675 = vunpack.c.h.b16 %v1577
        %v1676 = vunpack.c.l.b16 %v1578
        %v1677 = vunpack.c.h.b16 %v1578
        %v1678 = vunpack.c.l.b16 %v1579
        %v1679 = vunpack.c.h.b16 %v1579
        %v1680 = vunpack.c.l.b16 %v1580
        %v1681 = vunpack.c.h.b16 %v1580
        %v1682 = vunpack.c.l.b16 %v1581
        %v1683 = vunpack.c.h.b16 %v1581
        %v1684 = vpack.c.b16 %v1622, %v1620
        %v1685 = vpack.c.b16 %v1623, %v1621
        %v1686 = vpack.c.b16 %v1626, %v1624
        %v1687 = vpack.c.b16 %v1627, %v1625
        %v1688 = vpack.c.b16 %v1630, %v1628
        %v1689 = vpack.c.b16 %v1631, %v1629
        %v1690 = vpack.c.b16 %v1634, %v1632
        %v1691 = vpack.c.b16 %v1635, %v1633
        %v1692 = vpack.c.b16 %v1638, %v1636
        %v1693 = vpack.c.b16 %v1639, %v1637
        %v1694 = vpack.c.b16 %v1642, %v1640
        %v1695 = vpack.c.b16 %v1643, %v1641
        %v1696 = vpack.c.b16 %v1646, %v1644
        %v1697 = vpack.c.b16 %v1647, %v1645
        %v1698 = vpack.c.b16 %v1650, %v1648
        %v1699 = vpack.c.b16 %v1651, %v1649
        %v1700 = vpack.c.b16 %v1654, %v1652
        %v1701 = vpack.c.b16 %v1655, %v1653
        %v1702 = vpack.c.b16 %v1658, %v1656
        %v1703 = vpack.c.b16 %v1659, %v1657
        %v1704 = vpack.c.b16 %v1662, %v1660
        %v1705 = vpack.c.b16 %v1663, %v1661
        %v1706 = vpack.c.b16 %v1666, %v1664
        %v1707 = vpack.c.b16 %v1667, %v1665
        %v1708 = vpack.c.b16 %v1670, %v1668
        %v1709 = vpack.c.b16 %v1671, %v1669
        %v1710 = vpack.c.b16 %v1674, %v1672
        %v1711 = vpack.c.b16 %v1675, %v1673
        %v1712 = vpack.c.b16 %v1678, %v1676
        %v1713 = vpack.c.b16 %v1679, %v1677
        %v1714 = vpack.c.b16 %v1682, %v1680
        %v1715 = vpack.c.b16 %v1683, %v1681
        %1748 = vmatpush.bf16.msra.mxu0 %v1698
        %1749 = vmatpush.bf16.msra.mxu0 %v1696
        %1750 = vmatpush.bf16.msra.mxu0 %v1694
        %1751 = vmatpush.bf16.msra.mxu0 %v1692
        %1752 = vmatpush.bf16.msra.mxu0 %v1690
        %1753 = vmatpush.bf16.msra.mxu0 %v1688
        %1754 = vmatpush.bf16.msra.mxu0 %v1686
        %1755 = vmatpush.bf16.msra.mxu0 %v1684
        %1756 = vmatmul.bf16.gmra.mxu0 %v1518
        %v1757 = vpop.f32.mrf.mxu0
        %v1758 = vadd.f32 %v1584, %v1757
        %v1759 = vpop.f32.mrf.mxu0
        %v1760 = vadd.f32 %v1584, %v1759
        %1761 = vmatmul.bf16.gmra.mxu0 %v1520
        %v1762 = vpop.f32.mrf.mxu0
        %v1763 = vadd.f32 %v1584, %v1762
        %v1764 = vpop.f32.mrf.mxu0
        %v1765 = vadd.f32 %v1584, %v1764
        %1766 = vmatmul.bf16.gmra.mxu0 %v1522
        %v1767 = vpop.f32.mrf.mxu0
        %v1768 = vadd.f32 %v1584, %v1767
        %v1769 = vpop.f32.mrf.mxu0
        %v1770 = vadd.f32 %v1584, %v1769
        %1771 = vmatmul.bf16.gmra.mxu0 %v1524
        %v1772 = vpop.f32.mrf.mxu0
        %v1773 = vadd.f32 %v1584, %v1772
        %v1774 = vpop.f32.mrf.mxu0
        %v1775 = vadd.f32 %v1584, %v1774
        %1776 = vmatmul.bf16.gmra.mxu0 %v1526
        %v1777 = vpop.f32.mrf.mxu0
        %v1778 = vadd.f32 %v1584, %v1777
        %v1779 = vpop.f32.mrf.mxu0
        %v1780 = vadd.f32 %v1584, %v1779
        %1781 = vmatmul.bf16.gmra.mxu0 %v1528
        %v1782 = vpop.f32.mrf.mxu0
        %v1783 = vadd.f32 %v1584, %v1782
        %v1784 = vpop.f32.mrf.mxu0
        %v1785 = vadd.f32 %v1584, %v1784
        %1786 = vmatmul.bf16.gmra.mxu0 %v1530
        %v1787 = vpop.f32.mrf.mxu0
        %v1788 = vadd.f32 %v1584, %v1787
        %v1789 = vpop.f32.mrf.mxu0
        %v1790 = vadd.f32 %v1584, %v1789
        %1791 = vmatmul.bf16.gmra.mxu0 %v1532
        %v1792 = vpop.f32.mrf.mxu0
        %v1793 = vadd.f32 %v1584, %v1792
        %v1794 = vpop.f32.mrf.mxu0
        %v1795 = vadd.f32 %v1584, %v1794
        %1796 = vmatmul.bf16.gmra.mxu0 %v1534
        %v1797 = vpop.f32.mrf.mxu0
        %v1798 = vadd.f32 %v1584, %v1797
        %v1799 = vpop.f32.mrf.mxu0
        %v1800 = vadd.f32 %v1584, %v1799
        %1801 = vmatmul.bf16.gmra.mxu0 %v1536
        %v1802 = vpop.f32.mrf.mxu0
        %v1803 = vadd.f32 %v1584, %v1802
        %v1804 = vpop.f32.mrf.mxu0
        %v1805 = vadd.f32 %v1584, %v1804
        %1806 = vmatmul.bf16.gmra.mxu0 %v1538
        %v1807 = vpop.f32.mrf.mxu0
        %v1808 = vadd.f32 %v1584, %v1807
        %v1809 = vpop.f32.mrf.mxu0
        %v1810 = vadd.f32 %v1584, %v1809
        %1811 = vmatmul.bf16.gmra.mxu0 %v1540
        %v1812 = vpop.f32.mrf.mxu0
        %v1813 = vadd.f32 %v1584, %v1812
        %v1814 = vpop.f32.mrf.mxu0
        %v1815 = vadd.f32 %v1584, %v1814
        %1816 = vmatmul.bf16.gmra.mxu0 %v1542
        %v1817 = vpop.f32.mrf.mxu0
        %v1818 = vadd.f32 %v1584, %v1817
        %v1819 = vpop.f32.mrf.mxu0
        %v1820 = vadd.f32 %v1584, %v1819
        %1821 = vmatmul.bf16.gmra.mxu0 %v1544
        %v1822 = vpop.f32.mrf.mxu0
        %v1823 = vadd.f32 %v1584, %v1822
        %v1824 = vpop.f32.mrf.mxu0
        %v1825 = vadd.f32 %v1584, %v1824
        %1826 = vmatmul.bf16.gmra.mxu0 %v1546
        %v1827 = vpop.f32.mrf.mxu0
        %v1828 = vadd.f32 %v1584, %v1827
        %v1829 = vpop.f32.mrf.mxu0
        %v1830 = vadd.f32 %v1584, %v1829
        %1831 = vmatmul.bf16.gmra.mxu0 %v1548
        %v1832 = vpop.f32.mrf.mxu0
        %v1833 = vadd.f32 %v1584, %v1832
        %v1834 = vpop.f32.mrf.mxu0
        %v1835 = vadd.f32 %v1584, %v1834
        %1836 = vdwg.mxu0
        %1837 = vmatpush.bf16.msra.mxu0 %v1714
        %1838 = vmatpush.bf16.msra.mxu0 %v1712
        %1839 = vmatpush.bf16.msra.mxu0 %v1710
        %1840 = vmatpush.bf16.msra.mxu0 %v1708
        %1841 = vmatpush.bf16.msra.mxu0 %v1706
        %1842 = vmatpush.bf16.msra.mxu0 %v1704
        %1843 = vmatpush.bf16.msra.mxu0 %v1702
        %1844 = vmatpush.bf16.msra.mxu0 %v1700
        %1845 = vmatmul.bf16.gmra.mxu0 %v1519
        %v1846 = vpop.f32.mrf.mxu0
        %v1847 = vadd.f32 %v1758, %v1846
        %v1848 = vpop.f32.mrf.mxu0
        %v1849 = vadd.f32 %v1760, %v1848
        %1850 = vmatmul.bf16.gmra.mxu0 %v1521
        %v1851 = vpop.f32.mrf.mxu0
        %v1852 = vadd.f32 %v1763, %v1851
        %v1853 = vpop.f32.mrf.mxu0
        %v1854 = vadd.f32 %v1765, %v1853
        %1855 = vmatmul.bf16.gmra.mxu0 %v1523
        %v1856 = vpop.f32.mrf.mxu0
        %v1857 = vadd.f32 %v1768, %v1856
        %v1858 = vpop.f32.mrf.mxu0
        %v1859 = vadd.f32 %v1770, %v1858
        %1860 = vmatmul.bf16.gmra.mxu0 %v1525
        %v1861 = vpop.f32.mrf.mxu0
        %v1862 = vadd.f32 %v1773, %v1861
        %v1863 = vpop.f32.mrf.mxu0
        %v1864 = vadd.f32 %v1775, %v1863
        %1865 = vmatmul.bf16.gmra.mxu0 %v1527
        %v1866 = vpop.f32.mrf.mxu0
        %v1867 = vadd.f32 %v1778, %v1866
        %v1868 = vpop.f32.mrf.mxu0
        %v1869 = vadd.f32 %v1780, %v1868
        %1870 = vmatmul.bf16.gmra.mxu0 %v1529
        %v1871 = vpop.f32.mrf.mxu0
        %v1872 = vadd.f32 %v1783, %v1871
        %v1873 = vpop.f32.mrf.mxu0
        %v1874 = vadd.f32 %v1785, %v1873
        %1875 = vmatmul.bf16.gmra.mxu0 %v1531
        %v1876 = vpop.f32.mrf.mxu0
        %v1877 = vadd.f32 %v1788, %v1876
        %v1878 = vpop.f32.mrf.mxu0
        %v1879 = vadd.f32 %v1790, %v1878
        %1880 = vmatmul.bf16.gmra.mxu0 %v1533
        %v1881 = vpop.f32.mrf.mxu0
        %v1882 = vadd.f32 %v1793, %v1881
        %v1883 = vpop.f32.mrf.mxu0
        %v1884 = vadd.f32 %v1795, %v1883
        %1885 = vmatmul.bf16.gmra.mxu0 %v1535
        %v1886 = vpop.f32.mrf.mxu0
        %v1887 = vadd.f32 %v1798, %v1886
        %v1888 = vpop.f32.mrf.mxu0
        %v1889 = vadd.f32 %v1800, %v1888
        %1890 = vmatmul.bf16.gmra.mxu0 %v1537
        %v1891 = vpop.f32.mrf.mxu0
        %v1892 = vadd.f32 %v1803, %v1891
        %v1893 = vpop.f32.mrf.mxu0
        %v1894 = vadd.f32 %v1805, %v1893
        %1895 = vmatmul.bf16.gmra.mxu0 %v1539
        %v1896 = vpop.f32.mrf.mxu0
        %v1897 = vadd.f32 %v1808, %v1896
        %v1898 = vpop.f32.mrf.mxu0
        %v1899 = vadd.f32 %v1810, %v1898
        %1900 = vmatmul.bf16.gmra.mxu0 %v1541
        %v1901 = vpop.f32.mrf.mxu0
        %v1902 = vadd.f32 %v1813, %v1901
        %v1903 = vpop.f32.mrf.mxu0
        %v1904 = vadd.f32 %v1815, %v1903
        %1905 = vmatmul.bf16.gmra.mxu0 %v1543
        %v1906 = vpop.f32.mrf.mxu0
        %v1907 = vadd.f32 %v1818, %v1906
        %v1908 = vpop.f32.mrf.mxu0
        %v1909 = vadd.f32 %v1820, %v1908
        %1910 = vmatmul.bf16.gmra.mxu0 %v1545
        %v1911 = vpop.f32.mrf.mxu0
        %v1912 = vadd.f32 %v1823, %v1911
        %v1913 = vpop.f32.mrf.mxu0
        %v1914 = vadd.f32 %v1825, %v1913
        %1915 = vmatmul.bf16.gmra.mxu0 %v1547
        %v1916 = vpop.f32.mrf.mxu0
        %v1917 = vadd.f32 %v1828, %v1916
        %v1918 = vpop.f32.mrf.mxu0
        %v1919 = vadd.f32 %v1830, %v1918
        %1920 = vmatmul.bf16.gmra.mxu0 %v1549
        %v1921 = vpop.f32.mrf.mxu0
        %v1922 = vadd.f32 %v1833, %v1921
        %v1923 = vpop.f32.mrf.mxu0
        %v1924 = vadd.f32 %v1835, %v1923
        %1925 = vdwg.mxu0
        %1926 = vmatpush.bf16.msra.mxu0 %v1699
        %1927 = vmatpush.bf16.msra.mxu0 %v1697
        %1928 = vmatpush.bf16.msra.mxu0 %v1695
        %1929 = vmatpush.bf16.msra.mxu0 %v1693
        %1930 = vmatpush.bf16.msra.mxu0 %v1691
        %1931 = vmatpush.bf16.msra.mxu0 %v1689
        %1932 = vmatpush.bf16.msra.mxu0 %v1687
        %1933 = vmatpush.bf16.msra.mxu0 %v1685
        %1934 = vmatmul.bf16.gmra.mxu0 %v1518
        %v1935 = vpop.f32.mrf.mxu0
        %v1936 = vadd.f32 %v1585, %v1935
        %v1937 = vpop.f32.mrf.mxu0
        %v1938 = vadd.f32 %v1585, %v1937
        %1939 = vmatmul.bf16.gmra.mxu0 %v1520
        %v1940 = vpop.f32.mrf.mxu0
        %v1941 = vadd.f32 %v1585, %v1940
        %v1942 = vpop.f32.mrf.mxu0
        %v1943 = vadd.f32 %v1585, %v1942
        %1944 = vmatmul.bf16.gmra.mxu0 %v1522
        %v1945 = vpop.f32.mrf.mxu0
        %v1946 = vadd.f32 %v1585, %v1945
        %v1947 = vpop.f32.mrf.mxu0
        %v1948 = vadd.f32 %v1585, %v1947
        %1949 = vmatmul.bf16.gmra.mxu0 %v1524
        %v1950 = vpop.f32.mrf.mxu0
        %v1951 = vadd.f32 %v1585, %v1950
        %v1952 = vpop.f32.mrf.mxu0
        %v1953 = vadd.f32 %v1585, %v1952
        %1954 = vmatmul.bf16.gmra.mxu0 %v1526
        %v1955 = vpop.f32.mrf.mxu0
        %v1956 = vadd.f32 %v1585, %v1955
        %v1957 = vpop.f32.mrf.mxu0
        %v1958 = vadd.f32 %v1585, %v1957
        %1959 = vmatmul.bf16.gmra.mxu0 %v1528
        %v1960 = vpop.f32.mrf.mxu0
        %v1961 = vadd.f32 %v1585, %v1960
        %v1962 = vpop.f32.mrf.mxu0
        %v1963 = vadd.f32 %v1585, %v1962
        %1964 = vmatmul.bf16.gmra.mxu0 %v1530
        %v1965 = vpop.f32.mrf.mxu0
        %v1966 = vadd.f32 %v1585, %v1965
        %v1967 = vpop.f32.mrf.mxu0
        %v1968 = vadd.f32 %v1585, %v1967
        %1969 = vmatmul.bf16.gmra.mxu0 %v1532
        %v1970 = vpop.f32.mrf.mxu0
        %v1971 = vadd.f32 %v1585, %v1970
        %v1972 = vpop.f32.mrf.mxu0
        %v1973 = vadd.f32 %v1585, %v1972
        %1974 = vmatmul.bf16.gmra.mxu0 %v1534
        %v1975 = vpop.f32.mrf.mxu0
        %v1976 = vadd.f32 %v1585, %v1975
        %v1977 = vpop.f32.mrf.mxu0
        %v1978 = vadd.f32 %v1585, %v1977
        %1979 = vmatmul.bf16.gmra.mxu0 %v1536
        %v1980 = vpop.f32.mrf.mxu0
        %v1981 = vadd.f32 %v1585, %v1980
        %v1982 = vpop.f32.mrf.mxu0
        %v1983 = vadd.f32 %v1585, %v1982
        %1984 = vmatmul.bf16.gmra.mxu0 %v1538
        %v1985 = vpop.f32.mrf.mxu0
        %v1986 = vadd.f32 %v1585, %v1985
        %v1987 = vpop.f32.mrf.mxu0
        %v1988 = vadd.f32 %v1585, %v1987
        %1989 = vmatmul.bf16.gmra.mxu0 %v1540
        %v1990 = vpop.f32.mrf.mxu0
        %v1991 = vadd.f32 %v1585, %v1990
        %v1992 = vpop.f32.mrf.mxu0
        %v1993 = vadd.f32 %v1585, %v1992
        %1994 = vmatmul.bf16.gmra.mxu0 %v1542
        %v1995 = vpop.f32.mrf.mxu0
        %v1996 = vadd.f32 %v1585, %v1995
        %v1997 = vpop.f32.mrf.mxu0
        %v1998 = vadd.f32 %v1585, %v1997
        %1999 = vmatmul.bf16.gmra.mxu0 %v1544
        %v2000 = vpop.f32.mrf.mxu0
        %v2001 = vadd.f32 %v1585, %v2000
        %v2002 = vpop.f32.mrf.mxu0
        %v2003 = vadd.f32 %v1585, %v2002
        %2004 = vmatmul.bf16.gmra.mxu0 %v1546
        %v2005 = vpop.f32.mrf.mxu0
        %v2006 = vadd.f32 %v1585, %v2005
        %v2007 = vpop.f32.mrf.mxu0
        %v2008 = vadd.f32 %v1585, %v2007
        %2009 = vmatmul.bf16.gmra.mxu0 %v1548
        %v2010 = vpop.f32.mrf.mxu0
        %v2011 = vadd.f32 %v1585, %v2010
        %v2012 = vpop.f32.mrf.mxu0
        %v2013 = vadd.f32 %v1585, %v2012
        %2014 = vdwg.mxu0
        %2015 = vmatpush.bf16.msra.mxu0 %v1715
        %2016 = vmatpush.bf16.msra.mxu0 %v1713
        %2017 = vmatpush.bf16.msra.mxu0 %v1711
        %2018 = vmatpush.bf16.msra.mxu0 %v1709
        %2019 = vmatpush.bf16.msra.mxu0 %v1707
        %2020 = vmatpush.bf16.msra.mxu0 %v1705
        %2021 = vmatpush.bf16.msra.mxu0 %v1703
        %2022 = vmatpush.bf16.msra.mxu0 %v1701
        %2023 = vmatmul.bf16.gmra.mxu0 %v1519
        %v2024 = vpop.f32.mrf.mxu0
        %v2025 = vadd.f32 %v1936, %v2024
        %v2026 = vpop.f32.mrf.mxu0
        %v2027 = vadd.f32 %v1938, %v2026
        %2028 = vmatmul.bf16.gmra.mxu0 %v1521
        %v2029 = vpop.f32.mrf.mxu0
        %v2030 = vadd.f32 %v1941, %v2029
        %v2031 = vpop.f32.mrf.mxu0
        %v2032 = vadd.f32 %v1943, %v2031
        %2033 = vmatmul.bf16.gmra.mxu0 %v1523
        %v2034 = vpop.f32.mrf.mxu0
        %v2035 = vadd.f32 %v1946, %v2034
        %v2036 = vpop.f32.mrf.mxu0
        %v2037 = vadd.f32 %v1948, %v2036
        %2038 = vmatmul.bf16.gmra.mxu0 %v1525
        %v2039 = vpop.f32.mrf.mxu0
        %v2040 = vadd.f32 %v1951, %v2039
        %v2041 = vpop.f32.mrf.mxu0
        %v2042 = vadd.f32 %v1953, %v2041
        %2043 = vmatmul.bf16.gmra.mxu0 %v1527
        %v2044 = vpop.f32.mrf.mxu0
        %v2045 = vadd.f32 %v1956, %v2044
        %v2046 = vpop.f32.mrf.mxu0
        %v2047 = vadd.f32 %v1958, %v2046
        %2048 = vmatmul.bf16.gmra.mxu0 %v1529
        %v2049 = vpop.f32.mrf.mxu0
        %v2050 = vadd.f32 %v1961, %v2049
        %v2051 = vpop.f32.mrf.mxu0
        %v2052 = vadd.f32 %v1963, %v2051
        %2053 = vmatmul.bf16.gmra.mxu0 %v1531
        %v2054 = vpop.f32.mrf.mxu0
        %v2055 = vadd.f32 %v1966, %v2054
        %v2056 = vpop.f32.mrf.mxu0
        %v2057 = vadd.f32 %v1968, %v2056
        %2058 = vmatmul.bf16.gmra.mxu0 %v1533
        %v2059 = vpop.f32.mrf.mxu0
        %v2060 = vadd.f32 %v1971, %v2059
        %v2061 = vpop.f32.mrf.mxu0
        %v2062 = vadd.f32 %v1973, %v2061
        %2063 = vmatmul.bf16.gmra.mxu0 %v1535
        %v2064 = vpop.f32.mrf.mxu0
        %v2065 = vadd.f32 %v1976, %v2064
        %v2066 = vpop.f32.mrf.mxu0
        %v2067 = vadd.f32 %v1978, %v2066
        %2068 = vmatmul.bf16.gmra.mxu0 %v1537
        %v2069 = vpop.f32.mrf.mxu0
        %v2070 = vadd.f32 %v1981, %v2069
        %v2071 = vpop.f32.mrf.mxu0
        %v2072 = vadd.f32 %v1983, %v2071
        %2073 = vmatmul.bf16.gmra.mxu0 %v1539
        %v2074 = vpop.f32.mrf.mxu0
        %v2075 = vadd.f32 %v1986, %v2074
        %v2076 = vpop.f32.mrf.mxu0
        %v2077 = vadd.f32 %v1988, %v2076
        %2078 = vmatmul.bf16.gmra.mxu0 %v1541
        %v2079 = vpop.f32.mrf.mxu0
        %v2080 = vadd.f32 %v1991, %v2079
        %v2081 = vpop.f32.mrf.mxu0
        %v2082 = vadd.f32 %v1993, %v2081
        %2083 = vmatmul.bf16.gmra.mxu0 %v1543
        %v2084 = vpop.f32.mrf.mxu0
        %v2085 = vadd.f32 %v1996, %v2084
        %v2086 = vpop.f32.mrf.mxu0
        %v2087 = vadd.f32 %v1998, %v2086
        %2088 = vmatmul.bf16.gmra.mxu0 %v1545
        %v2089 = vpop.f32.mrf.mxu0
        %v2090 = vadd.f32 %v2001, %v2089
        %v2091 = vpop.f32.mrf.mxu0
        %v2092 = vadd.f32 %v2003, %v2091
        %2093 = vmatmul.bf16.gmra.mxu0 %v1547
        %v2094 = vpop.f32.mrf.mxu0
        %v2095 = vadd.f32 %v2006, %v2094
        %v2096 = vpop.f32.mrf.mxu0
        %v2097 = vadd.f32 %v2008, %v2096
        %2098 = vmatmul.bf16.gmra.mxu0 %v1549
        %v2099 = vpop.f32.mrf.mxu0
        %v2100 = vadd.f32 %v2011, %v2099
        %v2101 = vpop.f32.mrf.mxu0
        %v2102 = vadd.f32 %v2013, %v2101
        %2103 = vdwg.mxu0
        %v2104 = vmax.f32 %v1847, 0.0
        %v2105 = vmax.f32 %v2025, 0.0
        %v2106 = vmax.f32 %v1849, 0.0
        %v2107 = vmax.f32 %v2027, 0.0
        %v2108 = vmax.f32 %v1852, 0.0
        %v2109 = vmax.f32 %v2030, 0.0
        %v2110 = vmax.f32 %v1854, 0.0
        %v2111 = vmax.f32 %v2032, 0.0
        %v2112 = vmax.f32 %v1857, 0.0
        %v2113 = vmax.f32 %v2035, 0.0
        %v2114 = vmax.f32 %v1859, 0.0
        %v2115 = vmax.f32 %v2037, 0.0
        %v2116 = vmax.f32 %v1862, 0.0
        %v2117 = vmax.f32 %v2040, 0.0
        %v2118 = vmax.f32 %v1864, 0.0
        %v2119 = vmax.f32 %v2042, 0.0
        %v2120 = vmax.f32 %v1867, 0.0
        %v2121 = vmax.f32 %v2045, 0.0
        %v2122 = vmax.f32 %v1869, 0.0
        %v2123 = vmax.f32 %v2047, 0.0
        %v2124 = vmax.f32 %v1872, 0.0
        %v2125 = vmax.f32 %v2050, 0.0
        %v2126 = vmax.f32 %v1874, 0.0
        %v2127 = vmax.f32 %v2052, 0.0
        %v2128 = vmax.f32 %v1877, 0.0
        %v2129 = vmax.f32 %v2055, 0.0
        %v2130 = vmax.f32 %v1879, 0.0
        %v2131 = vmax.f32 %v2057, 0.0
        %v2132 = vmax.f32 %v1882, 0.0
        %v2133 = vmax.f32 %v2060, 0.0
        %v2134 = vmax.f32 %v1884, 0.0
        %v2135 = vmax.f32 %v2062, 0.0
        %v2136 = vmax.f32 %v1887, 0.0
        %v2137 = vmax.f32 %v2065, 0.0
        %v2138 = vmax.f32 %v1889, 0.0
        %v2139 = vmax.f32 %v2067, 0.0
        %v2140 = vmax.f32 %v1892, 0.0
        %v2141 = vmax.f32 %v2070, 0.0
        %v2142 = vmax.f32 %v1894, 0.0
        %v2143 = vmax.f32 %v2072, 0.0
        %v2144 = vmax.f32 %v1897, 0.0
        %v2145 = vmax.f32 %v2075, 0.0
        %v2146 = vmax.f32 %v1899, 0.0
        %v2147 = vmax.f32 %v2077, 0.0
        %v2148 = vmax.f32 %v1902, 0.0
        %v2149 = vmax.f32 %v2080, 0.0
        %v2150 = vmax.f32 %v1904, 0.0
        %v2151 = vmax.f32 %v2082, 0.0
        %v2152 = vmax.f32 %v1907, 0.0
        %v2153 = vmax.f32 %v2085, 0.0
        %v2154 = vmax.f32 %v1909, 0.0
        %v2155 = vmax.f32 %v2087, 0.0
        %v2156 = vmax.f32 %v1912, 0.0
        %v2157 = vmax.f32 %v2090, 0.0
        %v2158 = vmax.f32 %v1914, 0.0
        %v2159 = vmax.f32 %v2092, 0.0
        %v2160 = vmax.f32 %v1917, 0.0
        %v2161 = vmax.f32 %v2095, 0.0
        %v2162 = vmax.f32 %v1919, 0.0
        %v2163 = vmax.f32 %v2097, 0.0
        %v2164 = vmax.f32 %v1922, 0.0
        %v2165 = vmax.f32 %v2100, 0.0
        %v2166 = vmax.f32 %v1924, 0.0
        %v2167 = vmax.f32 %v2102, 0.0
        %v2168 = vpack.c.bf16 %v2106, %v2104
        %v2169 = vpack.c.bf16 %v2107, %v2105
        %v2170 = vpack.c.bf16 %v2110, %v2108
        %v2171 = vpack.c.bf16 %v2111, %v2109
        %v2172 = vpack.c.bf16 %v2114, %v2112
        %v2173 = vpack.c.bf16 %v2115, %v2113
        %v2174 = vpack.c.bf16 %v2118, %v2116
        %v2175 = vpack.c.bf16 %v2119, %v2117
        %v2176 = vpack.c.bf16 %v2122, %v2120
        %v2177 = vpack.c.bf16 %v2123, %v2121
        %v2178 = vpack.c.bf16 %v2126, %v2124
        %v2179 = vpack.c.bf16 %v2127, %v2125
        %v2180 = vpack.c.bf16 %v2130, %v2128
        %v2181 = vpack.c.bf16 %v2131, %v2129
        %v2182 = vpack.c.bf16 %v2134, %v2132
        %v2183 = vpack.c.bf16 %v2135, %v2133
        %v2184 = vpack.c.bf16 %v2138, %v2136
        %v2185 = vpack.c.bf16 %v2139, %v2137
        %v2186 = vpack.c.bf16 %v2142, %v2140
        %v2187 = vpack.c.bf16 %v2143, %v2141
        %v2188 = vpack.c.bf16 %v2146, %v2144
        %v2189 = vpack.c.bf16 %v2147, %v2145
        %v2190 = vpack.c.bf16 %v2150, %v2148
        %v2191 = vpack.c.bf16 %v2151, %v2149
        %v2192 = vpack.c.bf16 %v2154, %v2152
        %v2193 = vpack.c.bf16 %v2155, %v2153
        %v2194 = vpack.c.bf16 %v2158, %v2156
        %v2195 = vpack.c.bf16 %v2159, %v2157
        %v2196 = vpack.c.bf16 %v2162, %v2160
        %v2197 = vpack.c.bf16 %v2163, %v2161
        %v2198 = vpack.c.bf16 %v2166, %v2164
        %v2199 = vpack.c.bf16 %v2167, %v2165
        %v2200 = vld [vmem:[%s6] sm:$0xff]
        %v2201 = vld [vmem:[%s6 + $0x8] sm:$0xff]
        %v2202 = vld [vmem:[%s6 + $0x10] sm:$0xff]
        %v2203 = vld [vmem:[%s6 + $0x18] sm:$0xff]
        %v2204 = vld [vmem:[%s6 + $0x20] sm:$0xff]
        %v2205 = vld [vmem:[%s6 + $0x28] sm:$0xff]
        %v2206 = vld [vmem:[%s6 + $0x30] sm:$0xff]
        %v2207 = vld [vmem:[%s6 + $0x38] sm:$0xff]
        %v2208 = vld [vmem:[%s6 + $0x40] sm:$0xff]
        %v2209 = vld [vmem:[%s6 + $0x48] sm:$0xff]
        %v2210 = vld [vmem:[%s6 + $0x50] sm:$0xff]
        %v2211 = vld [vmem:[%s6 + $0x58] sm:$0xff]
        %v2212 = vld [vmem:[%s6 + $0x60] sm:$0xff]
        %v2213 = vld [vmem:[%s6 + $0x68] sm:$0xff]
        %v2214 = vld [vmem:[%s6 + $0x70] sm:$0xff]
        %v2215 = vld [vmem:[%s6 + $0x78] sm:$0xff]
        %v2216 = vld [vmem:[%s6 + $0x80] sm:$0xff]
        %v2217 = vld [vmem:[%s6 + $0x88] sm:$0xff]
        %v2218 = vld [vmem:[%s6 + $0x90] sm:$0xff]
        %v2219 = vld [vmem:[%s6 + $0x98] sm:$0xff]
        %v2220 = vld [vmem:[%s6 + $0xa0] sm:$0xff]
        %v2221 = vld [vmem:[%s6 + $0xa8] sm:$0xff]
        %v2222 = vld [vmem:[%s6 + $0xb0] sm:$0xff]
        %v2223 = vld [vmem:[%s6 + $0xb8] sm:$0xff]
        %v2224 = vld [vmem:[%s6 + $0xc0] sm:$0xff]
        %v2225 = vld [vmem:[%s6 + $0xc8] sm:$0xff]
        %v2226 = vld [vmem:[%s6 + $0xd0] sm:$0xff]
        %v2227 = vld [vmem:[%s6 + $0xd8] sm:$0xff]
        %v2228 = vld [vmem:[%s6 + $0xe0] sm:$0xff]
        %v2229 = vld [vmem:[%s6 + $0xe8] sm:$0xff]
        %v2230 = vld [vmem:[%s6 + $0xf0] sm:$0xff]
        %v2231 = vld [vmem:[%s6 + $0xf8] sm:$0xff]
        %v2232 = vld [vmem:[#allocation8] sm:$0x3]
        %v2234 = vperm.slane %v2232, 0
        %v2235 = vperm.slane %v2232, 1
        %v2270 = vunpack.c.l.b16 %v2200
        %v2271 = vunpack.c.h.b16 %v2200
        %v2272 = vunpack.c.l.b16 %v2201
        %v2273 = vunpack.c.h.b16 %v2201
        %v2274 = vunpack.c.l.b16 %v2202
        %v2275 = vunpack.c.h.b16 %v2202
        %v2276 = vunpack.c.l.b16 %v2203
        %v2277 = vunpack.c.h.b16 %v2203
        %v2278 = vunpack.c.l.b16 %v2204
        %v2279 = vunpack.c.h.b16 %v2204
        %v2280 = vunpack.c.l.b16 %v2205
        %v2281 = vunpack.c.h.b16 %v2205
        %v2282 = vunpack.c.l.b16 %v2206
        %v2283 = vunpack.c.h.b16 %v2206
        %v2284 = vunpack.c.l.b16 %v2207
        %v2285 = vunpack.c.h.b16 %v2207
        %v2286 = vunpack.c.l.b16 %v2208
        %v2287 = vunpack.c.h.b16 %v2208
        %v2288 = vunpack.c.l.b16 %v2209
        %v2289 = vunpack.c.h.b16 %v2209
        %v2290 = vunpack.c.l.b16 %v2210
        %v2291 = vunpack.c.h.b16 %v2210
        %v2292 = vunpack.c.l.b16 %v2211
        %v2293 = vunpack.c.h.b16 %v2211
        %v2294 = vunpack.c.l.b16 %v2212
        %v2295 = vunpack.c.h.b16 %v2212
        %v2296 = vunpack.c.l.b16 %v2213
        %v2297 = vunpack.c.h.b16 %v2213
        %v2298 = vunpack.c.l.b16 %v2214
        %v2299 = vunpack.c.h.b16 %v2214
        %v2300 = vunpack.c.l.b16 %v2215
        %v2301 = vunpack.c.h.b16 %v2215
        %v2302 = vunpack.c.l.b16 %v2216
        %v2303 = vunpack.c.h.b16 %v2216
        %v2304 = vunpack.c.l.b16 %v2217
        %v2305 = vunpack.c.h.b16 %v2217
        %v2306 = vunpack.c.l.b16 %v2218
        %v2307 = vunpack.c.h.b16 %v2218
        %v2308 = vunpack.c.l.b16 %v2219
        %v2309 = vunpack.c.h.b16 %v2219
        %v2310 = vunpack.c.l.b16 %v2220
        %v2311 = vunpack.c.h.b16 %v2220
        %v2312 = vunpack.c.l.b16 %v2221
        %v2313 = vunpack.c.h.b16 %v2221
        %v2314 = vunpack.c.l.b16 %v2222
        %v2315 = vunpack.c.h.b16 %v2222
        %v2316 = vunpack.c.l.b16 %v2223
        %v2317 = vunpack.c.h.b16 %v2223
        %v2318 = vunpack.c.l.b16 %v2224
        %v2319 = vunpack.c.h.b16 %v2224
        %v2320 = vunpack.c.l.b16 %v2225
        %v2321 = vunpack.c.h.b16 %v2225
        %v2322 = vunpack.c.l.b16 %v2226
        %v2323 = vunpack.c.h.b16 %v2226
        %v2324 = vunpack.c.l.b16 %v2227
        %v2325 = vunpack.c.h.b16 %v2227
        %v2326 = vunpack.c.l.b16 %v2228
        %v2327 = vunpack.c.h.b16 %v2228
        %v2328 = vunpack.c.l.b16 %v2229
        %v2329 = vunpack.c.h.b16 %v2229
        %v2330 = vunpack.c.l.b16 %v2230
        %v2331 = vunpack.c.h.b16 %v2230
        %v2332 = vunpack.c.l.b16 %v2231
        %v2333 = vunpack.c.h.b16 %v2231
        %v2334 = vpack.c.b16 %v2272, %v2270
        %v2335 = vpack.c.b16 %v2273, %v2271
        %v2336 = vpack.c.b16 %v2276, %v2274
        %v2337 = vpack.c.b16 %v2277, %v2275
        %v2338 = vpack.c.b16 %v2280, %v2278
        %v2339 = vpack.c.b16 %v2281, %v2279
        %v2340 = vpack.c.b16 %v2284, %v2282
        %v2341 = vpack.c.b16 %v2285, %v2283
        %v2342 = vpack.c.b16 %v2288, %v2286
        %v2343 = vpack.c.b16 %v2289, %v2287
        %v2344 = vpack.c.b16 %v2292, %v2290
        %v2345 = vpack.c.b16 %v2293, %v2291
        %v2346 = vpack.c.b16 %v2296, %v2294
        %v2347 = vpack.c.b16 %v2297, %v2295
        %v2348 = vpack.c.b16 %v2300, %v2298
        %v2349 = vpack.c.b16 %v2301, %v2299
        %v2350 = vpack.c.b16 %v2304, %v2302
        %v2351 = vpack.c.b16 %v2305, %v2303
        %v2352 = vpack.c.b16 %v2308, %v2306
        %v2353 = vpack.c.b16 %v2309, %v2307
        %v2354 = vpack.c.b16 %v2312, %v2310
        %v2355 = vpack.c.b16 %v2313, %v2311
        %v2356 = vpack.c.b16 %v2316, %v2314
        %v2357 = vpack.c.b16 %v2317, %v2315
        %v2358 = vpack.c.b16 %v2320, %v2318
        %v2359 = vpack.c.b16 %v2321, %v2319
        %v2360 = vpack.c.b16 %v2324, %v2322
        %v2361 = vpack.c.b16 %v2325, %v2323
        %v2362 = vpack.c.b16 %v2328, %v2326
        %v2363 = vpack.c.b16 %v2329, %v2327
        %v2364 = vpack.c.b16 %v2332, %v2330
        %v2365 = vpack.c.b16 %v2333, %v2331
        %2398 = vmatpush.bf16.msra.mxu0 %v2348
        %2399 = vmatpush.bf16.msra.mxu0 %v2346
        %2400 = vmatpush.bf16.msra.mxu0 %v2344
        %2401 = vmatpush.bf16.msra.mxu0 %v2342
        %2402 = vmatpush.bf16.msra.mxu0 %v2340
        %2403 = vmatpush.bf16.msra.mxu0 %v2338
        %2404 = vmatpush.bf16.msra.mxu0 %v2336
        %2405 = vmatpush.bf16.msra.mxu0 %v2334
        %2406 = vmatmul.bf16.gmra.mxu0 %v2168
        %v2407 = vpop.f32.mrf.mxu0
        %v2408 = vadd.f32 %v2234, %v2407
        %v2409 = vpop.f32.mrf.mxu0
        %v2410 = vadd.f32 %v2234, %v2409
        %2411 = vmatmul.bf16.gmra.mxu0 %v2170
        %v2412 = vpop.f32.mrf.mxu0
        %v2413 = vadd.f32 %v2234, %v2412
        %v2414 = vpop.f32.mrf.mxu0
        %v2415 = vadd.f32 %v2234, %v2414
        %2416 = vmatmul.bf16.gmra.mxu0 %v2172
        %v2417 = vpop.f32.mrf.mxu0
        %v2418 = vadd.f32 %v2234, %v2417
        %v2419 = vpop.f32.mrf.mxu0
        %v2420 = vadd.f32 %v2234, %v2419
        %2421 = vmatmul.bf16.gmra.mxu0 %v2174
        %v2422 = vpop.f32.mrf.mxu0
        %v2423 = vadd.f32 %v2234, %v2422
        %v2424 = vpop.f32.mrf.mxu0
        %v2425 = vadd.f32 %v2234, %v2424
        %2426 = vmatmul.bf16.gmra.mxu0 %v2176
        %v2427 = vpop.f32.mrf.mxu0
        %v2428 = vadd.f32 %v2234, %v2427
        %v2429 = vpop.f32.mrf.mxu0
        %v2430 = vadd.f32 %v2234, %v2429
        %2431 = vmatmul.bf16.gmra.mxu0 %v2178
        %v2432 = vpop.f32.mrf.mxu0
        %v2433 = vadd.f32 %v2234, %v2432
        %v2434 = vpop.f32.mrf.mxu0
        %v2435 = vadd.f32 %v2234, %v2434
        %2436 = vmatmul.bf16.gmra.mxu0 %v2180
        %v2437 = vpop.f32.mrf.mxu0
        %v2438 = vadd.f32 %v2234, %v2437
        %v2439 = vpop.f32.mrf.mxu0
        %v2440 = vadd.f32 %v2234, %v2439
        %2441 = vmatmul.bf16.gmra.mxu0 %v2182
        %v2442 = vpop.f32.mrf.mxu0
        %v2443 = vadd.f32 %v2234, %v2442
        %v2444 = vpop.f32.mrf.mxu0
        %v2445 = vadd.f32 %v2234, %v2444
        %2446 = vmatmul.bf16.gmra.mxu0 %v2184
        %v2447 = vpop.f32.mrf.mxu0
        %v2448 = vadd.f32 %v2234, %v2447
        %v2449 = vpop.f32.mrf.mxu0
        %v2450 = vadd.f32 %v2234, %v2449
        %2451 = vmatmul.bf16.gmra.mxu0 %v2186
        %v2452 = vpop.f32.mrf.mxu0
        %v2453 = vadd.f32 %v2234, %v2452
        %v2454 = vpop.f32.mrf.mxu0
        %v2455 = vadd.f32 %v2234, %v2454
        %2456 = vmatmul.bf16.gmra.mxu0 %v2188
        %v2457 = vpop.f32.mrf.mxu0
        %v2458 = vadd.f32 %v2234, %v2457
        %v2459 = vpop.f32.mrf.mxu0
        %v2460 = vadd.f32 %v2234, %v2459
        %2461 = vmatmul.bf16.gmra.mxu0 %v2190
        %v2462 = vpop.f32.mrf.mxu0
        %v2463 = vadd.f32 %v2234, %v2462
        %v2464 = vpop.f32.mrf.mxu0
        %v2465 = vadd.f32 %v2234, %v2464
        %2466 = vmatmul.bf16.gmra.mxu0 %v2192
        %v2467 = vpop.f32.mrf.mxu0
        %v2468 = vadd.f32 %v2234, %v2467
        %v2469 = vpop.f32.mrf.mxu0
        %v2470 = vadd.f32 %v2234, %v2469
        %2471 = vmatmul.bf16.gmra.mxu0 %v2194
        %v2472 = vpop.f32.mrf.mxu0
        %v2473 = vadd.f32 %v2234, %v2472
        %v2474 = vpop.f32.mrf.mxu0
        %v2475 = vadd.f32 %v2234, %v2474
        %2476 = vmatmul.bf16.gmra.mxu0 %v2196
        %v2477 = vpop.f32.mrf.mxu0
        %v2478 = vadd.f32 %v2234, %v2477
        %v2479 = vpop.f32.mrf.mxu0
        %v2480 = vadd.f32 %v2234, %v2479
        %2481 = vmatmul.bf16.gmra.mxu0 %v2198
        %v2482 = vpop.f32.mrf.mxu0
        %v2483 = vadd.f32 %v2234, %v2482
        %v2484 = vpop.f32.mrf.mxu0
        %v2485 = vadd.f32 %v2234, %v2484
        %2486 = vdwg.mxu0
        %2487 = vmatpush.bf16.msra.mxu0 %v2364
        %2488 = vmatpush.bf16.msra.mxu0 %v2362
        %2489 = vmatpush.bf16.msra.mxu0 %v2360
        %2490 = vmatpush.bf16.msra.mxu0 %v2358
        %2491 = vmatpush.bf16.msra.mxu0 %v2356
        %2492 = vmatpush.bf16.msra.mxu0 %v2354
        %2493 = vmatpush.bf16.msra.mxu0 %v2352
        %2494 = vmatpush.bf16.msra.mxu0 %v2350
        %2495 = vmatmul.bf16.gmra.mxu0 %v2169
        %v2496 = vpop.f32.mrf.mxu0
        %v2497 = vadd.f32 %v2408, %v2496
        %v2498 = vpop.f32.mrf.mxu0
        %v2499 = vadd.f32 %v2410, %v2498
        %2500 = vmatmul.bf16.gmra.mxu0 %v2171
        %v2501 = vpop.f32.mrf.mxu0
        %v2502 = vadd.f32 %v2413, %v2501
        %v2503 = vpop.f32.mrf.mxu0
        %v2504 = vadd.f32 %v2415, %v2503
        %2505 = vmatmul.bf16.gmra.mxu0 %v2173
        %v2506 = vpop.f32.mrf.mxu0
        %v2507 = vadd.f32 %v2418, %v2506
        %v2508 = vpop.f32.mrf.mxu0
        %v2509 = vadd.f32 %v2420, %v2508
        %2510 = vmatmul.bf16.gmra.mxu0 %v2175
        %v2511 = vpop.f32.mrf.mxu0
        %v2512 = vadd.f32 %v2423, %v2511
        %v2513 = vpop.f32.mrf.mxu0
        %v2514 = vadd.f32 %v2425, %v2513
        %2515 = vmatmul.bf16.gmra.mxu0 %v2177
        %v2516 = vpop.f32.mrf.mxu0
        %v2517 = vadd.f32 %v2428, %v2516
        %v2518 = vpop.f32.mrf.mxu0
        %v2519 = vadd.f32 %v2430, %v2518
        %2520 = vmatmul.bf16.gmra.mxu0 %v2179
        %v2521 = vpop.f32.mrf.mxu0
        %v2522 = vadd.f32 %v2433, %v2521
        %v2523 = vpop.f32.mrf.mxu0
        %v2524 = vadd.f32 %v2435, %v2523
        %2525 = vmatmul.bf16.gmra.mxu0 %v2181
        %v2526 = vpop.f32.mrf.mxu0
        %v2527 = vadd.f32 %v2438, %v2526
        %v2528 = vpop.f32.mrf.mxu0
        %v2529 = vadd.f32 %v2440, %v2528
        %2530 = vmatmul.bf16.gmra.mxu0 %v2183
        %v2531 = vpop.f32.mrf.mxu0
        %v2532 = vadd.f32 %v2443, %v2531
        %v2533 = vpop.f32.mrf.mxu0
        %v2534 = vadd.f32 %v2445, %v2533
        %2535 = vmatmul.bf16.gmra.mxu0 %v2185
        %v2536 = vpop.f32.mrf.mxu0
        %v2537 = vadd.f32 %v2448, %v2536
        %v2538 = vpop.f32.mrf.mxu0
        %v2539 = vadd.f32 %v2450, %v2538
        %2540 = vmatmul.bf16.gmra.mxu0 %v2187
        %v2541 = vpop.f32.mrf.mxu0
        %v2542 = vadd.f32 %v2453, %v2541
        %v2543 = vpop.f32.mrf.mxu0
        %v2544 = vadd.f32 %v2455, %v2543
        %2545 = vmatmul.bf16.gmra.mxu0 %v2189
        %v2546 = vpop.f32.mrf.mxu0
        %v2547 = vadd.f32 %v2458, %v2546
        %v2548 = vpop.f32.mrf.mxu0
        %v2549 = vadd.f32 %v2460, %v2548
        %2550 = vmatmul.bf16.gmra.mxu0 %v2191
        %v2551 = vpop.f32.mrf.mxu0
        %v2552 = vadd.f32 %v2463, %v2551
        %v2553 = vpop.f32.mrf.mxu0
        %v2554 = vadd.f32 %v2465, %v2553
        %2555 = vmatmul.bf16.gmra.mxu0 %v2193
        %v2556 = vpop.f32.mrf.mxu0
        %v2557 = vadd.f32 %v2468, %v2556
        %v2558 = vpop.f32.mrf.mxu0
        %v2559 = vadd.f32 %v2470, %v2558
        %2560 = vmatmul.bf16.gmra.mxu0 %v2195
        %v2561 = vpop.f32.mrf.mxu0
        %v2562 = vadd.f32 %v2473, %v2561
        %v2563 = vpop.f32.mrf.mxu0
        %v2564 = vadd.f32 %v2475, %v2563
        %2565 = vmatmul.bf16.gmra.mxu0 %v2197
        %v2566 = vpop.f32.mrf.mxu0
        %v2567 = vadd.f32 %v2478, %v2566
        %v2568 = vpop.f32.mrf.mxu0
        %v2569 = vadd.f32 %v2480, %v2568
        %2570 = vmatmul.bf16.gmra.mxu0 %v2199
        %v2571 = vpop.f32.mrf.mxu0
        %v2572 = vadd.f32 %v2483, %v2571
        %v2573 = vpop.f32.mrf.mxu0
        %v2574 = vadd.f32 %v2485, %v2573
        %2575 = vdwg.mxu0
        %2576 = vmatpush.bf16.msra.mxu0 %v2349
        %2577 = vmatpush.bf16.msra.mxu0 %v2347
        %2578 = vmatpush.bf16.msra.mxu0 %v2345
        %2579 = vmatpush.bf16.msra.mxu0 %v2343
        %2580 = vmatpush.bf16.msra.mxu0 %v2341
        %2581 = vmatpush.bf16.msra.mxu0 %v2339
        %2582 = vmatpush.bf16.msra.mxu0 %v2337
        %2583 = vmatpush.bf16.msra.mxu0 %v2335
        %2584 = vmatmul.bf16.gmra.mxu0 %v2168
        %v2585 = vpop.f32.mrf.mxu0
        %v2586 = vadd.f32 %v2235, %v2585
        %v2587 = vpop.f32.mrf.mxu0
        %v2588 = vadd.f32 %v2235, %v2587
        %2589 = vmatmul.bf16.gmra.mxu0 %v2170
        %v2590 = vpop.f32.mrf.mxu0
        %v2591 = vadd.f32 %v2235, %v2590
        %v2592 = vpop.f32.mrf.mxu0
        %v2593 = vadd.f32 %v2235, %v2592
        %2594 = vmatmul.bf16.gmra.mxu0 %v2172
        %v2595 = vpop.f32.mrf.mxu0
        %v2596 = vadd.f32 %v2235, %v2595
        %v2597 = vpop.f32.mrf.mxu0
        %v2598 = vadd.f32 %v2235, %v2597
        %2599 = vmatmul.bf16.gmra.mxu0 %v2174
        %v2600 = vpop.f32.mrf.mxu0
        %v2601 = vadd.f32 %v2235, %v2600
        %v2602 = vpop.f32.mrf.mxu0
        %v2603 = vadd.f32 %v2235, %v2602
        %2604 = vmatmul.bf16.gmra.mxu0 %v2176
        %v2605 = vpop.f32.mrf.mxu0
        %v2606 = vadd.f32 %v2235, %v2605
        %v2607 = vpop.f32.mrf.mxu0
        %v2608 = vadd.f32 %v2235, %v2607
        %2609 = vmatmul.bf16.gmra.mxu0 %v2178
        %v2610 = vpop.f32.mrf.mxu0
        %v2611 = vadd.f32 %v2235, %v2610
        %v2612 = vpop.f32.mrf.mxu0
        %v2613 = vadd.f32 %v2235, %v2612
        %2614 = vmatmul.bf16.gmra.mxu0 %v2180
        %v2615 = vpop.f32.mrf.mxu0
        %v2616 = vadd.f32 %v2235, %v2615
        %v2617 = vpop.f32.mrf.mxu0
        %v2618 = vadd.f32 %v2235, %v2617
        %2619 = vmatmul.bf16.gmra.mxu0 %v2182
        %v2620 = vpop.f32.mrf.mxu0
        %v2621 = vadd.f32 %v2235, %v2620
        %v2622 = vpop.f32.mrf.mxu0
        %v2623 = vadd.f32 %v2235, %v2622
        %2624 = vmatmul.bf16.gmra.mxu0 %v2184
        %v2625 = vpop.f32.mrf.mxu0
        %v2626 = vadd.f32 %v2235, %v2625
        %v2627 = vpop.f32.mrf.mxu0
        %v2628 = vadd.f32 %v2235, %v2627
        %2629 = vmatmul.bf16.gmra.mxu0 %v2186
        %v2630 = vpop.f32.mrf.mxu0
        %v2631 = vadd.f32 %v2235, %v2630
        %v2632 = vpop.f32.mrf.mxu0
        %v2633 = vadd.f32 %v2235, %v2632
        %2634 = vmatmul.bf16.gmra.mxu0 %v2188
        %v2635 = vpop.f32.mrf.mxu0
        %v2636 = vadd.f32 %v2235, %v2635
        %v2637 = vpop.f32.mrf.mxu0
        %v2638 = vadd.f32 %v2235, %v2637
        %2639 = vmatmul.bf16.gmra.mxu0 %v2190
        %v2640 = vpop.f32.mrf.mxu0
        %v2641 = vadd.f32 %v2235, %v2640
        %v2642 = vpop.f32.mrf.mxu0
        %v2643 = vadd.f32 %v2235, %v2642
        %2644 = vmatmul.bf16.gmra.mxu0 %v2192
        %v2645 = vpop.f32.mrf.mxu0
        %v2646 = vadd.f32 %v2235, %v2645
        %v2647 = vpop.f32.mrf.mxu0
        %v2648 = vadd.f32 %v2235, %v2647
        %2649 = vmatmul.bf16.gmra.mxu0 %v2194
        %v2650 = vpop.f32.mrf.mxu0
        %v2651 = vadd.f32 %v2235, %v2650
        %v2652 = vpop.f32.mrf.mxu0
        %v2653 = vadd.f32 %v2235, %v2652
        %2654 = vmatmul.bf16.gmra.mxu0 %v2196
        %v2655 = vpop.f32.mrf.mxu0
        %v2656 = vadd.f32 %v2235, %v2655
        %v2657 = vpop.f32.mrf.mxu0
        %v2658 = vadd.f32 %v2235, %v2657
        %2659 = vmatmul.bf16.gmra.mxu0 %v2198
        %v2660 = vpop.f32.mrf.mxu0
        %v2661 = vadd.f32 %v2235, %v2660
        %v2662 = vpop.f32.mrf.mxu0
        %v2663 = vadd.f32 %v2235, %v2662
        %2664 = vdwg.mxu0
        %2665 = vmatpush.bf16.msra.mxu0 %v2365
        %2666 = vmatpush.bf16.msra.mxu0 %v2363
        %2667 = vmatpush.bf16.msra.mxu0 %v2361
        %2668 = vmatpush.bf16.msra.mxu0 %v2359
        %2669 = vmatpush.bf16.msra.mxu0 %v2357
        %2670 = vmatpush.bf16.msra.mxu0 %v2355
        %2671 = vmatpush.bf16.msra.mxu0 %v2353
        %2672 = vmatpush.bf16.msra.mxu0 %v2351
        %2673 = vmatmul.bf16.gmra.mxu0 %v2169
        %v2674 = vpop.f32.mrf.mxu0
        %v2675 = vadd.f32 %v2586, %v2674
        %v2676 = vpop.f32.mrf.mxu0
        %v2677 = vadd.f32 %v2588, %v2676
        %2678 = vmatmul.bf16.gmra.mxu0 %v2171
        %v2679 = vpop.f32.mrf.mxu0
        %v2680 = vadd.f32 %v2591, %v2679
        %v2681 = vpop.f32.mrf.mxu0
        %v2682 = vadd.f32 %v2593, %v2681
        %2683 = vmatmul.bf16.gmra.mxu0 %v2173
        %v2684 = vpop.f32.mrf.mxu0
        %v2685 = vadd.f32 %v2596, %v2684
        %v2686 = vpop.f32.mrf.mxu0
        %v2687 = vadd.f32 %v2598, %v2686
        %2688 = vmatmul.bf16.gmra.mxu0 %v2175
        %v2689 = vpop.f32.mrf.mxu0
        %v2690 = vadd.f32 %v2601, %v2689
        %v2691 = vpop.f32.mrf.mxu0
        %v2692 = vadd.f32 %v2603, %v2691
        %2693 = vmatmul.bf16.gmra.mxu0 %v2177
        %v2694 = vpop.f32.mrf.mxu0
        %v2695 = vadd.f32 %v2606, %v2694
        %v2696 = vpop.f32.mrf.mxu0
        %v2697 = vadd.f32 %v2608, %v2696
        %2698 = vmatmul.bf16.gmra.mxu0 %v2179
        %v2699 = vpop.f32.mrf.mxu0
        %v2700 = vadd.f32 %v2611, %v2699
        %v2701 = vpop.f32.mrf.mxu0
        %v2702 = vadd.f32 %v2613, %v2701
        %2703 = vmatmul.bf16.gmra.mxu0 %v2181
        %v2704 = vpop.f32.mrf.mxu0
        %v2705 = vadd.f32 %v2616, %v2704
        %v2706 = vpop.f32.mrf.mxu0
        %v2707 = vadd.f32 %v2618, %v2706
        %2708 = vmatmul.bf16.gmra.mxu0 %v2183
        %v2709 = vpop.f32.mrf.mxu0
        %v2710 = vadd.f32 %v2621, %v2709
        %v2711 = vpop.f32.mrf.mxu0
        %v2712 = vadd.f32 %v2623, %v2711
        %2713 = vmatmul.bf16.gmra.mxu0 %v2185
        %v2714 = vpop.f32.mrf.mxu0
        %v2715 = vadd.f32 %v2626, %v2714
        %v2716 = vpop.f32.mrf.mxu0
        %v2717 = vadd.f32 %v2628, %v2716
        %2718 = vmatmul.bf16.gmra.mxu0 %v2187
        %v2719 = vpop.f32.mrf.mxu0
        %v2720 = vadd.f32 %v2631, %v2719
        %v2721 = vpop.f32.mrf.mxu0
        %v2722 = vadd.f32 %v2633, %v2721
        %2723 = vmatmul.bf16.gmra.mxu0 %v2189
        %v2724 = vpop.f32.mrf.mxu0
        %v2725 = vadd.f32 %v2636, %v2724
        %v2726 = vpop.f32.mrf.mxu0
        %v2727 = vadd.f32 %v2638, %v2726
        %2728 = vmatmul.bf16.gmra.mxu0 %v2191
        %v2729 = vpop.f32.mrf.mxu0
        %v2730 = vadd.f32 %v2641, %v2729
        %v2731 = vpop.f32.mrf.mxu0
        %v2732 = vadd.f32 %v2643, %v2731
        %2733 = vmatmul.bf16.gmra.mxu0 %v2193
        %v2734 = vpop.f32.mrf.mxu0
        %v2735 = vadd.f32 %v2646, %v2734
        %v2736 = vpop.f32.mrf.mxu0
        %v2737 = vadd.f32 %v2648, %v2736
        %2738 = vmatmul.bf16.gmra.mxu0 %v2195
        %v2739 = vpop.f32.mrf.mxu0
        %v2740 = vadd.f32 %v2651, %v2739
        %v2741 = vpop.f32.mrf.mxu0
        %v2742 = vadd.f32 %v2653, %v2741
        %2743 = vmatmul.bf16.gmra.mxu0 %v2197
        %v2744 = vpop.f32.mrf.mxu0
        %v2745 = vadd.f32 %v2656, %v2744
        %v2746 = vpop.f32.mrf.mxu0
        %v2747 = vadd.f32 %v2658, %v2746
        %2748 = vmatmul.bf16.gmra.mxu0 %v2199
        %v2749 = vpop.f32.mrf.mxu0
        %v2750 = vadd.f32 %v2661, %v2749
        %v2751 = vpop.f32.mrf.mxu0
        %v2752 = vadd.f32 %v2663, %v2751
        %2753 = vdwg.mxu0
        %v2754 = vmax.f32 %v2497, 0.0
        %v2755 = vmax.f32 %v2675, 0.0
        %v2756 = vmax.f32 %v2499, 0.0
        %v2757 = vmax.f32 %v2677, 0.0
        %v2758 = vmax.f32 %v2502, 0.0
        %v2759 = vmax.f32 %v2680, 0.0
        %v2760 = vmax.f32 %v2504, 0.0
        %v2761 = vmax.f32 %v2682, 0.0
        %v2762 = vmax.f32 %v2507, 0.0
        %v2763 = vmax.f32 %v2685, 0.0
        %v2764 = vmax.f32 %v2509, 0.0
        %v2765 = vmax.f32 %v2687, 0.0
        %v2766 = vmax.f32 %v2512, 0.0
        %v2767 = vmax.f32 %v2690, 0.0
        %v2768 = vmax.f32 %v2514, 0.0
        %v2769 = vmax.f32 %v2692, 0.0
        %v2770 = vmax.f32 %v2517, 0.0
        %v2771 = vmax.f32 %v2695, 0.0
        %v2772 = vmax.f32 %v2519, 0.0
        %v2773 = vmax.f32 %v2697, 0.0
        %v2774 = vmax.f32 %v2522, 0.0
        %v2775 = vmax.f32 %v2700, 0.0
        %v2776 = vmax.f32 %v2524, 0.0
        %v2777 = vmax.f32 %v2702, 0.0
        %v2778 = vmax.f32 %v2527, 0.0
        %v2779 = vmax.f32 %v2705, 0.0
        %v2780 = vmax.f32 %v2529, 0.0
        %v2781 = vmax.f32 %v2707, 0.0
        %v2782 = vmax.f32 %v2532, 0.0
        %v2783 = vmax.f32 %v2710, 0.0
        %v2784 = vmax.f32 %v2534, 0.0
        %v2785 = vmax.f32 %v2712, 0.0
        %v2786 = vmax.f32 %v2537, 0.0
        %v2787 = vmax.f32 %v2715, 0.0
        %v2788 = vmax.f32 %v2539, 0.0
        %v2789 = vmax.f32 %v2717, 0.0
        %v2790 = vmax.f32 %v2542, 0.0
        %v2791 = vmax.f32 %v2720, 0.0
        %v2792 = vmax.f32 %v2544, 0.0
        %v2793 = vmax.f32 %v2722, 0.0
        %v2794 = vmax.f32 %v2547, 0.0
        %v2795 = vmax.f32 %v2725, 0.0
        %v2796 = vmax.f32 %v2549, 0.0
        %v2797 = vmax.f32 %v2727, 0.0
        %v2798 = vmax.f32 %v2552, 0.0
        %v2799 = vmax.f32 %v2730, 0.0
        %v2800 = vmax.f32 %v2554, 0.0
        %v2801 = vmax.f32 %v2732, 0.0
        %v2802 = vmax.f32 %v2557, 0.0
        %v2803 = vmax.f32 %v2735, 0.0
        %v2804 = vmax.f32 %v2559, 0.0
        %v2805 = vmax.f32 %v2737, 0.0
        %v2806 = vmax.f32 %v2562, 0.0
        %v2807 = vmax.f32 %v2740, 0.0
        %v2808 = vmax.f32 %v2564, 0.0
        %v2809 = vmax.f32 %v2742, 0.0
        %v2810 = vmax.f32 %v2567, 0.0
        %v2811 = vmax.f32 %v2745, 0.0
        %v2812 = vmax.f32 %v2569, 0.0
        %v2813 = vmax.f32 %v2747, 0.0
        %v2814 = vmax.f32 %v2572, 0.0
        %v2815 = vmax.f32 %v2750, 0.0
        %v2816 = vmax.f32 %v2574, 0.0
        %v2817 = vmax.f32 %v2752, 0.0
        %v2818 = vpack.c.bf16 %v2756, %v2754
        %v2819 = vpack.c.bf16 %v2757, %v2755
        %v2820 = vpack.c.bf16 %v2760, %v2758
        %v2821 = vpack.c.bf16 %v2761, %v2759
        %v2822 = vpack.c.bf16 %v2764, %v2762
        %v2823 = vpack.c.bf16 %v2765, %v2763
        %v2824 = vpack.c.bf16 %v2768, %v2766
        %v2825 = vpack.c.bf16 %v2769, %v2767
        %v2826 = vpack.c.bf16 %v2772, %v2770
        %v2827 = vpack.c.bf16 %v2773, %v2771
        %v2828 = vpack.c.bf16 %v2776, %v2774
        %v2829 = vpack.c.bf16 %v2777, %v2775
        %v2830 = vpack.c.bf16 %v2780, %v2778
        %v2831 = vpack.c.bf16 %v2781, %v2779
        %v2832 = vpack.c.bf16 %v2784, %v2782
        %v2833 = vpack.c.bf16 %v2785, %v2783
        %v2834 = vpack.c.bf16 %v2788, %v2786
        %v2835 = vpack.c.bf16 %v2789, %v2787
        %v2836 = vpack.c.bf16 %v2792, %v2790
        %v2837 = vpack.c.bf16 %v2793, %v2791
        %v2838 = vpack.c.bf16 %v2796, %v2794
        %v2839 = vpack.c.bf16 %v2797, %v2795
        %v2840 = vpack.c.bf16 %v2800, %v2798
        %v2841 = vpack.c.bf16 %v2801, %v2799
        %v2842 = vpack.c.bf16 %v2804, %v2802
        %v2843 = vpack.c.bf16 %v2805, %v2803
        %v2844 = vpack.c.bf16 %v2808, %v2806
        %v2845 = vpack.c.bf16 %v2809, %v2807
        %v2846 = vpack.c.bf16 %v2812, %v2810
        %v2847 = vpack.c.bf16 %v2813, %v2811
        %v2848 = vpack.c.bf16 %v2816, %v2814
        %v2849 = vpack.c.bf16 %v2817, %v2815
        %v2850 = vld [vmem:[#allocation10] sm:$0xf]
        %v2851 = vld [vmem:[#allocation10 + $0x4] sm:$0xf]
        %v2852 = vld [vmem:[#allocation10 + $0x8] sm:$0xf]
        %v2853 = vld [vmem:[#allocation10 + $0xc] sm:$0xf]
        %v2854 = vld [vmem:[#allocation10 + $0x10] sm:$0xf]
        %v2855 = vld [vmem:[#allocation10 + $0x14] sm:$0xf]
        %v2856 = vld [vmem:[#allocation10 + $0x18] sm:$0xf]
        %v2857 = vld [vmem:[#allocation10 + $0x1c] sm:$0xf]
        %v2858 = vld [vmem:[#allocation10 + $0x20] sm:$0xf]
        %v2859 = vld [vmem:[#allocation10 + $0x24] sm:$0xf]
        %v2860 = vld [vmem:[#allocation10 + $0x28] sm:$0xf]
        %v2861 = vld [vmem:[#allocation10 + $0x2c] sm:$0xf]
        %v2862 = vld [vmem:[#allocation10 + $0x30] sm:$0xf]
        %v2863 = vld [vmem:[#allocation10 + $0x34] sm:$0xf]
        %v2864 = vld [vmem:[#allocation10 + $0x38] sm:$0xf]
        %v2865 = vld [vmem:[#allocation10 + $0x3c] sm:$0xf]
        %v2866 = vld [vmem:[#allocation10 + $0x40] sm:$0xf]
        %v2867 = vld [vmem:[#allocation10 + $0x44] sm:$0xf]
        %v2868 = vld [vmem:[#allocation10 + $0x48] sm:$0xf]
        %v2869 = vld [vmem:[#allocation10 + $0x4c] sm:$0xf]
        %v2870 = vld [vmem:[#allocation10 + $0x50] sm:$0xf]
        %v2871 = vld [vmem:[#allocation10 + $0x54] sm:$0xf]
        %v2872 = vld [vmem:[#allocation10 + $0x58] sm:$0xf]
        %v2873 = vld [vmem:[#allocation10 + $0x5c] sm:$0xf]
        %v2874 = vld [vmem:[#allocation10 + $0x60] sm:$0xf]
        %v2875 = vld [vmem:[#allocation10 + $0x64] sm:$0xf]
        %v2876 = vld [vmem:[#allocation10 + $0x68] sm:$0xf]
        %v2877 = vld [vmem:[#allocation10 + $0x6c] sm:$0xf]
        %v2878 = vld [vmem:[#allocation10 + $0x70] sm:$0xf]
        %v2879 = vld [vmem:[#allocation10 + $0x74] sm:$0xf]
        %v2880 = vld [vmem:[#allocation10 + $0x78] sm:$0xf]
        %v2881 = vld [vmem:[#allocation10 + $0x7c] sm:$0xf]
        %v2882 = vld [vmem:[#allocation11] sm:$0x1]
        %v2884 = vperm.slane %v2882, 0
        %v2918 = vunpack.c.l.b16 %v2850
        %v2919 = vunpack.c.l.b16 %v2851
        %v2920 = vunpack.c.l.b16 %v2852
        %v2921 = vunpack.c.l.b16 %v2853
        %v2922 = vunpack.c.l.b16 %v2854
        %v2923 = vunpack.c.l.b16 %v2855
        %v2924 = vunpack.c.l.b16 %v2856
        %v2925 = vunpack.c.l.b16 %v2857
        %v2926 = vunpack.c.l.b16 %v2858
        %v2927 = vunpack.c.l.b16 %v2859
        %v2928 = vunpack.c.l.b16 %v2860
        %v2929 = vunpack.c.l.b16 %v2861
        %v2930 = vunpack.c.l.b16 %v2862
        %v2931 = vunpack.c.l.b16 %v2863
        %v2932 = vunpack.c.l.b16 %v2864
        %v2933 = vunpack.c.l.b16 %v2865
        %v2934 = vunpack.c.l.b16 %v2866
        %v2935 = vunpack.c.l.b16 %v2867
        %v2936 = vunpack.c.l.b16 %v2868
        %v2937 = vunpack.c.l.b16 %v2869
        %v2938 = vunpack.c.l.b16 %v2870
        %v2939 = vunpack.c.l.b16 %v2871
        %v2940 = vunpack.c.l.b16 %v2872
        %v2941 = vunpack.c.l.b16 %v2873
        %v2942 = vunpack.c.l.b16 %v2874
        %v2943 = vunpack.c.l.b16 %v2875
        %v2944 = vunpack.c.l.b16 %v2876
        %v2945 = vunpack.c.l.b16 %v2877
        %v2946 = vunpack.c.l.b16 %v2878
        %v2947 = vunpack.c.l.b16 %v2879
        %v2948 = vunpack.c.l.b16 %v2880
        %v2949 = vunpack.c.l.b16 %v2881
        %v2950 = vpack.c.b16 %v2919, %v2918
        %v2951 = vpack.c.b16 %v2921, %v2920
        %v2952 = vpack.c.b16 %v2923, %v2922
        %v2953 = vpack.c.b16 %v2925, %v2924
        %v2954 = vpack.c.b16 %v2927, %v2926
        %v2955 = vpack.c.b16 %v2929, %v2928
        %v2956 = vpack.c.b16 %v2931, %v2930
        %v2957 = vpack.c.b16 %v2933, %v2932
        %v2958 = vpack.c.b16 %v2935, %v2934
        %v2959 = vpack.c.b16 %v2937, %v2936
        %v2960 = vpack.c.b16 %v2939, %v2938
        %v2961 = vpack.c.b16 %v2941, %v2940
        %v2962 = vpack.c.b16 %v2943, %v2942
        %v2963 = vpack.c.b16 %v2945, %v2944
        %v2964 = vpack.c.b16 %v2947, %v2946
        %v2965 = vpack.c.b16 %v2949, %v2948
        %2982 = vmatpush.bf16.msra.mxu0 %v2957
        %2983 = vmatpush.bf16.msra.mxu0 %v2956
        %2984 = vmatpush.bf16.msra.mxu0 %v2955
        %2985 = vmatpush.bf16.msra.mxu0 %v2954
        %2986 = vmatpush.bf16.msra.mxu0 %v2953
        %2987 = vmatpush.bf16.msra.mxu0 %v2952
        %2988 = vmatpush.bf16.msra.mxu0 %v2951
        %2989 = vmatpush.bf16.msra.mxu0 %v2950
        %2990 = vmatmul.bf16.gmra.mxu0 %v2818
        %v2991 = vpop.f32.mrf.mxu0
        %v2992 = vadd.f32 %v2884, %v2991
        %v2993 = vpop.f32.mrf.mxu0
        %v2994 = vadd.f32 %v2884, %v2993
        %2995 = vmatmul.bf16.gmra.mxu0 %v2820
        %v2996 = vpop.f32.mrf.mxu0
        %v2997 = vadd.f32 %v2884, %v2996
        %v2998 = vpop.f32.mrf.mxu0
        %v2999 = vadd.f32 %v2884, %v2998
        %3000 = vmatmul.bf16.gmra.mxu0 %v2822
        %v3001 = vpop.f32.mrf.mxu0
        %v3002 = vadd.f32 %v2884, %v3001
        %v3003 = vpop.f32.mrf.mxu0
        %v3004 = vadd.f32 %v2884, %v3003
        %3005 = vmatmul.bf16.gmra.mxu0 %v2824
        %v3006 = vpop.f32.mrf.mxu0
        %v3007 = vadd.f32 %v2884, %v3006
        %v3008 = vpop.f32.mrf.mxu0
        %v3009 = vadd.f32 %v2884, %v3008
        %3010 = vmatmul.bf16.gmra.mxu0 %v2826
        %v3011 = vpop.f32.mrf.mxu0
        %v3012 = vadd.f32 %v2884, %v3011
        %v3013 = vpop.f32.mrf.mxu0
        %v3014 = vadd.f32 %v2884, %v3013
        %3015 = vmatmul.bf16.gmra.mxu0 %v2828
        %v3016 = vpop.f32.mrf.mxu0
        %v3017 = vadd.f32 %v2884, %v3016
        %v3018 = vpop.f32.mrf.mxu0
        %v3019 = vadd.f32 %v2884, %v3018
        %3020 = vmatmul.bf16.gmra.mxu0 %v2830
        %v3021 = vpop.f32.mrf.mxu0
        %v3022 = vadd.f32 %v2884, %v3021
        %v3023 = vpop.f32.mrf.mxu0
        %v3024 = vadd.f32 %v2884, %v3023
        %3025 = vmatmul.bf16.gmra.mxu0 %v2832
        %v3026 = vpop.f32.mrf.mxu0
        %v3027 = vadd.f32 %v2884, %v3026
        %v3028 = vpop.f32.mrf.mxu0
        %v3029 = vadd.f32 %v2884, %v3028
        %3030 = vmatmul.bf16.gmra.mxu0 %v2834
        %v3031 = vpop.f32.mrf.mxu0
        %v3032 = vadd.f32 %v2884, %v3031
        %v3033 = vpop.f32.mrf.mxu0
        %v3034 = vadd.f32 %v2884, %v3033
        %3035 = vmatmul.bf16.gmra.mxu0 %v2836
        %v3036 = vpop.f32.mrf.mxu0
        %v3037 = vadd.f32 %v2884, %v3036
        %v3038 = vpop.f32.mrf.mxu0
        %v3039 = vadd.f32 %v2884, %v3038
        %3040 = vmatmul.bf16.gmra.mxu0 %v2838
        %v3041 = vpop.f32.mrf.mxu0
        %v3042 = vadd.f32 %v2884, %v3041
        %v3043 = vpop.f32.mrf.mxu0
        %v3044 = vadd.f32 %v2884, %v3043
        %3045 = vmatmul.bf16.gmra.mxu0 %v2840
        %v3046 = vpop.f32.mrf.mxu0
        %v3047 = vadd.f32 %v2884, %v3046
        %v3048 = vpop.f32.mrf.mxu0
        %v3049 = vadd.f32 %v2884, %v3048
        %3050 = vmatmul.bf16.gmra.mxu0 %v2842
        %v3051 = vpop.f32.mrf.mxu0
        %v3052 = vadd.f32 %v2884, %v3051
        %v3053 = vpop.f32.mrf.mxu0
        %v3054 = vadd.f32 %v2884, %v3053
        %3055 = vmatmul.bf16.gmra.mxu0 %v2844
        %v3056 = vpop.f32.mrf.mxu0
        %v3057 = vadd.f32 %v2884, %v3056
        %v3058 = vpop.f32.mrf.mxu0
        %v3059 = vadd.f32 %v2884, %v3058
        %3060 = vmatmul.bf16.gmra.mxu0 %v2846
        %v3061 = vpop.f32.mrf.mxu0
        %v3062 = vadd.f32 %v2884, %v3061
        %v3063 = vpop.f32.mrf.mxu0
        %v3064 = vadd.f32 %v2884, %v3063
        %3065 = vmatmul.bf16.gmra.mxu0 %v2848
        %v3066 = vpop.f32.mrf.mxu0
        %v3067 = vadd.f32 %v2884, %v3066
        %v3068 = vpop.f32.mrf.mxu0
        %v3069 = vadd.f32 %v2884, %v3068
        %3070 = vdwg.mxu0
        %3071 = vmatpush.bf16.msra.mxu0 %v2965
        %3072 = vmatpush.bf16.msra.mxu0 %v2964
        %3073 = vmatpush.bf16.msra.mxu0 %v2963
        %3074 = vmatpush.bf16.msra.mxu0 %v2962
        %3075 = vmatpush.bf16.msra.mxu0 %v2961
        %3076 = vmatpush.bf16.msra.mxu0 %v2960
        %3077 = vmatpush.bf16.msra.mxu0 %v2959
        %3078 = vmatpush.bf16.msra.mxu0 %v2958
        %3079 = vmatmul.bf16.gmra.mxu0 %v2819
        %v3080 = vpop.f32.mrf.mxu0
        %v3081 = vadd.f32 %v2992, %v3080
        %v3082 = vpop.f32.mrf.mxu0
        %v3083 = vadd.f32 %v2994, %v3082
        %3084 = vmatmul.bf16.gmra.mxu0 %v2821
        %v3085 = vpop.f32.mrf.mxu0
        %v3086 = vadd.f32 %v2997, %v3085
        %v3087 = vpop.f32.mrf.mxu0
        %v3088 = vadd.f32 %v2999, %v3087
        %3089 = vmatmul.bf16.gmra.mxu0 %v2823
        %v3090 = vpop.f32.mrf.mxu0
        %v3091 = vadd.f32 %v3002, %v3090
        %v3092 = vpop.f32.mrf.mxu0
        %v3093 = vadd.f32 %v3004, %v3092
        %3094 = vmatmul.bf16.gmra.mxu0 %v2825
        %v3095 = vpop.f32.mrf.mxu0
        %v3096 = vadd.f32 %v3007, %v3095
        %v3097 = vpop.f32.mrf.mxu0
        %v3098 = vadd.f32 %v3009, %v3097
        %3099 = vmatmul.bf16.gmra.mxu0 %v2827
        %v3100 = vpop.f32.mrf.mxu0
        %v3101 = vadd.f32 %v3012, %v3100
        %v3102 = vpop.f32.mrf.mxu0
        %v3103 = vadd.f32 %v3014, %v3102
        %3104 = vmatmul.bf16.gmra.mxu0 %v2829
        %v3105 = vpop.f32.mrf.mxu0
        %v3106 = vadd.f32 %v3017, %v3105
        %v3107 = vpop.f32.mrf.mxu0
        %v3108 = vadd.f32 %v3019, %v3107
        %3109 = vmatmul.bf16.gmra.mxu0 %v2831
        %v3110 = vpop.f32.mrf.mxu0
        %v3111 = vadd.f32 %v3022, %v3110
        %v3112 = vpop.f32.mrf.mxu0
        %v3113 = vadd.f32 %v3024, %v3112
        %3114 = vmatmul.bf16.gmra.mxu0 %v2833
        %v3115 = vpop.f32.mrf.mxu0
        %v3116 = vadd.f32 %v3027, %v3115
        %v3117 = vpop.f32.mrf.mxu0
        %v3118 = vadd.f32 %v3029, %v3117
        %3119 = vmatmul.bf16.gmra.mxu0 %v2835
        %v3120 = vpop.f32.mrf.mxu0
        %v3121 = vadd.f32 %v3032, %v3120
        %v3122 = vpop.f32.mrf.mxu0
        %v3123 = vadd.f32 %v3034, %v3122
        %3124 = vmatmul.bf16.gmra.mxu0 %v2837
        %v3125 = vpop.f32.mrf.mxu0
        %v3126 = vadd.f32 %v3037, %v3125
        %v3127 = vpop.f32.mrf.mxu0
        %v3128 = vadd.f32 %v3039, %v3127
        %3129 = vmatmul.bf16.gmra.mxu0 %v2839
        %v3130 = vpop.f32.mrf.mxu0
        %v3131 = vadd.f32 %v3042, %v3130
        %v3132 = vpop.f32.mrf.mxu0
        %v3133 = vadd.f32 %v3044, %v3132
        %3134 = vmatmul.bf16.gmra.mxu0 %v2841
        %v3135 = vpop.f32.mrf.mxu0
        %v3136 = vadd.f32 %v3047, %v3135
        %v3137 = vpop.f32.mrf.mxu0
        %v3138 = vadd.f32 %v3049, %v3137
        %3139 = vmatmul.bf16.gmra.mxu0 %v2843
        %v3140 = vpop.f32.mrf.mxu0
        %v3141 = vadd.f32 %v3052, %v3140
        %v3142 = vpop.f32.mrf.mxu0
        %v3143 = vadd.f32 %v3054, %v3142
        %3144 = vmatmul.bf16.gmra.mxu0 %v2845
        %v3145 = vpop.f32.mrf.mxu0
        %v3146 = vadd.f32 %v3057, %v3145
        %v3147 = vpop.f32.mrf.mxu0
        %v3148 = vadd.f32 %v3059, %v3147
        %3149 = vmatmul.bf16.gmra.mxu0 %v2847
        %v3150 = vpop.f32.mrf.mxu0
        %v3151 = vadd.f32 %v3062, %v3150
        %v3152 = vpop.f32.mrf.mxu0
        %v3153 = vadd.f32 %v3064, %v3152
        %3154 = vmatmul.bf16.gmra.mxu0 %v2849
        %v3155 = vpop.f32.mrf.mxu0
        %v3156 = vadd.f32 %v3067, %v3155
        %v3157 = vpop.f32.mrf.mxu0
        %v3158 = vadd.f32 %v3069, %v3157
        %3159 = vdwg.mxu0
        %3160 = vst [vmem:[%s801] sm:$0xff] %v3081
        %3161 = vst [vmem:[%s801 + $0x8] sm:$0xff] %v3083
        %3162 = vst [vmem:[%s801 + $0x10] sm:$0xff] %v3086
        %3163 = vst [vmem:[%s801 + $0x18] sm:$0xff] %v3088
        %3164 = vst [vmem:[%s801 + $0x20] sm:$0xff] %v3091
        %3165 = vst [vmem:[%s801 + $0x28] sm:$0xff] %v3093
        %3166 = vst [vmem:[%s801 + $0x30] sm:$0xff] %v3096
        %3167 = vst [vmem:[%s801 + $0x38] sm:$0xff] %v3098
        %3168 = vst [vmem:[%s801 + $0x40] sm:$0xff] %v3101
        %3169 = vst [vmem:[%s801 + $0x48] sm:$0xff] %v3103
        %3170 = vst [vmem:[%s801 + $0x50] sm:$0xff] %v3106
        %3171 = vst [vmem:[%s801 + $0x58] sm:$0xff] %v3108
        %3172 = vst [vmem:[%s801 + $0x60] sm:$0xff] %v3111
        %3173 = vst [vmem:[%s801 + $0x68] sm:$0xff] %v3113
        %3174 = vst [vmem:[%s801 + $0x70] sm:$0xff] %v3116
        %3175 = vst [vmem:[%s801 + $0x78] sm:$0xff] %v3118
        %3176 = vst [vmem:[%s801 + $0x80] sm:$0xff] %v3121
        %3177 = vst [vmem:[%s801 + $0x88] sm:$0xff] %v3123
        %3178 = vst [vmem:[%s801 + $0x90] sm:$0xff] %v3126
        %3179 = vst [vmem:[%s801 + $0x98] sm:$0xff] %v3128
        %3180 = vst [vmem:[%s801 + $0xa0] sm:$0xff] %v3131
        %3181 = vst [vmem:[%s801 + $0xa8] sm:$0xff] %v3133
        %3182 = vst [vmem:[%s801 + $0xb0] sm:$0xff] %v3136
        %3183 = vst [vmem:[%s801 + $0xb8] sm:$0xff] %v3138
        %3184 = vst [vmem:[%s801 + $0xc0] sm:$0xff] %v3141
        %3185 = vst [vmem:[%s801 + $0xc8] sm:$0xff] %v3143
        %3186 = vst [vmem:[%s801 + $0xd0] sm:$0xff] %v3146
        %3187 = vst [vmem:[%s801 + $0xd8] sm:$0xff] %v3148
        %3188 = vst [vmem:[%s801 + $0xe0] sm:$0xff] %v3151
        %3189 = vst [vmem:[%s801 + $0xe8] sm:$0xff] %v3153
        %3190 = vst [vmem:[%s801 + $0xf0] sm:$0xff] %v3156
        %3191 = vst [vmem:[%s801 + $0xf8] sm:$0xff] %v3158
        %v3192 = vld [vmem:[%s794] sm:$0xff]
        %v3193 = vld [vmem:[%s794 + $0x8] sm:$0xff]
        %v3194 = vld [vmem:[%s794 + $0x10] sm:$0xff]
        %v3195 = vld [vmem:[%s794 + $0x18] sm:$0xff]
        %v3196 = vld [vmem:[%s794 + $0x20] sm:$0xff]
        %v3197 = vld [vmem:[%s794 + $0x28] sm:$0xff]
        %v3198 = vld [vmem:[%s794 + $0x30] sm:$0xff]
        %v3199 = vld [vmem:[%s794 + $0x38] sm:$0xff]
        %v3200 = vld [vmem:[%s794 + $0x40] sm:$0xff]
        %v3201 = vld [vmem:[%s794 + $0x48] sm:$0xff]
        %v3202 = vld [vmem:[%s794 + $0x50] sm:$0xff]
        %v3203 = vld [vmem:[%s794 + $0x58] sm:$0xff]
        %v3204 = vld [vmem:[%s794 + $0x60] sm:$0xff]
        %v3205 = vld [vmem:[%s794 + $0x68] sm:$0xff]
        %v3206 = vld [vmem:[%s794 + $0x70] sm:$0xff]
        %v3207 = vld [vmem:[%s794 + $0x78] sm:$0xff]
        %v3208 = vld [vmem:[%s794 + $0x80] sm:$0xff]
        %v3209 = vld [vmem:[%s794 + $0x88] sm:$0xff]
        %v3210 = vld [vmem:[%s794 + $0x90] sm:$0xff]
        %v3211 = vld [vmem:[%s794 + $0x98] sm:$0xff]
        %v3212 = vld [vmem:[%s794 + $0xa0] sm:$0xff]
        %v3213 = vld [vmem:[%s794 + $0xa8] sm:$0xff]
        %v3214 = vld [vmem:[%s794 + $0xb0] sm:$0xff]
        %v3215 = vld [vmem:[%s794 + $0xb8] sm:$0xff]
        %v3216 = vld [vmem:[%s794 + $0xc0] sm:$0xff]
        %v3217 = vld [vmem:[%s794 + $0xc8] sm:$0xff]
        %v3218 = vld [vmem:[%s794 + $0xd0] sm:$0xff]
        %v3219 = vld [vmem:[%s794 + $0xd8] sm:$0xff]
        %v3220 = vld [vmem:[%s794 + $0xe0] sm:$0xff]
        %v3221 = vld [vmem:[%s794 + $0xe8] sm:$0xff]
        %v3222 = vld [vmem:[%s794 + $0xf0] sm:$0xff]
        %v3223 = vld [vmem:[%s794 + $0xf8] sm:$0xff]
        %v3224 = vmul.f32 %v3081, 0.5
        %v3225 = vmul.f32 %v3083, 0.5
        %v3226 = vmul.f32 %v3086, 0.5
        %v3227 = vmul.f32 %v3088, 0.5
        %v3228 = vmul.f32 %v3091, 0.5
        %v3229 = vmul.f32 %v3093, 0.5
        %v3230 = vmul.f32 %v3096, 0.5
        %v3231 = vmul.f32 %v3098, 0.5
        %v3232 = vmul.f32 %v3101, 0.5
        %v3233 = vmul.f32 %v3103, 0.5
        %v3234 = vmul.f32 %v3106, 0.5
        %v3235 = vmul.f32 %v3108, 0.5
        %v3236 = vmul.f32 %v3111, 0.5
        %v3237 = vmul.f32 %v3113, 0.5
        %v3238 = vmul.f32 %v3116, 0.5
        %v3239 = vmul.f32 %v3118, 0.5
        %v3240 = vmul.f32 %v3121, 0.5
        %v3241 = vmul.f32 %v3123, 0.5
        %v3242 = vmul.f32 %v3126, 0.5
        %v3243 = vmul.f32 %v3128, 0.5
        %v3244 = vmul.f32 %v3131, 0.5
        %v3245 = vmul.f32 %v3133, 0.5
        %v3246 = vmul.f32 %v3136, 0.5
        %v3247 = vmul.f32 %v3138, 0.5
        %v3248 = vmul.f32 %v3141, 0.5
        %v3249 = vmul.f32 %v3143, 0.5
        %v3250 = vmul.f32 %v3146, 0.5
        %v3251 = vmul.f32 %v3148, 0.5
        %v3252 = vmul.f32 %v3151, 0.5
        %v3253 = vmul.f32 %v3153, 0.5
        %v3254 = vmul.f32 %v3156, 0.5
        %v3255 = vmul.f32 %v3158, 0.5
        %v3256 = vmul.f32 %v3224, 1.442695
        %v3257 = vpow.pop %v3256
        %v3258 = vmul.f32 %v3225, 1.442695
        %v3259 = vpow.pop %v3258
        %v3260 = vmul.f32 %v3226, 1.442695
        %v3261 = vpow.pop %v3260
        %v3262 = vmul.f32 %v3227, 1.442695
        %v3263 = vpow.pop %v3262
        %v3264 = vmul.f32 %v3228, 1.442695
        %v3265 = vpow.pop %v3264
        %v3266 = vmul.f32 %v3229, 1.442695
        %v3267 = vpow.pop %v3266
        %v3268 = vmul.f32 %v3230, 1.442695
        %v3269 = vpow.pop %v3268
        %v3270 = vmul.f32 %v3231, 1.442695
        %v3271 = vpow.pop %v3270
        %v3272 = vmul.f32 %v3232, 1.442695
        %v3273 = vpow.pop %v3272
        %v3274 = vmul.f32 %v3233, 1.442695
        %v3275 = vpow.pop %v3274
        %v3276 = vmul.f32 %v3234, 1.442695
        %v3277 = vpow.pop %v3276
        %v3278 = vmul.f32 %v3235, 1.442695
        %v3279 = vpow.pop %v3278
        %v3280 = vmul.f32 %v3236, 1.442695
        %v3281 = vpow.pop %v3280
        %v3282 = vmul.f32 %v3237, 1.442695
        %v3283 = vpow.pop %v3282
        %v3284 = vmul.f32 %v3238, 1.442695
        %v3285 = vpow.pop %v3284
        %v3286 = vmul.f32 %v3239, 1.442695
        %v3287 = vpow.pop %v3286
        %v3288 = vmul.f32 %v3240, 1.442695
        %v3289 = vpow.pop %v3288
        %v3290 = vmul.f32 %v3241, 1.442695
        %v3291 = vpow.pop %v3290
        %v3292 = vmul.f32 %v3242, 1.442695
        %v3293 = vpow.pop %v3292
        %v3294 = vmul.f32 %v3243, 1.442695
        %v3295 = vpow.pop %v3294
        %v3296 = vmul.f32 %v3244, 1.442695
        %v3297 = vpow.pop %v3296
        %v3298 = vmul.f32 %v3245, 1.442695
        %v3299 = vpow.pop %v3298
        %v3300 = vmul.f32 %v3246, 1.442695
        %v3301 = vpow.pop %v3300
        %v3302 = vmul.f32 %v3247, 1.442695
        %v3303 = vpow.pop %v3302
        %v3304 = vmul.f32 %v3248, 1.442695
        %v3305 = vpow.pop %v3304
        %v3306 = vmul.f32 %v3249, 1.442695
        %v3307 = vpow.pop %v3306
        %v3308 = vmul.f32 %v3250, 1.442695
        %v3309 = vpow.pop %v3308
        %v3310 = vmul.f32 %v3251, 1.442695
        %v3311 = vpow.pop %v3310
        %v3312 = vmul.f32 %v3252, 1.442695
        %v3313 = vpow.pop %v3312
        %v3314 = vmul.f32 %v3253, 1.442695
        %v3315 = vpow.pop %v3314
        %v3316 = vmul.f32 %v3254, 1.442695
        %v3317 = vpow.pop %v3316
        %v3318 = vmul.f32 %v3255, 1.442695
        %v3319 = vpow.pop %v3318
        %3352 = vrot.lane.b32.xlu0 %v3257, 64
        %v3353 = vpop.permute.xlu0 %3352
        %3354 = vrot.lane.b32.xlu0 %v3259, 64
        %v3355 = vpop.permute.xlu0 %3354
        %3356 = vrot.lane.b32.xlu0 %v3261, 64
        %v3357 = vpop.permute.xlu0 %3356
        %3358 = vrot.lane.b32.xlu0 %v3263, 64
        %v3359 = vpop.permute.xlu0 %3358
        %3360 = vrot.lane.b32.xlu0 %v3265, 64
        %v3361 = vpop.permute.xlu0 %3360
        %3362 = vrot.lane.b32.xlu0 %v3267, 64
        %v3363 = vpop.permute.xlu0 %3362
        %3364 = vrot.lane.b32.xlu0 %v3269, 64
        %v3365 = vpop.permute.xlu0 %3364
        %3366 = vrot.lane.b32.xlu0 %v3271, 64
        %v3367 = vpop.permute.xlu0 %3366
        %3368 = vrot.lane.b32.xlu0 %v3273, 64
        %v3369 = vpop.permute.xlu0 %3368
        %3370 = vrot.lane.b32.xlu0 %v3275, 64
        %v3371 = vpop.permute.xlu0 %3370
        %3372 = vrot.lane.b32.xlu0 %v3277, 64
        %v3373 = vpop.permute.xlu0 %3372
        %3374 = vrot.lane.b32.xlu0 %v3279, 64
        %v3375 = vpop.permute.xlu0 %3374
        %3376 = vrot.lane.b32.xlu0 %v3281, 64
        %v3377 = vpop.permute.xlu0 %3376
        %3378 = vrot.lane.b32.xlu0 %v3283, 64
        %v3379 = vpop.permute.xlu0 %3378
        %3380 = vrot.lane.b32.xlu0 %v3285, 64
        %v3381 = vpop.permute.xlu0 %3380
        %3382 = vrot.lane.b32.xlu0 %v3287, 64
        %v3383 = vpop.permute.xlu0 %3382
        %3384 = vrot.lane.b32.xlu0 %v3289, 64
        %v3385 = vpop.permute.xlu0 %3384
        %3386 = vrot.lane.b32.xlu0 %v3291, 64
        %v3387 = vpop.permute.xlu0 %3386
        %3388 = vrot.lane.b32.xlu0 %v3293, 64
        %v3389 = vpop.permute.xlu0 %3388
        %3390 = vrot.lane.b32.xlu0 %v3295, 64
        %v3391 = vpop.permute.xlu0 %3390
        %3392 = vrot.lane.b32.xlu0 %v3297, 64
        %v3393 = vpop.permute.xlu0 %3392
        %3394 = vrot.lane.b32.xlu0 %v3299, 64
        %v3395 = vpop.permute.xlu0 %3394
        %3396 = vrot.lane.b32.xlu0 %v3301, 64
        %v3397 = vpop.permute.xlu0 %3396
        %3398 = vrot.lane.b32.xlu0 %v3303, 64
        %v3399 = vpop.permute.xlu0 %3398
        %3400 = vrot.lane.b32.xlu0 %v3305, 64
        %v3401 = vpop.permute.xlu0 %3400
        %3402 = vrot.lane.b32.xlu0 %v3307, 64
        %v3403 = vpop.permute.xlu0 %3402
        %3404 = vrot.lane.b32.xlu0 %v3309, 64
        %v3405 = vpop.permute.xlu0 %3404
        %3406 = vrot.lane.b32.xlu0 %v3311, 64
        %v3407 = vpop.permute.xlu0 %3406
        %3408 = vrot.lane.b32.xlu0 %v3313, 64
        %v3409 = vpop.permute.xlu0 %3408
        %3410 = vrot.lane.b32.xlu0 %v3315, 64
        %v3411 = vpop.permute.xlu0 %3410
        %3412 = vrot.lane.b32.xlu0 %v3317, 64
        %v3413 = vpop.permute.xlu0 %3412
        %3414 = vrot.lane.b32.xlu0 %v3319, 64
        %v3415 = vpop.permute.xlu0 %3414
        %v3448 = vmul.f32 %v3192, %v3353
        %v3449 = vmul.f32 %v3193, %v3355
        %v3450 = vmul.f32 %v3194, %v3357
        %v3451 = vmul.f32 %v3195, %v3359
        %v3452 = vmul.f32 %v3196, %v3361
        %v3453 = vmul.f32 %v3197, %v3363
        %v3454 = vmul.f32 %v3198, %v3365
        %v3455 = vmul.f32 %v3199, %v3367
        %v3456 = vmul.f32 %v3200, %v3369
        %v3457 = vmul.f32 %v3201, %v3371
        %v3458 = vmul.f32 %v3202, %v3373
        %v3459 = vmul.f32 %v3203, %v3375
        %v3460 = vmul.f32 %v3204, %v3377
        %v3461 = vmul.f32 %v3205, %v3379
        %v3462 = vmul.f32 %v3206, %v3381
        %v3463 = vmul.f32 %v3207, %v3383
        %v3464 = vmul.f32 %v3208, %v3385
        %v3465 = vmul.f32 %v3209, %v3387
        %v3466 = vmul.f32 %v3210, %v3389
        %v3467 = vmul.f32 %v3211, %v3391
        %v3468 = vmul.f32 %v3212, %v3393
        %v3469 = vmul.f32 %v3213, %v3395
        %v3470 = vmul.f32 %v3214, %v3397
        %v3471 = vmul.f32 %v3215, %v3399
        %v3472 = vmul.f32 %v3216, %v3401
        %v3473 = vmul.f32 %v3217, %v3403
        %v3474 = vmul.f32 %v3218, %v3405
        %v3475 = vmul.f32 %v3219, %v3407
        %v3476 = vmul.f32 %v3220, %v3409
        %v3477 = vmul.f32 %v3221, %v3411
        %v3478 = vmul.f32 %v3222, %v3413
        %v3479 = vmul.f32 %v3223, %v3415
        %v3480 = vadd.f32 %v3081, %v3448
        %v3481 = vadd.f32 %v3083, %v3449
        %v3482 = vadd.f32 %v3086, %v3450
        %v3483 = vadd.f32 %v3088, %v3451
        %v3484 = vadd.f32 %v3091, %v3452
        %v3485 = vadd.f32 %v3093, %v3453
        %v3486 = vadd.f32 %v3096, %v3454
        %v3487 = vadd.f32 %v3098, %v3455
        %v3488 = vadd.f32 %v3101, %v3456
        %v3489 = vadd.f32 %v3103, %v3457
        %v3490 = vadd.f32 %v3106, %v3458
        %v3491 = vadd.f32 %v3108, %v3459
        %v3492 = vadd.f32 %v3111, %v3460
        %v3493 = vadd.f32 %v3113, %v3461
        %v3494 = vadd.f32 %v3116, %v3462
        %v3495 = vadd.f32 %v3118, %v3463
        %v3496 = vadd.f32 %v3121, %v3464
        %v3497 = vadd.f32 %v3123, %v3465
        %v3498 = vadd.f32 %v3126, %v3466
        %v3499 = vadd.f32 %v3128, %v3467
        %v3500 = vadd.f32 %v3131, %v3468
        %v3501 = vadd.f32 %v3133, %v3469
        %v3502 = vadd.f32 %v3136, %v3470
        %v3503 = vadd.f32 %v3138, %v3471
        %v3504 = vadd.f32 %v3141, %v3472
        %v3505 = vadd.f32 %v3143, %v3473
        %v3506 = vadd.f32 %v3146, %v3474
        %v3507 = vadd.f32 %v3148, %v3475
        %v3508 = vadd.f32 %v3151, %v3476
        %v3509 = vadd.f32 %v3153, %v3477
        %v3510 = vadd.f32 %v3156, %v3478
        %v3511 = vadd.f32 %v3158, %v3479
        %v3512 = vpack.c.bf16 %v3481, %v3480
        %v3513 = vpack.c.bf16 %v3483, %v3482
        %v3514 = vpack.c.bf16 %v3485, %v3484
        %v3515 = vpack.c.bf16 %v3487, %v3486
        %v3516 = vpack.c.bf16 %v3489, %v3488
        %v3517 = vpack.c.bf16 %v3491, %v3490
        %v3518 = vpack.c.bf16 %v3493, %v3492
        %v3519 = vpack.c.bf16 %v3495, %v3494
        %v3520 = vpack.c.bf16 %v3497, %v3496
        %v3521 = vpack.c.bf16 %v3499, %v3498
        %v3522 = vpack.c.bf16 %v3501, %v3500
        %v3523 = vpack.c.bf16 %v3503, %v3502
        %v3524 = vpack.c.bf16 %v3505, %v3504
        %v3525 = vpack.c.bf16 %v3507, %v3506
        %v3526 = vpack.c.bf16 %v3509, %v3508
        %v3527 = vpack.c.bf16 %v3511, %v3510
        %v3528 = vld [vmem:[#allocation13] sm:$0xff]
        %v3529 = vld [vmem:[#allocation13 + $0x8] sm:$0xff]
        %v3530 = vld [vmem:[#allocation13 + $0x10] sm:$0xff]
        %v3531 = vld [vmem:[#allocation13 + $0x18] sm:$0xff]
        %v3532 = vld [vmem:[#allocation13 + $0x20] sm:$0xff]
        %v3533 = vld [vmem:[#allocation13 + $0x28] sm:$0xff]
        %v3534 = vld [vmem:[#allocation13 + $0x30] sm:$0xff]
        %v3535 = vld [vmem:[#allocation13 + $0x38] sm:$0xff]
        %v3536 = vld [vmem:[%s11] sm:$0x3]
        %v3538 = vperm.slane %v3536, 0
        %v3539 = vperm.slane %v3536, 1
        %v3550 = vunpack.c.l.b16 %v3528
        %v3551 = vunpack.c.h.b16 %v3528
        %v3552 = vunpack.c.l.b16 %v3529
        %v3553 = vunpack.c.h.b16 %v3529
        %v3554 = vunpack.c.l.b16 %v3530
        %v3555 = vunpack.c.h.b16 %v3530
        %v3556 = vunpack.c.l.b16 %v3531
        %v3557 = vunpack.c.h.b16 %v3531
        %v3558 = vunpack.c.l.b16 %v3532
        %v3559 = vunpack.c.h.b16 %v3532
        %v3560 = vunpack.c.l.b16 %v3533
        %v3561 = vunpack.c.h.b16 %v3533
        %v3562 = vunpack.c.l.b16 %v3534
        %v3563 = vunpack.c.h.b16 %v3534
        %v3564 = vunpack.c.l.b16 %v3535
        %v3565 = vunpack.c.h.b16 %v3535
        %v3566 = vpack.c.b16 %v3552, %v3550
        %v3567 = vpack.c.b16 %v3553, %v3551
        %v3568 = vpack.c.b16 %v3556, %v3554
        %v3569 = vpack.c.b16 %v3557, %v3555
        %v3570 = vpack.c.b16 %v3560, %v3558
        %v3571 = vpack.c.b16 %v3561, %v3559
        %v3572 = vpack.c.b16 %v3564, %v3562
        %v3573 = vpack.c.b16 %v3565, %v3563
        %vm3582 = vcmask 523264
        %v3584 = vsel %vm3582, %v3512, 0
        %v3587 = vsel %vm3582, %v3513, 0
        %v3590 = vsel %vm3582, %v3514, 0
        %v3593 = vsel %vm3582, %v3515, 0
        %v3596 = vsel %vm3582, %v3516, 0
        %v3599 = vsel %vm3582, %v3517, 0
        %v3602 = vsel %vm3582, %v3518, 0
        %v3605 = vsel %vm3582, %v3519, 0
        %v3608 = vsel %vm3582, %v3520, 0
        %v3611 = vsel %vm3582, %v3521, 0
        %v3614 = vsel %vm3582, %v3522, 0
        %v3617 = vsel %vm3582, %v3523, 0
        %v3620 = vsel %vm3582, %v3524, 0
        %v3623 = vsel %vm3582, %v3525, 0
        %v3626 = vsel %vm3582, %v3526, 0
        %v3629 = vsel %vm3582, %v3527, 0
        %3631 = vmatpush.bf16.msra.mxu0 0
        %3632 = vmatpush.bf16.msra.mxu0 0
        %3633 = vmatpush.bf16.msra.mxu0 0
        %3634 = vmatpush.bf16.msra.mxu0 0
        %3635 = vmatpush.bf16.msra.mxu0 %v3572
        %3636 = vmatpush.bf16.msra.mxu0 %v3570
        %3637 = vmatpush.bf16.msra.mxu0 %v3568
        %3638 = vmatpush.bf16.msra.mxu0 %v3566
        %3639 = vmatmul.bf16.gmra.mxu0 %v3584
        %v3640 = vpop.f32.mrf.mxu0
        %v3641 = vadd.f32 %v3538, %v3640
        %v3642 = vpop.f32.mrf.mxu0
        %v3643 = vadd.f32 %v3538, %v3642
        %3644 = vmatmul.bf16.gmra.mxu0 %v3587
        %v3645 = vpop.f32.mrf.mxu0
        %v3646 = vadd.f32 %v3538, %v3645
        %v3647 = vpop.f32.mrf.mxu0
        %v3648 = vadd.f32 %v3538, %v3647
        %3649 = vmatmul.bf16.gmra.mxu0 %v3590
        %v3650 = vpop.f32.mrf.mxu0
        %v3651 = vadd.f32 %v3538, %v3650
        %v3652 = vpop.f32.mrf.mxu0
        %v3653 = vadd.f32 %v3538, %v3652
        %3654 = vmatmul.bf16.gmra.mxu0 %v3593
        %v3655 = vpop.f32.mrf.mxu0
        %v3656 = vadd.f32 %v3538, %v3655
        %v3657 = vpop.f32.mrf.mxu0
        %v3658 = vadd.f32 %v3538, %v3657
        %3659 = vmatmul.bf16.gmra.mxu0 %v3596
        %v3660 = vpop.f32.mrf.mxu0
        %v3661 = vadd.f32 %v3538, %v3660
        %v3662 = vpop.f32.mrf.mxu0
        %v3663 = vadd.f32 %v3538, %v3662
        %3664 = vmatmul.bf16.gmra.mxu0 %v3599
        %v3665 = vpop.f32.mrf.mxu0
        %v3666 = vadd.f32 %v3538, %v3665
        %v3667 = vpop.f32.mrf.mxu0
        %v3668 = vadd.f32 %v3538, %v3667
        %3669 = vmatmul.bf16.gmra.mxu0 %v3602
        %v3670 = vpop.f32.mrf.mxu0
        %v3671 = vadd.f32 %v3538, %v3670
        %v3672 = vpop.f32.mrf.mxu0
        %v3673 = vadd.f32 %v3538, %v3672
        %3674 = vmatmul.bf16.gmra.mxu0 %v3605
        %v3675 = vpop.f32.mrf.mxu0
        %v3676 = vadd.f32 %v3538, %v3675
        %v3677 = vpop.f32.mrf.mxu0
        %v3678 = vadd.f32 %v3538, %v3677
        %3679 = vmatmul.bf16.gmra.mxu0 %v3608
        %v3680 = vpop.f32.mrf.mxu0
        %v3681 = vadd.f32 %v3538, %v3680
        %v3682 = vpop.f32.mrf.mxu0
        %v3683 = vadd.f32 %v3538, %v3682
        %3684 = vmatmul.bf16.gmra.mxu0 %v3611
        %v3685 = vpop.f32.mrf.mxu0
        %v3686 = vadd.f32 %v3538, %v3685
        %v3687 = vpop.f32.mrf.mxu0
        %v3688 = vadd.f32 %v3538, %v3687
        %3689 = vmatmul.bf16.gmra.mxu0 %v3614
        %v3690 = vpop.f32.mrf.mxu0
        %v3691 = vadd.f32 %v3538, %v3690
        %v3692 = vpop.f32.mrf.mxu0
        %v3693 = vadd.f32 %v3538, %v3692
        %3694 = vmatmul.bf16.gmra.mxu0 %v3617
        %v3695 = vpop.f32.mrf.mxu0
        %v3696 = vadd.f32 %v3538, %v3695
        %v3697 = vpop.f32.mrf.mxu0
        %v3698 = vadd.f32 %v3538, %v3697
        %3699 = vmatmul.bf16.gmra.mxu0 %v3620
        %v3700 = vpop.f32.mrf.mxu0
        %v3701 = vadd.f32 %v3538, %v3700
        %v3702 = vpop.f32.mrf.mxu0
        %v3703 = vadd.f32 %v3538, %v3702
        %3704 = vmatmul.bf16.gmra.mxu0 %v3623
        %v3705 = vpop.f32.mrf.mxu0
        %v3706 = vadd.f32 %v3538, %v3705
        %v3707 = vpop.f32.mrf.mxu0
        %v3708 = vadd.f32 %v3538, %v3707
        %3709 = vmatmul.bf16.gmra.mxu0 %v3626
        %v3710 = vpop.f32.mrf.mxu0
        %v3711 = vadd.f32 %v3538, %v3710
        %v3712 = vpop.f32.mrf.mxu0
        %v3713 = vadd.f32 %v3538, %v3712
        %3714 = vmatmul.bf16.gmra.mxu0 %v3629
        %v3715 = vpop.f32.mrf.mxu0
        %v3716 = vadd.f32 %v3538, %v3715
        %v3717 = vpop.f32.mrf.mxu0
        %v3718 = vadd.f32 %v3538, %v3717
        %3719 = vdwg.mxu0
        %3720 = vmatpush.bf16.msra.mxu0 0
        %3721 = vmatpush.bf16.msra.mxu0 0
        %3722 = vmatpush.bf16.msra.mxu0 0
        %3723 = vmatpush.bf16.msra.mxu0 0
        %3724 = vmatpush.bf16.msra.mxu0 %v3573
        %3725 = vmatpush.bf16.msra.mxu0 %v3571
        %3726 = vmatpush.bf16.msra.mxu0 %v3569
        %3727 = vmatpush.bf16.msra.mxu0 %v3567
        %3728 = vmatmul.bf16.gmra.mxu0 %v3584
        %v3729 = vpop.f32.mrf.mxu0
        %v3730 = vadd.f32 %v3539, %v3729
        %v3731 = vpop.f32.mrf.mxu0
        %v3732 = vadd.f32 %v3539, %v3731
        %3733 = vmatmul.bf16.gmra.mxu0 %v3587
        %v3734 = vpop.f32.mrf.mxu0
        %v3735 = vadd.f32 %v3539, %v3734
        %v3736 = vpop.f32.mrf.mxu0
        %v3737 = vadd.f32 %v3539, %v3736
        %3738 = vmatmul.bf16.gmra.mxu0 %v3590
        %v3739 = vpop.f32.mrf.mxu0
        %v3740 = vadd.f32 %v3539, %v3739
        %v3741 = vpop.f32.mrf.mxu0
        %v3742 = vadd.f32 %v3539, %v3741
        %3743 = vmatmul.bf16.gmra.mxu0 %v3593
        %v3744 = vpop.f32.mrf.mxu0
        %v3745 = vadd.f32 %v3539, %v3744
        %v3746 = vpop.f32.mrf.mxu0
        %v3747 = vadd.f32 %v3539, %v3746
        %3748 = vmatmul.bf16.gmra.mxu0 %v3596
        %v3749 = vpop.f32.mrf.mxu0
        %v3750 = vadd.f32 %v3539, %v3749
        %v3751 = vpop.f32.mrf.mxu0
        %v3752 = vadd.f32 %v3539, %v3751
        %3753 = vmatmul.bf16.gmra.mxu0 %v3599
        %v3754 = vpop.f32.mrf.mxu0
        %v3755 = vadd.f32 %v3539, %v3754
        %v3756 = vpop.f32.mrf.mxu0
        %v3757 = vadd.f32 %v3539, %v3756
        %3758 = vmatmul.bf16.gmra.mxu0 %v3602
        %v3759 = vpop.f32.mrf.mxu0
        %v3760 = vadd.f32 %v3539, %v3759
        %v3761 = vpop.f32.mrf.mxu0
        %v3762 = vadd.f32 %v3539, %v3761
        %3763 = vmatmul.bf16.gmra.mxu0 %v3605
        %v3764 = vpop.f32.mrf.mxu0
        %v3765 = vadd.f32 %v3539, %v3764
        %v3766 = vpop.f32.mrf.mxu0
        %v3767 = vadd.f32 %v3539, %v3766
        %3768 = vmatmul.bf16.gmra.mxu0 %v3608
        %v3769 = vpop.f32.mrf.mxu0
        %v3770 = vadd.f32 %v3539, %v3769
        %v3771 = vpop.f32.mrf.mxu0
        %v3772 = vadd.f32 %v3539, %v3771
        %3773 = vmatmul.bf16.gmra.mxu0 %v3611
        %v3774 = vpop.f32.mrf.mxu0
        %v3775 = vadd.f32 %v3539, %v3774
        %v3776 = vpop.f32.mrf.mxu0
        %v3777 = vadd.f32 %v3539, %v3776
        %3778 = vmatmul.bf16.gmra.mxu0 %v3614
        %v3779 = vpop.f32.mrf.mxu0
        %v3780 = vadd.f32 %v3539, %v3779
        %v3781 = vpop.f32.mrf.mxu0
        %v3782 = vadd.f32 %v3539, %v3781
        %3783 = vmatmul.bf16.gmra.mxu0 %v3617
        %v3784 = vpop.f32.mrf.mxu0
        %v3785 = vadd.f32 %v3539, %v3784
        %v3786 = vpop.f32.mrf.mxu0
        %v3787 = vadd.f32 %v3539, %v3786
        %3788 = vmatmul.bf16.gmra.mxu0 %v3620
        %v3789 = vpop.f32.mrf.mxu0
        %v3790 = vadd.f32 %v3539, %v3789
        %v3791 = vpop.f32.mrf.mxu0
        %v3792 = vadd.f32 %v3539, %v3791
        %3793 = vmatmul.bf16.gmra.mxu0 %v3623
        %v3794 = vpop.f32.mrf.mxu0
        %v3795 = vadd.f32 %v3539, %v3794
        %v3796 = vpop.f32.mrf.mxu0
        %v3797 = vadd.f32 %v3539, %v3796
        %3798 = vmatmul.bf16.gmra.mxu0 %v3626
        %v3799 = vpop.f32.mrf.mxu0
        %v3800 = vadd.f32 %v3539, %v3799
        %v3801 = vpop.f32.mrf.mxu0
        %v3802 = vadd.f32 %v3539, %v3801
        %3803 = vmatmul.bf16.gmra.mxu0 %v3629
        %v3804 = vpop.f32.mrf.mxu0
        %v3805 = vadd.f32 %v3539, %v3804
        %v3806 = vpop.f32.mrf.mxu0
        %v3807 = vadd.f32 %v3539, %v3806
        %3808 = vdwg.mxu0
        %v3809 = vmax.f32 %v3641, 0.0
        %v3810 = vmax.f32 %v3730, 0.0
        %v3811 = vmax.f32 %v3643, 0.0
        %v3812 = vmax.f32 %v3732, 0.0
        %v3813 = vmax.f32 %v3646, 0.0
        %v3814 = vmax.f32 %v3735, 0.0
        %v3815 = vmax.f32 %v3648, 0.0
        %v3816 = vmax.f32 %v3737, 0.0
        %v3817 = vmax.f32 %v3651, 0.0
        %v3818 = vmax.f32 %v3740, 0.0
        %v3819 = vmax.f32 %v3653, 0.0
        %v3820 = vmax.f32 %v3742, 0.0
        %v3821 = vmax.f32 %v3656, 0.0
        %v3822 = vmax.f32 %v3745, 0.0
        %v3823 = vmax.f32 %v3658, 0.0
        %v3824 = vmax.f32 %v3747, 0.0
        %v3825 = vmax.f32 %v3661, 0.0
        %v3826 = vmax.f32 %v3750, 0.0
        %v3827 = vmax.f32 %v3663, 0.0
        %v3828 = vmax.f32 %v3752, 0.0
        %v3829 = vmax.f32 %v3666, 0.0
        %v3830 = vmax.f32 %v3755, 0.0
        %v3831 = vmax.f32 %v3668, 0.0
        %v3832 = vmax.f32 %v3757, 0.0
        %v3833 = vmax.f32 %v3671, 0.0
        %v3834 = vmax.f32 %v3760, 0.0
        %v3835 = vmax.f32 %v3673, 0.0
        %v3836 = vmax.f32 %v3762, 0.0
        %v3837 = vmax.f32 %v3676, 0.0
        %v3838 = vmax.f32 %v3765, 0.0
        %v3839 = vmax.f32 %v3678, 0.0
        %v3840 = vmax.f32 %v3767, 0.0
        %v3841 = vmax.f32 %v3681, 0.0
        %v3842 = vmax.f32 %v3770, 0.0
        %v3843 = vmax.f32 %v3683, 0.0
        %v3844 = vmax.f32 %v3772, 0.0
        %v3845 = vmax.f32 %v3686, 0.0
        %v3846 = vmax.f32 %v3775, 0.0
        %v3847 = vmax.f32 %v3688, 0.0
        %v3848 = vmax.f32 %v3777, 0.0
        %v3849 = vmax.f32 %v3691, 0.0
        %v3850 = vmax.f32 %v3780, 0.0
        %v3851 = vmax.f32 %v3693, 0.0
        %v3852 = vmax.f32 %v3782, 0.0
        %v3853 = vmax.f32 %v3696, 0.0
        %v3854 = vmax.f32 %v3785, 0.0
        %v3855 = vmax.f32 %v3698, 0.0
        %v3856 = vmax.f32 %v3787, 0.0
        %v3857 = vmax.f32 %v3701, 0.0
        %v3858 = vmax.f32 %v3790, 0.0
        %v3859 = vmax.f32 %v3703, 0.0
        %v3860 = vmax.f32 %v3792, 0.0
        %v3861 = vmax.f32 %v3706, 0.0
        %v3862 = vmax.f32 %v3795, 0.0
        %v3863 = vmax.f32 %v3708, 0.0
        %v3864 = vmax.f32 %v3797, 0.0
        %v3865 = vmax.f32 %v3711, 0.0
        %v3866 = vmax.f32 %v3800, 0.0
        %v3867 = vmax.f32 %v3713, 0.0
        %v3868 = vmax.f32 %v3802, 0.0
        %v3869 = vmax.f32 %v3716, 0.0
        %v3870 = vmax.f32 %v3805, 0.0
        %v3871 = vmax.f32 %v3718, 0.0
        %v3872 = vmax.f32 %v3807, 0.0
        %v3873 = vpack.c.bf16 %v3811, %v3809
        %v3874 = vpack.c.bf16 %v3812, %v3810
        %v3875 = vpack.c.bf16 %v3815, %v3813
        %v3876 = vpack.c.bf16 %v3816, %v3814
        %v3877 = vpack.c.bf16 %v3819, %v3817
        %v3878 = vpack.c.bf16 %v3820, %v3818
        %v3879 = vpack.c.bf16 %v3823, %v3821
        %v3880 = vpack.c.bf16 %v3824, %v3822
        %v3881 = vpack.c.bf16 %v3827, %v3825
        %v3882 = vpack.c.bf16 %v3828, %v3826
        %v3883 = vpack.c.bf16 %v3831, %v3829
        %v3884 = vpack.c.bf16 %v3832, %v3830
        %v3885 = vpack.c.bf16 %v3835, %v3833
        %v3886 = vpack.c.bf16 %v3836, %v3834
        %v3887 = vpack.c.bf16 %v3839, %v3837
        %v3888 = vpack.c.bf16 %v3840, %v3838
        %v3889 = vpack.c.bf16 %v3843, %v3841
        %v3890 = vpack.c.bf16 %v3844, %v3842
        %v3891 = vpack.c.bf16 %v3847, %v3845
        %v3892 = vpack.c.bf16 %v3848, %v3846
        %v3893 = vpack.c.bf16 %v3851, %v3849
        %v3894 = vpack.c.bf16 %v3852, %v3850
        %v3895 = vpack.c.bf16 %v3855, %v3853
        %v3896 = vpack.c.bf16 %v3856, %v3854
        %v3897 = vpack.c.bf16 %v3859, %v3857
        %v3898 = vpack.c.bf16 %v3860, %v3858
        %v3899 = vpack.c.bf16 %v3863, %v3861
        %v3900 = vpack.c.bf16 %v3864, %v3862
        %v3901 = vpack.c.bf16 %v3867, %v3865
        %v3902 = vpack.c.bf16 %v3868, %v3866
        %v3903 = vpack.c.bf16 %v3871, %v3869
        %v3904 = vpack.c.bf16 %v3872, %v3870
        %v3905 = vld [vmem:[#allocation14] sm:$0xff]
        %v3906 = vld [vmem:[#allocation14 + $0x8] sm:$0xff]
        %v3907 = vld [vmem:[#allocation14 + $0x10] sm:$0xff]
        %v3908 = vld [vmem:[#allocation14 + $0x18] sm:$0xff]
        %v3909 = vld [vmem:[#allocation14 + $0x20] sm:$0xff]
        %v3910 = vld [vmem:[#allocation14 + $0x28] sm:$0xff]
        %v3911 = vld [vmem:[#allocation14 + $0x30] sm:$0xff]
        %v3912 = vld [vmem:[#allocation14 + $0x38] sm:$0xff]
        %v3913 = vld [vmem:[#allocation14 + $0x40] sm:$0xff]
        %v3914 = vld [vmem:[#allocation14 + $0x48] sm:$0xff]
        %v3915 = vld [vmem:[#allocation14 + $0x50] sm:$0xff]
        %v3916 = vld [vmem:[#allocation14 + $0x58] sm:$0xff]
        %v3917 = vld [vmem:[#allocation14 + $0x60] sm:$0xff]
        %v3918 = vld [vmem:[#allocation14 + $0x68] sm:$0xff]
        %v3919 = vld [vmem:[#allocation14 + $0x70] sm:$0xff]
        %v3920 = vld [vmem:[#allocation14 + $0x78] sm:$0xff]
        %v3921 = vld [vmem:[#allocation14 + $0x80] sm:$0xff]
        %v3922 = vld [vmem:[#allocation14 + $0x88] sm:$0xff]
        %v3923 = vld [vmem:[#allocation14 + $0x90] sm:$0xff]
        %v3924 = vld [vmem:[#allocation14 + $0x98] sm:$0xff]
        %v3925 = vld [vmem:[#allocation14 + $0xa0] sm:$0xff]
        %v3926 = vld [vmem:[#allocation14 + $0xa8] sm:$0xff]
        %v3927 = vld [vmem:[#allocation14 + $0xb0] sm:$0xff]
        %v3928 = vld [vmem:[#allocation14 + $0xb8] sm:$0xff]
        %v3929 = vld [vmem:[#allocation14 + $0xc0] sm:$0xff]
        %v3930 = vld [vmem:[#allocation14 + $0xc8] sm:$0xff]
        %v3931 = vld [vmem:[#allocation14 + $0xd0] sm:$0xff]
        %v3932 = vld [vmem:[#allocation14 + $0xd8] sm:$0xff]
        %v3933 = vld [vmem:[#allocation14 + $0xe0] sm:$0xff]
        %v3934 = vld [vmem:[#allocation14 + $0xe8] sm:$0xff]
        %v3935 = vld [vmem:[#allocation14 + $0xf0] sm:$0xff]
        %v3936 = vld [vmem:[#allocation14 + $0xf8] sm:$0xff]
        %v3937 = vld [vmem:[%s13] sm:$0x3]
        %v3939 = vperm.slane %v3937, 0
        %v3940 = vperm.slane %v3937, 1
        %v3975 = vunpack.c.l.b16 %v3905
        %v3976 = vunpack.c.h.b16 %v3905
        %v3977 = vunpack.c.l.b16 %v3906
        %v3978 = vunpack.c.h.b16 %v3906
        %v3979 = vunpack.c.l.b16 %v3907
        %v3980 = vunpack.c.h.b16 %v3907
        %v3981 = vunpack.c.l.b16 %v3908
        %v3982 = vunpack.c.h.b16 %v3908
        %v3983 = vunpack.c.l.b16 %v3909
        %v3984 = vunpack.c.h.b16 %v3909
        %v3985 = vunpack.c.l.b16 %v3910
        %v3986 = vunpack.c.h.b16 %v3910
        %v3987 = vunpack.c.l.b16 %v3911
        %v3988 = vunpack.c.h.b16 %v3911
        %v3989 = vunpack.c.l.b16 %v3912
        %v3990 = vunpack.c.h.b16 %v3912
        %v3991 = vunpack.c.l.b16 %v3913
        %v3992 = vunpack.c.h.b16 %v3913
        %v3993 = vunpack.c.l.b16 %v3914
        %v3994 = vunpack.c.h.b16 %v3914
        %v3995 = vunpack.c.l.b16 %v3915
        %v3996 = vunpack.c.h.b16 %v3915
        %v3997 = vunpack.c.l.b16 %v3916
        %v3998 = vunpack.c.h.b16 %v3916
        %v3999 = vunpack.c.l.b16 %v3917
        %v4000 = vunpack.c.h.b16 %v3917
        %v4001 = vunpack.c.l.b16 %v3918
        %v4002 = vunpack.c.h.b16 %v3918
        %v4003 = vunpack.c.l.b16 %v3919
        %v4004 = vunpack.c.h.b16 %v3919
        %v4005 = vunpack.c.l.b16 %v3920
        %v4006 = vunpack.c.h.b16 %v3920
        %v4007 = vunpack.c.l.b16 %v3921
        %v4008 = vunpack.c.h.b16 %v3921
        %v4009 = vunpack.c.l.b16 %v3922
        %v4010 = vunpack.c.h.b16 %v3922
        %v4011 = vunpack.c.l.b16 %v3923
        %v4012 = vunpack.c.h.b16 %v3923
        %v4013 = vunpack.c.l.b16 %v3924
        %v4014 = vunpack.c.h.b16 %v3924
        %v4015 = vunpack.c.l.b16 %v3925
        %v4016 = vunpack.c.h.b16 %v3925
        %v4017 = vunpack.c.l.b16 %v3926
        %v4018 = vunpack.c.h.b16 %v3926
        %v4019 = vunpack.c.l.b16 %v3927
        %v4020 = vunpack.c.h.b16 %v3927
        %v4021 = vunpack.c.l.b16 %v3928
        %v4022 = vunpack.c.h.b16 %v3928
        %v4023 = vunpack.c.l.b16 %v3929
        %v4024 = vunpack.c.h.b16 %v3929
        %v4025 = vunpack.c.l.b16 %v3930
        %v4026 = vunpack.c.h.b16 %v3930
        %v4027 = vunpack.c.l.b16 %v3931
        %v4028 = vunpack.c.h.b16 %v3931
        %v4029 = vunpack.c.l.b16 %v3932
        %v4030 = vunpack.c.h.b16 %v3932
        %v4031 = vunpack.c.l.b16 %v3933
        %v4032 = vunpack.c.h.b16 %v3933
        %v4033 = vunpack.c.l.b16 %v3934
        %v4034 = vunpack.c.h.b16 %v3934
        %v4035 = vunpack.c.l.b16 %v3935
        %v4036 = vunpack.c.h.b16 %v3935
        %v4037 = vunpack.c.l.b16 %v3936
        %v4038 = vunpack.c.h.b16 %v3936
        %v4039 = vpack.c.b16 %v3977, %v3975
        %v4040 = vpack.c.b16 %v3978, %v3976
        %v4041 = vpack.c.b16 %v3981, %v3979
        %v4042 = vpack.c.b16 %v3982, %v3980
        %v4043 = vpack.c.b16 %v3985, %v3983
        %v4044 = vpack.c.b16 %v3986, %v3984
        %v4045 = vpack.c.b16 %v3989, %v3987
        %v4046 = vpack.c.b16 %v3990, %v3988
        %v4047 = vpack.c.b16 %v3993, %v3991
        %v4048 = vpack.c.b16 %v3994, %v3992
        %v4049 = vpack.c.b16 %v3997, %v3995
        %v4050 = vpack.c.b16 %v3998, %v3996
        %v4051 = vpack.c.b16 %v4001, %v3999
        %v4052 = vpack.c.b16 %v4002, %v4000
        %v4053 = vpack.c.b16 %v4005, %v4003
        %v4054 = vpack.c.b16 %v4006, %v4004
        %v4055 = vpack.c.b16 %v4009, %v4007
        %v4056 = vpack.c.b16 %v4010, %v4008
        %v4057 = vpack.c.b16 %v4013, %v4011
        %v4058 = vpack.c.b16 %v4014, %v4012
        %v4059 = vpack.c.b16 %v4017, %v4015
        %v4060 = vpack.c.b16 %v4018, %v4016
        %v4061 = vpack.c.b16 %v4021, %v4019
        %v4062 = vpack.c.b16 %v4022, %v4020
        %v4063 = vpack.c.b16 %v4025, %v4023
        %v4064 = vpack.c.b16 %v4026, %v4024
        %v4065 = vpack.c.b16 %v4029, %v4027
        %v4066 = vpack.c.b16 %v4030, %v4028
        %v4067 = vpack.c.b16 %v4033, %v4031
        %v4068 = vpack.c.b16 %v4034, %v4032
        %v4069 = vpack.c.b16 %v4037, %v4035
        %v4070 = vpack.c.b16 %v4038, %v4036
        %4103 = vmatpush.bf16.msra.mxu0 %v4053
        %4104 = vmatpush.bf16.msra.mxu0 %v4051
        %4105 = vmatpush.bf16.msra.mxu0 %v4049
        %4106 = vmatpush.bf16.msra.mxu0 %v4047
        %4107 = vmatpush.bf16.msra.mxu0 %v4045
        %4108 = vmatpush.bf16.msra.mxu0 %v4043
        %4109 = vmatpush.bf16.msra.mxu0 %v4041
        %4110 = vmatpush.bf16.msra.mxu0 %v4039
        %4111 = vmatmul.bf16.gmra.mxu0 %v3873
        %v4112 = vpop.f32.mrf.mxu0
        %v4113 = vadd.f32 %v3939, %v4112
        %v4114 = vpop.f32.mrf.mxu0
        %v4115 = vadd.f32 %v3939, %v4114
        %4116 = vmatmul.bf16.gmra.mxu0 %v3875
        %v4117 = vpop.f32.mrf.mxu0
        %v4118 = vadd.f32 %v3939, %v4117
        %v4119 = vpop.f32.mrf.mxu0
        %v4120 = vadd.f32 %v3939, %v4119
        %4121 = vmatmul.bf16.gmra.mxu0 %v3877
        %v4122 = vpop.f32.mrf.mxu0
        %v4123 = vadd.f32 %v3939, %v4122
        %v4124 = vpop.f32.mrf.mxu0
        %v4125 = vadd.f32 %v3939, %v4124
        %4126 = vmatmul.bf16.gmra.mxu0 %v3879
        %v4127 = vpop.f32.mrf.mxu0
        %v4128 = vadd.f32 %v3939, %v4127
        %v4129 = vpop.f32.mrf.mxu0
        %v4130 = vadd.f32 %v3939, %v4129
        %4131 = vmatmul.bf16.gmra.mxu0 %v3881
        %v4132 = vpop.f32.mrf.mxu0
        %v4133 = vadd.f32 %v3939, %v4132
        %v4134 = vpop.f32.mrf.mxu0
        %v4135 = vadd.f32 %v3939, %v4134
        %4136 = vmatmul.bf16.gmra.mxu0 %v3883
        %v4137 = vpop.f32.mrf.mxu0
        %v4138 = vadd.f32 %v3939, %v4137
        %v4139 = vpop.f32.mrf.mxu0
        %v4140 = vadd.f32 %v3939, %v4139
        %4141 = vmatmul.bf16.gmra.mxu0 %v3885
        %v4142 = vpop.f32.mrf.mxu0
        %v4143 = vadd.f32 %v3939, %v4142
        %v4144 = vpop.f32.mrf.mxu0
        %v4145 = vadd.f32 %v3939, %v4144
        %4146 = vmatmul.bf16.gmra.mxu0 %v3887
        %v4147 = vpop.f32.mrf.mxu0
        %v4148 = vadd.f32 %v3939, %v4147
        %v4149 = vpop.f32.mrf.mxu0
        %v4150 = vadd.f32 %v3939, %v4149
        %4151 = vmatmul.bf16.gmra.mxu0 %v3889
        %v4152 = vpop.f32.mrf.mxu0
        %v4153 = vadd.f32 %v3939, %v4152
        %v4154 = vpop.f32.mrf.mxu0
        %v4155 = vadd.f32 %v3939, %v4154
        %4156 = vmatmul.bf16.gmra.mxu0 %v3891
        %v4157 = vpop.f32.mrf.mxu0
        %v4158 = vadd.f32 %v3939, %v4157
        %v4159 = vpop.f32.mrf.mxu0
        %v4160 = vadd.f32 %v3939, %v4159
        %4161 = vmatmul.bf16.gmra.mxu0 %v3893
        %v4162 = vpop.f32.mrf.mxu0
        %v4163 = vadd.f32 %v3939, %v4162
        %v4164 = vpop.f32.mrf.mxu0
        %v4165 = vadd.f32 %v3939, %v4164
        %4166 = vmatmul.bf16.gmra.mxu0 %v3895
        %v4167 = vpop.f32.mrf.mxu0
        %v4168 = vadd.f32 %v3939, %v4167
        %v4169 = vpop.f32.mrf.mxu0
        %v4170 = vadd.f32 %v3939, %v4169
        %4171 = vmatmul.bf16.gmra.mxu0 %v3897
        %v4172 = vpop.f32.mrf.mxu0
        %v4173 = vadd.f32 %v3939, %v4172
        %v4174 = vpop.f32.mrf.mxu0
        %v4175 = vadd.f32 %v3939, %v4174
        %4176 = vmatmul.bf16.gmra.mxu0 %v3899
        %v4177 = vpop.f32.mrf.mxu0
        %v4178 = vadd.f32 %v3939, %v4177
        %v4179 = vpop.f32.mrf.mxu0
        %v4180 = vadd.f32 %v3939, %v4179
        %4181 = vmatmul.bf16.gmra.mxu0 %v3901
        %v4182 = vpop.f32.mrf.mxu0
        %v4183 = vadd.f32 %v3939, %v4182
        %v4184 = vpop.f32.mrf.mxu0
        %v4185 = vadd.f32 %v3939, %v4184
        %4186 = vmatmul.bf16.gmra.mxu0 %v3903
        %v4187 = vpop.f32.mrf.mxu0
        %v4188 = vadd.f32 %v3939, %v4187
        %v4189 = vpop.f32.mrf.mxu0
        %v4190 = vadd.f32 %v3939, %v4189
        %4191 = vdwg.mxu0
        %4192 = vmatpush.bf16.msra.mxu0 %v4069
        %4193 = vmatpush.bf16.msra.mxu0 %v4067
        %4194 = vmatpush.bf16.msra.mxu0 %v4065
        %4195 = vmatpush.bf16.msra.mxu0 %v4063
        %4196 = vmatpush.bf16.msra.mxu0 %v4061
        %4197 = vmatpush.bf16.msra.mxu0 %v4059
        %4198 = vmatpush.bf16.msra.mxu0 %v4057
        %4199 = vmatpush.bf16.msra.mxu0 %v4055
        %4200 = vmatmul.bf16.gmra.mxu0 %v3874
        %v4201 = vpop.f32.mrf.mxu0
        %v4202 = vadd.f32 %v4113, %v4201
        %v4203 = vpop.f32.mrf.mxu0
        %v4204 = vadd.f32 %v4115, %v4203
        %4205 = vmatmul.bf16.gmra.mxu0 %v3876
        %v4206 = vpop.f32.mrf.mxu0
        %v4207 = vadd.f32 %v4118, %v4206
        %v4208 = vpop.f32.mrf.mxu0
        %v4209 = vadd.f32 %v4120, %v4208
        %4210 = vmatmul.bf16.gmra.mxu0 %v3878
        %v4211 = vpop.f32.mrf.mxu0
        %v4212 = vadd.f32 %v4123, %v4211
        %v4213 = vpop.f32.mrf.mxu0
        %v4214 = vadd.f32 %v4125, %v4213
        %4215 = vmatmul.bf16.gmra.mxu0 %v3880
        %v4216 = vpop.f32.mrf.mxu0
        %v4217 = vadd.f32 %v4128, %v4216
        %v4218 = vpop.f32.mrf.mxu0
        %v4219 = vadd.f32 %v4130, %v4218
        %4220 = vmatmul.bf16.gmra.mxu0 %v3882
        %v4221 = vpop.f32.mrf.mxu0
        %v4222 = vadd.f32 %v4133, %v4221
        %v4223 = vpop.f32.mrf.mxu0
        %v4224 = vadd.f32 %v4135, %v4223
        %4225 = vmatmul.bf16.gmra.mxu0 %v3884
        %v4226 = vpop.f32.mrf.mxu0
        %v4227 = vadd.f32 %v4138, %v4226
        %v4228 = vpop.f32.mrf.mxu0
        %v4229 = vadd.f32 %v4140, %v4228
        %4230 = vmatmul.bf16.gmra.mxu0 %v3886
        %v4231 = vpop.f32.mrf.mxu0
        %v4232 = vadd.f32 %v4143, %v4231
        %v4233 = vpop.f32.mrf.mxu0
        %v4234 = vadd.f32 %v4145, %v4233
        %4235 = vmatmul.bf16.gmra.mxu0 %v3888
        %v4236 = vpop.f32.mrf.mxu0
        %v4237 = vadd.f32 %v4148, %v4236
        %v4238 = vpop.f32.mrf.mxu0
        %v4239 = vadd.f32 %v4150, %v4238
        %4240 = vmatmul.bf16.gmra.mxu0 %v3890
        %v4241 = vpop.f32.mrf.mxu0
        %v4242 = vadd.f32 %v4153, %v4241
        %v4243 = vpop.f32.mrf.mxu0
        %v4244 = vadd.f32 %v4155, %v4243
        %4245 = vmatmul.bf16.gmra.mxu0 %v3892
        %v4246 = vpop.f32.mrf.mxu0
        %v4247 = vadd.f32 %v4158, %v4246
        %v4248 = vpop.f32.mrf.mxu0
        %v4249 = vadd.f32 %v4160, %v4248
        %4250 = vmatmul.bf16.gmra.mxu0 %v3894
        %v4251 = vpop.f32.mrf.mxu0
        %v4252 = vadd.f32 %v4163, %v4251
        %v4253 = vpop.f32.mrf.mxu0
        %v4254 = vadd.f32 %v4165, %v4253
        %4255 = vmatmul.bf16.gmra.mxu0 %v3896
        %v4256 = vpop.f32.mrf.mxu0
        %v4257 = vadd.f32 %v4168, %v4256
        %v4258 = vpop.f32.mrf.mxu0
        %v4259 = vadd.f32 %v4170, %v4258
        %4260 = vmatmul.bf16.gmra.mxu0 %v3898
        %v4261 = vpop.f32.mrf.mxu0
        %v4262 = vadd.f32 %v4173, %v4261
        %v4263 = vpop.f32.mrf.mxu0
        %v4264 = vadd.f32 %v4175, %v4263
        %4265 = vmatmul.bf16.gmra.mxu0 %v3900
        %v4266 = vpop.f32.mrf.mxu0
        %v4267 = vadd.f32 %v4178, %v4266
        %v4268 = vpop.f32.mrf.mxu0
        %v4269 = vadd.f32 %v4180, %v4268
        %4270 = vmatmul.bf16.gmra.mxu0 %v3902
        %v4271 = vpop.f32.mrf.mxu0
        %v4272 = vadd.f32 %v4183, %v4271
        %v4273 = vpop.f32.mrf.mxu0
        %v4274 = vadd.f32 %v4185, %v4273
        %4275 = vmatmul.bf16.gmra.mxu0 %v3904
        %v4276 = vpop.f32.mrf.mxu0
        %v4277 = vadd.f32 %v4188, %v4276
        %v4278 = vpop.f32.mrf.mxu0
        %v4279 = vadd.f32 %v4190, %v4278
        %4280 = vdwg.mxu0
        %4281 = vmatpush.bf16.msra.mxu0 %v4054
        %4282 = vmatpush.bf16.msra.mxu0 %v4052
        %4283 = vmatpush.bf16.msra.mxu0 %v4050
        %4284 = vmatpush.bf16.msra.mxu0 %v4048
        %4285 = vmatpush.bf16.msra.mxu0 %v4046
        %4286 = vmatpush.bf16.msra.mxu0 %v4044
        %4287 = vmatpush.bf16.msra.mxu0 %v4042
        %4288 = vmatpush.bf16.msra.mxu0 %v4040
        %4289 = vmatmul.bf16.gmra.mxu0 %v3873
        %v4290 = vpop.f32.mrf.mxu0
        %v4291 = vadd.f32 %v3940, %v4290
        %v4292 = vpop.f32.mrf.mxu0
        %v4293 = vadd.f32 %v3940, %v4292
        %4294 = vmatmul.bf16.gmra.mxu0 %v3875
        %v4295 = vpop.f32.mrf.mxu0
        %v4296 = vadd.f32 %v3940, %v4295
        %v4297 = vpop.f32.mrf.mxu0
        %v4298 = vadd.f32 %v3940, %v4297
        %4299 = vmatmul.bf16.gmra.mxu0 %v3877
        %v4300 = vpop.f32.mrf.mxu0
        %v4301 = vadd.f32 %v3940, %v4300
        %v4302 = vpop.f32.mrf.mxu0
        %v4303 = vadd.f32 %v3940, %v4302
        %4304 = vmatmul.bf16.gmra.mxu0 %v3879
        %v4305 = vpop.f32.mrf.mxu0
        %v4306 = vadd.f32 %v3940, %v4305
        %v4307 = vpop.f32.mrf.mxu0
        %v4308 = vadd.f32 %v3940, %v4307
        %4309 = vmatmul.bf16.gmra.mxu0 %v3881
        %v4310 = vpop.f32.mrf.mxu0
        %v4311 = vadd.f32 %v3940, %v4310
        %v4312 = vpop.f32.mrf.mxu0
        %v4313 = vadd.f32 %v3940, %v4312
        %4314 = vmatmul.bf16.gmra.mxu0 %v3883
        %v4315 = vpop.f32.mrf.mxu0
        %v4316 = vadd.f32 %v3940, %v4315
        %v4317 = vpop.f32.mrf.mxu0
        %v4318 = vadd.f32 %v3940, %v4317
        %4319 = vmatmul.bf16.gmra.mxu0 %v3885
        %v4320 = vpop.f32.mrf.mxu0
        %v4321 = vadd.f32 %v3940, %v4320
        %v4322 = vpop.f32.mrf.mxu0
        %v4323 = vadd.f32 %v3940, %v4322
        %4324 = vmatmul.bf16.gmra.mxu0 %v3887
        %v4325 = vpop.f32.mrf.mxu0
        %v4326 = vadd.f32 %v3940, %v4325
        %v4327 = vpop.f32.mrf.mxu0
        %v4328 = vadd.f32 %v3940, %v4327
        %4329 = vmatmul.bf16.gmra.mxu0 %v3889
        %v4330 = vpop.f32.mrf.mxu0
        %v4331 = vadd.f32 %v3940, %v4330
        %v4332 = vpop.f32.mrf.mxu0
        %v4333 = vadd.f32 %v3940, %v4332
        %4334 = vmatmul.bf16.gmra.mxu0 %v3891
        %v4335 = vpop.f32.mrf.mxu0
        %v4336 = vadd.f32 %v3940, %v4335
        %v4337 = vpop.f32.mrf.mxu0
        %v4338 = vadd.f32 %v3940, %v4337
        %4339 = vmatmul.bf16.gmra.mxu0 %v3893
        %v4340 = vpop.f32.mrf.mxu0
        %v4341 = vadd.f32 %v3940, %v4340
        %v4342 = vpop.f32.mrf.mxu0
        %v4343 = vadd.f32 %v3940, %v4342
        %4344 = vmatmul.bf16.gmra.mxu0 %v3895
        %v4345 = vpop.f32.mrf.mxu0
        %v4346 = vadd.f32 %v3940, %v4345
        %v4347 = vpop.f32.mrf.mxu0
        %v4348 = vadd.f32 %v3940, %v4347
        %4349 = vmatmul.bf16.gmra.mxu0 %v3897
        %v4350 = vpop.f32.mrf.mxu0
        %v4351 = vadd.f32 %v3940, %v4350
        %v4352 = vpop.f32.mrf.mxu0
        %v4353 = vadd.f32 %v3940, %v4352
        %4354 = vmatmul.bf16.gmra.mxu0 %v3899
        %v4355 = vpop.f32.mrf.mxu0
        %v4356 = vadd.f32 %v3940, %v4355
        %v4357 = vpop.f32.mrf.mxu0
        %v4358 = vadd.f32 %v3940, %v4357
        %4359 = vmatmul.bf16.gmra.mxu0 %v3901
        %v4360 = vpop.f32.mrf.mxu0
        %v4361 = vadd.f32 %v3940, %v4360
        %v4362 = vpop.f32.mrf.mxu0
        %v4363 = vadd.f32 %v3940, %v4362
        %4364 = vmatmul.bf16.gmra.mxu0 %v3903
        %v4365 = vpop.f32.mrf.mxu0
        %v4366 = vadd.f32 %v3940, %v4365
        %v4367 = vpop.f32.mrf.mxu0
        %v4368 = vadd.f32 %v3940, %v4367
        %4369 = vdwg.mxu0
        %4370 = vmatpush.bf16.msra.mxu0 %v4070
        %4371 = vmatpush.bf16.msra.mxu0 %v4068
        %4372 = vmatpush.bf16.msra.mxu0 %v4066
        %4373 = vmatpush.bf16.msra.mxu0 %v4064
        %4374 = vmatpush.bf16.msra.mxu0 %v4062
        %4375 = vmatpush.bf16.msra.mxu0 %v4060
        %4376 = vmatpush.bf16.msra.mxu0 %v4058
        %4377 = vmatpush.bf16.msra.mxu0 %v4056
        %4378 = vmatmul.bf16.gmra.mxu0 %v3874
        %v4379 = vpop.f32.mrf.mxu0
        %v4380 = vadd.f32 %v4291, %v4379
        %v4381 = vpop.f32.mrf.mxu0
        %v4382 = vadd.f32 %v4293, %v4381
        %4383 = vmatmul.bf16.gmra.mxu0 %v3876
        %v4384 = vpop.f32.mrf.mxu0
        %v4385 = vadd.f32 %v4296, %v4384
        %v4386 = vpop.f32.mrf.mxu0
        %v4387 = vadd.f32 %v4298, %v4386
        %4388 = vmatmul.bf16.gmra.mxu0 %v3878
        %v4389 = vpop.f32.mrf.mxu0
        %v4390 = vadd.f32 %v4301, %v4389
        %v4391 = vpop.f32.mrf.mxu0
        %v4392 = vadd.f32 %v4303, %v4391
        %4393 = vmatmul.bf16.gmra.mxu0 %v3880
        %v4394 = vpop.f32.mrf.mxu0
        %v4395 = vadd.f32 %v4306, %v4394
        %v4396 = vpop.f32.mrf.mxu0
        %v4397 = vadd.f32 %v4308, %v4396
        %4398 = vmatmul.bf16.gmra.mxu0 %v3882
        %v4399 = vpop.f32.mrf.mxu0
        %v4400 = vadd.f32 %v4311, %v4399
        %v4401 = vpop.f32.mrf.mxu0
        %v4402 = vadd.f32 %v4313, %v4401
        %4403 = vmatmul.bf16.gmra.mxu0 %v3884
        %v4404 = vpop.f32.mrf.mxu0
        %v4405 = vadd.f32 %v4316, %v4404
        %v4406 = vpop.f32.mrf.mxu0
        %v4407 = vadd.f32 %v4318, %v4406
        %4408 = vmatmul.bf16.gmra.mxu0 %v3886
        %v4409 = vpop.f32.mrf.mxu0
        %v4410 = vadd.f32 %v4321, %v4409
        %v4411 = vpop.f32.mrf.mxu0
        %v4412 = vadd.f32 %v4323, %v4411
        %4413 = vmatmul.bf16.gmra.mxu0 %v3888
        %v4414 = vpop.f32.mrf.mxu0
        %v4415 = vadd.f32 %v4326, %v4414
        %v4416 = vpop.f32.mrf.mxu0
        %v4417 = vadd.f32 %v4328, %v4416
        %4418 = vmatmul.bf16.gmra.mxu0 %v3890
        %v4419 = vpop.f32.mrf.mxu0
        %v4420 = vadd.f32 %v4331, %v4419
        %v4421 = vpop.f32.mrf.mxu0
        %v4422 = vadd.f32 %v4333, %v4421
        %4423 = vmatmul.bf16.gmra.mxu0 %v3892
        %v4424 = vpop.f32.mrf.mxu0
        %v4425 = vadd.f32 %v4336, %v4424
        %v4426 = vpop.f32.mrf.mxu0
        %v4427 = vadd.f32 %v4338, %v4426
        %4428 = vmatmul.bf16.gmra.mxu0 %v3894
        %v4429 = vpop.f32.mrf.mxu0
        %v4430 = vadd.f32 %v4341, %v4429
        %v4431 = vpop.f32.mrf.mxu0
        %v4432 = vadd.f32 %v4343, %v4431
        %4433 = vmatmul.bf16.gmra.mxu0 %v3896
        %v4434 = vpop.f32.mrf.mxu0
        %v4435 = vadd.f32 %v4346, %v4434
        %v4436 = vpop.f32.mrf.mxu0
        %v4437 = vadd.f32 %v4348, %v4436
        %4438 = vmatmul.bf16.gmra.mxu0 %v3898
        %v4439 = vpop.f32.mrf.mxu0
        %v4440 = vadd.f32 %v4351, %v4439
        %v4441 = vpop.f32.mrf.mxu0
        %v4442 = vadd.f32 %v4353, %v4441
        %4443 = vmatmul.bf16.gmra.mxu0 %v3900
        %v4444 = vpop.f32.mrf.mxu0
        %v4445 = vadd.f32 %v4356, %v4444
        %v4446 = vpop.f32.mrf.mxu0
        %v4447 = vadd.f32 %v4358, %v4446
        %4448 = vmatmul.bf16.gmra.mxu0 %v3902
        %v4449 = vpop.f32.mrf.mxu0
        %v4450 = vadd.f32 %v4361, %v4449
        %v4451 = vpop.f32.mrf.mxu0
        %v4452 = vadd.f32 %v4363, %v4451
        %4453 = vmatmul.bf16.gmra.mxu0 %v3904
        %v4454 = vpop.f32.mrf.mxu0
        %v4455 = vadd.f32 %v4366, %v4454
        %v4456 = vpop.f32.mrf.mxu0
        %v4457 = vadd.f32 %v4368, %v4456
        %4458 = vdwg.mxu0
        %v4459 = vmax.f32 %v4202, 0.0
        %v4460 = vmax.f32 %v4380, 0.0
        %v4461 = vmax.f32 %v4204, 0.0
        %v4462 = vmax.f32 %v4382, 0.0
        %v4463 = vmax.f32 %v4207, 0.0
        %v4464 = vmax.f32 %v4385, 0.0
        %v4465 = vmax.f32 %v4209, 0.0
        %v4466 = vmax.f32 %v4387, 0.0
        %v4467 = vmax.f32 %v4212, 0.0
        %v4468 = vmax.f32 %v4390, 0.0
        %v4469 = vmax.f32 %v4214, 0.0
        %v4470 = vmax.f32 %v4392, 0.0
        %v4471 = vmax.f32 %v4217, 0.0
        %v4472 = vmax.f32 %v4395, 0.0
        %v4473 = vmax.f32 %v4219, 0.0
        %v4474 = vmax.f32 %v4397, 0.0
        %v4475 = vmax.f32 %v4222, 0.0
        %v4476 = vmax.f32 %v4400, 0.0
        %v4477 = vmax.f32 %v4224, 0.0
        %v4478 = vmax.f32 %v4402, 0.0
        %v4479 = vmax.f32 %v4227, 0.0
        %v4480 = vmax.f32 %v4405, 0.0
        %v4481 = vmax.f32 %v4229, 0.0
        %v4482 = vmax.f32 %v4407, 0.0
        %v4483 = vmax.f32 %v4232, 0.0
        %v4484 = vmax.f32 %v4410, 0.0
        %v4485 = vmax.f32 %v4234, 0.0
        %v4486 = vmax.f32 %v4412, 0.0
        %v4487 = vmax.f32 %v4237, 0.0
        %v4488 = vmax.f32 %v4415, 0.0
        %v4489 = vmax.f32 %v4239, 0.0
        %v4490 = vmax.f32 %v4417, 0.0
        %v4491 = vmax.f32 %v4242, 0.0
        %v4492 = vmax.f32 %v4420, 0.0
        %v4493 = vmax.f32 %v4244, 0.0
        %v4494 = vmax.f32 %v4422, 0.0
        %v4495 = vmax.f32 %v4247, 0.0
        %v4496 = vmax.f32 %v4425, 0.0
        %v4497 = vmax.f32 %v4249, 0.0
        %v4498 = vmax.f32 %v4427, 0.0
        %v4499 = vmax.f32 %v4252, 0.0
        %v4500 = vmax.f32 %v4430, 0.0
        %v4501 = vmax.f32 %v4254, 0.0
        %v4502 = vmax.f32 %v4432, 0.0
        %v4503 = vmax.f32 %v4257, 0.0
        %v4504 = vmax.f32 %v4435, 0.0
        %v4505 = vmax.f32 %v4259, 0.0
        %v4506 = vmax.f32 %v4437, 0.0
        %v4507 = vmax.f32 %v4262, 0.0
        %v4508 = vmax.f32 %v4440, 0.0
        %v4509 = vmax.f32 %v4264, 0.0
        %v4510 = vmax.f32 %v4442, 0.0
        %v4511 = vmax.f32 %v4267, 0.0
        %v4512 = vmax.f32 %v4445, 0.0
        %v4513 = vmax.f32 %v4269, 0.0
        %v4514 = vmax.f32 %v4447, 0.0
        %v4515 = vmax.f32 %v4272, 0.0
        %v4516 = vmax.f32 %v4450, 0.0
        %v4517 = vmax.f32 %v4274, 0.0
        %v4518 = vmax.f32 %v4452, 0.0
        %v4519 = vmax.f32 %v4277, 0.0
        %v4520 = vmax.f32 %v4455, 0.0
        %v4521 = vmax.f32 %v4279, 0.0
        %v4522 = vmax.f32 %v4457, 0.0
        %v4523 = vpack.c.bf16 %v4461, %v4459
        %v4524 = vpack.c.bf16 %v4462, %v4460
        %v4525 = vpack.c.bf16 %v4465, %v4463
        %v4526 = vpack.c.bf16 %v4466, %v4464
        %v4527 = vpack.c.bf16 %v4469, %v4467
        %v4528 = vpack.c.bf16 %v4470, %v4468
        %v4529 = vpack.c.bf16 %v4473, %v4471
        %v4530 = vpack.c.bf16 %v4474, %v4472
        %v4531 = vpack.c.bf16 %v4477, %v4475
        %v4532 = vpack.c.bf16 %v4478, %v4476
        %v4533 = vpack.c.bf16 %v4481, %v4479
        %v4534 = vpack.c.bf16 %v4482, %v4480
        %v4535 = vpack.c.bf16 %v4485, %v4483
        %v4536 = vpack.c.bf16 %v4486, %v4484
        %v4537 = vpack.c.bf16 %v4489, %v4487
        %v4538 = vpack.c.bf16 %v4490, %v4488
        %v4539 = vpack.c.bf16 %v4493, %v4491
        %v4540 = vpack.c.bf16 %v4494, %v4492
        %v4541 = vpack.c.bf16 %v4497, %v4495
        %v4542 = vpack.c.bf16 %v4498, %v4496
        %v4543 = vpack.c.bf16 %v4501, %v4499
        %v4544 = vpack.c.bf16 %v4502, %v4500
        %v4545 = vpack.c.bf16 %v4505, %v4503
        %v4546 = vpack.c.bf16 %v4506, %v4504
        %v4547 = vpack.c.bf16 %v4509, %v4507
        %v4548 = vpack.c.bf16 %v4510, %v4508
        %v4549 = vpack.c.bf16 %v4513, %v4511
        %v4550 = vpack.c.bf16 %v4514, %v4512
        %v4551 = vpack.c.bf16 %v4517, %v4515
        %v4552 = vpack.c.bf16 %v4518, %v4516
        %v4553 = vpack.c.bf16 %v4521, %v4519
        %v4554 = vpack.c.bf16 %v4522, %v4520
        %v4555 = vld [vmem:[#allocation16] sm:$0xff]
        %v4556 = vld [vmem:[#allocation16 + $0x8] sm:$0xff]
        %v4557 = vld [vmem:[#allocation16 + $0x10] sm:$0xff]
        %v4558 = vld [vmem:[#allocation16 + $0x18] sm:$0xff]
        %v4559 = vld [vmem:[#allocation16 + $0x20] sm:$0xff]
        %v4560 = vld [vmem:[#allocation16 + $0x28] sm:$0xff]
        %v4561 = vld [vmem:[#allocation16 + $0x30] sm:$0xff]
        %v4562 = vld [vmem:[#allocation16 + $0x38] sm:$0xff]
        %v4563 = vld [vmem:[#allocation16 + $0x40] sm:$0xff]
        %v4564 = vld [vmem:[#allocation16 + $0x48] sm:$0xff]
        %v4565 = vld [vmem:[#allocation16 + $0x50] sm:$0xff]
        %v4566 = vld [vmem:[#allocation16 + $0x58] sm:$0xff]
        %v4567 = vld [vmem:[#allocation16 + $0x60] sm:$0xff]
        %v4568 = vld [vmem:[#allocation16 + $0x68] sm:$0xff]
        %v4569 = vld [vmem:[#allocation16 + $0x70] sm:$0xff]
        %v4570 = vld [vmem:[#allocation16 + $0x78] sm:$0xff]
        %v4571 = vld [vmem:[#allocation16 + $0x80] sm:$0xff]
        %v4572 = vld [vmem:[#allocation16 + $0x88] sm:$0xff]
        %v4573 = vld [vmem:[#allocation16 + $0x90] sm:$0xff]
        %v4574 = vld [vmem:[#allocation16 + $0x98] sm:$0xff]
        %v4575 = vld [vmem:[#allocation16 + $0xa0] sm:$0xff]
        %v4576 = vld [vmem:[#allocation16 + $0xa8] sm:$0xff]
        %v4577 = vld [vmem:[#allocation16 + $0xb0] sm:$0xff]
        %v4578 = vld [vmem:[#allocation16 + $0xb8] sm:$0xff]
        %v4579 = vld [vmem:[#allocation16 + $0xc0] sm:$0xff]
        %v4580 = vld [vmem:[#allocation16 + $0xc8] sm:$0xff]
        %v4581 = vld [vmem:[#allocation16 + $0xd0] sm:$0xff]
        %v4582 = vld [vmem:[#allocation16 + $0xd8] sm:$0xff]
        %v4583 = vld [vmem:[#allocation16 + $0xe0] sm:$0xff]
        %v4584 = vld [vmem:[#allocation16 + $0xe8] sm:$0xff]
        %v4585 = vld [vmem:[#allocation16 + $0xf0] sm:$0xff]
        %v4586 = vld [vmem:[#allocation16 + $0xf8] sm:$0xff]
        %v4587 = vld [vmem:[%s15] sm:$0x3]
        %v4589 = vperm.slane %v4587, 0
        %v4590 = vperm.slane %v4587, 1
        %v4625 = vunpack.c.l.b16 %v4555
        %v4626 = vunpack.c.h.b16 %v4555
        %v4627 = vunpack.c.l.b16 %v4556
        %v4628 = vunpack.c.h.b16 %v4556
        %v4629 = vunpack.c.l.b16 %v4557
        %v4630 = vunpack.c.h.b16 %v4557
        %v4631 = vunpack.c.l.b16 %v4558
        %v4632 = vunpack.c.h.b16 %v4558
        %v4633 = vunpack.c.l.b16 %v4559
        %v4634 = vunpack.c.h.b16 %v4559
        %v4635 = vunpack.c.l.b16 %v4560
        %v4636 = vunpack.c.h.b16 %v4560
        %v4637 = vunpack.c.l.b16 %v4561
        %v4638 = vunpack.c.h.b16 %v4561
        %v4639 = vunpack.c.l.b16 %v4562
        %v4640 = vunpack.c.h.b16 %v4562
        %v4641 = vunpack.c.l.b16 %v4563
        %v4642 = vunpack.c.h.b16 %v4563
        %v4643 = vunpack.c.l.b16 %v4564
        %v4644 = vunpack.c.h.b16 %v4564
        %v4645 = vunpack.c.l.b16 %v4565
        %v4646 = vunpack.c.h.b16 %v4565
        %v4647 = vunpack.c.l.b16 %v4566
        %v4648 = vunpack.c.h.b16 %v4566
        %v4649 = vunpack.c.l.b16 %v4567
        %v4650 = vunpack.c.h.b16 %v4567
        %v4651 = vunpack.c.l.b16 %v4568
        %v4652 = vunpack.c.h.b16 %v4568
        %v4653 = vunpack.c.l.b16 %v4569
        %v4654 = vunpack.c.h.b16 %v4569
        %v4655 = vunpack.c.l.b16 %v4570
        %v4656 = vunpack.c.h.b16 %v4570
        %v4657 = vunpack.c.l.b16 %v4571
        %v4658 = vunpack.c.h.b16 %v4571
        %v4659 = vunpack.c.l.b16 %v4572
        %v4660 = vunpack.c.h.b16 %v4572
        %v4661 = vunpack.c.l.b16 %v4573
        %v4662 = vunpack.c.h.b16 %v4573
        %v4663 = vunpack.c.l.b16 %v4574
        %v4664 = vunpack.c.h.b16 %v4574
        %v4665 = vunpack.c.l.b16 %v4575
        %v4666 = vunpack.c.h.b16 %v4575
        %v4667 = vunpack.c.l.b16 %v4576
        %v4668 = vunpack.c.h.b16 %v4576
        %v4669 = vunpack.c.l.b16 %v4577
        %v4670 = vunpack.c.h.b16 %v4577
        %v4671 = vunpack.c.l.b16 %v4578
        %v4672 = vunpack.c.h.b16 %v4578
        %v4673 = vunpack.c.l.b16 %v4579
        %v4674 = vunpack.c.h.b16 %v4579
        %v4675 = vunpack.c.l.b16 %v4580
        %v4676 = vunpack.c.h.b16 %v4580
        %v4677 = vunpack.c.l.b16 %v4581
        %v4678 = vunpack.c.h.b16 %v4581
        %v4679 = vunpack.c.l.b16 %v4582
        %v4680 = vunpack.c.h.b16 %v4582
        %v4681 = vunpack.c.l.b16 %v4583
        %v4682 = vunpack.c.h.b16 %v4583
        %v4683 = vunpack.c.l.b16 %v4584
        %v4684 = vunpack.c.h.b16 %v4584
        %v4685 = vunpack.c.l.b16 %v4585
        %v4686 = vunpack.c.h.b16 %v4585
        %v4687 = vunpack.c.l.b16 %v4586
        %v4688 = vunpack.c.h.b16 %v4586
        %v4689 = vpack.c.b16 %v4627, %v4625
        %v4690 = vpack.c.b16 %v4628, %v4626
        %v4691 = vpack.c.b16 %v4631, %v4629
        %v4692 = vpack.c.b16 %v4632, %v4630
        %v4693 = vpack.c.b16 %v4635, %v4633
        %v4694 = vpack.c.b16 %v4636, %v4634
        %v4695 = vpack.c.b16 %v4639, %v4637
        %v4696 = vpack.c.b16 %v4640, %v4638
        %v4697 = vpack.c.b16 %v4643, %v4641
        %v4698 = vpack.c.b16 %v4644, %v4642
        %v4699 = vpack.c.b16 %v4647, %v4645
        %v4700 = vpack.c.b16 %v4648, %v4646
        %v4701 = vpack.c.b16 %v4651, %v4649
        %v4702 = vpack.c.b16 %v4652, %v4650
        %v4703 = vpack.c.b16 %v4655, %v4653
        %v4704 = vpack.c.b16 %v4656, %v4654
        %v4705 = vpack.c.b16 %v4659, %v4657
        %v4706 = vpack.c.b16 %v4660, %v4658
        %v4707 = vpack.c.b16 %v4663, %v4661
        %v4708 = vpack.c.b16 %v4664, %v4662
        %v4709 = vpack.c.b16 %v4667, %v4665
        %v4710 = vpack.c.b16 %v4668, %v4666
        %v4711 = vpack.c.b16 %v4671, %v4669
        %v4712 = vpack.c.b16 %v4672, %v4670
        %v4713 = vpack.c.b16 %v4675, %v4673
        %v4714 = vpack.c.b16 %v4676, %v4674
        %v4715 = vpack.c.b16 %v4679, %v4677
        %v4716 = vpack.c.b16 %v4680, %v4678
        %v4717 = vpack.c.b16 %v4683, %v4681
        %v4718 = vpack.c.b16 %v4684, %v4682
        %v4719 = vpack.c.b16 %v4687, %v4685
        %v4720 = vpack.c.b16 %v4688, %v4686
        %4753 = vmatpush.bf16.msra.mxu0 %v4703
        %4754 = vmatpush.bf16.msra.mxu0 %v4701
        %4755 = vmatpush.bf16.msra.mxu0 %v4699
        %4756 = vmatpush.bf16.msra.mxu0 %v4697
        %4757 = vmatpush.bf16.msra.mxu0 %v4695
        %4758 = vmatpush.bf16.msra.mxu0 %v4693
        %4759 = vmatpush.bf16.msra.mxu0 %v4691
        %4760 = vmatpush.bf16.msra.mxu0 %v4689
        %4761 = vmatmul.bf16.gmra.mxu0 %v4523
        %v4762 = vpop.f32.mrf.mxu0
        %v4763 = vadd.f32 %v4589, %v4762
        %v4764 = vpop.f32.mrf.mxu0
        %v4765 = vadd.f32 %v4589, %v4764
        %4766 = vmatmul.bf16.gmra.mxu0 %v4525
        %v4767 = vpop.f32.mrf.mxu0
        %v4768 = vadd.f32 %v4589, %v4767
        %v4769 = vpop.f32.mrf.mxu0
        %v4770 = vadd.f32 %v4589, %v4769
        %4771 = vmatmul.bf16.gmra.mxu0 %v4527
        %v4772 = vpop.f32.mrf.mxu0
        %v4773 = vadd.f32 %v4589, %v4772
        %v4774 = vpop.f32.mrf.mxu0
        %v4775 = vadd.f32 %v4589, %v4774
        %4776 = vmatmul.bf16.gmra.mxu0 %v4529
        %v4777 = vpop.f32.mrf.mxu0
        %v4778 = vadd.f32 %v4589, %v4777
        %v4779 = vpop.f32.mrf.mxu0
        %v4780 = vadd.f32 %v4589, %v4779
        %4781 = vmatmul.bf16.gmra.mxu0 %v4531
        %v4782 = vpop.f32.mrf.mxu0
        %v4783 = vadd.f32 %v4589, %v4782
        %v4784 = vpop.f32.mrf.mxu0
        %v4785 = vadd.f32 %v4589, %v4784
        %4786 = vmatmul.bf16.gmra.mxu0 %v4533
        %v4787 = vpop.f32.mrf.mxu0
        %v4788 = vadd.f32 %v4589, %v4787
        %v4789 = vpop.f32.mrf.mxu0
        %v4790 = vadd.f32 %v4589, %v4789
        %4791 = vmatmul.bf16.gmra.mxu0 %v4535
        %v4792 = vpop.f32.mrf.mxu0
        %v4793 = vadd.f32 %v4589, %v4792
        %v4794 = vpop.f32.mrf.mxu0
        %v4795 = vadd.f32 %v4589, %v4794
        %4796 = vmatmul.bf16.gmra.mxu0 %v4537
        %v4797 = vpop.f32.mrf.mxu0
        %v4798 = vadd.f32 %v4589, %v4797
        %v4799 = vpop.f32.mrf.mxu0
        %v4800 = vadd.f32 %v4589, %v4799
        %4801 = vmatmul.bf16.gmra.mxu0 %v4539
        %v4802 = vpop.f32.mrf.mxu0
        %v4803 = vadd.f32 %v4589, %v4802
        %v4804 = vpop.f32.mrf.mxu0
        %v4805 = vadd.f32 %v4589, %v4804
        %4806 = vmatmul.bf16.gmra.mxu0 %v4541
        %v4807 = vpop.f32.mrf.mxu0
        %v4808 = vadd.f32 %v4589, %v4807
        %v4809 = vpop.f32.mrf.mxu0
        %v4810 = vadd.f32 %v4589, %v4809
        %4811 = vmatmul.bf16.gmra.mxu0 %v4543
        %v4812 = vpop.f32.mrf.mxu0
        %v4813 = vadd.f32 %v4589, %v4812
        %v4814 = vpop.f32.mrf.mxu0
        %v4815 = vadd.f32 %v4589, %v4814
        %4816 = vmatmul.bf16.gmra.mxu0 %v4545
        %v4817 = vpop.f32.mrf.mxu0
        %v4818 = vadd.f32 %v4589, %v4817
        %v4819 = vpop.f32.mrf.mxu0
        %v4820 = vadd.f32 %v4589, %v4819
        %4821 = vmatmul.bf16.gmra.mxu0 %v4547
        %v4822 = vpop.f32.mrf.mxu0
        %v4823 = vadd.f32 %v4589, %v4822
        %v4824 = vpop.f32.mrf.mxu0
        %v4825 = vadd.f32 %v4589, %v4824
        %4826 = vmatmul.bf16.gmra.mxu0 %v4549
        %v4827 = vpop.f32.mrf.mxu0
        %v4828 = vadd.f32 %v4589, %v4827
        %v4829 = vpop.f32.mrf.mxu0
        %v4830 = vadd.f32 %v4589, %v4829
        %4831 = vmatmul.bf16.gmra.mxu0 %v4551
        %v4832 = vpop.f32.mrf.mxu0
        %v4833 = vadd.f32 %v4589, %v4832
        %v4834 = vpop.f32.mrf.mxu0
        %v4835 = vadd.f32 %v4589, %v4834
        %4836 = vmatmul.bf16.gmra.mxu0 %v4553
        %v4837 = vpop.f32.mrf.mxu0
        %v4838 = vadd.f32 %v4589, %v4837
        %v4839 = vpop.f32.mrf.mxu0
        %v4840 = vadd.f32 %v4589, %v4839
        %4841 = vdwg.mxu0
        %4842 = vmatpush.bf16.msra.mxu0 %v4719
        %4843 = vmatpush.bf16.msra.mxu0 %v4717
        %4844 = vmatpush.bf16.msra.mxu0 %v4715
        %4845 = vmatpush.bf16.msra.mxu0 %v4713
        %4846 = vmatpush.bf16.msra.mxu0 %v4711
        %4847 = vmatpush.bf16.msra.mxu0 %v4709
        %4848 = vmatpush.bf16.msra.mxu0 %v4707
        %4849 = vmatpush.bf16.msra.mxu0 %v4705
        %4850 = vmatmul.bf16.gmra.mxu0 %v4524
        %v4851 = vpop.f32.mrf.mxu0
        %v4852 = vadd.f32 %v4763, %v4851
        %v4853 = vpop.f32.mrf.mxu0
        %v4854 = vadd.f32 %v4765, %v4853
        %4855 = vmatmul.bf16.gmra.mxu0 %v4526
        %v4856 = vpop.f32.mrf.mxu0
        %v4857 = vadd.f32 %v4768, %v4856
        %v4858 = vpop.f32.mrf.mxu0
        %v4859 = vadd.f32 %v4770, %v4858
        %4860 = vmatmul.bf16.gmra.mxu0 %v4528
        %v4861 = vpop.f32.mrf.mxu0
        %v4862 = vadd.f32 %v4773, %v4861
        %v4863 = vpop.f32.mrf.mxu0
        %v4864 = vadd.f32 %v4775, %v4863
        %4865 = vmatmul.bf16.gmra.mxu0 %v4530
        %v4866 = vpop.f32.mrf.mxu0
        %v4867 = vadd.f32 %v4778, %v4866
        %v4868 = vpop.f32.mrf.mxu0
        %v4869 = vadd.f32 %v4780, %v4868
        %4870 = vmatmul.bf16.gmra.mxu0 %v4532
        %v4871 = vpop.f32.mrf.mxu0
        %v4872 = vadd.f32 %v4783, %v4871
        %v4873 = vpop.f32.mrf.mxu0
        %v4874 = vadd.f32 %v4785, %v4873
        %4875 = vmatmul.bf16.gmra.mxu0 %v4534
        %v4876 = vpop.f32.mrf.mxu0
        %v4877 = vadd.f32 %v4788, %v4876
        %v4878 = vpop.f32.mrf.mxu0
        %v4879 = vadd.f32 %v4790, %v4878
        %4880 = vmatmul.bf16.gmra.mxu0 %v4536
        %v4881 = vpop.f32.mrf.mxu0
        %v4882 = vadd.f32 %v4793, %v4881
        %v4883 = vpop.f32.mrf.mxu0
        %v4884 = vadd.f32 %v4795, %v4883
        %4885 = vmatmul.bf16.gmra.mxu0 %v4538
        %v4886 = vpop.f32.mrf.mxu0
        %v4887 = vadd.f32 %v4798, %v4886
        %v4888 = vpop.f32.mrf.mxu0
        %v4889 = vadd.f32 %v4800, %v4888
        %4890 = vmatmul.bf16.gmra.mxu0 %v4540
        %v4891 = vpop.f32.mrf.mxu0
        %v4892 = vadd.f32 %v4803, %v4891
        %v4893 = vpop.f32.mrf.mxu0
        %v4894 = vadd.f32 %v4805, %v4893
        %4895 = vmatmul.bf16.gmra.mxu0 %v4542
        %v4896 = vpop.f32.mrf.mxu0
        %v4897 = vadd.f32 %v4808, %v4896
        %v4898 = vpop.f32.mrf.mxu0
        %v4899 = vadd.f32 %v4810, %v4898
        %4900 = vmatmul.bf16.gmra.mxu0 %v4544
        %v4901 = vpop.f32.mrf.mxu0
        %v4902 = vadd.f32 %v4813, %v4901
        %v4903 = vpop.f32.mrf.mxu0
        %v4904 = vadd.f32 %v4815, %v4903
        %4905 = vmatmul.bf16.gmra.mxu0 %v4546
        %v4906 = vpop.f32.mrf.mxu0
        %v4907 = vadd.f32 %v4818, %v4906
        %v4908 = vpop.f32.mrf.mxu0
        %v4909 = vadd.f32 %v4820, %v4908
        %4910 = vmatmul.bf16.gmra.mxu0 %v4548
        %v4911 = vpop.f32.mrf.mxu0
        %v4912 = vadd.f32 %v4823, %v4911
        %v4913 = vpop.f32.mrf.mxu0
        %v4914 = vadd.f32 %v4825, %v4913
        %4915 = vmatmul.bf16.gmra.mxu0 %v4550
        %v4916 = vpop.f32.mrf.mxu0
        %v4917 = vadd.f32 %v4828, %v4916
        %v4918 = vpop.f32.mrf.mxu0
        %v4919 = vadd.f32 %v4830, %v4918
        %4920 = vmatmul.bf16.gmra.mxu0 %v4552
        %v4921 = vpop.f32.mrf.mxu0
        %v4922 = vadd.f32 %v4833, %v4921
        %v4923 = vpop.f32.mrf.mxu0
        %v4924 = vadd.f32 %v4835, %v4923
        %4925 = vmatmul.bf16.gmra.mxu0 %v4554
        %v4926 = vpop.f32.mrf.mxu0
        %v4927 = vadd.f32 %v4838, %v4926
        %v4928 = vpop.f32.mrf.mxu0
        %v4929 = vadd.f32 %v4840, %v4928
        %4930 = vdwg.mxu0
        %4931 = vmatpush.bf16.msra.mxu0 %v4704
        %4932 = vmatpush.bf16.msra.mxu0 %v4702
        %4933 = vmatpush.bf16.msra.mxu0 %v4700
        %4934 = vmatpush.bf16.msra.mxu0 %v4698
        %4935 = vmatpush.bf16.msra.mxu0 %v4696
        %4936 = vmatpush.bf16.msra.mxu0 %v4694
        %4937 = vmatpush.bf16.msra.mxu0 %v4692
        %4938 = vmatpush.bf16.msra.mxu0 %v4690
        %4939 = vmatmul.bf16.gmra.mxu0 %v4523
        %v4940 = vpop.f32.mrf.mxu0
        %v4941 = vadd.f32 %v4590, %v4940
        %v4942 = vpop.f32.mrf.mxu0
        %v4943 = vadd.f32 %v4590, %v4942
        %4944 = vmatmul.bf16.gmra.mxu0 %v4525
        %v4945 = vpop.f32.mrf.mxu0
        %v4946 = vadd.f32 %v4590, %v4945
        %v4947 = vpop.f32.mrf.mxu0
        %v4948 = vadd.f32 %v4590, %v4947
        %4949 = vmatmul.bf16.gmra.mxu0 %v4527
        %v4950 = vpop.f32.mrf.mxu0
        %v4951 = vadd.f32 %v4590, %v4950
        %v4952 = vpop.f32.mrf.mxu0
        %v4953 = vadd.f32 %v4590, %v4952
        %4954 = vmatmul.bf16.gmra.mxu0 %v4529
        %v4955 = vpop.f32.mrf.mxu0
        %v4956 = vadd.f32 %v4590, %v4955
        %v4957 = vpop.f32.mrf.mxu0
        %v4958 = vadd.f32 %v4590, %v4957
        %4959 = vmatmul.bf16.gmra.mxu0 %v4531
        %v4960 = vpop.f32.mrf.mxu0
        %v4961 = vadd.f32 %v4590, %v4960
        %v4962 = vpop.f32.mrf.mxu0
        %v4963 = vadd.f32 %v4590, %v4962
        %4964 = vmatmul.bf16.gmra.mxu0 %v4533
        %v4965 = vpop.f32.mrf.mxu0
        %v4966 = vadd.f32 %v4590, %v4965
        %v4967 = vpop.f32.mrf.mxu0
        %v4968 = vadd.f32 %v4590, %v4967
        %4969 = vmatmul.bf16.gmra.mxu0 %v4535
        %v4970 = vpop.f32.mrf.mxu0
        %v4971 = vadd.f32 %v4590, %v4970
        %v4972 = vpop.f32.mrf.mxu0
        %v4973 = vadd.f32 %v4590, %v4972
        %4974 = vmatmul.bf16.gmra.mxu0 %v4537
        %v4975 = vpop.f32.mrf.mxu0
        %v4976 = vadd.f32 %v4590, %v4975
        %v4977 = vpop.f32.mrf.mxu0
        %v4978 = vadd.f32 %v4590, %v4977
        %4979 = vmatmul.bf16.gmra.mxu0 %v4539
        %v4980 = vpop.f32.mrf.mxu0
        %v4981 = vadd.f32 %v4590, %v4980
        %v4982 = vpop.f32.mrf.mxu0
        %v4983 = vadd.f32 %v4590, %v4982
        %4984 = vmatmul.bf16.gmra.mxu0 %v4541
        %v4985 = vpop.f32.mrf.mxu0
        %v4986 = vadd.f32 %v4590, %v4985
        %v4987 = vpop.f32.mrf.mxu0
        %v4988 = vadd.f32 %v4590, %v4987
        %4989 = vmatmul.bf16.gmra.mxu0 %v4543
        %v4990 = vpop.f32.mrf.mxu0
        %v4991 = vadd.f32 %v4590, %v4990
        %v4992 = vpop.f32.mrf.mxu0
        %v4993 = vadd.f32 %v4590, %v4992
        %4994 = vmatmul.bf16.gmra.mxu0 %v4545
        %v4995 = vpop.f32.mrf.mxu0
        %v4996 = vadd.f32 %v4590, %v4995
        %v4997 = vpop.f32.mrf.mxu0
        %v4998 = vadd.f32 %v4590, %v4997
        %4999 = vmatmul.bf16.gmra.mxu0 %v4547
        %v5000 = vpop.f32.mrf.mxu0
        %v5001 = vadd.f32 %v4590, %v5000
        %v5002 = vpop.f32.mrf.mxu0
        %v5003 = vadd.f32 %v4590, %v5002
        %5004 = vmatmul.bf16.gmra.mxu0 %v4549
        %v5005 = vpop.f32.mrf.mxu0
        %v5006 = vadd.f32 %v4590, %v5005
        %v5007 = vpop.f32.mrf.mxu0
        %v5008 = vadd.f32 %v4590, %v5007
        %5009 = vmatmul.bf16.gmra.mxu0 %v4551
        %v5010 = vpop.f32.mrf.mxu0
        %v5011 = vadd.f32 %v4590, %v5010
        %v5012 = vpop.f32.mrf.mxu0
        %v5013 = vadd.f32 %v4590, %v5012
        %5014 = vmatmul.bf16.gmra.mxu0 %v4553
        %v5015 = vpop.f32.mrf.mxu0
        %v5016 = vadd.f32 %v4590, %v5015
        %v5017 = vpop.f32.mrf.mxu0
        %v5018 = vadd.f32 %v4590, %v5017
        %5019 = vdwg.mxu0
        %5020 = vmatpush.bf16.msra.mxu0 %v4720
        %5021 = vmatpush.bf16.msra.mxu0 %v4718
        %5022 = vmatpush.bf16.msra.mxu0 %v4716
        %5023 = vmatpush.bf16.msra.mxu0 %v4714
        %5024 = vmatpush.bf16.msra.mxu0 %v4712
        %5025 = vmatpush.bf16.msra.mxu0 %v4710
        %5026 = vmatpush.bf16.msra.mxu0 %v4708
        %5027 = vmatpush.bf16.msra.mxu0 %v4706
        %5028 = vmatmul.bf16.gmra.mxu0 %v4524
        %v5029 = vpop.f32.mrf.mxu0
        %v5030 = vadd.f32 %v4941, %v5029
        %v5031 = vpop.f32.mrf.mxu0
        %v5032 = vadd.f32 %v4943, %v5031
        %5033 = vmatmul.bf16.gmra.mxu0 %v4526
        %v5034 = vpop.f32.mrf.mxu0
        %v5035 = vadd.f32 %v4946, %v5034
        %v5036 = vpop.f32.mrf.mxu0
        %v5037 = vadd.f32 %v4948, %v5036
        %5038 = vmatmul.bf16.gmra.mxu0 %v4528
        %v5039 = vpop.f32.mrf.mxu0
        %v5040 = vadd.f32 %v4951, %v5039
        %v5041 = vpop.f32.mrf.mxu0
        %v5042 = vadd.f32 %v4953, %v5041
        %5043 = vmatmul.bf16.gmra.mxu0 %v4530
        %v5044 = vpop.f32.mrf.mxu0
        %v5045 = vadd.f32 %v4956, %v5044
        %v5046 = vpop.f32.mrf.mxu0
        %v5047 = vadd.f32 %v4958, %v5046
        %5048 = vmatmul.bf16.gmra.mxu0 %v4532
        %v5049 = vpop.f32.mrf.mxu0
        %v5050 = vadd.f32 %v4961, %v5049
        %v5051 = vpop.f32.mrf.mxu0
        %v5052 = vadd.f32 %v4963, %v5051
        %5053 = vmatmul.bf16.gmra.mxu0 %v4534
        %v5054 = vpop.f32.mrf.mxu0
        %v5055 = vadd.f32 %v4966, %v5054
        %v5056 = vpop.f32.mrf.mxu0
        %v5057 = vadd.f32 %v4968, %v5056
        %5058 = vmatmul.bf16.gmra.mxu0 %v4536
        %v5059 = vpop.f32.mrf.mxu0
        %v5060 = vadd.f32 %v4971, %v5059
        %v5061 = vpop.f32.mrf.mxu0
        %v5062 = vadd.f32 %v4973, %v5061
        %5063 = vmatmul.bf16.gmra.mxu0 %v4538
        %v5064 = vpop.f32.mrf.mxu0
        %v5065 = vadd.f32 %v4976, %v5064
        %v5066 = vpop.f32.mrf.mxu0
        %v5067 = vadd.f32 %v4978, %v5066
        %5068 = vmatmul.bf16.gmra.mxu0 %v4540
        %v5069 = vpop.f32.mrf.mxu0
        %v5070 = vadd.f32 %v4981, %v5069
        %v5071 = vpop.f32.mrf.mxu0
        %v5072 = vadd.f32 %v4983, %v5071
        %5073 = vmatmul.bf16.gmra.mxu0 %v4542
        %v5074 = vpop.f32.mrf.mxu0
        %v5075 = vadd.f32 %v4986, %v5074
        %v5076 = vpop.f32.mrf.mxu0
        %v5077 = vadd.f32 %v4988, %v5076
        %5078 = vmatmul.bf16.gmra.mxu0 %v4544
        %v5079 = vpop.f32.mrf.mxu0
        %v5080 = vadd.f32 %v4991, %v5079
        %v5081 = vpop.f32.mrf.mxu0
        %v5082 = vadd.f32 %v4993, %v5081
        %5083 = vmatmul.bf16.gmra.mxu0 %v4546
        %v5084 = vpop.f32.mrf.mxu0
        %v5085 = vadd.f32 %v4996, %v5084
        %v5086 = vpop.f32.mrf.mxu0
        %v5087 = vadd.f32 %v4998, %v5086
        %5088 = vmatmul.bf16.gmra.mxu0 %v4548
        %v5089 = vpop.f32.mrf.mxu0
        %v5090 = vadd.f32 %v5001, %v5089
        %v5091 = vpop.f32.mrf.mxu0
        %v5092 = vadd.f32 %v5003, %v5091
        %5093 = vmatmul.bf16.gmra.mxu0 %v4550
        %v5094 = vpop.f32.mrf.mxu0
        %v5095 = vadd.f32 %v5006, %v5094
        %v5096 = vpop.f32.mrf.mxu0
        %v5097 = vadd.f32 %v5008, %v5096
        %5098 = vmatmul.bf16.gmra.mxu0 %v4552
        %v5099 = vpop.f32.mrf.mxu0
        %v5100 = vadd.f32 %v5011, %v5099
        %v5101 = vpop.f32.mrf.mxu0
        %v5102 = vadd.f32 %v5013, %v5101
        %5103 = vmatmul.bf16.gmra.mxu0 %v4554
        %v5104 = vpop.f32.mrf.mxu0
        %v5105 = vadd.f32 %v5016, %v5104
        %v5106 = vpop.f32.mrf.mxu0
        %v5107 = vadd.f32 %v5018, %v5106
        %5108 = vdwg.mxu0
        %v5109 = vmax.f32 %v4852, 0.0
        %v5110 = vmax.f32 %v5030, 0.0
        %v5111 = vmax.f32 %v4854, 0.0
        %v5112 = vmax.f32 %v5032, 0.0
        %v5113 = vmax.f32 %v4857, 0.0
        %v5114 = vmax.f32 %v5035, 0.0
        %v5115 = vmax.f32 %v4859, 0.0
        %v5116 = vmax.f32 %v5037, 0.0
        %v5117 = vmax.f32 %v4862, 0.0
        %v5118 = vmax.f32 %v5040, 0.0
        %v5119 = vmax.f32 %v4864, 0.0
        %v5120 = vmax.f32 %v5042, 0.0
        %v5121 = vmax.f32 %v4867, 0.0
        %v5122 = vmax.f32 %v5045, 0.0
        %v5123 = vmax.f32 %v4869, 0.0
        %v5124 = vmax.f32 %v5047, 0.0
        %v5125 = vmax.f32 %v4872, 0.0
        %v5126 = vmax.f32 %v5050, 0.0
        %v5127 = vmax.f32 %v4874, 0.0
        %v5128 = vmax.f32 %v5052, 0.0
        %v5129 = vmax.f32 %v4877, 0.0
        %v5130 = vmax.f32 %v5055, 0.0
        %v5131 = vmax.f32 %v4879, 0.0
        %v5132 = vmax.f32 %v5057, 0.0
        %v5133 = vmax.f32 %v4882, 0.0
        %v5134 = vmax.f32 %v5060, 0.0
        %v5135 = vmax.f32 %v4884, 0.0
        %v5136 = vmax.f32 %v5062, 0.0
        %v5137 = vmax.f32 %v4887, 0.0
        %v5138 = vmax.f32 %v5065, 0.0
        %v5139 = vmax.f32 %v4889, 0.0
        %v5140 = vmax.f32 %v5067, 0.0
        %v5141 = vmax.f32 %v4892, 0.0
        %v5142 = vmax.f32 %v5070, 0.0
        %v5143 = vmax.f32 %v4894, 0.0
        %v5144 = vmax.f32 %v5072, 0.0
        %v5145 = vmax.f32 %v4897, 0.0
        %v5146 = vmax.f32 %v5075, 0.0
        %v5147 = vmax.f32 %v4899, 0.0
        %v5148 = vmax.f32 %v5077, 0.0
        %v5149 = vmax.f32 %v4902, 0.0
        %v5150 = vmax.f32 %v5080, 0.0
        %v5151 = vmax.f32 %v4904, 0.0
        %v5152 = vmax.f32 %v5082, 0.0
        %v5153 = vmax.f32 %v4907, 0.0
        %v5154 = vmax.f32 %v5085, 0.0
        %v5155 = vmax.f32 %v4909, 0.0
        %v5156 = vmax.f32 %v5087, 0.0
        %v5157 = vmax.f32 %v4912, 0.0
        %v5158 = vmax.f32 %v5090, 0.0
        %v5159 = vmax.f32 %v4914, 0.0
        %v5160 = vmax.f32 %v5092, 0.0
        %v5161 = vmax.f32 %v4917, 0.0
        %v5162 = vmax.f32 %v5095, 0.0
        %v5163 = vmax.f32 %v4919, 0.0
        %v5164 = vmax.f32 %v5097, 0.0
        %v5165 = vmax.f32 %v4922, 0.0
        %v5166 = vmax.f32 %v5100, 0.0
        %v5167 = vmax.f32 %v4924, 0.0
        %v5168 = vmax.f32 %v5102, 0.0
        %v5169 = vmax.f32 %v4927, 0.0
        %v5170 = vmax.f32 %v5105, 0.0
        %v5171 = vmax.f32 %v4929, 0.0
        %v5172 = vmax.f32 %v5107, 0.0
        %v5173 = vpack.c.bf16 %v5111, %v5109
        %v5174 = vpack.c.bf16 %v5112, %v5110
        %v5175 = vpack.c.bf16 %v5115, %v5113
        %v5176 = vpack.c.bf16 %v5116, %v5114
        %v5177 = vpack.c.bf16 %v5119, %v5117
        %v5178 = vpack.c.bf16 %v5120, %v5118
        %v5179 = vpack.c.bf16 %v5123, %v5121
        %v5180 = vpack.c.bf16 %v5124, %v5122
        %v5181 = vpack.c.bf16 %v5127, %v5125
        %v5182 = vpack.c.bf16 %v5128, %v5126
        %v5183 = vpack.c.bf16 %v5131, %v5129
        %v5184 = vpack.c.bf16 %v5132, %v5130
        %v5185 = vpack.c.bf16 %v5135, %v5133
        %v5186 = vpack.c.bf16 %v5136, %v5134
        %v5187 = vpack.c.bf16 %v5139, %v5137
        %v5188 = vpack.c.bf16 %v5140, %v5138
        %v5189 = vpack.c.bf16 %v5143, %v5141
        %v5190 = vpack.c.bf16 %v5144, %v5142
        %v5191 = vpack.c.bf16 %v5147, %v5145
        %v5192 = vpack.c.bf16 %v5148, %v5146
        %v5193 = vpack.c.bf16 %v5151, %v5149
        %v5194 = vpack.c.bf16 %v5152, %v5150
        %v5195 = vpack.c.bf16 %v5155, %v5153
        %v5196 = vpack.c.bf16 %v5156, %v5154
        %v5197 = vpack.c.bf16 %v5159, %v5157
        %v5198 = vpack.c.bf16 %v5160, %v5158
        %v5199 = vpack.c.bf16 %v5163, %v5161
        %v5200 = vpack.c.bf16 %v5164, %v5162
        %v5201 = vpack.c.bf16 %v5167, %v5165
        %v5202 = vpack.c.bf16 %v5168, %v5166
        %v5203 = vpack.c.bf16 %v5171, %v5169
        %v5204 = vpack.c.bf16 %v5172, %v5170
        %v5205 = vld [vmem:[#allocation17] sm:$0xff]
        %v5206 = vld [vmem:[#allocation17 + $0x8] sm:$0xff]
        %v5207 = vld [vmem:[#allocation17 + $0x10] sm:$0xff]
        %v5208 = vld [vmem:[#allocation17 + $0x18] sm:$0xff]
        %v5209 = vld [vmem:[#allocation17 + $0x20] sm:$0xff]
        %v5210 = vld [vmem:[#allocation17 + $0x28] sm:$0xff]
        %v5211 = vld [vmem:[#allocation17 + $0x30] sm:$0xff]
        %v5212 = vld [vmem:[#allocation17 + $0x38] sm:$0xff]
        %v5213 = vld [vmem:[#allocation17 + $0x40] sm:$0xff]
        %v5214 = vld [vmem:[#allocation17 + $0x48] sm:$0xff]
        %v5215 = vld [vmem:[#allocation17 + $0x50] sm:$0xff]
        %v5216 = vld [vmem:[#allocation17 + $0x58] sm:$0xff]
        %v5217 = vld [vmem:[#allocation17 + $0x60] sm:$0xff]
        %v5218 = vld [vmem:[#allocation17 + $0x68] sm:$0xff]
        %v5219 = vld [vmem:[#allocation17 + $0x70] sm:$0xff]
        %v5220 = vld [vmem:[#allocation17 + $0x78] sm:$0xff]
        %v5221 = vld [vmem:[#allocation17 + $0x80] sm:$0xff]
        %v5222 = vld [vmem:[#allocation17 + $0x88] sm:$0xff]
        %v5223 = vld [vmem:[#allocation17 + $0x90] sm:$0xff]
        %v5224 = vld [vmem:[#allocation17 + $0x98] sm:$0xff]
        %v5225 = vld [vmem:[#allocation17 + $0xa0] sm:$0xff]
        %v5226 = vld [vmem:[#allocation17 + $0xa8] sm:$0xff]
        %v5227 = vld [vmem:[#allocation17 + $0xb0] sm:$0xff]
        %v5228 = vld [vmem:[#allocation17 + $0xb8] sm:$0xff]
        %v5229 = vld [vmem:[#allocation17 + $0xc0] sm:$0xff]
        %v5230 = vld [vmem:[#allocation17 + $0xc8] sm:$0xff]
        %v5231 = vld [vmem:[#allocation17 + $0xd0] sm:$0xff]
        %v5232 = vld [vmem:[#allocation17 + $0xd8] sm:$0xff]
        %v5233 = vld [vmem:[#allocation17 + $0xe0] sm:$0xff]
        %v5234 = vld [vmem:[#allocation17 + $0xe8] sm:$0xff]
        %v5235 = vld [vmem:[#allocation17 + $0xf0] sm:$0xff]
        %v5236 = vld [vmem:[#allocation17 + $0xf8] sm:$0xff]
        %v5237 = vld [vmem:[%s17] sm:$0x3]
        %v5239 = vperm.slane %v5237, 0
        %v5240 = vperm.slane %v5237, 1
        %v5275 = vunpack.c.l.b16 %v5205
        %v5276 = vunpack.c.h.b16 %v5205
        %v5277 = vunpack.c.l.b16 %v5206
        %v5278 = vunpack.c.h.b16 %v5206
        %v5279 = vunpack.c.l.b16 %v5207
        %v5280 = vunpack.c.h.b16 %v5207
        %v5281 = vunpack.c.l.b16 %v5208
        %v5282 = vunpack.c.h.b16 %v5208
        %v5283 = vunpack.c.l.b16 %v5209
        %v5284 = vunpack.c.h.b16 %v5209
        %v5285 = vunpack.c.l.b16 %v5210
        %v5286 = vunpack.c.h.b16 %v5210
        %v5287 = vunpack.c.l.b16 %v5211
        %v5288 = vunpack.c.h.b16 %v5211
        %v5289 = vunpack.c.l.b16 %v5212
        %v5290 = vunpack.c.h.b16 %v5212
        %v5291 = vunpack.c.l.b16 %v5213
        %v5292 = vunpack.c.h.b16 %v5213
        %v5293 = vunpack.c.l.b16 %v5214
        %v5294 = vunpack.c.h.b16 %v5214
        %v5295 = vunpack.c.l.b16 %v5215
        %v5296 = vunpack.c.h.b16 %v5215
        %v5297 = vunpack.c.l.b16 %v5216
        %v5298 = vunpack.c.h.b16 %v5216
        %v5299 = vunpack.c.l.b16 %v5217
        %v5300 = vunpack.c.h.b16 %v5217
        %v5301 = vunpack.c.l.b16 %v5218
        %v5302 = vunpack.c.h.b16 %v5218
        %v5303 = vunpack.c.l.b16 %v5219
        %v5304 = vunpack.c.h.b16 %v5219
        %v5305 = vunpack.c.l.b16 %v5220
        %v5306 = vunpack.c.h.b16 %v5220
        %v5307 = vunpack.c.l.b16 %v5221
        %v5308 = vunpack.c.h.b16 %v5221
        %v5309 = vunpack.c.l.b16 %v5222
        %v5310 = vunpack.c.h.b16 %v5222
        %v5311 = vunpack.c.l.b16 %v5223
        %v5312 = vunpack.c.h.b16 %v5223
        %v5313 = vunpack.c.l.b16 %v5224
        %v5314 = vunpack.c.h.b16 %v5224
        %v5315 = vunpack.c.l.b16 %v5225
        %v5316 = vunpack.c.h.b16 %v5225
        %v5317 = vunpack.c.l.b16 %v5226
        %v5318 = vunpack.c.h.b16 %v5226
        %v5319 = vunpack.c.l.b16 %v5227
        %v5320 = vunpack.c.h.b16 %v5227
        %v5321 = vunpack.c.l.b16 %v5228
        %v5322 = vunpack.c.h.b16 %v5228
        %v5323 = vunpack.c.l.b16 %v5229
        %v5324 = vunpack.c.h.b16 %v5229
        %v5325 = vunpack.c.l.b16 %v5230
        %v5326 = vunpack.c.h.b16 %v5230
        %v5327 = vunpack.c.l.b16 %v5231
        %v5328 = vunpack.c.h.b16 %v5231
        %v5329 = vunpack.c.l.b16 %v5232
        %v5330 = vunpack.c.h.b16 %v5232
        %v5331 = vunpack.c.l.b16 %v5233
        %v5332 = vunpack.c.h.b16 %v5233
        %v5333 = vunpack.c.l.b16 %v5234
        %v5334 = vunpack.c.h.b16 %v5234
        %v5335 = vunpack.c.l.b16 %v5235
        %v5336 = vunpack.c.h.b16 %v5235
        %v5337 = vunpack.c.l.b16 %v5236
        %v5338 = vunpack.c.h.b16 %v5236
        %v5339 = vpack.c.b16 %v5277, %v5275
        %v5340 = vpack.c.b16 %v5278, %v5276
        %v5341 = vpack.c.b16 %v5281, %v5279
        %v5342 = vpack.c.b16 %v5282, %v5280
        %v5343 = vpack.c.b16 %v5285, %v5283
        %v5344 = vpack.c.b16 %v5286, %v5284
        %v5345 = vpack.c.b16 %v5289, %v5287
        %v5346 = vpack.c.b16 %v5290, %v5288
        %v5347 = vpack.c.b16 %v5293, %v5291
        %v5348 = vpack.c.b16 %v5294, %v5292
        %v5349 = vpack.c.b16 %v5297, %v5295
        %v5350 = vpack.c.b16 %v5298, %v5296
        %v5351 = vpack.c.b16 %v5301, %v5299
        %v5352 = vpack.c.b16 %v5302, %v5300
        %v5353 = vpack.c.b16 %v5305, %v5303
        %v5354 = vpack.c.b16 %v5306, %v5304
        %v5355 = vpack.c.b16 %v5309, %v5307
        %v5356 = vpack.c.b16 %v5310, %v5308
        %v5357 = vpack.c.b16 %v5313, %v5311
        %v5358 = vpack.c.b16 %v5314, %v5312
        %v5359 = vpack.c.b16 %v5317, %v5315
        %v5360 = vpack.c.b16 %v5318, %v5316
        %v5361 = vpack.c.b16 %v5321, %v5319
        %v5362 = vpack.c.b16 %v5322, %v5320
        %v5363 = vpack.c.b16 %v5325, %v5323
        %v5364 = vpack.c.b16 %v5326, %v5324
        %v5365 = vpack.c.b16 %v5329, %v5327
        %v5366 = vpack.c.b16 %v5330, %v5328
        %v5367 = vpack.c.b16 %v5333, %v5331
        %v5368 = vpack.c.b16 %v5334, %v5332
        %v5369 = vpack.c.b16 %v5337, %v5335
        %v5370 = vpack.c.b16 %v5338, %v5336
        %5403 = vmatpush.bf16.msra.mxu0 %v5353
        %5404 = vmatpush.bf16.msra.mxu0 %v5351
        %5405 = vmatpush.bf16.msra.mxu0 %v5349
        %5406 = vmatpush.bf16.msra.mxu0 %v5347
        %5407 = vmatpush.bf16.msra.mxu0 %v5345
        %5408 = vmatpush.bf16.msra.mxu0 %v5343
        %5409 = vmatpush.bf16.msra.mxu0 %v5341
        %5410 = vmatpush.bf16.msra.mxu0 %v5339
        %5411 = vmatmul.bf16.gmra.mxu0 %v5173
        %v5412 = vpop.f32.mrf.mxu0
        %v5413 = vadd.f32 %v5239, %v5412
        %v5414 = vpop.f32.mrf.mxu0
        %v5415 = vadd.f32 %v5239, %v5414
        %5416 = vmatmul.bf16.gmra.mxu0 %v5175
        %v5417 = vpop.f32.mrf.mxu0
        %v5418 = vadd.f32 %v5239, %v5417
        %v5419 = vpop.f32.mrf.mxu0
        %v5420 = vadd.f32 %v5239, %v5419
        %5421 = vmatmul.bf16.gmra.mxu0 %v5177
        %v5422 = vpop.f32.mrf.mxu0
        %v5423 = vadd.f32 %v5239, %v5422
        %v5424 = vpop.f32.mrf.mxu0
        %v5425 = vadd.f32 %v5239, %v5424
        %5426 = vmatmul.bf16.gmra.mxu0 %v5179
        %v5427 = vpop.f32.mrf.mxu0
        %v5428 = vadd.f32 %v5239, %v5427
        %v5429 = vpop.f32.mrf.mxu0
        %v5430 = vadd.f32 %v5239, %v5429
        %5431 = vmatmul.bf16.gmra.mxu0 %v5181
        %v5432 = vpop.f32.mrf.mxu0
        %v5433 = vadd.f32 %v5239, %v5432
        %v5434 = vpop.f32.mrf.mxu0
        %v5435 = vadd.f32 %v5239, %v5434
        %5436 = vmatmul.bf16.gmra.mxu0 %v5183
        %v5437 = vpop.f32.mrf.mxu0
        %v5438 = vadd.f32 %v5239, %v5437
        %v5439 = vpop.f32.mrf.mxu0
        %v5440 = vadd.f32 %v5239, %v5439
        %5441 = vmatmul.bf16.gmra.mxu0 %v5185
        %v5442 = vpop.f32.mrf.mxu0
        %v5443 = vadd.f32 %v5239, %v5442
        %v5444 = vpop.f32.mrf.mxu0
        %v5445 = vadd.f32 %v5239, %v5444
        %5446 = vmatmul.bf16.gmra.mxu0 %v5187
        %v5447 = vpop.f32.mrf.mxu0
        %v5448 = vadd.f32 %v5239, %v5447
        %v5449 = vpop.f32.mrf.mxu0
        %v5450 = vadd.f32 %v5239, %v5449
        %5451 = vmatmul.bf16.gmra.mxu0 %v5189
        %v5452 = vpop.f32.mrf.mxu0
        %v5453 = vadd.f32 %v5239, %v5452
        %v5454 = vpop.f32.mrf.mxu0
        %v5455 = vadd.f32 %v5239, %v5454
        %5456 = vmatmul.bf16.gmra.mxu0 %v5191
        %v5457 = vpop.f32.mrf.mxu0
        %v5458 = vadd.f32 %v5239, %v5457
        %v5459 = vpop.f32.mrf.mxu0
        %v5460 = vadd.f32 %v5239, %v5459
        %5461 = vmatmul.bf16.gmra.mxu0 %v5193
        %v5462 = vpop.f32.mrf.mxu0
        %v5463 = vadd.f32 %v5239, %v5462
        %v5464 = vpop.f32.mrf.mxu0
        %v5465 = vadd.f32 %v5239, %v5464
        %5466 = vmatmul.bf16.gmra.mxu0 %v5195
        %v5467 = vpop.f32.mrf.mxu0
        %v5468 = vadd.f32 %v5239, %v5467
        %v5469 = vpop.f32.mrf.mxu0
        %v5470 = vadd.f32 %v5239, %v5469
        %5471 = vmatmul.bf16.gmra.mxu0 %v5197
        %v5472 = vpop.f32.mrf.mxu0
        %v5473 = vadd.f32 %v5239, %v5472
        %v5474 = vpop.f32.mrf.mxu0
        %v5475 = vadd.f32 %v5239, %v5474
        %5476 = vmatmul.bf16.gmra.mxu0 %v5199
        %v5477 = vpop.f32.mrf.mxu0
        %v5478 = vadd.f32 %v5239, %v5477
        %v5479 = vpop.f32.mrf.mxu0
        %v5480 = vadd.f32 %v5239, %v5479
        %5481 = vmatmul.bf16.gmra.mxu0 %v5201
        %v5482 = vpop.f32.mrf.mxu0
        %v5483 = vadd.f32 %v5239, %v5482
        %v5484 = vpop.f32.mrf.mxu0
        %v5485 = vadd.f32 %v5239, %v5484
        %5486 = vmatmul.bf16.gmra.mxu0 %v5203
        %v5487 = vpop.f32.mrf.mxu0
        %v5488 = vadd.f32 %v5239, %v5487
        %v5489 = vpop.f32.mrf.mxu0
        %v5490 = vadd.f32 %v5239, %v5489
        %5491 = vdwg.mxu0
        %5492 = vmatpush.bf16.msra.mxu0 %v5369
        %5493 = vmatpush.bf16.msra.mxu0 %v5367
        %5494 = vmatpush.bf16.msra.mxu0 %v5365
        %5495 = vmatpush.bf16.msra.mxu0 %v5363
        %5496 = vmatpush.bf16.msra.mxu0 %v5361
        %5497 = vmatpush.bf16.msra.mxu0 %v5359
        %5498 = vmatpush.bf16.msra.mxu0 %v5357
        %5499 = vmatpush.bf16.msra.mxu0 %v5355
        %5500 = vmatmul.bf16.gmra.mxu0 %v5174
        %v5501 = vpop.f32.mrf.mxu0
        %v5502 = vadd.f32 %v5413, %v5501
        %v5503 = vpop.f32.mrf.mxu0
        %v5504 = vadd.f32 %v5415, %v5503
        %5505 = vmatmul.bf16.gmra.mxu0 %v5176
        %v5506 = vpop.f32.mrf.mxu0
        %v5507 = vadd.f32 %v5418, %v5506
        %v5508 = vpop.f32.mrf.mxu0
        %v5509 = vadd.f32 %v5420, %v5508
        %5510 = vmatmul.bf16.gmra.mxu0 %v5178
        %v5511 = vpop.f32.mrf.mxu0
        %v5512 = vadd.f32 %v5423, %v5511
        %v5513 = vpop.f32.mrf.mxu0
        %v5514 = vadd.f32 %v5425, %v5513
        %5515 = vmatmul.bf16.gmra.mxu0 %v5180
        %v5516 = vpop.f32.mrf.mxu0
        %v5517 = vadd.f32 %v5428, %v5516
        %v5518 = vpop.f32.mrf.mxu0
        %v5519 = vadd.f32 %v5430, %v5518
        %5520 = vmatmul.bf16.gmra.mxu0 %v5182
        %v5521 = vpop.f32.mrf.mxu0
        %v5522 = vadd.f32 %v5433, %v5521
        %v5523 = vpop.f32.mrf.mxu0
        %v5524 = vadd.f32 %v5435, %v5523
        %5525 = vmatmul.bf16.gmra.mxu0 %v5184
        %v5526 = vpop.f32.mrf.mxu0
        %v5527 = vadd.f32 %v5438, %v5526
        %v5528 = vpop.f32.mrf.mxu0
        %v5529 = vadd.f32 %v5440, %v5528
        %5530 = vmatmul.bf16.gmra.mxu0 %v5186
        %v5531 = vpop.f32.mrf.mxu0
        %v5532 = vadd.f32 %v5443, %v5531
        %v5533 = vpop.f32.mrf.mxu0
        %v5534 = vadd.f32 %v5445, %v5533
        %5535 = vmatmul.bf16.gmra.mxu0 %v5188
        %v5536 = vpop.f32.mrf.mxu0
        %v5537 = vadd.f32 %v5448, %v5536
        %v5538 = vpop.f32.mrf.mxu0
        %v5539 = vadd.f32 %v5450, %v5538
        %5540 = vmatmul.bf16.gmra.mxu0 %v5190
        %v5541 = vpop.f32.mrf.mxu0
        %v5542 = vadd.f32 %v5453, %v5541
        %v5543 = vpop.f32.mrf.mxu0
        %v5544 = vadd.f32 %v5455, %v5543
        %5545 = vmatmul.bf16.gmra.mxu0 %v5192
        %v5546 = vpop.f32.mrf.mxu0
        %v5547 = vadd.f32 %v5458, %v5546
        %v5548 = vpop.f32.mrf.mxu0
        %v5549 = vadd.f32 %v5460, %v5548
        %5550 = vmatmul.bf16.gmra.mxu0 %v5194
        %v5551 = vpop.f32.mrf.mxu0
        %v5552 = vadd.f32 %v5463, %v5551
        %v5553 = vpop.f32.mrf.mxu0
        %v5554 = vadd.f32 %v5465, %v5553
        %5555 = vmatmul.bf16.gmra.mxu0 %v5196
        %v5556 = vpop.f32.mrf.mxu0
        %v5557 = vadd.f32 %v5468, %v5556
        %v5558 = vpop.f32.mrf.mxu0
        %v5559 = vadd.f32 %v5470, %v5558
        %5560 = vmatmul.bf16.gmra.mxu0 %v5198
        %v5561 = vpop.f32.mrf.mxu0
        %v5562 = vadd.f32 %v5473, %v5561
        %v5563 = vpop.f32.mrf.mxu0
        %v5564 = vadd.f32 %v5475, %v5563
        %5565 = vmatmul.bf16.gmra.mxu0 %v5200
        %v5566 = vpop.f32.mrf.mxu0
        %v5567 = vadd.f32 %v5478, %v5566
        %v5568 = vpop.f32.mrf.mxu0
        %v5569 = vadd.f32 %v5480, %v5568
        %5570 = vmatmul.bf16.gmra.mxu0 %v5202
        %v5571 = vpop.f32.mrf.mxu0
        %v5572 = vadd.f32 %v5483, %v5571
        %v5573 = vpop.f32.mrf.mxu0
        %v5574 = vadd.f32 %v5485, %v5573
        %5575 = vmatmul.bf16.gmra.mxu0 %v5204
        %v5576 = vpop.f32.mrf.mxu0
        %v5577 = vadd.f32 %v5488, %v5576
        %v5578 = vpop.f32.mrf.mxu0
        %v5579 = vadd.f32 %v5490, %v5578
        %5580 = vdwg.mxu0
        %5581 = vmatpush.bf16.msra.mxu0 %v5354
        %5582 = vmatpush.bf16.msra.mxu0 %v5352
        %5583 = vmatpush.bf16.msra.mxu0 %v5350
        %5584 = vmatpush.bf16.msra.mxu0 %v5348
        %5585 = vmatpush.bf16.msra.mxu0 %v5346
        %5586 = vmatpush.bf16.msra.mxu0 %v5344
        %5587 = vmatpush.bf16.msra.mxu0 %v5342
        %5588 = vmatpush.bf16.msra.mxu0 %v5340
        %5589 = vmatmul.bf16.gmra.mxu0 %v5173
        %v5590 = vpop.f32.mrf.mxu0
        %v5591 = vadd.f32 %v5240, %v5590
        %v5592 = vpop.f32.mrf.mxu0
        %v5593 = vadd.f32 %v5240, %v5592
        %5594 = vmatmul.bf16.gmra.mxu0 %v5175
        %v5595 = vpop.f32.mrf.mxu0
        %v5596 = vadd.f32 %v5240, %v5595
        %v5597 = vpop.f32.mrf.mxu0
        %v5598 = vadd.f32 %v5240, %v5597
        %5599 = vmatmul.bf16.gmra.mxu0 %v5177
        %v5600 = vpop.f32.mrf.mxu0
        %v5601 = vadd.f32 %v5240, %v5600
        %v5602 = vpop.f32.mrf.mxu0
        %v5603 = vadd.f32 %v5240, %v5602
        %5604 = vmatmul.bf16.gmra.mxu0 %v5179
        %v5605 = vpop.f32.mrf.mxu0
        %v5606 = vadd.f32 %v5240, %v5605
        %v5607 = vpop.f32.mrf.mxu0
        %v5608 = vadd.f32 %v5240, %v5607
        %5609 = vmatmul.bf16.gmra.mxu0 %v5181
        %v5610 = vpop.f32.mrf.mxu0
        %v5611 = vadd.f32 %v5240, %v5610
        %v5612 = vpop.f32.mrf.mxu0
        %v5613 = vadd.f32 %v5240, %v5612
        %5614 = vmatmul.bf16.gmra.mxu0 %v5183
        %v5615 = vpop.f32.mrf.mxu0
        %v5616 = vadd.f32 %v5240, %v5615
        %v5617 = vpop.f32.mrf.mxu0
        %v5618 = vadd.f32 %v5240, %v5617
        %5619 = vmatmul.bf16.gmra.mxu0 %v5185
        %v5620 = vpop.f32.mrf.mxu0
        %v5621 = vadd.f32 %v5240, %v5620
        %v5622 = vpop.f32.mrf.mxu0
        %v5623 = vadd.f32 %v5240, %v5622
        %5624 = vmatmul.bf16.gmra.mxu0 %v5187
        %v5625 = vpop.f32.mrf.mxu0
        %v5626 = vadd.f32 %v5240, %v5625
        %v5627 = vpop.f32.mrf.mxu0
        %v5628 = vadd.f32 %v5240, %v5627
        %5629 = vmatmul.bf16.gmra.mxu0 %v5189
        %v5630 = vpop.f32.mrf.mxu0
        %v5631 = vadd.f32 %v5240, %v5630
        %v5632 = vpop.f32.mrf.mxu0
        %v5633 = vadd.f32 %v5240, %v5632
        %5634 = vmatmul.bf16.gmra.mxu0 %v5191
        %v5635 = vpop.f32.mrf.mxu0
        %v5636 = vadd.f32 %v5240, %v5635
        %v5637 = vpop.f32.mrf.mxu0
        %v5638 = vadd.f32 %v5240, %v5637
        %5639 = vmatmul.bf16.gmra.mxu0 %v5193
        %v5640 = vpop.f32.mrf.mxu0
        %v5641 = vadd.f32 %v5240, %v5640
        %v5642 = vpop.f32.mrf.mxu0
        %v5643 = vadd.f32 %v5240, %v5642
        %5644 = vmatmul.bf16.gmra.mxu0 %v5195
        %v5645 = vpop.f32.mrf.mxu0
        %v5646 = vadd.f32 %v5240, %v5645
        %v5647 = vpop.f32.mrf.mxu0
        %v5648 = vadd.f32 %v5240, %v5647
        %5649 = vmatmul.bf16.gmra.mxu0 %v5197
        %v5650 = vpop.f32.mrf.mxu0
        %v5651 = vadd.f32 %v5240, %v5650
        %v5652 = vpop.f32.mrf.mxu0
        %v5653 = vadd.f32 %v5240, %v5652
        %5654 = vmatmul.bf16.gmra.mxu0 %v5199
        %v5655 = vpop.f32.mrf.mxu0
        %v5656 = vadd.f32 %v5240, %v5655
        %v5657 = vpop.f32.mrf.mxu0
        %v5658 = vadd.f32 %v5240, %v5657
        %5659 = vmatmul.bf16.gmra.mxu0 %v5201
        %v5660 = vpop.f32.mrf.mxu0
        %v5661 = vadd.f32 %v5240, %v5660
        %v5662 = vpop.f32.mrf.mxu0
        %v5663 = vadd.f32 %v5240, %v5662
        %5664 = vmatmul.bf16.gmra.mxu0 %v5203
        %v5665 = vpop.f32.mrf.mxu0
        %v5666 = vadd.f32 %v5240, %v5665
        %v5667 = vpop.f32.mrf.mxu0
        %v5668 = vadd.f32 %v5240, %v5667
        %5669 = vdwg.mxu0
        %5670 = vmatpush.bf16.msra.mxu0 %v5370
        %5671 = vmatpush.bf16.msra.mxu0 %v5368
        %5672 = vmatpush.bf16.msra.mxu0 %v5366
        %5673 = vmatpush.bf16.msra.mxu0 %v5364
        %5674 = vmatpush.bf16.msra.mxu0 %v5362
        %5675 = vmatpush.bf16.msra.mxu0 %v5360
        %5676 = vmatpush.bf16.msra.mxu0 %v5358
        %5677 = vmatpush.bf16.msra.mxu0 %v5356
        %5678 = vmatmul.bf16.gmra.mxu0 %v5174
        %v5679 = vpop.f32.mrf.mxu0
        %v5680 = vadd.f32 %v5591, %v5679
        %v5681 = vpop.f32.mrf.mxu0
        %v5682 = vadd.f32 %v5593, %v5681
        %5683 = vmatmul.bf16.gmra.mxu0 %v5176
        %v5684 = vpop.f32.mrf.mxu0
        %v5685 = vadd.f32 %v5596, %v5684
        %v5686 = vpop.f32.mrf.mxu0
        %v5687 = vadd.f32 %v5598, %v5686
        %5688 = vmatmul.bf16.gmra.mxu0 %v5178
        %v5689 = vpop.f32.mrf.mxu0
        %v5690 = vadd.f32 %v5601, %v5689
        %v5691 = vpop.f32.mrf.mxu0
        %v5692 = vadd.f32 %v5603, %v5691
        %5693 = vmatmul.bf16.gmra.mxu0 %v5180
        %v5694 = vpop.f32.mrf.mxu0
        %v5695 = vadd.f32 %v5606, %v5694
        %v5696 = vpop.f32.mrf.mxu0
        %v5697 = vadd.f32 %v5608, %v5696
        %5698 = vmatmul.bf16.gmra.mxu0 %v5182
        %v5699 = vpop.f32.mrf.mxu0
        %v5700 = vadd.f32 %v5611, %v5699
        %v5701 = vpop.f32.mrf.mxu0
        %v5702 = vadd.f32 %v5613, %v5701
        %5703 = vmatmul.bf16.gmra.mxu0 %v5184
        %v5704 = vpop.f32.mrf.mxu0
        %v5705 = vadd.f32 %v5616, %v5704
        %v5706 = vpop.f32.mrf.mxu0
        %v5707 = vadd.f32 %v5618, %v5706
        %5708 = vmatmul.bf16.gmra.mxu0 %v5186
        %v5709 = vpop.f32.mrf.mxu0
        %v5710 = vadd.f32 %v5621, %v5709
        %v5711 = vpop.f32.mrf.mxu0
        %v5712 = vadd.f32 %v5623, %v5711
        %5713 = vmatmul.bf16.gmra.mxu0 %v5188
        %v5714 = vpop.f32.mrf.mxu0
        %v5715 = vadd.f32 %v5626, %v5714
        %v5716 = vpop.f32.mrf.mxu0
        %v5717 = vadd.f32 %v5628, %v5716
        %5718 = vmatmul.bf16.gmra.mxu0 %v5190
        %v5719 = vpop.f32.mrf.mxu0
        %v5720 = vadd.f32 %v5631, %v5719
        %v5721 = vpop.f32.mrf.mxu0
        %v5722 = vadd.f32 %v5633, %v5721
        %5723 = vmatmul.bf16.gmra.mxu0 %v5192
        %v5724 = vpop.f32.mrf.mxu0
        %v5725 = vadd.f32 %v5636, %v5724
        %v5726 = vpop.f32.mrf.mxu0
        %v5727 = vadd.f32 %v5638, %v5726
        %5728 = vmatmul.bf16.gmra.mxu0 %v5194
        %v5729 = vpop.f32.mrf.mxu0
        %v5730 = vadd.f32 %v5641, %v5729
        %v5731 = vpop.f32.mrf.mxu0
        %v5732 = vadd.f32 %v5643, %v5731
        %5733 = vmatmul.bf16.gmra.mxu0 %v5196
        %v5734 = vpop.f32.mrf.mxu0
        %v5735 = vadd.f32 %v5646, %v5734
        %v5736 = vpop.f32.mrf.mxu0
        %v5737 = vadd.f32 %v5648, %v5736
        %5738 = vmatmul.bf16.gmra.mxu0 %v5198
        %v5739 = vpop.f32.mrf.mxu0
        %v5740 = vadd.f32 %v5651, %v5739
        %v5741 = vpop.f32.mrf.mxu0
        %v5742 = vadd.f32 %v5653, %v5741
        %5743 = vmatmul.bf16.gmra.mxu0 %v5200
        %v5744 = vpop.f32.mrf.mxu0
        %v5745 = vadd.f32 %v5656, %v5744
        %v5746 = vpop.f32.mrf.mxu0
        %v5747 = vadd.f32 %v5658, %v5746
        %5748 = vmatmul.bf16.gmra.mxu0 %v5202
        %v5749 = vpop.f32.mrf.mxu0
        %v5750 = vadd.f32 %v5661, %v5749
        %v5751 = vpop.f32.mrf.mxu0
        %v5752 = vadd.f32 %v5663, %v5751
        %5753 = vmatmul.bf16.gmra.mxu0 %v5204
        %v5754 = vpop.f32.mrf.mxu0
        %v5755 = vadd.f32 %v5666, %v5754
        %v5756 = vpop.f32.mrf.mxu0
        %v5757 = vadd.f32 %v5668, %v5756
        %5758 = vdwg.mxu0
        %v5759 = vxor.u32 %v5502, 2147483648
        %v5760 = vxor.u32 %v5680, 2147483648
        %v5761 = vxor.u32 %v5504, 2147483648
        %v5762 = vxor.u32 %v5682, 2147483648
        %v5763 = vxor.u32 %v5507, 2147483648
        %v5764 = vxor.u32 %v5685, 2147483648
        %v5765 = vxor.u32 %v5509, 2147483648
        %v5766 = vxor.u32 %v5687, 2147483648
        %v5767 = vxor.u32 %v5512, 2147483648
        %v5768 = vxor.u32 %v5690, 2147483648
        %v5769 = vxor.u32 %v5514, 2147483648
        %v5770 = vxor.u32 %v5692, 2147483648
        %v5771 = vxor.u32 %v5517, 2147483648
        %v5772 = vxor.u32 %v5695, 2147483648
        %v5773 = vxor.u32 %v5519, 2147483648
        %v5774 = vxor.u32 %v5697, 2147483648
        %v5775 = vxor.u32 %v5522, 2147483648
        %v5776 = vxor.u32 %v5700, 2147483648
        %v5777 = vxor.u32 %v5524, 2147483648
        %v5778 = vxor.u32 %v5702, 2147483648
        %v5779 = vxor.u32 %v5527, 2147483648
        %v5780 = vxor.u32 %v5705, 2147483648
        %v5781 = vxor.u32 %v5529, 2147483648
        %v5782 = vxor.u32 %v5707, 2147483648
        %v5783 = vxor.u32 %v5532, 2147483648
        %v5784 = vxor.u32 %v5710, 2147483648
        %v5785 = vxor.u32 %v5534, 2147483648
        %v5786 = vxor.u32 %v5712, 2147483648
        %v5787 = vxor.u32 %v5537, 2147483648
        %v5788 = vxor.u32 %v5715, 2147483648
        %v5789 = vxor.u32 %v5539, 2147483648
        %v5790 = vxor.u32 %v5717, 2147483648
        %v5791 = vxor.u32 %v5542, 2147483648
        %v5792 = vxor.u32 %v5720, 2147483648
        %v5793 = vxor.u32 %v5544, 2147483648
        %v5794 = vxor.u32 %v5722, 2147483648
        %v5795 = vxor.u32 %v5547, 2147483648
        %v5796 = vxor.u32 %v5725, 2147483648
        %v5797 = vxor.u32 %v5549, 2147483648
        %v5798 = vxor.u32 %v5727, 2147483648
        %v5799 = vxor.u32 %v5552, 2147483648
        %v5800 = vxor.u32 %v5730, 2147483648
        %v5801 = vxor.u32 %v5554, 2147483648
        %v5802 = vxor.u32 %v5732, 2147483648
        %v5803 = vxor.u32 %v5557, 2147483648
        %v5804 = vxor.u32 %v5735, 2147483648
        %v5805 = vxor.u32 %v5559, 2147483648
        %v5806 = vxor.u32 %v5737, 2147483648
        %v5807 = vxor.u32 %v5562, 2147483648
        %v5808 = vxor.u32 %v5740, 2147483648
        %v5809 = vxor.u32 %v5564, 2147483648
        %v5810 = vxor.u32 %v5742, 2147483648
        %v5811 = vxor.u32 %v5567, 2147483648
        %v5812 = vxor.u32 %v5745, 2147483648
        %v5813 = vxor.u32 %v5569, 2147483648
        %v5814 = vxor.u32 %v5747, 2147483648
        %v5815 = vxor.u32 %v5572, 2147483648
        %v5816 = vxor.u32 %v5750, 2147483648
        %v5817 = vxor.u32 %v5574, 2147483648
        %v5818 = vxor.u32 %v5752, 2147483648
        %v5819 = vxor.u32 %v5577, 2147483648
        %v5820 = vxor.u32 %v5755, 2147483648
        %v5821 = vxor.u32 %v5579, 2147483648
        %v5822 = vxor.u32 %v5757, 2147483648
        %v5823 = vmul.f32 %v5759, 1.442695
        %v5824 = vpow.pop %v5823
        %v5825 = vmul.f32 %v5760, 1.442695
        %v5826 = vpow.pop %v5825
        %v5827 = vmul.f32 %v5761, 1.442695
        %v5828 = vpow.pop %v5827
        %v5829 = vmul.f32 %v5762, 1.442695
        %v5830 = vpow.pop %v5829
        %v5831 = vmul.f32 %v5763, 1.442695
        %v5832 = vpow.pop %v5831
        %v5833 = vmul.f32 %v5764, 1.442695
        %v5834 = vpow.pop %v5833
        %v5835 = vmul.f32 %v5765, 1.442695
        %v5836 = vpow.pop %v5835
        %v5837 = vmul.f32 %v5766, 1.442695
        %v5838 = vpow.pop %v5837
        %v5839 = vmul.f32 %v5767, 1.442695
        %v5840 = vpow.pop %v5839
        %v5841 = vmul.f32 %v5768, 1.442695
        %v5842 = vpow.pop %v5841
        %v5843 = vmul.f32 %v5769, 1.442695
        %v5844 = vpow.pop %v5843
        %v5845 = vmul.f32 %v5770, 1.442695
        %v5846 = vpow.pop %v5845
        %v5847 = vmul.f32 %v5771, 1.442695
        %v5848 = vpow.pop %v5847
        %v5849 = vmul.f32 %v5772, 1.442695
        %v5850 = vpow.pop %v5849
        %v5851 = vmul.f32 %v5773, 1.442695
        %v5852 = vpow.pop %v5851
        %v5853 = vmul.f32 %v5774, 1.442695
        %v5854 = vpow.pop %v5853
        %v5855 = vmul.f32 %v5775, 1.442695
        %v5856 = vpow.pop %v5855
        %v5857 = vmul.f32 %v5776, 1.442695
        %v5858 = vpow.pop %v5857
        %v5859 = vmul.f32 %v5777, 1.442695
        %v5860 = vpow.pop %v5859
        %v5861 = vmul.f32 %v5778, 1.442695
        %v5862 = vpow.pop %v5861
        %v5863 = vmul.f32 %v5779, 1.442695
        %v5864 = vpow.pop %v5863
        %v5865 = vmul.f32 %v5780, 1.442695
        %v5866 = vpow.pop %v5865
        %v5867 = vmul.f32 %v5781, 1.442695
        %v5868 = vpow.pop %v5867
        %v5869 = vmul.f32 %v5782, 1.442695
        %v5870 = vpow.pop %v5869
        %v5871 = vmul.f32 %v5783, 1.442695
        %v5872 = vpow.pop %v5871
        %v5873 = vmul.f32 %v5784, 1.442695
        %v5874 = vpow.pop %v5873
        %v5875 = vmul.f32 %v5785, 1.442695
        %v5876 = vpow.pop %v5875
        %v5877 = vmul.f32 %v5786, 1.442695
        %v5878 = vpow.pop %v5877
        %v5879 = vmul.f32 %v5787, 1.442695
        %v5880 = vpow.pop %v5879
        %v5881 = vmul.f32 %v5788, 1.442695
        %v5882 = vpow.pop %v5881
        %v5883 = vmul.f32 %v5789, 1.442695
        %v5884 = vpow.pop %v5883
        %v5885 = vmul.f32 %v5790, 1.442695
        %v5886 = vpow.pop %v5885
        %v5887 = vmul.f32 %v5791, 1.442695
        %v5888 = vpow.pop %v5887
        %v5889 = vmul.f32 %v5792, 1.442695
        %v5890 = vpow.pop %v5889
        %v5891 = vmul.f32 %v5793, 1.442695
        %v5892 = vpow.pop %v5891
        %v5893 = vmul.f32 %v5794, 1.442695
        %v5894 = vpow.pop %v5893
        %v5895 = vmul.f32 %v5795, 1.442695
        %v5896 = vpow.pop %v5895
        %v5897 = vmul.f32 %v5796, 1.442695
        %v5898 = vpow.pop %v5897
        %v5899 = vmul.f32 %v5797, 1.442695
        %v5900 = vpow.pop %v5899
        %v5901 = vmul.f32 %v5798, 1.442695
        %v5902 = vpow.pop %v5901
        %v5903 = vmul.f32 %v5799, 1.442695
        %v5904 = vpow.pop %v5903
        %v5905 = vmul.f32 %v5800, 1.442695
        %v5906 = vpow.pop %v5905
        %v5907 = vmul.f32 %v5801, 1.442695
        %v5908 = vpow.pop %v5907
        %v5909 = vmul.f32 %v5802, 1.442695
        %v5910 = vpow.pop %v5909
        %v5911 = vmul.f32 %v5803, 1.442695
        %v5912 = vpow.pop %v5911
        %v5913 = vmul.f32 %v5804, 1.442695
        %v5914 = vpow.pop %v5913
        %v5915 = vmul.f32 %v5805, 1.442695
        %v5916 = vpow.pop %v5915
        %v5917 = vmul.f32 %v5806, 1.442695
        %v5918 = vpow.pop %v5917
        %v5919 = vmul.f32 %v5807, 1.442695
        %v5920 = vpow.pop %v5919
        %v5921 = vmul.f32 %v5808, 1.442695
        %v5922 = vpow.pop %v5921
        %v5923 = vmul.f32 %v5809, 1.442695
        %v5924 = vpow.pop %v5923
        %v5925 = vmul.f32 %v5810, 1.442695
        %v5926 = vpow.pop %v5925
        %v5927 = vmul.f32 %v5811, 1.442695
        %v5928 = vpow.pop %v5927
        %v5929 = vmul.f32 %v5812, 1.442695
        %v5930 = vpow.pop %v5929
        %v5931 = vmul.f32 %v5813, 1.442695
        %v5932 = vpow.pop %v5931
        %v5933 = vmul.f32 %v5814, 1.442695
        %v5934 = vpow.pop %v5933
        %v5935 = vmul.f32 %v5815, 1.442695
        %v5936 = vpow.pop %v5935
        %v5937 = vmul.f32 %v5816, 1.442695
        %v5938 = vpow.pop %v5937
        %v5939 = vmul.f32 %v5817, 1.442695
        %v5940 = vpow.pop %v5939
        %v5941 = vmul.f32 %v5818, 1.442695
        %v5942 = vpow.pop %v5941
        %v5943 = vmul.f32 %v5819, 1.442695
        %v5944 = vpow.pop %v5943
        %v5945 = vmul.f32 %v5820, 1.442695
        %v5946 = vpow.pop %v5945
        %v5947 = vmul.f32 %v5821, 1.442695
        %v5948 = vpow.pop %v5947
        %v5949 = vmul.f32 %v5822, 1.442695
        %v5950 = vpow.pop %v5949
        %v5951 = vadd.f32 %v5824, 1.0
        %v5952 = vadd.f32 %v5826, 1.0
        %v5953 = vadd.f32 %v5828, 1.0
        %v5954 = vadd.f32 %v5830, 1.0
        %v5955 = vadd.f32 %v5832, 1.0
        %v5956 = vadd.f32 %v5834, 1.0
        %v5957 = vadd.f32 %v5836, 1.0
        %v5958 = vadd.f32 %v5838, 1.0
        %v5959 = vadd.f32 %v5840, 1.0
        %v5960 = vadd.f32 %v5842, 1.0
        %v5961 = vadd.f32 %v5844, 1.0
        %v5962 = vadd.f32 %v5846, 1.0
        %v5963 = vadd.f32 %v5848, 1.0
        %v5964 = vadd.f32 %v5850, 1.0
        %v5965 = vadd.f32 %v5852, 1.0
        %v5966 = vadd.f32 %v5854, 1.0
        %v5967 = vadd.f32 %v5856, 1.0
        %v5968 = vadd.f32 %v5858, 1.0
        %v5969 = vadd.f32 %v5860, 1.0
        %v5970 = vadd.f32 %v5862, 1.0
        %v5971 = vadd.f32 %v5864, 1.0
        %v5972 = vadd.f32 %v5866, 1.0
        %v5973 = vadd.f32 %v5868, 1.0
        %v5974 = vadd.f32 %v5870, 1.0
        %v5975 = vadd.f32 %v5872, 1.0
        %v5976 = vadd.f32 %v5874, 1.0
        %v5977 = vadd.f32 %v5876, 1.0
        %v5978 = vadd.f32 %v5878, 1.0
        %v5979 = vadd.f32 %v5880, 1.0
        %v5980 = vadd.f32 %v5882, 1.0
        %v5981 = vadd.f32 %v5884, 1.0
        %v5982 = vadd.f32 %v5886, 1.0
        %v5983 = vadd.f32 %v5888, 1.0
        %v5984 = vadd.f32 %v5890, 1.0
        %v5985 = vadd.f32 %v5892, 1.0
        %v5986 = vadd.f32 %v5894, 1.0
        %v5987 = vadd.f32 %v5896, 1.0
        %v5988 = vadd.f32 %v5898, 1.0
        %v5989 = vadd.f32 %v5900, 1.0
        %v5990 = vadd.f32 %v5902, 1.0
        %v5991 = vadd.f32 %v5904, 1.0
        %v5992 = vadd.f32 %v5906, 1.0
        %v5993 = vadd.f32 %v5908, 1.0
        %v5994 = vadd.f32 %v5910, 1.0
        %v5995 = vadd.f32 %v5912, 1.0
        %v5996 = vadd.f32 %v5914, 1.0
        %v5997 = vadd.f32 %v5916, 1.0
        %v5998 = vadd.f32 %v5918, 1.0
        %v5999 = vadd.f32 %v5920, 1.0
        %v6000 = vadd.f32 %v5922, 1.0
        %v6001 = vadd.f32 %v5924, 1.0
        %v6002 = vadd.f32 %v5926, 1.0
        %v6003 = vadd.f32 %v5928, 1.0
        %v6004 = vadd.f32 %v5930, 1.0
        %v6005 = vadd.f32 %v5932, 1.0
        %v6006 = vadd.f32 %v5934, 1.0
        %v6007 = vadd.f32 %v5936, 1.0
        %v6008 = vadd.f32 %v5938, 1.0
        %v6009 = vadd.f32 %v5940, 1.0
        %v6010 = vadd.f32 %v5942, 1.0
        %v6011 = vadd.f32 %v5944, 1.0
        %v6012 = vadd.f32 %v5946, 1.0
        %v6013 = vadd.f32 %v5948, 1.0
        %v6014 = vadd.f32 %v5950, 1.0
        %v6015 = vrcp.pop %v5951
        %v6016 = vmul.f32 %v5951, %v6015
        %v6017 = vsub.f32 1.0, %v6016
        %v6018 = vmul.f32 %v6015, %v6017
        %v6019 = vadd.f32 %v6015, %v6018
        %vm6020 = vweird.f32 %v5951
        %vm6021 = vweird.f32 %v6015
        %vm6022 = vmor %vm6020, %vm6021
        %v6023 = vsel %vm6022, %v6015, %v6019
        %v6024 = vand.u32 2147483647, %v5951
        %vm6025 = vcmp.eq.f32.partialorder %v6024, 8.507059e+37
        %v6026 = vand.u32 %v5951, 2147483648
        %v6027 = vor.u32 1.1754944e-38, %v6026
        %v6028 = vsel %vm6025, %v6027, %v6023
        %v6029 = vmul.f32 1.0, %v6028
        %v6030 = vrcp.pop %v5952
        %v6031 = vmul.f32 %v5952, %v6030
        %v6032 = vsub.f32 1.0, %v6031
        %v6033 = vmul.f32 %v6030, %v6032
        %v6034 = vadd.f32 %v6030, %v6033
        %vm6035 = vweird.f32 %v5952
        %vm6036 = vweird.f32 %v6030
        %vm6037 = vmor %vm6035, %vm6036
        %v6038 = vsel %vm6037, %v6030, %v6034
        %v6039 = vand.u32 2147483647, %v5952
        %vm6040 = vcmp.eq.f32.partialorder %v6039, 8.507059e+37
        %v6041 = vand.u32 %v5952, 2147483648
        %v6042 = vor.u32 1.1754944e-38, %v6041
        %v6043 = vsel %vm6040, %v6042, %v6038
        %v6044 = vmul.f32 1.0, %v6043
        %v6045 = vrcp.pop %v5953
        %v6046 = vmul.f32 %v5953, %v6045
        %v6047 = vsub.f32 1.0, %v6046
        %v6048 = vmul.f32 %v6045, %v6047
        %v6049 = vadd.f32 %v6045, %v6048
        %vm6050 = vweird.f32 %v5953
        %vm6051 = vweird.f32 %v6045
        %vm6052 = vmor %vm6050, %vm6051
        %v6053 = vsel %vm6052, %v6045, %v6049
        %v6054 = vand.u32 2147483647, %v5953
        %vm6055 = vcmp.eq.f32.partialorder %v6054, 8.507059e+37
        %v6056 = vand.u32 %v5953, 2147483648
        %v6057 = vor.u32 1.1754944e-38, %v6056
        %v6058 = vsel %vm6055, %v6057, %v6053
        %v6059 = vmul.f32 1.0, %v6058
        %v6060 = vrcp.pop %v5954
        %v6061 = vmul.f32 %v5954, %v6060
        %v6062 = vsub.f32 1.0, %v6061
        %v6063 = vmul.f32 %v6060, %v6062
        %v6064 = vadd.f32 %v6060, %v6063
        %vm6065 = vweird.f32 %v5954
        %vm6066 = vweird.f32 %v6060
        %vm6067 = vmor %vm6065, %vm6066
        %v6068 = vsel %vm6067, %v6060, %v6064
        %v6069 = vand.u32 2147483647, %v5954
        %vm6070 = vcmp.eq.f32.partialorder %v6069, 8.507059e+37
        %v6071 = vand.u32 %v5954, 2147483648
        %v6072 = vor.u32 1.1754944e-38, %v6071
        %v6073 = vsel %vm6070, %v6072, %v6068
        %v6074 = vmul.f32 1.0, %v6073
        %v6075 = vrcp.pop %v5955
        %v6076 = vmul.f32 %v5955, %v6075
        %v6077 = vsub.f32 1.0, %v6076
        %v6078 = vmul.f32 %v6075, %v6077
        %v6079 = vadd.f32 %v6075, %v6078
        %vm6080 = vweird.f32 %v5955
        %vm6081 = vweird.f32 %v6075
        %vm6082 = vmor %vm6080, %vm6081
        %v6083 = vsel %vm6082, %v6075, %v6079
        %v6084 = vand.u32 2147483647, %v5955
        %vm6085 = vcmp.eq.f32.partialorder %v6084, 8.507059e+37
        %v6086 = vand.u32 %v5955, 2147483648
        %v6087 = vor.u32 1.1754944e-38, %v6086
        %v6088 = vsel %vm6085, %v6087, %v6083
        %v6089 = vmul.f32 1.0, %v6088
        %v6090 = vrcp.pop %v5956
        %v6091 = vmul.f32 %v5956, %v6090
        %v6092 = vsub.f32 1.0, %v6091
        %v6093 = vmul.f32 %v6090, %v6092
        %v6094 = vadd.f32 %v6090, %v6093
        %vm6095 = vweird.f32 %v5956
        %vm6096 = vweird.f32 %v6090
        %vm6097 = vmor %vm6095, %vm6096
        %v6098 = vsel %vm6097, %v6090, %v6094
        %v6099 = vand.u32 2147483647, %v5956
        %vm6100 = vcmp.eq.f32.partialorder %v6099, 8.507059e+37
        %v6101 = vand.u32 %v5956, 2147483648
        %v6102 = vor.u32 1.1754944e-38, %v6101
        %v6103 = vsel %vm6100, %v6102, %v6098
        %v6104 = vmul.f32 1.0, %v6103
        %v6105 = vrcp.pop %v5957
        %v6106 = vmul.f32 %v5957, %v6105
        %v6107 = vsub.f32 1.0, %v6106
        %v6108 = vmul.f32 %v6105, %v6107
        %v6109 = vadd.f32 %v6105, %v6108
        %vm6110 = vweird.f32 %v5957
        %vm6111 = vweird.f32 %v6105
        %vm6112 = vmor %vm6110, %vm6111
        %v6113 = vsel %vm6112, %v6105, %v6109
        %v6114 = vand.u32 2147483647, %v5957
        %vm6115 = vcmp.eq.f32.partialorder %v6114, 8.507059e+37
        %v6116 = vand.u32 %v5957, 2147483648
        %v6117 = vor.u32 1.1754944e-38, %v6116
        %v6118 = vsel %vm6115, %v6117, %v6113
        %v6119 = vmul.f32 1.0, %v6118
        %v6120 = vrcp.pop %v5958
        %v6121 = vmul.f32 %v5958, %v6120
        %v6122 = vsub.f32 1.0, %v6121
        %v6123 = vmul.f32 %v6120, %v6122
        %v6124 = vadd.f32 %v6120, %v6123
        %vm6125 = vweird.f32 %v5958
        %vm6126 = vweird.f32 %v6120
        %vm6127 = vmor %vm6125, %vm6126
        %v6128 = vsel %vm6127, %v6120, %v6124
        %v6129 = vand.u32 2147483647, %v5958
        %vm6130 = vcmp.eq.f32.partialorder %v6129, 8.507059e+37
        %v6131 = vand.u32 %v5958, 2147483648
        %v6132 = vor.u32 1.1754944e-38, %v6131
        %v6133 = vsel %vm6130, %v6132, %v6128
        %v6134 = vmul.f32 1.0, %v6133
        %v6135 = vrcp.pop %v5959
        %v6136 = vmul.f32 %v5959, %v6135
        %v6137 = vsub.f32 1.0, %v6136
        %v6138 = vmul.f32 %v6135, %v6137
        %v6139 = vadd.f32 %v6135, %v6138
        %vm6140 = vweird.f32 %v5959
        %vm6141 = vweird.f32 %v6135
        %vm6142 = vmor %vm6140, %vm6141
        %v6143 = vsel %vm6142, %v6135, %v6139
        %v6144 = vand.u32 2147483647, %v5959
        %vm6145 = vcmp.eq.f32.partialorder %v6144, 8.507059e+37
        %v6146 = vand.u32 %v5959, 2147483648
        %v6147 = vor.u32 1.1754944e-38, %v6146
        %v6148 = vsel %vm6145, %v6147, %v6143
        %v6149 = vmul.f32 1.0, %v6148
        %v6150 = vrcp.pop %v5960
        %v6151 = vmul.f32 %v5960, %v6150
        %v6152 = vsub.f32 1.0, %v6151
        %v6153 = vmul.f32 %v6150, %v6152
        %v6154 = vadd.f32 %v6150, %v6153
        %vm6155 = vweird.f32 %v5960
        %vm6156 = vweird.f32 %v6150
        %vm6157 = vmor %vm6155, %vm6156
        %v6158 = vsel %vm6157, %v6150, %v6154
        %v6159 = vand.u32 2147483647, %v5960
        %vm6160 = vcmp.eq.f32.partialorder %v6159, 8.507059e+37
        %v6161 = vand.u32 %v5960, 2147483648
        %v6162 = vor.u32 1.1754944e-38, %v6161
        %v6163 = vsel %vm6160, %v6162, %v6158
        %v6164 = vmul.f32 1.0, %v6163
        %v6165 = vrcp.pop %v5961
        %v6166 = vmul.f32 %v5961, %v6165
        %v6167 = vsub.f32 1.0, %v6166
        %v6168 = vmul.f32 %v6165, %v6167
        %v6169 = vadd.f32 %v6165, %v6168
        %vm6170 = vweird.f32 %v5961
        %vm6171 = vweird.f32 %v6165
        %vm6172 = vmor %vm6170, %vm6171
        %v6173 = vsel %vm6172, %v6165, %v6169
        %v6174 = vand.u32 2147483647, %v5961
        %vm6175 = vcmp.eq.f32.partialorder %v6174, 8.507059e+37
        %v6176 = vand.u32 %v5961, 2147483648
        %v6177 = vor.u32 1.1754944e-38, %v6176
        %v6178 = vsel %vm6175, %v6177, %v6173
        %v6179 = vmul.f32 1.0, %v6178
        %v6180 = vrcp.pop %v5962
        %v6181 = vmul.f32 %v5962, %v6180
        %v6182 = vsub.f32 1.0, %v6181
        %v6183 = vmul.f32 %v6180, %v6182
        %v6184 = vadd.f32 %v6180, %v6183
        %vm6185 = vweird.f32 %v5962
        %vm6186 = vweird.f32 %v6180
        %vm6187 = vmor %vm6185, %vm6186
        %v6188 = vsel %vm6187, %v6180, %v6184
        %v6189 = vand.u32 2147483647, %v5962
        %vm6190 = vcmp.eq.f32.partialorder %v6189, 8.507059e+37
        %v6191 = vand.u32 %v5962, 2147483648
        %v6192 = vor.u32 1.1754944e-38, %v6191
        %v6193 = vsel %vm6190, %v6192, %v6188
        %v6194 = vmul.f32 1.0, %v6193
        %v6195 = vrcp.pop %v5963
        %v6196 = vmul.f32 %v5963, %v6195
        %v6197 = vsub.f32 1.0, %v6196
        %v6198 = vmul.f32 %v6195, %v6197
        %v6199 = vadd.f32 %v6195, %v6198
        %vm6200 = vweird.f32 %v5963
        %vm6201 = vweird.f32 %v6195
        %vm6202 = vmor %vm6200, %vm6201
        %v6203 = vsel %vm6202, %v6195, %v6199
        %v6204 = vand.u32 2147483647, %v5963
        %vm6205 = vcmp.eq.f32.partialorder %v6204, 8.507059e+37
        %v6206 = vand.u32 %v5963, 2147483648
        %v6207 = vor.u32 1.1754944e-38, %v6206
        %v6208 = vsel %vm6205, %v6207, %v6203
        %v6209 = vmul.f32 1.0, %v6208
        %v6210 = vrcp.pop %v5964
        %v6211 = vmul.f32 %v5964, %v6210
        %v6212 = vsub.f32 1.0, %v6211
        %v6213 = vmul.f32 %v6210, %v6212
        %v6214 = vadd.f32 %v6210, %v6213
        %vm6215 = vweird.f32 %v5964
        %vm6216 = vweird.f32 %v6210
        %vm6217 = vmor %vm6215, %vm6216
        %v6218 = vsel %vm6217, %v6210, %v6214
        %v6219 = vand.u32 2147483647, %v5964
        %vm6220 = vcmp.eq.f32.partialorder %v6219, 8.507059e+37
        %v6221 = vand.u32 %v5964, 2147483648
        %v6222 = vor.u32 1.1754944e-38, %v6221
        %v6223 = vsel %vm6220, %v6222, %v6218
        %v6224 = vmul.f32 1.0, %v6223
        %v6225 = vrcp.pop %v5965
        %v6226 = vmul.f32 %v5965, %v6225
        %v6227 = vsub.f32 1.0, %v6226
        %v6228 = vmul.f32 %v6225, %v6227
        %v6229 = vadd.f32 %v6225, %v6228
        %vm6230 = vweird.f32 %v5965
        %vm6231 = vweird.f32 %v6225
        %vm6232 = vmor %vm6230, %vm6231
        %v6233 = vsel %vm6232, %v6225, %v6229
        %v6234 = vand.u32 2147483647, %v5965
        %vm6235 = vcmp.eq.f32.partialorder %v6234, 8.507059e+37
        %v6236 = vand.u32 %v5965, 2147483648
        %v6237 = vor.u32 1.1754944e-38, %v6236
        %v6238 = vsel %vm6235, %v6237, %v6233
        %v6239 = vmul.f32 1.0, %v6238
        %v6240 = vrcp.pop %v5966
        %v6241 = vmul.f32 %v5966, %v6240
        %v6242 = vsub.f32 1.0, %v6241
        %v6243 = vmul.f32 %v6240, %v6242
        %v6244 = vadd.f32 %v6240, %v6243
        %vm6245 = vweird.f32 %v5966
        %vm6246 = vweird.f32 %v6240
        %vm6247 = vmor %vm6245, %vm6246
        %v6248 = vsel %vm6247, %v6240, %v6244
        %v6249 = vand.u32 2147483647, %v5966
        %vm6250 = vcmp.eq.f32.partialorder %v6249, 8.507059e+37
        %v6251 = vand.u32 %v5966, 2147483648
        %v6252 = vor.u32 1.1754944e-38, %v6251
        %v6253 = vsel %vm6250, %v6252, %v6248
        %v6254 = vmul.f32 1.0, %v6253
        %v6255 = vrcp.pop %v5967
        %v6256 = vmul.f32 %v5967, %v6255
        %v6257 = vsub.f32 1.0, %v6256
        %v6258 = vmul.f32 %v6255, %v6257
        %v6259 = vadd.f32 %v6255, %v6258
        %vm6260 = vweird.f32 %v5967
        %vm6261 = vweird.f32 %v6255
        %vm6262 = vmor %vm6260, %vm6261
        %v6263 = vsel %vm6262, %v6255, %v6259
        %v6264 = vand.u32 2147483647, %v5967
        %vm6265 = vcmp.eq.f32.partialorder %v6264, 8.507059e+37
        %v6266 = vand.u32 %v5967, 2147483648
        %v6267 = vor.u32 1.1754944e-38, %v6266
        %v6268 = vsel %vm6265, %v6267, %v6263
        %v6269 = vmul.f32 1.0, %v6268
        %v6270 = vrcp.pop %v5968
        %v6271 = vmul.f32 %v5968, %v6270
        %v6272 = vsub.f32 1.0, %v6271
        %v6273 = vmul.f32 %v6270, %v6272
        %v6274 = vadd.f32 %v6270, %v6273
        %vm6275 = vweird.f32 %v5968
        %vm6276 = vweird.f32 %v6270
        %vm6277 = vmor %vm6275, %vm6276
        %v6278 = vsel %vm6277, %v6270, %v6274
        %v6279 = vand.u32 2147483647, %v5968
        %vm6280 = vcmp.eq.f32.partialorder %v6279, 8.507059e+37
        %v6281 = vand.u32 %v5968, 2147483648
        %v6282 = vor.u32 1.1754944e-38, %v6281
        %v6283 = vsel %vm6280, %v6282, %v6278
        %v6284 = vmul.f32 1.0, %v6283
        %v6285 = vrcp.pop %v5969
        %v6286 = vmul.f32 %v5969, %v6285
        %v6287 = vsub.f32 1.0, %v6286
        %v6288 = vmul.f32 %v6285, %v6287
        %v6289 = vadd.f32 %v6285, %v6288
        %vm6290 = vweird.f32 %v5969
        %vm6291 = vweird.f32 %v6285
        %vm6292 = vmor %vm6290, %vm6291
        %v6293 = vsel %vm6292, %v6285, %v6289
        %v6294 = vand.u32 2147483647, %v5969
        %vm6295 = vcmp.eq.f32.partialorder %v6294, 8.507059e+37
        %v6296 = vand.u32 %v5969, 2147483648
        %v6297 = vor.u32 1.1754944e-38, %v6296
        %v6298 = vsel %vm6295, %v6297, %v6293
        %v6299 = vmul.f32 1.0, %v6298
        %v6300 = vrcp.pop %v5970
        %v6301 = vmul.f32 %v5970, %v6300
        %v6302 = vsub.f32 1.0, %v6301
        %v6303 = vmul.f32 %v6300, %v6302
        %v6304 = vadd.f32 %v6300, %v6303
        %vm6305 = vweird.f32 %v5970
        %vm6306 = vweird.f32 %v6300
        %vm6307 = vmor %vm6305, %vm6306
        %v6308 = vsel %vm6307, %v6300, %v6304
        %v6309 = vand.u32 2147483647, %v5970
        %vm6310 = vcmp.eq.f32.partialorder %v6309, 8.507059e+37
        %v6311 = vand.u32 %v5970, 2147483648
        %v6312 = vor.u32 1.1754944e-38, %v6311
        %v6313 = vsel %vm6310, %v6312, %v6308
        %v6314 = vmul.f32 1.0, %v6313
        %v6315 = vrcp.pop %v5971
        %v6316 = vmul.f32 %v5971, %v6315
        %v6317 = vsub.f32 1.0, %v6316
        %v6318 = vmul.f32 %v6315, %v6317
        %v6319 = vadd.f32 %v6315, %v6318
        %vm6320 = vweird.f32 %v5971
        %vm6321 = vweird.f32 %v6315
        %vm6322 = vmor %vm6320, %vm6321
        %v6323 = vsel %vm6322, %v6315, %v6319
        %v6324 = vand.u32 2147483647, %v5971
        %vm6325 = vcmp.eq.f32.partialorder %v6324, 8.507059e+37
        %v6326 = vand.u32 %v5971, 2147483648
        %v6327 = vor.u32 1.1754944e-38, %v6326
        %v6328 = vsel %vm6325, %v6327, %v6323
        %v6329 = vmul.f32 1.0, %v6328
        %v6330 = vrcp.pop %v5972
        %v6331 = vmul.f32 %v5972, %v6330
        %v6332 = vsub.f32 1.0, %v6331
        %v6333 = vmul.f32 %v6330, %v6332
        %v6334 = vadd.f32 %v6330, %v6333
        %vm6335 = vweird.f32 %v5972
        %vm6336 = vweird.f32 %v6330
        %vm6337 = vmor %vm6335, %vm6336
        %v6338 = vsel %vm6337, %v6330, %v6334
        %v6339 = vand.u32 2147483647, %v5972
        %vm6340 = vcmp.eq.f32.partialorder %v6339, 8.507059e+37
        %v6341 = vand.u32 %v5972, 2147483648
        %v6342 = vor.u32 1.1754944e-38, %v6341
        %v6343 = vsel %vm6340, %v6342, %v6338
        %v6344 = vmul.f32 1.0, %v6343
        %v6345 = vrcp.pop %v5973
        %v6346 = vmul.f32 %v5973, %v6345
        %v6347 = vsub.f32 1.0, %v6346
        %v6348 = vmul.f32 %v6345, %v6347
        %v6349 = vadd.f32 %v6345, %v6348
        %vm6350 = vweird.f32 %v5973
        %vm6351 = vweird.f32 %v6345
        %vm6352 = vmor %vm6350, %vm6351
        %v6353 = vsel %vm6352, %v6345, %v6349
        %v6354 = vand.u32 2147483647, %v5973
        %vm6355 = vcmp.eq.f32.partialorder %v6354, 8.507059e+37
        %v6356 = vand.u32 %v5973, 2147483648
        %v6357 = vor.u32 1.1754944e-38, %v6356
        %v6358 = vsel %vm6355, %v6357, %v6353
        %v6359 = vmul.f32 1.0, %v6358
        %v6360 = vrcp.pop %v5974
        %v6361 = vmul.f32 %v5974, %v6360
        %v6362 = vsub.f32 1.0, %v6361
        %v6363 = vmul.f32 %v6360, %v6362
        %v6364 = vadd.f32 %v6360, %v6363
        %vm6365 = vweird.f32 %v5974
        %vm6366 = vweird.f32 %v6360
        %vm6367 = vmor %vm6365, %vm6366
        %v6368 = vsel %vm6367, %v6360, %v6364
        %v6369 = vand.u32 2147483647, %v5974
        %vm6370 = vcmp.eq.f32.partialorder %v6369, 8.507059e+37
        %v6371 = vand.u32 %v5974, 2147483648
        %v6372 = vor.u32 1.1754944e-38, %v6371
        %v6373 = vsel %vm6370, %v6372, %v6368
        %v6374 = vmul.f32 1.0, %v6373
        %v6375 = vrcp.pop %v5975
        %v6376 = vmul.f32 %v5975, %v6375
        %v6377 = vsub.f32 1.0, %v6376
        %v6378 = vmul.f32 %v6375, %v6377
        %v6379 = vadd.f32 %v6375, %v6378
        %vm6380 = vweird.f32 %v5975
        %vm6381 = vweird.f32 %v6375
        %vm6382 = vmor %vm6380, %vm6381
        %v6383 = vsel %vm6382, %v6375, %v6379
        %v6384 = vand.u32 2147483647, %v5975
        %vm6385 = vcmp.eq.f32.partialorder %v6384, 8.507059e+37
        %v6386 = vand.u32 %v5975, 2147483648
        %v6387 = vor.u32 1.1754944e-38, %v6386
        %v6388 = vsel %vm6385, %v6387, %v6383
        %v6389 = vmul.f32 1.0, %v6388
        %v6390 = vrcp.pop %v5976
        %v6391 = vmul.f32 %v5976, %v6390
        %v6392 = vsub.f32 1.0, %v6391
        %v6393 = vmul.f32 %v6390, %v6392
        %v6394 = vadd.f32 %v6390, %v6393
        %vm6395 = vweird.f32 %v5976
        %vm6396 = vweird.f32 %v6390
        %vm6397 = vmor %vm6395, %vm6396
        %v6398 = vsel %vm6397, %v6390, %v6394
        %v6399 = vand.u32 2147483647, %v5976
        %vm6400 = vcmp.eq.f32.partialorder %v6399, 8.507059e+37
        %v6401 = vand.u32 %v5976, 2147483648
        %v6402 = vor.u32 1.1754944e-38, %v6401
        %v6403 = vsel %vm6400, %v6402, %v6398
        %v6404 = vmul.f32 1.0, %v6403
        %v6405 = vrcp.pop %v5977
        %v6406 = vmul.f32 %v5977, %v6405
        %v6407 = vsub.f32 1.0, %v6406
        %v6408 = vmul.f32 %v6405, %v6407
        %v6409 = vadd.f32 %v6405, %v6408
        %vm6410 = vweird.f32 %v5977
        %vm6411 = vweird.f32 %v6405
        %vm6412 = vmor %vm6410, %vm6411
        %v6413 = vsel %vm6412, %v6405, %v6409
        %v6414 = vand.u32 2147483647, %v5977
        %vm6415 = vcmp.eq.f32.partialorder %v6414, 8.507059e+37
        %v6416 = vand.u32 %v5977, 2147483648
        %v6417 = vor.u32 1.1754944e-38, %v6416
        %v6418 = vsel %vm6415, %v6417, %v6413
        %v6419 = vmul.f32 1.0, %v6418
        %v6420 = vrcp.pop %v5978
        %v6421 = vmul.f32 %v5978, %v6420
        %v6422 = vsub.f32 1.0, %v6421
        %v6423 = vmul.f32 %v6420, %v6422
        %v6424 = vadd.f32 %v6420, %v6423
        %vm6425 = vweird.f32 %v5978
        %vm6426 = vweird.f32 %v6420
        %vm6427 = vmor %vm6425, %vm6426
        %v6428 = vsel %vm6427, %v6420, %v6424
        %v6429 = vand.u32 2147483647, %v5978
        %vm6430 = vcmp.eq.f32.partialorder %v6429, 8.507059e+37
        %v6431 = vand.u32 %v5978, 2147483648
        %v6432 = vor.u32 1.1754944e-38, %v6431
        %v6433 = vsel %vm6430, %v6432, %v6428
        %v6434 = vmul.f32 1.0, %v6433
        %v6435 = vrcp.pop %v5979
        %v6436 = vmul.f32 %v5979, %v6435
        %v6437 = vsub.f32 1.0, %v6436
        %v6438 = vmul.f32 %v6435, %v6437
        %v6439 = vadd.f32 %v6435, %v6438
        %vm6440 = vweird.f32 %v5979
        %vm6441 = vweird.f32 %v6435
        %vm6442 = vmor %vm6440, %vm6441
        %v6443 = vsel %vm6442, %v6435, %v6439
        %v6444 = vand.u32 2147483647, %v5979
        %vm6445 = vcmp.eq.f32.partialorder %v6444, 8.507059e+37
        %v6446 = vand.u32 %v5979, 2147483648
        %v6447 = vor.u32 1.1754944e-38, %v6446
        %v6448 = vsel %vm6445, %v6447, %v6443
        %v6449 = vmul.f32 1.0, %v6448
        %v6450 = vrcp.pop %v5980
        %v6451 = vmul.f32 %v5980, %v6450
        %v6452 = vsub.f32 1.0, %v6451
        %v6453 = vmul.f32 %v6450, %v6452
        %v6454 = vadd.f32 %v6450, %v6453
        %vm6455 = vweird.f32 %v5980
        %vm6456 = vweird.f32 %v6450
        %vm6457 = vmor %vm6455, %vm6456
        %v6458 = vsel %vm6457, %v6450, %v6454
        %v6459 = vand.u32 2147483647, %v5980
        %vm6460 = vcmp.eq.f32.partialorder %v6459, 8.507059e+37
        %v6461 = vand.u32 %v5980, 2147483648
        %v6462 = vor.u32 1.1754944e-38, %v6461
        %v6463 = vsel %vm6460, %v6462, %v6458
        %v6464 = vmul.f32 1.0, %v6463
        %v6465 = vrcp.pop %v5981
        %v6466 = vmul.f32 %v5981, %v6465
        %v6467 = vsub.f32 1.0, %v6466
        %v6468 = vmul.f32 %v6465, %v6467
        %v6469 = vadd.f32 %v6465, %v6468
        %vm6470 = vweird.f32 %v5981
        %vm6471 = vweird.f32 %v6465
        %vm6472 = vmor %vm6470, %vm6471
        %v6473 = vsel %vm6472, %v6465, %v6469
        %v6474 = vand.u32 2147483647, %v5981
        %vm6475 = vcmp.eq.f32.partialorder %v6474, 8.507059e+37
        %v6476 = vand.u32 %v5981, 2147483648
        %v6477 = vor.u32 1.1754944e-38, %v6476
        %v6478 = vsel %vm6475, %v6477, %v6473
        %v6479 = vmul.f32 1.0, %v6478
        %v6480 = vrcp.pop %v5982
        %v6481 = vmul.f32 %v5982, %v6480
        %v6482 = vsub.f32 1.0, %v6481
        %v6483 = vmul.f32 %v6480, %v6482
        %v6484 = vadd.f32 %v6480, %v6483
        %vm6485 = vweird.f32 %v5982
        %vm6486 = vweird.f32 %v6480
        %vm6487 = vmor %vm6485, %vm6486
        %v6488 = vsel %vm6487, %v6480, %v6484
        %v6489 = vand.u32 2147483647, %v5982
        %vm6490 = vcmp.eq.f32.partialorder %v6489, 8.507059e+37
        %v6491 = vand.u32 %v5982, 2147483648
        %v6492 = vor.u32 1.1754944e-38, %v6491
        %v6493 = vsel %vm6490, %v6492, %v6488
        %v6494 = vmul.f32 1.0, %v6493
        %v6495 = vrcp.pop %v5983
        %v6496 = vmul.f32 %v5983, %v6495
        %v6497 = vsub.f32 1.0, %v6496
        %v6498 = vmul.f32 %v6495, %v6497
        %v6499 = vadd.f32 %v6495, %v6498
        %vm6500 = vweird.f32 %v5983
        %vm6501 = vweird.f32 %v6495
        %vm6502 = vmor %vm6500, %vm6501
        %v6503 = vsel %vm6502, %v6495, %v6499
        %v6504 = vand.u32 2147483647, %v5983
        %vm6505 = vcmp.eq.f32.partialorder %v6504, 8.507059e+37
        %v6506 = vand.u32 %v5983, 2147483648
        %v6507 = vor.u32 1.1754944e-38, %v6506
        %v6508 = vsel %vm6505, %v6507, %v6503
        %v6509 = vmul.f32 1.0, %v6508
        %v6510 = vrcp.pop %v5984
        %v6511 = vmul.f32 %v5984, %v6510
        %v6512 = vsub.f32 1.0, %v6511
        %v6513 = vmul.f32 %v6510, %v6512
        %v6514 = vadd.f32 %v6510, %v6513
        %vm6515 = vweird.f32 %v5984
        %vm6516 = vweird.f32 %v6510
        %vm6517 = vmor %vm6515, %vm6516
        %v6518 = vsel %vm6517, %v6510, %v6514
        %v6519 = vand.u32 2147483647, %v5984
        %vm6520 = vcmp.eq.f32.partialorder %v6519, 8.507059e+37
        %v6521 = vand.u32 %v5984, 2147483648
        %v6522 = vor.u32 1.1754944e-38, %v6521
        %v6523 = vsel %vm6520, %v6522, %v6518
        %v6524 = vmul.f32 1.0, %v6523
        %v6525 = vrcp.pop %v5985
        %v6526 = vmul.f32 %v5985, %v6525
        %v6527 = vsub.f32 1.0, %v6526
        %v6528 = vmul.f32 %v6525, %v6527
        %v6529 = vadd.f32 %v6525, %v6528
        %vm6530 = vweird.f32 %v5985
        %vm6531 = vweird.f32 %v6525
        %vm6532 = vmor %vm6530, %vm6531
        %v6533 = vsel %vm6532, %v6525, %v6529
        %v6534 = vand.u32 2147483647, %v5985
        %vm6535 = vcmp.eq.f32.partialorder %v6534, 8.507059e+37
        %v6536 = vand.u32 %v5985, 2147483648
        %v6537 = vor.u32 1.1754944e-38, %v6536
        %v6538 = vsel %vm6535, %v6537, %v6533
        %v6539 = vmul.f32 1.0, %v6538
        %v6540 = vrcp.pop %v5986
        %v6541 = vmul.f32 %v5986, %v6540
        %v6542 = vsub.f32 1.0, %v6541
        %v6543 = vmul.f32 %v6540, %v6542
        %v6544 = vadd.f32 %v6540, %v6543
        %vm6545 = vweird.f32 %v5986
        %vm6546 = vweird.f32 %v6540
        %vm6547 = vmor %vm6545, %vm6546
        %v6548 = vsel %vm6547, %v6540, %v6544
        %v6549 = vand.u32 2147483647, %v5986
        %vm6550 = vcmp.eq.f32.partialorder %v6549, 8.507059e+37
        %v6551 = vand.u32 %v5986, 2147483648
        %v6552 = vor.u32 1.1754944e-38, %v6551
        %v6553 = vsel %vm6550, %v6552, %v6548
        %v6554 = vmul.f32 1.0, %v6553
        %v6555 = vrcp.pop %v5987
        %v6556 = vmul.f32 %v5987, %v6555
        %v6557 = vsub.f32 1.0, %v6556
        %v6558 = vmul.f32 %v6555, %v6557
        %v6559 = vadd.f32 %v6555, %v6558
        %vm6560 = vweird.f32 %v5987
        %vm6561 = vweird.f32 %v6555
        %vm6562 = vmor %vm6560, %vm6561
        %v6563 = vsel %vm6562, %v6555, %v6559
        %v6564 = vand.u32 2147483647, %v5987
        %vm6565 = vcmp.eq.f32.partialorder %v6564, 8.507059e+37
        %v6566 = vand.u32 %v5987, 2147483648
        %v6567 = vor.u32 1.1754944e-38, %v6566
        %v6568 = vsel %vm6565, %v6567, %v6563
        %v6569 = vmul.f32 1.0, %v6568
        %v6570 = vrcp.pop %v5988
        %v6571 = vmul.f32 %v5988, %v6570
        %v6572 = vsub.f32 1.0, %v6571
        %v6573 = vmul.f32 %v6570, %v6572
        %v6574 = vadd.f32 %v6570, %v6573
        %vm6575 = vweird.f32 %v5988
        %vm6576 = vweird.f32 %v6570
        %vm6577 = vmor %vm6575, %vm6576
        %v6578 = vsel %vm6577, %v6570, %v6574
        %v6579 = vand.u32 2147483647, %v5988
        %vm6580 = vcmp.eq.f32.partialorder %v6579, 8.507059e+37
        %v6581 = vand.u32 %v5988, 2147483648
        %v6582 = vor.u32 1.1754944e-38, %v6581
        %v6583 = vsel %vm6580, %v6582, %v6578
        %v6584 = vmul.f32 1.0, %v6583
        %v6585 = vrcp.pop %v5989
        %v6586 = vmul.f32 %v5989, %v6585
        %v6587 = vsub.f32 1.0, %v6586
        %v6588 = vmul.f32 %v6585, %v6587
        %v6589 = vadd.f32 %v6585, %v6588
        %vm6590 = vweird.f32 %v5989
        %vm6591 = vweird.f32 %v6585
        %vm6592 = vmor %vm6590, %vm6591
        %v6593 = vsel %vm6592, %v6585, %v6589
        %v6594 = vand.u32 2147483647, %v5989
        %vm6595 = vcmp.eq.f32.partialorder %v6594, 8.507059e+37
        %v6596 = vand.u32 %v5989, 2147483648
        %v6597 = vor.u32 1.1754944e-38, %v6596
        %v6598 = vsel %vm6595, %v6597, %v6593
        %v6599 = vmul.f32 1.0, %v6598
        %v6600 = vrcp.pop %v5990
        %v6601 = vmul.f32 %v5990, %v6600
        %v6602 = vsub.f32 1.0, %v6601
        %v6603 = vmul.f32 %v6600, %v6602
        %v6604 = vadd.f32 %v6600, %v6603
        %vm6605 = vweird.f32 %v5990
        %vm6606 = vweird.f32 %v6600
        %vm6607 = vmor %vm6605, %vm6606
        %v6608 = vsel %vm6607, %v6600, %v6604
        %v6609 = vand.u32 2147483647, %v5990
        %vm6610 = vcmp.eq.f32.partialorder %v6609, 8.507059e+37
        %v6611 = vand.u32 %v5990, 2147483648
        %v6612 = vor.u32 1.1754944e-38, %v6611
        %v6613 = vsel %vm6610, %v6612, %v6608
        %v6614 = vmul.f32 1.0, %v6613
        %v6615 = vrcp.pop %v5991
        %v6616 = vmul.f32 %v5991, %v6615
        %v6617 = vsub.f32 1.0, %v6616
        %v6618 = vmul.f32 %v6615, %v6617
        %v6619 = vadd.f32 %v6615, %v6618
        %vm6620 = vweird.f32 %v5991
        %vm6621 = vweird.f32 %v6615
        %vm6622 = vmor %vm6620, %vm6621
        %v6623 = vsel %vm6622, %v6615, %v6619
        %v6624 = vand.u32 2147483647, %v5991
        %vm6625 = vcmp.eq.f32.partialorder %v6624, 8.507059e+37
        %v6626 = vand.u32 %v5991, 2147483648
        %v6627 = vor.u32 1.1754944e-38, %v6626
        %v6628 = vsel %vm6625, %v6627, %v6623
        %v6629 = vmul.f32 1.0, %v6628
        %v6630 = vrcp.pop %v5992
        %v6631 = vmul.f32 %v5992, %v6630
        %v6632 = vsub.f32 1.0, %v6631
        %v6633 = vmul.f32 %v6630, %v6632
        %v6634 = vadd.f32 %v6630, %v6633
        %vm6635 = vweird.f32 %v5992
        %vm6636 = vweird.f32 %v6630
        %vm6637 = vmor %vm6635, %vm6636
        %v6638 = vsel %vm6637, %v6630, %v6634
        %v6639 = vand.u32 2147483647, %v5992
        %vm6640 = vcmp.eq.f32.partialorder %v6639, 8.507059e+37
        %v6641 = vand.u32 %v5992, 2147483648
        %v6642 = vor.u32 1.1754944e-38, %v6641
        %v6643 = vsel %vm6640, %v6642, %v6638
        %v6644 = vmul.f32 1.0, %v6643
        %v6645 = vrcp.pop %v5993
        %v6646 = vmul.f32 %v5993, %v6645
        %v6647 = vsub.f32 1.0, %v6646
        %v6648 = vmul.f32 %v6645, %v6647
        %v6649 = vadd.f32 %v6645, %v6648
        %vm6650 = vweird.f32 %v5993
        %vm6651 = vweird.f32 %v6645
        %vm6652 = vmor %vm6650, %vm6651
        %v6653 = vsel %vm6652, %v6645, %v6649
        %v6654 = vand.u32 2147483647, %v5993
        %vm6655 = vcmp.eq.f32.partialorder %v6654, 8.507059e+37
        %v6656 = vand.u32 %v5993, 2147483648
        %v6657 = vor.u32 1.1754944e-38, %v6656
        %v6658 = vsel %vm6655, %v6657, %v6653
        %v6659 = vmul.f32 1.0, %v6658
        %v6660 = vrcp.pop %v5994
        %v6661 = vmul.f32 %v5994, %v6660
        %v6662 = vsub.f32 1.0, %v6661
        %v6663 = vmul.f32 %v6660, %v6662
        %v6664 = vadd.f32 %v6660, %v6663
        %vm6665 = vweird.f32 %v5994
        %vm6666 = vweird.f32 %v6660
        %vm6667 = vmor %vm6665, %vm6666
        %v6668 = vsel %vm6667, %v6660, %v6664
        %v6669 = vand.u32 2147483647, %v5994
        %vm6670 = vcmp.eq.f32.partialorder %v6669, 8.507059e+37
        %v6671 = vand.u32 %v5994, 2147483648
        %v6672 = vor.u32 1.1754944e-38, %v6671
        %v6673 = vsel %vm6670, %v6672, %v6668
        %v6674 = vmul.f32 1.0, %v6673
        %v6675 = vrcp.pop %v5995
        %v6676 = vmul.f32 %v5995, %v6675
        %v6677 = vsub.f32 1.0, %v6676
        %v6678 = vmul.f32 %v6675, %v6677
        %v6679 = vadd.f32 %v6675, %v6678
        %vm6680 = vweird.f32 %v5995
        %vm6681 = vweird.f32 %v6675
        %vm6682 = vmor %vm6680, %vm6681
        %v6683 = vsel %vm6682, %v6675, %v6679
        %v6684 = vand.u32 2147483647, %v5995
        %vm6685 = vcmp.eq.f32.partialorder %v6684, 8.507059e+37
        %v6686 = vand.u32 %v5995, 2147483648
        %v6687 = vor.u32 1.1754944e-38, %v6686
        %v6688 = vsel %vm6685, %v6687, %v6683
        %v6689 = vmul.f32 1.0, %v6688
        %v6690 = vrcp.pop %v5996
        %v6691 = vmul.f32 %v5996, %v6690
        %v6692 = vsub.f32 1.0, %v6691
        %v6693 = vmul.f32 %v6690, %v6692
        %v6694 = vadd.f32 %v6690, %v6693
        %vm6695 = vweird.f32 %v5996
        %vm6696 = vweird.f32 %v6690
        %vm6697 = vmor %vm6695, %vm6696
        %v6698 = vsel %vm6697, %v6690, %v6694
        %v6699 = vand.u32 2147483647, %v5996
        %vm6700 = vcmp.eq.f32.partialorder %v6699, 8.507059e+37
        %v6701 = vand.u32 %v5996, 2147483648
        %v6702 = vor.u32 1.1754944e-38, %v6701
        %v6703 = vsel %vm6700, %v6702, %v6698
        %v6704 = vmul.f32 1.0, %v6703
        %v6705 = vrcp.pop %v5997
        %v6706 = vmul.f32 %v5997, %v6705
        %v6707 = vsub.f32 1.0, %v6706
        %v6708 = vmul.f32 %v6705, %v6707
        %v6709 = vadd.f32 %v6705, %v6708
        %vm6710 = vweird.f32 %v5997
        %vm6711 = vweird.f32 %v6705
        %vm6712 = vmor %vm6710, %vm6711
        %v6713 = vsel %vm6712, %v6705, %v6709
        %v6714 = vand.u32 2147483647, %v5997
        %vm6715 = vcmp.eq.f32.partialorder %v6714, 8.507059e+37
        %v6716 = vand.u32 %v5997, 2147483648
        %v6717 = vor.u32 1.1754944e-38, %v6716
        %v6718 = vsel %vm6715, %v6717, %v6713
        %v6719 = vmul.f32 1.0, %v6718
        %v6720 = vrcp.pop %v5998
        %v6721 = vmul.f32 %v5998, %v6720
        %v6722 = vsub.f32 1.0, %v6721
        %v6723 = vmul.f32 %v6720, %v6722
        %v6724 = vadd.f32 %v6720, %v6723
        %vm6725 = vweird.f32 %v5998
        %vm6726 = vweird.f32 %v6720
        %vm6727 = vmor %vm6725, %vm6726
        %v6728 = vsel %vm6727, %v6720, %v6724
        %v6729 = vand.u32 2147483647, %v5998
        %vm6730 = vcmp.eq.f32.partialorder %v6729, 8.507059e+37
        %v6731 = vand.u32 %v5998, 2147483648
        %v6732 = vor.u32 1.1754944e-38, %v6731
        %v6733 = vsel %vm6730, %v6732, %v6728
        %v6734 = vmul.f32 1.0, %v6733
        %v6735 = vrcp.pop %v5999
        %v6736 = vmul.f32 %v5999, %v6735
        %v6737 = vsub.f32 1.0, %v6736
        %v6738 = vmul.f32 %v6735, %v6737
        %v6739 = vadd.f32 %v6735, %v6738
        %vm6740 = vweird.f32 %v5999
        %vm6741 = vweird.f32 %v6735
        %vm6742 = vmor %vm6740, %vm6741
        %v6743 = vsel %vm6742, %v6735, %v6739
        %v6744 = vand.u32 2147483647, %v5999
        %vm6745 = vcmp.eq.f32.partialorder %v6744, 8.507059e+37
        %v6746 = vand.u32 %v5999, 2147483648
        %v6747 = vor.u32 1.1754944e-38, %v6746
        %v6748 = vsel %vm6745, %v6747, %v6743
        %v6749 = vmul.f32 1.0, %v6748
        %v6750 = vrcp.pop %v6000
        %v6751 = vmul.f32 %v6000, %v6750
        %v6752 = vsub.f32 1.0, %v6751
        %v6753 = vmul.f32 %v6750, %v6752
        %v6754 = vadd.f32 %v6750, %v6753
        %vm6755 = vweird.f32 %v6000
        %vm6756 = vweird.f32 %v6750
        %vm6757 = vmor %vm6755, %vm6756
        %v6758 = vsel %vm6757, %v6750, %v6754
        %v6759 = vand.u32 2147483647, %v6000
        %vm6760 = vcmp.eq.f32.partialorder %v6759, 8.507059e+37
        %v6761 = vand.u32 %v6000, 2147483648
        %v6762 = vor.u32 1.1754944e-38, %v6761
        %v6763 = vsel %vm6760, %v6762, %v6758
        %v6764 = vmul.f32 1.0, %v6763
        %v6765 = vrcp.pop %v6001
        %v6766 = vmul.f32 %v6001, %v6765
        %v6767 = vsub.f32 1.0, %v6766
        %v6768 = vmul.f32 %v6765, %v6767
        %v6769 = vadd.f32 %v6765, %v6768
        %vm6770 = vweird.f32 %v6001
        %vm6771 = vweird.f32 %v6765
        %vm6772 = vmor %vm6770, %vm6771
        %v6773 = vsel %vm6772, %v6765, %v6769
        %v6774 = vand.u32 2147483647, %v6001
        %vm6775 = vcmp.eq.f32.partialorder %v6774, 8.507059e+37
        %v6776 = vand.u32 %v6001, 2147483648
        %v6777 = vor.u32 1.1754944e-38, %v6776
        %v6778 = vsel %vm6775, %v6777, %v6773
        %v6779 = vmul.f32 1.0, %v6778
        %v6780 = vrcp.pop %v6002
        %v6781 = vmul.f32 %v6002, %v6780
        %v6782 = vsub.f32 1.0, %v6781
        %v6783 = vmul.f32 %v6780, %v6782
        %v6784 = vadd.f32 %v6780, %v6783
        %vm6785 = vweird.f32 %v6002
        %vm6786 = vweird.f32 %v6780
        %vm6787 = vmor %vm6785, %vm6786
        %v6788 = vsel %vm6787, %v6780, %v6784
        %v6789 = vand.u32 2147483647, %v6002
        %vm6790 = vcmp.eq.f32.partialorder %v6789, 8.507059e+37
        %v6791 = vand.u32 %v6002, 2147483648
        %v6792 = vor.u32 1.1754944e-38, %v6791
        %v6793 = vsel %vm6790, %v6792, %v6788
        %v6794 = vmul.f32 1.0, %v6793
        %v6795 = vrcp.pop %v6003
        %v6796 = vmul.f32 %v6003, %v6795
        %v6797 = vsub.f32 1.0, %v6796
        %v6798 = vmul.f32 %v6795, %v6797
        %v6799 = vadd.f32 %v6795, %v6798
        %vm6800 = vweird.f32 %v6003
        %vm6801 = vweird.f32 %v6795
        %vm6802 = vmor %vm6800, %vm6801
        %v6803 = vsel %vm6802, %v6795, %v6799
        %v6804 = vand.u32 2147483647, %v6003
        %vm6805 = vcmp.eq.f32.partialorder %v6804, 8.507059e+37
        %v6806 = vand.u32 %v6003, 2147483648
        %v6807 = vor.u32 1.1754944e-38, %v6806
        %v6808 = vsel %vm6805, %v6807, %v6803
        %v6809 = vmul.f32 1.0, %v6808
        %v6810 = vrcp.pop %v6004
        %v6811 = vmul.f32 %v6004, %v6810
        %v6812 = vsub.f32 1.0, %v6811
        %v6813 = vmul.f32 %v6810, %v6812
        %v6814 = vadd.f32 %v6810, %v6813
        %vm6815 = vweird.f32 %v6004
        %vm6816 = vweird.f32 %v6810
        %vm6817 = vmor %vm6815, %vm6816
        %v6818 = vsel %vm6817, %v6810, %v6814
        %v6819 = vand.u32 2147483647, %v6004
        %vm6820 = vcmp.eq.f32.partialorder %v6819, 8.507059e+37
        %v6821 = vand.u32 %v6004, 2147483648
        %v6822 = vor.u32 1.1754944e-38, %v6821
        %v6823 = vsel %vm6820, %v6822, %v6818
        %v6824 = vmul.f32 1.0, %v6823
        %v6825 = vrcp.pop %v6005
        %v6826 = vmul.f32 %v6005, %v6825
        %v6827 = vsub.f32 1.0, %v6826
        %v6828 = vmul.f32 %v6825, %v6827
        %v6829 = vadd.f32 %v6825, %v6828
        %vm6830 = vweird.f32 %v6005
        %vm6831 = vweird.f32 %v6825
        %vm6832 = vmor %vm6830, %vm6831
        %v6833 = vsel %vm6832, %v6825, %v6829
        %v6834 = vand.u32 2147483647, %v6005
        %vm6835 = vcmp.eq.f32.partialorder %v6834, 8.507059e+37
        %v6836 = vand.u32 %v6005, 2147483648
        %v6837 = vor.u32 1.1754944e-38, %v6836
        %v6838 = vsel %vm6835, %v6837, %v6833
        %v6839 = vmul.f32 1.0, %v6838
        %v6840 = vrcp.pop %v6006
        %v6841 = vmul.f32 %v6006, %v6840
        %v6842 = vsub.f32 1.0, %v6841
        %v6843 = vmul.f32 %v6840, %v6842
        %v6844 = vadd.f32 %v6840, %v6843
        %vm6845 = vweird.f32 %v6006
        %vm6846 = vweird.f32 %v6840
        %vm6847 = vmor %vm6845, %vm6846
        %v6848 = vsel %vm6847, %v6840, %v6844
        %v6849 = vand.u32 2147483647, %v6006
        %vm6850 = vcmp.eq.f32.partialorder %v6849, 8.507059e+37
        %v6851 = vand.u32 %v6006, 2147483648
        %v6852 = vor.u32 1.1754944e-38, %v6851
        %v6853 = vsel %vm6850, %v6852, %v6848
        %v6854 = vmul.f32 1.0, %v6853
        %v6855 = vrcp.pop %v6007
        %v6856 = vmul.f32 %v6007, %v6855
        %v6857 = vsub.f32 1.0, %v6856
        %v6858 = vmul.f32 %v6855, %v6857
        %v6859 = vadd.f32 %v6855, %v6858
        %vm6860 = vweird.f32 %v6007
        %vm6861 = vweird.f32 %v6855
        %vm6862 = vmor %vm6860, %vm6861
        %v6863 = vsel %vm6862, %v6855, %v6859
        %v6864 = vand.u32 2147483647, %v6007
        %vm6865 = vcmp.eq.f32.partialorder %v6864, 8.507059e+37
        %v6866 = vand.u32 %v6007, 2147483648
        %v6867 = vor.u32 1.1754944e-38, %v6866
        %v6868 = vsel %vm6865, %v6867, %v6863
        %v6869 = vmul.f32 1.0, %v6868
        %v6870 = vrcp.pop %v6008
        %v6871 = vmul.f32 %v6008, %v6870
        %v6872 = vsub.f32 1.0, %v6871
        %v6873 = vmul.f32 %v6870, %v6872
        %v6874 = vadd.f32 %v6870, %v6873
        %vm6875 = vweird.f32 %v6008
        %vm6876 = vweird.f32 %v6870
        %vm6877 = vmor %vm6875, %vm6876
        %v6878 = vsel %vm6877, %v6870, %v6874
        %v6879 = vand.u32 2147483647, %v6008
        %vm6880 = vcmp.eq.f32.partialorder %v6879, 8.507059e+37
        %v6881 = vand.u32 %v6008, 2147483648
        %v6882 = vor.u32 1.1754944e-38, %v6881
        %v6883 = vsel %vm6880, %v6882, %v6878
        %v6884 = vmul.f32 1.0, %v6883
        %v6885 = vrcp.pop %v6009
        %v6886 = vmul.f32 %v6009, %v6885
        %v6887 = vsub.f32 1.0, %v6886
        %v6888 = vmul.f32 %v6885, %v6887
        %v6889 = vadd.f32 %v6885, %v6888
        %vm6890 = vweird.f32 %v6009
        %vm6891 = vweird.f32 %v6885
        %vm6892 = vmor %vm6890, %vm6891
        %v6893 = vsel %vm6892, %v6885, %v6889
        %v6894 = vand.u32 2147483647, %v6009
        %vm6895 = vcmp.eq.f32.partialorder %v6894, 8.507059e+37
        %v6896 = vand.u32 %v6009, 2147483648
        %v6897 = vor.u32 1.1754944e-38, %v6896
        %v6898 = vsel %vm6895, %v6897, %v6893
        %v6899 = vmul.f32 1.0, %v6898
        %v6900 = vrcp.pop %v6010
        %v6901 = vmul.f32 %v6010, %v6900
        %v6902 = vsub.f32 1.0, %v6901
        %v6903 = vmul.f32 %v6900, %v6902
        %v6904 = vadd.f32 %v6900, %v6903
        %vm6905 = vweird.f32 %v6010
        %vm6906 = vweird.f32 %v6900
        %vm6907 = vmor %vm6905, %vm6906
        %v6908 = vsel %vm6907, %v6900, %v6904
        %v6909 = vand.u32 2147483647, %v6010
        %vm6910 = vcmp.eq.f32.partialorder %v6909, 8.507059e+37
        %v6911 = vand.u32 %v6010, 2147483648
        %v6912 = vor.u32 1.1754944e-38, %v6911
        %v6913 = vsel %vm6910, %v6912, %v6908
        %v6914 = vmul.f32 1.0, %v6913
        %v6915 = vrcp.pop %v6011
        %v6916 = vmul.f32 %v6011, %v6915
        %v6917 = vsub.f32 1.0, %v6916
        %v6918 = vmul.f32 %v6915, %v6917
        %v6919 = vadd.f32 %v6915, %v6918
        %vm6920 = vweird.f32 %v6011
        %vm6921 = vweird.f32 %v6915
        %vm6922 = vmor %vm6920, %vm6921
        %v6923 = vsel %vm6922, %v6915, %v6919
        %v6924 = vand.u32 2147483647, %v6011
        %vm6925 = vcmp.eq.f32.partialorder %v6924, 8.507059e+37
        %v6926 = vand.u32 %v6011, 2147483648
        %v6927 = vor.u32 1.1754944e-38, %v6926
        %v6928 = vsel %vm6925, %v6927, %v6923
        %v6929 = vmul.f32 1.0, %v6928
        %v6930 = vrcp.pop %v6012
        %v6931 = vmul.f32 %v6012, %v6930
        %v6932 = vsub.f32 1.0, %v6931
        %v6933 = vmul.f32 %v6930, %v6932
        %v6934 = vadd.f32 %v6930, %v6933
        %vm6935 = vweird.f32 %v6012
        %vm6936 = vweird.f32 %v6930
        %vm6937 = vmor %vm6935, %vm6936
        %v6938 = vsel %vm6937, %v6930, %v6934
        %v6939 = vand.u32 2147483647, %v6012
        %vm6940 = vcmp.eq.f32.partialorder %v6939, 8.507059e+37
        %v6941 = vand.u32 %v6012, 2147483648
        %v6942 = vor.u32 1.1754944e-38, %v6941
        %v6943 = vsel %vm6940, %v6942, %v6938
        %v6944 = vmul.f32 1.0, %v6943
        %v6945 = vrcp.pop %v6013
        %v6946 = vmul.f32 %v6013, %v6945
        %v6947 = vsub.f32 1.0, %v6946
        %v6948 = vmul.f32 %v6945, %v6947
        %v6949 = vadd.f32 %v6945, %v6948
        %vm6950 = vweird.f32 %v6013
        %vm6951 = vweird.f32 %v6945
        %vm6952 = vmor %vm6950, %vm6951
        %v6953 = vsel %vm6952, %v6945, %v6949
        %v6954 = vand.u32 2147483647, %v6013
        %vm6955 = vcmp.eq.f32.partialorder %v6954, 8.507059e+37
        %v6956 = vand.u32 %v6013, 2147483648
        %v6957 = vor.u32 1.1754944e-38, %v6956
        %v6958 = vsel %vm6955, %v6957, %v6953
        %v6959 = vmul.f32 1.0, %v6958
        %v6960 = vrcp.pop %v6014
        %v6961 = vmul.f32 %v6014, %v6960
        %v6962 = vsub.f32 1.0, %v6961
        %v6963 = vmul.f32 %v6960, %v6962
        %v6964 = vadd.f32 %v6960, %v6963
        %vm6965 = vweird.f32 %v6014
        %vm6966 = vweird.f32 %v6960
        %vm6967 = vmor %vm6965, %vm6966
        %v6968 = vsel %vm6967, %v6960, %v6964
        %v6969 = vand.u32 2147483647, %v6014
        %vm6970 = vcmp.eq.f32.partialorder %v6969, 8.507059e+37
        %v6971 = vand.u32 %v6014, 2147483648
        %v6972 = vor.u32 1.1754944e-38, %v6971
        %v6973 = vsel %vm6970, %v6972, %v6968
        %v6974 = vmul.f32 1.0, %v6973
        %v6975 = vpack.c.bf16 %v6044, %v6029
        %v6976 = vpack.c.bf16 %v6074, %v6059
        %v6977 = vpack.c.bf16 %v6104, %v6089
        %v6978 = vpack.c.bf16 %v6134, %v6119
        %v6979 = vpack.c.bf16 %v6164, %v6149
        %v6980 = vpack.c.bf16 %v6194, %v6179
        %v6981 = vpack.c.bf16 %v6224, %v6209
        %v6982 = vpack.c.bf16 %v6254, %v6239
        %v6983 = vpack.c.bf16 %v6284, %v6269
        %v6984 = vpack.c.bf16 %v6314, %v6299
        %v6985 = vpack.c.bf16 %v6344, %v6329
        %v6986 = vpack.c.bf16 %v6374, %v6359
        %v6987 = vpack.c.bf16 %v6404, %v6389
        %v6988 = vpack.c.bf16 %v6434, %v6419
        %v6989 = vpack.c.bf16 %v6464, %v6449
        %v6990 = vpack.c.bf16 %v6494, %v6479
        %v6991 = vpack.c.bf16 %v6524, %v6509
        %v6992 = vpack.c.bf16 %v6554, %v6539
        %v6993 = vpack.c.bf16 %v6584, %v6569
        %v6994 = vpack.c.bf16 %v6614, %v6599
        %v6995 = vpack.c.bf16 %v6644, %v6629
        %v6996 = vpack.c.bf16 %v6674, %v6659
        %v6997 = vpack.c.bf16 %v6704, %v6689
        %v6998 = vpack.c.bf16 %v6734, %v6719
        %v6999 = vpack.c.bf16 %v6764, %v6749
        %v7000 = vpack.c.bf16 %v6794, %v6779
        %v7001 = vpack.c.bf16 %v6824, %v6809
        %v7002 = vpack.c.bf16 %v6854, %v6839
        %v7003 = vpack.c.bf16 %v6884, %v6869
        %v7004 = vpack.c.bf16 %v6914, %v6899
        %v7005 = vpack.c.bf16 %v6944, %v6929
        %v7006 = vpack.c.bf16 %v6974, %v6959
        %7007 = vst [vmem:[%s781] sm:$0xff] %v6975
        %7008 = vst [vmem:[%s781 + $0x8] sm:$0xff] %v6976
        %7009 = vst [vmem:[%s781 + $0x10] sm:$0xff] %v6977
        %7010 = vst [vmem:[%s781 + $0x18] sm:$0xff] %v6978
        %7011 = vst [vmem:[%s781 + $0x20] sm:$0xff] %v6979
        %7012 = vst [vmem:[%s781 + $0x28] sm:$0xff] %v6980
        %7013 = vst [vmem:[%s781 + $0x30] sm:$0xff] %v6981
        %7014 = vst [vmem:[%s781 + $0x38] sm:$0xff] %v6982
        %7015 = vst [vmem:[%s781 + $0x40] sm:$0xff] %v6983
        %7016 = vst [vmem:[%s781 + $0x48] sm:$0xff] %v6984
        %7017 = vst [vmem:[%s781 + $0x50] sm:$0xff] %v6985
        %7018 = vst [vmem:[%s781 + $0x58] sm:$0xff] %v6986
        %7019 = vst [vmem:[%s781 + $0x60] sm:$0xff] %v6987
        %7020 = vst [vmem:[%s781 + $0x68] sm:$0xff] %v6988
        %7021 = vst [vmem:[%s781 + $0x70] sm:$0xff] %v6989
        %7022 = vst [vmem:[%s781 + $0x78] sm:$0xff] %v6990
        %7023 = vst [vmem:[%s781 + $0x80] sm:$0xff] %v6991
        %7024 = vst [vmem:[%s781 + $0x88] sm:$0xff] %v6992
        %7025 = vst [vmem:[%s781 + $0x90] sm:$0xff] %v6993
        %7026 = vst [vmem:[%s781 + $0x98] sm:$0xff] %v6994
        %7027 = vst [vmem:[%s781 + $0xa0] sm:$0xff] %v6995
        %7028 = vst [vmem:[%s781 + $0xa8] sm:$0xff] %v6996
        %7029 = vst [vmem:[%s781 + $0xb0] sm:$0xff] %v6997
        %7030 = vst [vmem:[%s781 + $0xb8] sm:$0xff] %v6998
        %7031 = vst [vmem:[%s781 + $0xc0] sm:$0xff] %v6999
        %7032 = vst [vmem:[%s781 + $0xc8] sm:$0xff] %v7000
        %7033 = vst [vmem:[%s781 + $0xd0] sm:$0xff] %v7001
        %7034 = vst [vmem:[%s781 + $0xd8] sm:$0xff] %v7002
        %7035 = vst [vmem:[%s781 + $0xe0] sm:$0xff] %v7003
        %7036 = vst [vmem:[%s781 + $0xe8] sm:$0xff] %v7004
        %7037 = vst [vmem:[%s781 + $0xf0] sm:$0xff] %v7005
        %7038 = vst [vmem:[%s781 + $0xf8] sm:$0xff] %v7006
        %s7039 = sand.u32 %s438, 1
        %s7040 = scalar_lea.sflag [#allocation4], %s7039
        %s7041 = sand.u32 %s438, 1
        %s7042 = smul.addr %s7041, 256
        %s7043 = scalar_lea.vmem [#allocation19], %s7042
        %s7044 = smul.u32 32, %s42
        %p7045 = scmp.lt.s32.totalorder %s7044, 63
        %s7046 = scalar_select %p7045, %s7044, 63
        %s7047 = smul.addr %s7046, 8
        %s7048 = scalar_lea.vmem %s19, %s7047
        // Predicated region
        $region133: #{vae_forward.1} parent=91 // pred_check
          %p7049 = pneg %p448
        $region134: #{vae_forward.1} parent=91 // pred_check_branch
          %7051 = sbr.rel (%p7049) target = $region136
        $region135: #{vae_forward.1} parent=91 // pred_region
          %s7052 = smul.u32 32, %s42
          %7054 = vsyncadd %s7040, 0
          %s7055 = smul.addr %s7052, 2
          %s7056 = smul.addr %s7055, 4
          %s7057 = scalar_lea.hbm %s18, %s7056
          %s7058 = sshll.u32 %s7043, 4
          %s7059 = int_to_ptr.vmem [resolvable:$true] %s7058
          %s7060 = sshll.u32 %s7057, 4
          %s7061 = int_to_ptr.hbm [resolvable:$true] %s7060
          %7066 = dma.vmem_to_hbm [thread:$0]  %s7059, 4096, %s7061, %s7040, 128, 128, 8
        $region136: #{vae_forward.1} parent=91 // pred_fallthru
          _
        // Predicated region
        $region137: #{vae_forward.1} parent=91 // pred_check
          %p7067 = pneg %p474
        $region138: #{vae_forward.1} parent=91 // pred_check_branch
          %7069 = sbr.rel (%p7067) target = $region140
        $region139: #{vae_forward.1} parent=91 // pred_region
          %s7070 = smul.u32 32, %s42
        $region140: #{vae_forward.1} parent=91 // pred_fallthru
          _
      $region92: #{vae_forward.1} parent=5 // pred_fallthru
        _
      %p7071 = scmp.le.s32.totalorder 2, %s37
      // Predicated region
      $region141: #{vae_forward.1} parent=5 // pred_check
        %p7072 = pneg %p7071
      $region142: #{vae_forward.1} parent=5 // pred_check_branch
        %7074 = sbr.rel (%p7072) target = $region144
      $region143: #{vae_forward.1} parent=5 // pred_region
        %s7075 = ssub.s32 %s37, 2
        // Predicated region
        $region145: #{vae_forward.1} parent=143 // pred_check
          %p7076 = pneg %p454
        $region146: #{vae_forward.1} parent=143 // pred_check_branch
          %7078 = sbr.rel (%p7076) target = $region148
        $region147: #{vae_forward.1} parent=143 // pred_region
          %s7079 = sand.u32 %s439, 1
          %s7080 = scalar_lea.sflag [#allocation4], %s7079
          %s7081 = sand.u32 %s439, 1
          %s7082 = smul.addr %s7081, 256
          %s7083 = scalar_lea.vmem [#allocation19], %s7082
          %7085 = dma.done %s7080, 4096
        $region148: #{vae_forward.1} parent=143 // pred_fallthru
          _
        // Predicated region
        $region149: #{vae_forward.1} parent=143 // pred_check
          %p7086 = pneg %p480
        $region150: #{vae_forward.1} parent=143 // pred_check_branch
          %7088 = sbr.rel (%p7086) target = $region152
        $region151: #{vae_forward.1} parent=143 // pred_region
          %s7089 = smul.u32 32, %s43
          %p7090 = scmp.lt.s32.totalorder %s7089, 63
          %s7091 = scalar_select %p7090, %s7089, 63
          %s7092 = smul.addr %s7091, 8
          %s7093 = scalar_lea.vmem %s19, %s7092
        $region152: #{vae_forward.1} parent=143 // pred_fallthru
          _
      $region144: #{vae_forward.1} parent=5 // pred_fallthru
        _
    $region6: #{vae_forward.1} parent=1 // loop_footer
      %s41 = sadd.s32 1, %s37
    $region7: #{vae_forward.1} parent=1 // loop_footer_branch
      %36 = sbr.rel target = $region3
    $region8: #{vae_forward.1} parent=1 // loop_exit
      _
    %7094 = vsyncpa [#allocation3], 1
    %s7095 = scalar_lea.sflag [#allocation3], 1
    %7096 = vsyncpa %s7095, 1
    %7097 = vsyncpa [#allocation6], 1
    %7098 = vsyncpa [#allocation9], 1
    %7099 = vsyncpa [#allocation12], 1
    %7100 = vsyncpa [#allocation15], 1
    %7101 = vsyncpa [#allocation18], 1
    %7102 = vsyncpa [#allocation4], 1
    %s7103 = scalar_lea.sflag [#allocation4], 1
    %7104 = vsyncpa %s7103, 1

</llo_original>
